<compile_context>
chip_gen: v7x
topology: tpu7x:2x2x1
jax: 0.10.0
libtpu: 0.0.40
codegen_flags: <defaults>
</compile_context>

<pallas_src>
import jax
import jax.numpy as jnp
from jax.experimental import pallas as pl
from jax.experimental.pallas import tpu as pltpu


# ----------------------------------------------------------------------------
# Fused Pallas kernel: one batch element per grid step.
# ----------------------------------------------------------------------------
def _decoder_block_kernel(
    low_ref, gate_ref, old_ref,            # data inputs
    wc_ref, bc_ref,                        # 1x1 compress conv
    w1_ref, s1_ref, b1_ref,                # 3x3 conv 96->96 + folded BN
    w2_ref, s2_ref, b2_ref,                # 3x3 conv 96->32 + folded BN
    wp_ref, bp_ref,                        # 1x1 prediction conv
    feats_ref, cosal_ref,                  # outputs
    m_pad, h1_pad,                         # VMEM scratch (zero-padded maps)
):
    H, W = low_ref.shape[1], low_ref.shape[2]
    cin = low_ref.shape[3]
    hw = H * W
    taps = [(dy, dx) for dy in range(3) for dx in range(3)]

    # Zero the padded scratch buffers: the 1-pixel border must be zero to
    # emulate conv zero-padding; the interior is overwritten below.
    m_pad[...] = jnp.zeros_like(m_pad)
    h1_pad[...] = jnp.zeros_like(h1_pad)

    x = low_ref[0].reshape(hw, cin)          # (HW, Cin)
    gate = gate_ref[0].reshape(hw, 2)        # (HW, 2): [cosal, SISM]
    old = old_ref[0].reshape(hw, 32)         # (HW, 32)

    # ---- cmprs: 1x1 conv.  K = Cin is tiny -> VPU broadcast-FMAs (no MXU) ----
    wc = wc_ref[...]                         # (Cin, 32)
    if cin <= 16:
        cmprs = bc_ref[...]                  # (1, 32), broadcasts up
        for c in range(cin):
            cmprs = cmprs + x[:, c:c + 1] * wc[c:c + 1, :]
    else:
        cmprs = jnp.dot(x, wc, preferred_element_type=jnp.float32) + bc_ref[...]

    # ---- gated concat -> zero-padded `merged` kept entirely in VMEM ----
    # Single value-level concat + ONE full-lane store into the padded interior
    # (avoids three lane-offset masked stores).
    merged = jnp.concatenate(
        [cmprs * gate[:, 0:1], cmprs * gate[:, 1:2], old], axis=-1)   # (HW, 96)
    m_pad[pl.ds(1, H), pl.ds(1, W), :] = merged.reshape(H, W, 96)

    # ---- merge_conv[0..2]: 3x3 conv 96->96 as 9 shifted matmuls + BN + ReLU --
    acc1 = None
    for t, (dy, dx) in enumerate(taps):
        patch = m_pad[pl.ds(dy, H), pl.ds(dx, W), :].reshape(hw, 96)
        part = jnp.dot(patch, w1_ref[t], preferred_element_type=jnp.float32)
        acc1 = part if acc1 is None else acc1 + part
    h1 = jnp.maximum(acc1 * s1_ref[...] + b1_ref[...], 0.0)
    h1_pad[pl.ds(1, H), pl.ds(1, W), :] = h1.reshape(H, W, 96)

    # ---- merge_conv[3..5]: 3x3 conv 96->32 as 9 shifted matmuls + BN + ReLU --
    acc2 = None
    for t, (dy, dx) in enumerate(taps):
        patch = h1_pad[pl.ds(dy, H), pl.ds(dx, W), :].reshape(hw, 96)
        part = jnp.dot(patch, w2_ref[t], preferred_element_type=jnp.float32)
        acc2 = part if acc2 is None else acc2 + part
    feats2 = jnp.maximum(acc2 * s2_ref[...] + b2_ref[...], 0.0)       # (HW, 32)
    feats_ref[0] = feats2.reshape(H, W, 32)

    # ---- prediction head: 1x1 conv 32->1 (lane reduce, XLU) + sigmoid ----
    logits = jnp.sum(feats2 * wp_ref[...], axis=-1, keepdims=True) + bp_ref[...]
    cosal_ref[0] = (1.0 / (1.0 + jnp.exp(-logits))).reshape(H, W, 1)


def fused_decoder_block(low, gate, old, wc, bc, w1, s1, b1, w2, s2, b2, wp, bp):
    """low:(N,H,W,Cin), gate:(N,H,W,2), old:(N,H,W,32) -> (N,H,W,32),(N,H,W,1)."""
    N, H, W, cin = low.shape

    def img_spec(c):
        return pl.BlockSpec((1, H, W, c), lambda n: (n, 0, 0, 0))

    def full_spec(a):
        nd = a.ndim
        return pl.BlockSpec(a.shape, lambda n, _nd=nd: (0,) * _nd)

    out_shape = (jax.ShapeDtypeStruct((N, H, W, 32), jnp.float32),
                 jax.ShapeDtypeStruct((N, H, W, 1), jnp.float32))

    return pl.pallas_call(
        _decoder_block_kernel,
        out_shape=out_shape,
        grid=(N,),
        in_specs=[
            img_spec(cin), img_spec(2), img_spec(32),
            full_spec(wc), full_spec(bc),
            full_spec(w1), full_spec(s1), full_spec(b1),
            full_spec(w2), full_spec(s2), full_spec(b2),
            full_spec(wp), full_spec(bp),
        ],
        out_specs=(img_spec(32), img_spec(1)),
        scratch_shapes=[
            pltpu.VMEM((H + 2, W + 2, 96), jnp.float32),   # padded `merged`
            pltpu.VMEM((H + 2, W + 2, 96), jnp.float32),   # padded `h1`
        ],
        compiler_params=pltpu.CompilerParams(
            dimension_semantics=("parallel",),
        ),
    )(low, gate, old, wc, bc, w1, s1, b1, w2, s2, b2, wp, bp)


# ----------------------------------------------------------------------------
# Host-side glue: bilinear resize (align_corners=True), weight/BN folding.
# ----------------------------------------------------------------------------
def resize_align_corners_nhwc(x, H_out, W_out):
    """Bilinear resize of an NHWC tensor matching F.interpolate(align_corners=True)."""
    _, H, W, _ = x.shape
    if (H, W) == (H_out, W_out):
        return x
    ys = jnp.linspace(0.0, float(H - 1), H_out)
    xs = jnp.linspace(0.0, float(W - 1), W_out)
    y0 = jnp.floor(ys).astype(jnp.int32)
    x0 = jnp.floor(xs).astype(jnp.int32)
    y1 = jnp.minimum(y0 + 1, H - 1)
    x1 = jnp.minimum(x0 + 1, W - 1)
    wy = (ys - y0.astype(jnp.float32))[None, :, None, None]
    wx = (xs - x0.astype(jnp.float32))[None, None, :, None]
    rows = x[:, y0, :, :] * (1.0 - wy) + x[:, y1, :, :] * wy
    out = rows[:, :, x0, :] * (1.0 - wx) + rows[:, :, x1, :] * wx
    return out


def fold_bn(conv_b, gamma, beta, mean, var, eps=1e-5):
    scale = gamma / jnp.sqrt(var + eps)
    bias = beta + (conv_b - mean) * scale
    return scale[None, :], bias[None, :]


def conv_w_to_taps(w_oihw):
    """(Cout, Cin, 3, 3) -> (9, Cin, Cout); tap index = dy*3 + dx."""
    cout, cin = w_oihw.shape[0], w_oihw.shape[1]
    return jnp.transpose(w_oihw, (2, 3, 1, 0)).reshape(9, cin, cout)


def init_params(key, in_channel):
    ks = jax.random.split(key, 8)
    p = {}
    p["cmprs_w"] = 0.1 * jax.random.normal(ks[0], (32, in_channel, 1, 1), jnp.float32)
    p["cmprs_b"] = 0.05 * jax.random.normal(ks[1], (32,), jnp.float32)
    p["mc1_w"] = 0.05 * jax.random.normal(ks[2], (96, 96, 3, 3), jnp.float32)
    p["mc1_b"] = 0.05 * jax.random.normal(ks[3], (96,), jnp.float32)
    p["bn1_gamma"] = jnp.ones((96,), jnp.float32)
    p["bn1_beta"] = jnp.zeros((96,), jnp.float32)
    p["bn1_mean"] = jnp.zeros((96,), jnp.float32)
    p["bn1_var"] = jnp.ones((96,), jnp.float32)
    p["mc2_w"] = 0.05 * jax.random.normal(ks[4], (32, 96, 3, 3), jnp.float32)
    p["mc2_b"] = 0.05 * jax.random.normal(ks[5], (32,), jnp.float32)
    p["bn2_gamma"] = jnp.ones((32,), jnp.float32)
    p["bn2_beta"] = jnp.zeros((32,), jnp.float32)
    p["bn2_mean"] = jnp.zeros((32,), jnp.float32)
    p["bn2_var"] = jnp.ones((32,), jnp.float32)
    p["pred_w"] = 0.1 * jax.random.normal(ks[6], (1, 32, 1, 1), jnp.float32)
    p["pred_b"] = 0.05 * jax.random.normal(ks[7], (1,), jnp.float32)
    return p


# ----------------------------------------------------------------------------
# Decoder_Block forward (NCHW in / NCHW out, matching the PyTorch module).
# ----------------------------------------------------------------------------
@jax.jit
def decoder_block_forward(params, low_level_feats, cosal_map, SISMs, old_feats):
    """BatchNorm is applied in eval mode (running statistics) folded into conv
    scale/bias.  # TODO(synk): training-mode batch statistics not replicated.
    """
    N, cin, H, W = low_level_feats.shape

    # NCHW -> NHWC at the boundary; resize runs channels-last.
    low = jnp.transpose(low_level_feats, (0, 2, 3, 1))
    cos = resize_align_corners_nhwc(jnp.transpose(cosal_map, (0, 2, 3, 1)), H, W)
    sis = resize_align_corners_nhwc(jnp.transpose(SISMs, (0, 2, 3, 1)), H, W)
    old = resize_align_corners_nhwc(jnp.transpose(old_feats, (0, 2, 3, 1)), H, W)
    gate = jnp.concatenate([cos, sis], axis=-1)                  # (N, H, W, 2)

    wc = params["cmprs_w"].reshape(32, cin).T                    # (Cin, 32)
    bc = params["cmprs_b"][None, :]                              # (1, 32)
    w1 = conv_w_to_taps(params["mc1_w"])                         # (9, 96, 96)
    s1, b1 = fold_bn(params["mc1_b"], params["bn1_gamma"], params["bn1_beta"],
                     params["bn1_mean"], params["bn1_var"])
    w2 = conv_w_to_taps(params["mc2_w"])                         # (9, 96, 32)
    s2, b2 = fold_bn(params["mc2_b"], params["bn2_gamma"], params["bn2_beta"],
                     params["bn2_mean"], params["bn2_var"])
    wp = params["pred_w"].reshape(1, 32)                         # (1, 32)
    bp = params["pred_b"][None, :]                               # (1, 1)

    feats_nhwc, cosal_nhwc = fused_decoder_block(
        low, gate, old, wc, bc, w1, s1, b1, w2, s2, b2, wp, bp)

    new_feats = jnp.transpose(feats_nhwc, (0, 3, 1, 2))          # (N, 32, H, W)
    new_cosal_map = jnp.transpose(cosal_nhwc, (0, 3, 1, 2))      # (N, 1, H, W)
    return new_feats, new_cosal_map


# ----------------------------------------------------------------------------
# Pure-JAX reference (uses lax.conv directly on the original OIHW weights).
# ----------------------------------------------------------------------------
def _bn_eval(x, gamma, beta, mean, var, eps=1e-5):
    return (x - mean) / jnp.sqrt(var + eps) * gamma + beta


def reference_forward(params, low_level_feats, cosal_map, SISMs, old_feats):
    N, cin, H, W = low_level_feats.shape
    low = jnp.transpose(low_level_feats, (0, 2, 3, 1))
    cos = resize_align_corners_nhwc(jnp.transpose(cosal_map, (0, 2, 3, 1)), H, W)
    sis = resize_align_corners_nhwc(jnp.transpose(SISMs, (0, 2, 3, 1)), H, W)
    old = resize_align_corners_nhwc(jnp.transpose(old_feats, (0, 2, 3, 1)), H, W)

    wc = params["cmprs_w"].reshape(32, cin)
    cmprs = jnp.einsum("nhwc,oc->nhwo", low, wc) + params["cmprs_b"]
    merged = jnp.concatenate([cmprs * cos, cmprs * sis, old], axis=-1)

    def conv3x3(x, w_oihw, b):
        w = jnp.transpose(w_oihw, (2, 3, 1, 0))      # HWIO
        y = jax.lax.conv_general_dilated(
            x, w, window_strides=(1, 1), padding="SAME",
            dimension_numbers=("NHWC", "HWIO", "NHWC"))
        return y + b

    h1 = jax.nn.relu(_bn_eval(conv3x3(merged, params["mc1_w"], params["mc1_b"]),
                              params["bn1_gamma"], params["bn1_beta"],
                              params["bn1_mean"], params["bn1_var"]))
    h2 = jax.nn.relu(_bn_eval(conv3x3(h1, params["mc2_w"], params["mc2_b"]),
                              params["bn2_gamma"], params["bn2_beta"],
                              params["bn2_mean"], params["bn2_var"]))
    wp = params["pred_w"].reshape(1, 32)
    logits = jnp.einsum("nhwc,oc->nhwo", h2, wp) + params["pred_b"]
    pred = jax.nn.sigmoid(logits)
    return jnp.transpose(h2, (0, 3, 1, 2)), jnp.transpose(pred, (0, 3, 1, 2))


# ----------------------------------------------------------------------------
if __name__ == "__main__":
    key = jax.random.PRNGKey(0)
    k_in, k_cos, k_sism, k_old, k_par = jax.random.split(key, 5)

    N, in_channel, H, W = 2, 4, 16, 16
    low_level_feats = jax.random.normal(k_in, (N, in_channel, H, W), jnp.float32)
    cosal_map = jax.nn.sigmoid(jax.random.normal(k_cos, (N, 1, 8, 8), jnp.float32))
    SISMs = jax.nn.sigmoid(jax.random.normal(k_sism, (N, 1, 8, 8), jnp.float32))
    old_feats = jax.nn.relu(jax.random.normal(k_old, (N, 32, 8, 8), jnp.float32))

    params = init_params(k_par, in_channel)

    new_feats, new_cosal_map = decoder_block_forward(
        params, low_level_feats, cosal_map, SISMs, old_feats)
    jax.block_until_ready((new_feats, new_cosal_map))

    assert new_feats.shape == (N, 32, H, W), new_feats.shape
    assert new_cosal_map.shape == (N, 1, H, W), new_cosal_map.shape
    assert bool(jnp.all(jnp.isfinite(new_feats)))
    assert bool(jnp.all((new_cosal_map >= 0.0) & (new_cosal_map <= 1.0)))

    # Loose-tolerance check against a pure-JAX / lax.conv reference (tolerance
    # allows for MXU reduced-precision f32 matmul passes on either side).
    ref_feats, ref_cosal = reference_forward(
        params, low_level_feats, cosal_map, SISMs, old_feats)
    jax.block_until_ready((ref_feats, ref_cosal))
    assert bool(jnp.all(jnp.abs(new_feats - ref_feats)
                        <= 5e-2 + 5e-2 * jnp.abs(ref_feats)))
    assert bool(jnp.all(jnp.abs(new_cosal_map - ref_cosal)
                        <= 5e-2 + 5e-2 * jnp.abs(ref_cosal)))

    print("KERNEL_OK")
</pallas_src>

<mosaic_0001>
module attributes {stable_mosaic.version = 11 : i64} {
  func.func @_decoder_block_kernel(%arg0: i32, %arg1: memref<1x16x16x4xf32, #tpu.memory_space<vmem>>, %arg2: memref<1x16x16x2xf32, #tpu.memory_space<vmem>>, %arg3: memref<1x16x16x32xf32, #tpu.memory_space<vmem>>, %arg4: memref<4x32xf32, #tpu.memory_space<vmem>>, %arg5: memref<1x32xf32, #tpu.memory_space<vmem>>, %arg6: memref<9x96x96xf32, #tpu.memory_space<vmem>>, %arg7: memref<1x96xf32, #tpu.memory_space<vmem>>, %arg8: memref<1x96xf32, #tpu.memory_space<vmem>>, %arg9: memref<9x96x32xf32, #tpu.memory_space<vmem>>, %arg10: memref<1x32xf32, #tpu.memory_space<vmem>>, %arg11: memref<1x32xf32, #tpu.memory_space<vmem>>, %arg12: memref<1x32xf32, #tpu.memory_space<vmem>>, %arg13: memref<1x1xf32, #tpu.memory_space<vmem>>, %arg14: memref<1x16x16x32xf32, #tpu.memory_space<vmem>>, %arg15: memref<1x16x16x1xf32, #tpu.memory_space<vmem>>, %arg16: memref<18x18x96xf32, #tpu.memory_space<vmem>>, %arg17: memref<18x18x96xf32, #tpu.memory_space<vmem>>) attributes {dimension_semantics = [#tpu.dimension_semantics<parallel>], iteration_bounds = array<i64: 2>, scalar_prefetch = 0 : i64, scratch_operands = 2 : i64, tpu.core_type = #tpu.core_type<tc>, window_params = [{transform_indices = @transform_0, window_bounds = array<i64: 1, 16, 16, 4>}, {transform_indices = @transform_1, window_bounds = array<i64: 1, 16, 16, 2>}, {transform_indices = @transform_2, window_bounds = array<i64: 1, 16, 16, 32>}, {pipeline_mode = #tpu.pipeline_mode<synchronous>, transform_indices = @transform_3, window_bounds = array<i64: 4, 32>}, {pipeline_mode = #tpu.pipeline_mode<synchronous>, transform_indices = @transform_4, window_bounds = array<i64: 1, 32>}, {pipeline_mode = #tpu.pipeline_mode<synchronous>, transform_indices = @transform_5, window_bounds = array<i64: 9, 96, 96>}, {pipeline_mode = #tpu.pipeline_mode<synchronous>, transform_indices = @transform_6, window_bounds = array<i64: 1, 96>}, {pipeline_mode = #tpu.pipeline_mode<synchronous>, transform_indices = @transform_7, window_bounds = array<i64: 1, 96>}, {pipeline_mode = #tpu.pipeline_mode<synchronous>, transform_indices = @transform_8, window_bounds = array<i64: 9, 96, 32>}, {pipeline_mode = #tpu.pipeline_mode<synchronous>, transform_indices = @transform_9, window_bounds = array<i64: 1, 32>}, {pipeline_mode = #tpu.pipeline_mode<synchronous>, transform_indices = @transform_10, window_bounds = array<i64: 1, 32>}, {pipeline_mode = #tpu.pipeline_mode<synchronous>, transform_indices = @transform_11, window_bounds = array<i64: 1, 32>}, {pipeline_mode = #tpu.pipeline_mode<synchronous>, transform_indices = @transform_12, window_bounds = array<i64: 1, 1>}, {transform_indices = @transform_13, window_bounds = array<i64: 1, 16, 16, 32>}, {transform_indices = @transform_14, window_bounds = array<i64: 1, 16, 16, 1>}]} {
    %cst = arith.constant 0.000000e+00 : f32
    %0 = vector.broadcast %cst : f32 to vector<18x18x96xf32>
    %c0 = arith.constant 0 : index
    %c0_0 = arith.constant 0 : index
    %c0_1 = arith.constant 0 : index
    %1 = vector.load %arg16[%c0, %c0_0, %c0_1] : memref<18x18x96xf32, #tpu.memory_space<vmem>>, vector<18x18x96xf32>
    tpu.vector_store %arg16[%c0, %c0_0, %c0_1], %0 {strides = array<i32>} : memref<18x18x96xf32, #tpu.memory_space<vmem>>, vector<18x18x96xf32>,
    %cst_2 = arith.constant 0.000000e+00 : f32
    %2 = vector.broadcast %cst_2 : f32 to vector<18x18x96xf32>
    %c0_3 = arith.constant 0 : index
    %c0_4 = arith.constant 0 : index
    %c0_5 = arith.constant 0 : index
    %3 = vector.load %arg17[%c0_3, %c0_4, %c0_5] : memref<18x18x96xf32, #tpu.memory_space<vmem>>, vector<18x18x96xf32>
    tpu.vector_store %arg17[%c0_3, %c0_4, %c0_5], %2 {strides = array<i32>} : memref<18x18x96xf32, #tpu.memory_space<vmem>>, vector<18x18x96xf32>,
    %c0_6 = arith.constant 0 : index
    %c0_7 = arith.constant 0 : index
    %c0_8 = arith.constant 0 : index
    %c0_9 = arith.constant 0 : index
    %4 = vector.load %arg1[%c0_6, %c0_7, %c0_8, %c0_9] : memref<1x16x16x4xf32, #tpu.memory_space<vmem>>, vector<1x16x16x4xf32>
    %5 = vector.shape_cast %4 : vector<1x16x16x4xf32> to vector<16x16x4xf32>
    %6 = vector.shape_cast %5 : vector<16x16x4xf32> to vector<256x4xf32>
    %c0_10 = arith.constant 0 : index
    %c0_11 = arith.constant 0 : index
    %c0_12 = arith.constant 0 : index
    %c0_13 = arith.constant 0 : index
    %7 = vector.load %arg2[%c0_10, %c0_11, %c0_12, %c0_13] : memref<1x16x16x2xf32, #tpu.memory_space<vmem>>, vector<1x16x16x2xf32>
    %8 = vector.shape_cast %7 : vector<1x16x16x2xf32> to vector<16x16x2xf32>
    %9 = vector.shape_cast %8 : vector<16x16x2xf32> to vector<256x2xf32>
    %c0_14 = arith.constant 0 : index
    %c0_15 = arith.constant 0 : index
    %c0_16 = arith.constant 0 : index
    %c0_17 = arith.constant 0 : index
    %10 = vector.load %arg3[%c0_14, %c0_15, %c0_16, %c0_17] : memref<1x16x16x32xf32, #tpu.memory_space<vmem>>, vector<1x16x16x32xf32>
    %11 = vector.shape_cast %10 : vector<1x16x16x32xf32> to vector<16x16x32xf32>
    %12 = vector.shape_cast %11 : vector<16x16x32xf32> to vector<256x32xf32>
    %c0_18 = arith.constant 0 : index
    %c0_19 = arith.constant 0 : index
    %13 = vector.load %arg4[%c0_18, %c0_19] : memref<4x32xf32, #tpu.memory_space<vmem>>, vector<4x32xf32>
    %c0_20 = arith.constant 0 : index
    %c0_21 = arith.constant 0 : index
    %14 = vector.load %arg5[%c0_20, %c0_21] : memref<1x32xf32, #tpu.memory_space<vmem>>, vector<1x32xf32>
    %15 = vector.extract_strided_slice %6 {offsets = [0, 0], sizes = [256, 1], strides = [1, 1]} : vector<256x4xf32> to vector<256x1xf32>
    %16 = vector.extract_strided_slice %13 {offsets = [0, 0], sizes = [1, 32], strides = [1, 1]} : vector<4x32xf32> to vector<1x32xf32>
    %17 = vector.broadcast %15 : vector<256x1xf32> to vector<256x32xf32>
    %18 = vector.broadcast %16 : vector<1x32xf32> to vector<256x32xf32>
    %19 = arith.mulf %17, %18 : vector<256x32xf32>
    %20 = vector.broadcast %14 : vector<1x32xf32> to vector<256x32xf32>
    %21 = arith.addf %20, %19 : vector<256x32xf32>
    %22 = vector.extract_strided_slice %6 {offsets = [0, 1], sizes = [256, 1], strides = [1, 1]} : vector<256x4xf32> to vector<256x1xf32>
    %23 = vector.extract_strided_slice %13 {offsets = [1, 0], sizes = [1, 32], strides = [1, 1]} : vector<4x32xf32> to vector<1x32xf32>
    %24 = vector.broadcast %22 : vector<256x1xf32> to vector<256x32xf32>
    %25 = vector.broadcast %23 : vector<1x32xf32> to vector<256x32xf32>
    %26 = arith.mulf %24, %25 : vector<256x32xf32>
    %27 = arith.addf %21, %26 : vector<256x32xf32>
    %28 = vector.extract_strided_slice %6 {offsets = [0, 2], sizes = [256, 1], strides = [1, 1]} : vector<256x4xf32> to vector<256x1xf32>
    %29 = vector.extract_strided_slice %13 {offsets = [2, 0], sizes = [1, 32], strides = [1, 1]} : vector<4x32xf32> to vector<1x32xf32>
    %30 = vector.broadcast %28 : vector<256x1xf32> to vector<256x32xf32>
    %31 = vector.broadcast %29 : vector<1x32xf32> to vector<256x32xf32>
    %32 = arith.mulf %30, %31 : vector<256x32xf32>
    %33 = arith.addf %27, %32 : vector<256x32xf32>
    %34 = vector.extract_strided_slice %6 {offsets = [0, 3], sizes = [256, 1], strides = [1, 1]} : vector<256x4xf32> to vector<256x1xf32>
    %35 = vector.extract_strided_slice %13 {offsets = [3, 0], sizes = [1, 32], strides = [1, 1]} : vector<4x32xf32> to vector<1x32xf32>
    %36 = vector.broadcast %34 : vector<256x1xf32> to vector<256x32xf32>
    %37 = vector.broadcast %35 : vector<1x32xf32> to vector<256x32xf32>
    %38 = arith.mulf %36, %37 : vector<256x32xf32>
    %39 = arith.addf %33, %38 : vector<256x32xf32>
    %40 = vector.extract_strided_slice %9 {offsets = [0, 0], sizes = [256, 1], strides = [1, 1]} : vector<256x2xf32> to vector<256x1xf32>
    %41 = vector.broadcast %40 : vector<256x1xf32> to vector<256x32xf32>
    %42 = arith.mulf %39, %41 : vector<256x32xf32>
    %43 = vector.extract_strided_slice %9 {offsets = [0, 1], sizes = [256, 1], strides = [1, 1]} : vector<256x2xf32> to vector<256x1xf32>
    %44 = vector.broadcast %43 : vector<256x1xf32> to vector<256x32xf32>
    %45 = arith.mulf %39, %44 : vector<256x32xf32>
    %46 = tpu.concatenate %42, %45, %12 in 1 : vector<256x32xf32>, vector<256x32xf32>, vector<256x32xf32> -> vector<256x96xf32>
    %47 = vector.shape_cast %46 : vector<256x96xf32> to vector<16x16x96xf32>
    %c1 = arith.constant 1 : index
    %c1_22 = arith.constant 1 : index
    %c0_23 = arith.constant 0 : index
    %48 = vector.load %arg16[%c1, %c1_22, %c0_23] : memref<18x18x96xf32, #tpu.memory_space<vmem>>, vector<16x16x96xf32>
    tpu.vector_store %arg16[%c1, %c1_22, %c0_23], %47 {strides = array<i32>} : memref<18x18x96xf32, #tpu.memory_space<vmem>>, vector<16x16x96xf32>,
    %c0_24 = arith.constant 0 : index
    %c0_25 = arith.constant 0 : index
    %c0_26 = arith.constant 0 : index
    %49 = vector.load %arg16[%c0_24, %c0_25, %c0_26] : memref<18x18x96xf32, #tpu.memory_space<vmem>>, vector<16x16x96xf32>
    %50 = vector.shape_cast %49 : vector<16x16x96xf32> to vector<256x96xf32>
    %c0_27 = arith.constant 0 : index
    %c0_28 = arith.constant 0 : index
    %c0_29 = arith.constant 0 : index
    %51 = vector.load %arg6[%c0_27, %c0_28, %c0_29] : memref<9x96x96xf32, #tpu.memory_space<vmem>>, vector<1x96x96xf32>
    %52 = vector.shape_cast %51 : vector<1x96x96xf32> to vector<96x96xf32>
    %cst_30 = arith.constant dense<0.000000e+00> : vector<256x96xf32>
    %53 = tpu.matmul %50, %52, %cst_30 {dimension_numbers = #tpu.dot_dimension_numbers<[1], [0], [0], [1], [0, 0, 1, 1], [], []>} : vector<256x96xf32>, vector<96x96xf32>, vector<256x96xf32> -> vector<256x96xf32>
    %c0_31 = arith.constant 0 : index
    %c1_32 = arith.constant 1 : index
    %c0_33 = arith.constant 0 : index
    %54 = vector.load %arg16[%c0_31, %c1_32, %c0_33] : memref<18x18x96xf32, #tpu.memory_space<vmem>>, vector<16x16x96xf32>
    %55 = vector.shape_cast %54 : vector<16x16x96xf32> to vector<256x96xf32>
    %c1_34 = arith.constant 1 : index
    %c0_35 = arith.constant 0 : index
    %c0_36 = arith.constant 0 : index
    %56 = vector.load %arg6[%c1_34, %c0_35, %c0_36] : memref<9x96x96xf32, #tpu.memory_space<vmem>>, vector<1x96x96xf32>
    %57 = vector.shape_cast %56 : vector<1x96x96xf32> to vector<96x96xf32>
    %cst_37 = arith.constant dense<0.000000e+00> : vector<256x96xf32>
    %58 = tpu.matmul %55, %57, %cst_37 {dimension_numbers = #tpu.dot_dimension_numbers<[1], [0], [0], [1], [0, 0, 1, 1], [], []>} : vector<256x96xf32>, vector<96x96xf32>, vector<256x96xf32> -> vector<256x96xf32>
    %59 = arith.addf %53, %58 : vector<256x96xf32>
    %c0_38 = arith.constant 0 : index
    %c2 = arith.constant 2 : index
    %c0_39 = arith.constant 0 : index
    %60 = vector.load %arg16[%c0_38, %c2, %c0_39] : memref<18x18x96xf32, #tpu.memory_space<vmem>>, vector<16x16x96xf32>
    %61 = vector.shape_cast %60 : vector<16x16x96xf32> to vector<256x96xf32>
    %c2_40 = arith.constant 2 : index
    %c0_41 = arith.constant 0 : index
    %c0_42 = arith.constant 0 : index
    %62 = vector.load %arg6[%c2_40, %c0_41, %c0_42] : memref<9x96x96xf32, #tpu.memory_space<vmem>>, vector<1x96x96xf32>
    %63 = vector.shape_cast %62 : vector<1x96x96xf32> to vector<96x96xf32>
    %cst_43 = arith.constant dense<0.000000e+00> : vector<256x96xf32>
    %64 = tpu.matmul %61, %63, %cst_43 {dimension_numbers = #tpu.dot_dimension_numbers<[1], [0], [0], [1], [0, 0, 1, 1], [], []>} : vector<256x96xf32>, vector<96x96xf32>, vector<256x96xf32> -> vector<256x96xf32>
    %65 = arith.addf %59, %64 : vector<256x96xf32>
    %c1_44 = arith.constant 1 : index
    %c0_45 = arith.constant 0 : index
    %c0_46 = arith.constant 0 : index
    %66 = vector.load %arg16[%c1_44, %c0_45, %c0_46] : memref<18x18x96xf32, #tpu.memory_space<vmem>>, vector<16x16x96xf32>
    %67 = vector.shape_cast %66 : vector<16x16x96xf32> to vector<256x96xf32>
    %c3 = arith.constant 3 : index
    %c0_47 = arith.constant 0 : index
    %c0_48 = arith.constant 0 : index
    %68 = vector.load %arg6[%c3, %c0_47, %c0_48] : memref<9x96x96xf32, #tpu.memory_space<vmem>>, vector<1x96x96xf32>
    %69 = vector.shape_cast %68 : vector<1x96x96xf32> to vector<96x96xf32>
    %cst_49 = arith.constant dense<0.000000e+00> : vector<256x96xf32>
    %70 = tpu.matmul %67, %69, %cst_49 {dimension_numbers = #tpu.dot_dimension_numbers<[1], [0], [0], [1], [0, 0, 1, 1], [], []>} : vector<256x96xf32>, vector<96x96xf32>, vector<256x96xf32> -> vector<256x96xf32>
    %71 = arith.addf %65, %70 : vector<256x96xf32>
    %c1_50 = arith.constant 1 : index
    %c1_51 = arith.constant 1 : index
    %c0_52 = arith.constant 0 : index
    %72 = vector.load %arg16[%c1_50, %c1_51, %c0_52] : memref<18x18x96xf32, #tpu.memory_space<vmem>>, vector<16x16x96xf32>
    %73 = vector.shape_cast %72 : vector<16x16x96xf32> to vector<256x96xf32>
    %c4 = arith.constant 4 : index
    %c0_53 = arith.constant 0 : index
    %c0_54 = arith.constant 0 : index
    %74 = vector.load %arg6[%c4, %c0_53, %c0_54] : memref<9x96x96xf32, #tpu.memory_space<vmem>>, vector<1x96x96xf32>
    %75 = vector.shape_cast %74 : vector<1x96x96xf32> to vector<96x96xf32>
    %cst_55 = arith.constant dense<0.000000e+00> : vector<256x96xf32>
    %76 = tpu.matmul %73, %75, %cst_55 {dimension_numbers = #tpu.dot_dimension_numbers<[1], [0], [0], [1], [0, 0, 1, 1], [], []>} : vector<256x96xf32>, vector<96x96xf32>, vector<256x96xf32> -> vector<256x96xf32>
    %77 = arith.addf %71, %76 : vector<256x96xf32>
    %c1_56 = arith.constant 1 : index
    %c2_57 = arith.constant 2 : index
    %c0_58 = arith.constant 0 : index
    %78 = vector.load %arg16[%c1_56, %c2_57, %c0_58] : memref<18x18x96xf32, #tpu.memory_space<vmem>>, vector<16x16x96xf32>
    %79 = vector.shape_cast %78 : vector<16x16x96xf32> to vector<256x96xf32>
    %c5 = arith.constant 5 : index
    %c0_59 = arith.constant 0 : index
    %c0_60 = arith.constant 0 : index
    %80 = vector.load %arg6[%c5, %c0_59, %c0_60] : memref<9x96x96xf32, #tpu.memory_space<vmem>>, vector<1x96x96xf32>
    %81 = vector.shape_cast %80 : vector<1x96x96xf32> to vector<96x96xf32>
    %cst_61 = arith.constant dense<0.000000e+00> : vector<256x96xf32>
    %82 = tpu.matmul %79, %81, %cst_61 {dimension_numbers = #tpu.dot_dimension_numbers<[1], [0], [0], [1], [0, 0, 1, 1], [], []>} : vector<256x96xf32>, vector<96x96xf32>, vector<256x96xf32> -> vector<256x96xf32>
    %83 = arith.addf %77, %82 : vector<256x96xf32>
    %c2_62 = arith.constant 2 : index
    %c0_63 = arith.constant 0 : index
    %c0_64 = arith.constant 0 : index
    %84 = vector.load %arg16[%c2_62, %c0_63, %c0_64] : memref<18x18x96xf32, #tpu.memory_space<vmem>>, vector<16x16x96xf32>
    %85 = vector.shape_cast %84 : vector<16x16x96xf32> to vector<256x96xf32>
    %c6 = arith.constant 6 : index
    %c0_65 = arith.constant 0 : index
    %c0_66 = arith.constant 0 : index
    %86 = vector.load %arg6[%c6, %c0_65, %c0_66] : memref<9x96x96xf32, #tpu.memory_space<vmem>>, vector<1x96x96xf32>
    %87 = vector.shape_cast %86 : vector<1x96x96xf32> to vector<96x96xf32>
    %cst_67 = arith.constant dense<0.000000e+00> : vector<256x96xf32>
    %88 = tpu.matmul %85, %87, %cst_67 {dimension_numbers = #tpu.dot_dimension_numbers<[1], [0], [0], [1], [0, 0, 1, 1], [], []>} : vector<256x96xf32>, vector<96x96xf32>, vector<256x96xf32> -> vector<256x96xf32>
    %89 = arith.addf %83, %88 : vector<256x96xf32>
    %c2_68 = arith.constant 2 : index
    %c1_69 = arith.constant 1 : index
    %c0_70 = arith.constant 0 : index
    %90 = vector.load %arg16[%c2_68, %c1_69, %c0_70] : memref<18x18x96xf32, #tpu.memory_space<vmem>>, vector<16x16x96xf32>
    %91 = vector.shape_cast %90 : vector<16x16x96xf32> to vector<256x96xf32>
    %c7 = arith.constant 7 : index
    %c0_71 = arith.constant 0 : index
    %c0_72 = arith.constant 0 : index
    %92 = vector.load %arg6[%c7, %c0_71, %c0_72] : memref<9x96x96xf32, #tpu.memory_space<vmem>>, vector<1x96x96xf32>
    %93 = vector.shape_cast %92 : vector<1x96x96xf32> to vector<96x96xf32>
    %cst_73 = arith.constant dense<0.000000e+00> : vector<256x96xf32>
    %94 = tpu.matmul %91, %93, %cst_73 {dimension_numbers = #tpu.dot_dimension_numbers<[1], [0], [0], [1], [0, 0, 1, 1], [], []>} : vector<256x96xf32>, vector<96x96xf32>, vector<256x96xf32> -> vector<256x96xf32>
    %95 = arith.addf %89, %94 : vector<256x96xf32>
    %c2_74 = arith.constant 2 : index
    %c2_75 = arith.constant 2 : index
    %c0_76 = arith.constant 0 : index
    %96 = vector.load %arg16[%c2_74, %c2_75, %c0_76] : memref<18x18x96xf32, #tpu.memory_space<vmem>>, vector<16x16x96xf32>
    %97 = vector.shape_cast %96 : vector<16x16x96xf32> to vector<256x96xf32>
    %c8 = arith.constant 8 : index
    %c0_77 = arith.constant 0 : index
    %c0_78 = arith.constant 0 : index
    %98 = vector.load %arg6[%c8, %c0_77, %c0_78] : memref<9x96x96xf32, #tpu.memory_space<vmem>>, vector<1x96x96xf32>
    %99 = vector.shape_cast %98 : vector<1x96x96xf32> to vector<96x96xf32>
    %cst_79 = arith.constant dense<0.000000e+00> : vector<256x96xf32>
    %100 = tpu.matmul %97, %99, %cst_79 {dimension_numbers = #tpu.dot_dimension_numbers<[1], [0], [0], [1], [0, 0, 1, 1], [], []>} : vector<256x96xf32>, vector<96x96xf32>, vector<256x96xf32> -> vector<256x96xf32>
    %101 = arith.addf %95, %100 : vector<256x96xf32>
    %c0_80 = arith.constant 0 : index
    %c0_81 = arith.constant 0 : index
    %102 = vector.load %arg7[%c0_80, %c0_81] : memref<1x96xf32, #tpu.memory_space<vmem>>, vector<1x96xf32>
    %103 = vector.broadcast %102 : vector<1x96xf32> to vector<256x96xf32>
    %104 = arith.mulf %101, %103 : vector<256x96xf32>
    %c0_82 = arith.constant 0 : index
    %c0_83 = arith.constant 0 : index
    %105 = vector.load %arg8[%c0_82, %c0_83] : memref<1x96xf32, #tpu.memory_space<vmem>>, vector<1x96xf32>
    %106 = vector.broadcast %105 : vector<1x96xf32> to vector<256x96xf32>
    %107 = arith.addf %104, %106 : vector<256x96xf32>
    %cst_84 = arith.constant 0.000000e+00 : f32
    %108 = vector.broadcast %cst_84 : f32 to vector<256x96xf32>
    %109 = arith.maximumf %107, %108 : vector<256x96xf32>
    %110 = vector.shape_cast %109 : vector<256x96xf32> to vector<16x16x96xf32>
    %c1_85 = arith.constant 1 : index
    %c1_86 = arith.constant 1 : index
    %c0_87 = arith.constant 0 : index
    %111 = vector.load %arg17[%c1_85, %c1_86, %c0_87] : memref<18x18x96xf32, #tpu.memory_space<vmem>>, vector<16x16x96xf32>
    tpu.vector_store %arg17[%c1_85, %c1_86, %c0_87], %110 {strides = array<i32>} : memref<18x18x96xf32, #tpu.memory_space<vmem>>, vector<16x16x96xf32>,
    %c0_88 = arith.constant 0 : index
    %c0_89 = arith.constant 0 : index
    %c0_90 = arith.constant 0 : index
    %112 = vector.load %arg17[%c0_88, %c0_89, %c0_90] : memref<18x18x96xf32, #tpu.memory_space<vmem>>, vector<16x16x96xf32>
    %113 = vector.shape_cast %112 : vector<16x16x96xf32> to vector<256x96xf32>
    %c0_91 = arith.constant 0 : index
    %c0_92 = arith.constant 0 : index
    %c0_93 = arith.constant 0 : index
    %114 = vector.load %arg9[%c0_91, %c0_92, %c0_93] : memref<9x96x32xf32, #tpu.memory_space<vmem>>, vector<1x96x32xf32>
    %115 = vector.shape_cast %114 : vector<1x96x32xf32> to vector<96x32xf32>
    %cst_94 = arith.constant dense<0.000000e+00> : vector<256x32xf32>
    %116 = tpu.matmul %113, %115, %cst_94 {dimension_numbers = #tpu.dot_dimension_numbers<[1], [0], [0], [1], [0, 0, 1, 1], [], []>} : vector<256x96xf32>, vector<96x32xf32>, vector<256x32xf32> -> vector<256x32xf32>
    %c0_95 = arith.constant 0 : index
    %c1_96 = arith.constant 1 : index
    %c0_97 = arith.constant 0 : index
    %117 = vector.load %arg17[%c0_95, %c1_96, %c0_97] : memref<18x18x96xf32, #tpu.memory_space<vmem>>, vector<16x16x96xf32>
    %118 = vector.shape_cast %117 : vector<16x16x96xf32> to vector<256x96xf32>
    %c1_98 = arith.constant 1 : index
    %c0_99 = arith.constant 0 : index
    %c0_100 = arith.constant 0 : index
    %119 = vector.load %arg9[%c1_98, %c0_99, %c0_100] : memref<9x96x32xf32, #tpu.memory_space<vmem>>, vector<1x96x32xf32>
    %120 = vector.shape_cast %119 : vector<1x96x32xf32> to vector<96x32xf32>
    %cst_101 = arith.constant dense<0.000000e+00> : vector<256x32xf32>
    %121 = tpu.matmul %118, %120, %cst_101 {dimension_numbers = #tpu.dot_dimension_numbers<[1], [0], [0], [1], [0, 0, 1, 1], [], []>} : vector<256x96xf32>, vector<96x32xf32>, vector<256x32xf32> -> vector<256x32xf32>
    %122 = arith.addf %116, %121 : vector<256x32xf32>
    %c0_102 = arith.constant 0 : index
    %c2_103 = arith.constant 2 : index
    %c0_104 = arith.constant 0 : index
    %123 = vector.load %arg17[%c0_102, %c2_103, %c0_104] : memref<18x18x96xf32, #tpu.memory_space<vmem>>, vector<16x16x96xf32>
    %124 = vector.shape_cast %123 : vector<16x16x96xf32> to vector<256x96xf32>
    %c2_105 = arith.constant 2 : index
    %c0_106 = arith.constant 0 : index
    %c0_107 = arith.constant 0 : index
    %125 = vector.load %arg9[%c2_105, %c0_106, %c0_107] : memref<9x96x32xf32, #tpu.memory_space<vmem>>, vector<1x96x32xf32>
    %126 = vector.shape_cast %125 : vector<1x96x32xf32> to vector<96x32xf32>
    %cst_108 = arith.constant dense<0.000000e+00> : vector<256x32xf32>
    %127 = tpu.matmul %124, %126, %cst_108 {dimension_numbers = #tpu.dot_dimension_numbers<[1], [0], [0], [1], [0, 0, 1, 1], [], []>} : vector<256x96xf32>, vector<96x32xf32>, vector<256x32xf32> -> vector<256x32xf32>
    %128 = arith.addf %122, %127 : vector<256x32xf32>
    %c1_109 = arith.constant 1 : index
    %c0_110 = arith.constant 0 : index
    %c0_111 = arith.constant 0 : index
    %129 = vector.load %arg17[%c1_109, %c0_110, %c0_111] : memref<18x18x96xf32, #tpu.memory_space<vmem>>, vector<16x16x96xf32>
    %130 = vector.shape_cast %129 : vector<16x16x96xf32> to vector<256x96xf32>
    %c3_112 = arith.constant 3 : index
    %c0_113 = arith.constant 0 : index
    %c0_114 = arith.constant 0 : index
    %131 = vector.load %arg9[%c3_112, %c0_113, %c0_114] : memref<9x96x32xf32, #tpu.memory_space<vmem>>, vector<1x96x32xf32>
    %132 = vector.shape_cast %131 : vector<1x96x32xf32> to vector<96x32xf32>
    %cst_115 = arith.constant dense<0.000000e+00> : vector<256x32xf32>
    %133 = tpu.matmul %130, %132, %cst_115 {dimension_numbers = #tpu.dot_dimension_numbers<[1], [0], [0], [1], [0, 0, 1, 1], [], []>} : vector<256x96xf32>, vector<96x32xf32>, vector<256x32xf32> -> vector<256x32xf32>
    %134 = arith.addf %128, %133 : vector<256x32xf32>
    %c1_116 = arith.constant 1 : index
    %c1_117 = arith.constant 1 : index
    %c0_118 = arith.constant 0 : index
    %135 = vector.load %arg17[%c1_116, %c1_117, %c0_118] : memref<18x18x96xf32, #tpu.memory_space<vmem>>, vector<16x16x96xf32>
    %136 = vector.shape_cast %135 : vector<16x16x96xf32> to vector<256x96xf32>
    %c4_119 = arith.constant 4 : index
    %c0_120 = arith.constant 0 : index
    %c0_121 = arith.constant 0 : index
    %137 = vector.load %arg9[%c4_119, %c0_120, %c0_121] : memref<9x96x32xf32, #tpu.memory_space<vmem>>, vector<1x96x32xf32>
    %138 = vector.shape_cast %137 : vector<1x96x32xf32> to vector<96x32xf32>
    %cst_122 = arith.constant dense<0.000000e+00> : vector<256x32xf32>
    %139 = tpu.matmul %136, %138, %cst_122 {dimension_numbers = #tpu.dot_dimension_numbers<[1], [0], [0], [1], [0, 0, 1, 1], [], []>} : vector<256x96xf32>, vector<96x32xf32>, vector<256x32xf32> -> vector<256x32xf32>
    %140 = arith.addf %134, %139 : vector<256x32xf32>
    %c1_123 = arith.constant 1 : index
    %c2_124 = arith.constant 2 : index
    %c0_125 = arith.constant 0 : index
    %141 = vector.load %arg17[%c1_123, %c2_124, %c0_125] : memref<18x18x96xf32, #tpu.memory_space<vmem>>, vector<16x16x96xf32>
    %142 = vector.shape_cast %141 : vector<16x16x96xf32> to vector<256x96xf32>
    %c5_126 = arith.constant 5 : index
    %c0_127 = arith.constant 0 : index
    %c0_128 = arith.constant 0 : index
    %143 = vector.load %arg9[%c5_126, %c0_127, %c0_128] : memref<9x96x32xf32, #tpu.memory_space<vmem>>, vector<1x96x32xf32>
    %144 = vector.shape_cast %143 : vector<1x96x32xf32> to vector<96x32xf32>
    %cst_129 = arith.constant dense<0.000000e+00> : vector<256x32xf32>
    %145 = tpu.matmul %142, %144, %cst_129 {dimension_numbers = #tpu.dot_dimension_numbers<[1], [0], [0], [1], [0, 0, 1, 1], [], []>} : vector<256x96xf32>, vector<96x32xf32>, vector<256x32xf32> -> vector<256x32xf32>
    %146 = arith.addf %140, %145 : vector<256x32xf32>
    %c2_130 = arith.constant 2 : index
    %c0_131 = arith.constant 0 : index
    %c0_132 = arith.constant 0 : index
    %147 = vector.load %arg17[%c2_130, %c0_131, %c0_132] : memref<18x18x96xf32, #tpu.memory_space<vmem>>, vector<16x16x96xf32>
    %148 = vector.shape_cast %147 : vector<16x16x96xf32> to vector<256x96xf32>
    %c6_133 = arith.constant 6 : index
    %c0_134 = arith.constant 0 : index
    %c0_135 = arith.constant 0 : index
    %149 = vector.load %arg9[%c6_133, %c0_134, %c0_135] : memref<9x96x32xf32, #tpu.memory_space<vmem>>, vector<1x96x32xf32>
    %150 = vector.shape_cast %149 : vector<1x96x32xf32> to vector<96x32xf32>
    %cst_136 = arith.constant dense<0.000000e+00> : vector<256x32xf32>
    %151 = tpu.matmul %148, %150, %cst_136 {dimension_numbers = #tpu.dot_dimension_numbers<[1], [0], [0], [1], [0, 0, 1, 1], [], []>} : vector<256x96xf32>, vector<96x32xf32>, vector<256x32xf32> -> vector<256x32xf32>
    %152 = arith.addf %146, %151 : vector<256x32xf32>
    %c2_137 = arith.constant 2 : index
    %c1_138 = arith.constant 1 : index
    %c0_139 = arith.constant 0 : index
    %153 = vector.load %arg17[%c2_137, %c1_138, %c0_139] : memref<18x18x96xf32, #tpu.memory_space<vmem>>, vector<16x16x96xf32>
    %154 = vector.shape_cast %153 : vector<16x16x96xf32> to vector<256x96xf32>
    %c7_140 = arith.constant 7 : index
    %c0_141 = arith.constant 0 : index
    %c0_142 = arith.constant 0 : index
    %155 = vector.load %arg9[%c7_140, %c0_141, %c0_142] : memref<9x96x32xf32, #tpu.memory_space<vmem>>, vector<1x96x32xf32>
    %156 = vector.shape_cast %155 : vector<1x96x32xf32> to vector<96x32xf32>
    %cst_143 = arith.constant dense<0.000000e+00> : vector<256x32xf32>
    %157 = tpu.matmul %154, %156, %cst_143 {dimension_numbers = #tpu.dot_dimension_numbers<[1], [0], [0], [1], [0, 0, 1, 1], [], []>} : vector<256x96xf32>, vector<96x32xf32>, vector<256x32xf32> -> vector<256x32xf32>
    %158 = arith.addf %152, %157 : vector<256x32xf32>
    %c2_144 = arith.constant 2 : index
    %c2_145 = arith.constant 2 : index
    %c0_146 = arith.constant 0 : index
    %159 = vector.load %arg17[%c2_144, %c2_145, %c0_146] : memref<18x18x96xf32, #tpu.memory_space<vmem>>, vector<16x16x96xf32>
    %160 = vector.shape_cast %159 : vector<16x16x96xf32> to vector<256x96xf32>
    %c8_147 = arith.constant 8 : index
    %c0_148 = arith.constant 0 : index
    %c0_149 = arith.constant 0 : index
    %161 = vector.load %arg9[%c8_147, %c0_148, %c0_149] : memref<9x96x32xf32, #tpu.memory_space<vmem>>, vector<1x96x32xf32>
    %162 = vector.shape_cast %161 : vector<1x96x32xf32> to vector<96x32xf32>
    %cst_150 = arith.constant dense<0.000000e+00> : vector<256x32xf32>
    %163 = tpu.matmul %160, %162, %cst_150 {dimension_numbers = #tpu.dot_dimension_numbers<[1], [0], [0], [1], [0, 0, 1, 1], [], []>} : vector<256x96xf32>, vector<96x32xf32>, vector<256x32xf32> -> vector<256x32xf32>
    %164 = arith.addf %158, %163 : vector<256x32xf32>
    %c0_151 = arith.constant 0 : index
    %c0_152 = arith.constant 0 : index
    %165 = vector.load %arg10[%c0_151, %c0_152] : memref<1x32xf32, #tpu.memory_space<vmem>>, vector<1x32xf32>
    %166 = vector.broadcast %165 : vector<1x32xf32> to vector<256x32xf32>
    %167 = arith.mulf %164, %166 : vector<256x32xf32>
    %c0_153 = arith.constant 0 : index
    %c0_154 = arith.constant 0 : index
    %168 = vector.load %arg11[%c0_153, %c0_154] : memref<1x32xf32, #tpu.memory_space<vmem>>, vector<1x32xf32>
    %169 = vector.broadcast %168 : vector<1x32xf32> to vector<256x32xf32>
    %170 = arith.addf %167, %169 : vector<256x32xf32>
    %cst_155 = arith.constant 0.000000e+00 : f32
    %171 = vector.broadcast %cst_155 : f32 to vector<256x32xf32>
    %172 = arith.maximumf %170, %171 : vector<256x32xf32>
    %173 = vector.shape_cast %172 : vector<256x32xf32> to vector<16x16x32xf32>
    %c0_156 = arith.constant 0 : index
    %c0_157 = arith.constant 0 : index
    %c0_158 = arith.constant 0 : index
    %c0_159 = arith.constant 0 : index
    %174 = vector.load %arg14[%c0_156, %c0_157, %c0_158, %c0_159] : memref<1x16x16x32xf32, #tpu.memory_space<vmem>>, vector<1x16x16x32xf32>
    %175 = vector.shape_cast %174 : vector<1x16x16x32xf32> to vector<16x16x32xf32>
    %176 = vector.shape_cast %173 : vector<16x16x32xf32> to vector<1x16x16x32xf32>
    tpu.vector_store %arg14[%c0_156, %c0_157, %c0_158, %c0_159], %176 {strides = array<i32>} : memref<1x16x16x32xf32, #tpu.memory_space<vmem>>, vector<1x16x16x32xf32>,
    %c0_160 = arith.constant 0 : index
    %c0_161 = arith.constant 0 : index
    %177 = vector.load %arg12[%c0_160, %c0_161] : memref<1x32xf32, #tpu.memory_space<vmem>>, vector<1x32xf32>
    %178 = vector.broadcast %177 : vector<1x32xf32> to vector<256x32xf32>
    %179 = arith.mulf %172, %178 : vector<256x32xf32>
    %cst_162 = arith.constant dense<0.000000e+00> : vector<256xf32>
    %180 = vector.multi_reduction <add>, %179, %cst_162 [1] : vector<256x32xf32> to vector<256xf32>
    %181 = vector.shape_cast %180 : vector<256xf32> to vector<256x1xf32>
    %c0_163 = arith.constant 0 : index
    %c0_164 = arith.constant 0 : index
    %182 = vector.load %arg13[%c0_163, %c0_164] : memref<1x1xf32, #tpu.memory_space<vmem>>, vector<1x1xf32>
    %183 = vector.broadcast %182 : vector<1x1xf32> to vector<256x1xf32>
    %184 = arith.addf %181, %183 : vector<256x1xf32>
    %cst_165 = arith.constant 0.000000e+00 : f32
    %185 = vector.broadcast %cst_165 : f32 to vector<256x1xf32>
    %186 = arith.subf %185, %184 : vector<256x1xf32>
    %187 = math.exp %186 : vector<256x1xf32>
    %cst_166 = arith.constant 1.000000e+00 : f32
    %188 = vector.broadcast %cst_166 : f32 to vector<256x1xf32>
    %189 = arith.addf %188, %187 : vector<256x1xf32>
    %cst_167 = arith.constant 1.000000e+00 : f32
    %190 = vector.broadcast %cst_167 : f32 to vector<256x1xf32>
    %191 = arith.divf %190, %189 : vector<256x1xf32>
    %192 = vector.shape_cast %191 : vector<256x1xf32> to vector<16x16x1xf32>
    %c0_168 = arith.constant 0 : index
    %c0_169 = arith.constant 0 : index
    %c0_170 = arith.constant 0 : index
    %c0_171 = arith.constant 0 : index
    %193 = vector.load %arg15[%c0_168, %c0_169, %c0_170, %c0_171] : memref<1x16x16x1xf32, #tpu.memory_space<vmem>>, vector<1x16x16x1xf32>
    %194 = vector.shape_cast %193 : vector<1x16x16x1xf32> to vector<16x16x1xf32>
    %195 = vector.shape_cast %192 : vector<16x16x1xf32> to vector<1x16x16x1xf32>
    tpu.vector_store %arg15[%c0_168, %c0_169, %c0_170, %c0_171], %195 {strides = array<i32>} : memref<1x16x16x1xf32, #tpu.memory_space<vmem>>, vector<1x16x16x1xf32>,
    return
  }
  func.func @transform_0(%arg0: i32) -> (i32, i32, i32, i32) {
    %c0_i32 = arith.constant 0 : i32
    %c0_i32_0 = arith.constant 0 : i32
    %c0_i32_1 = arith.constant 0 : i32
    %c0_i32_2 = arith.constant 0 : i32
    return %arg0, %c0_i32, %c0_i32_0, %c0_i32_1 : i32, i32, i32, i32
  }
  func.func @transform_1(%arg0: i32) -> (i32, i32, i32, i32) {
    %c0_i32 = arith.constant 0 : i32
    %c0_i32_0 = arith.constant 0 : i32
    %c0_i32_1 = arith.constant 0 : i32
    %c0_i32_2 = arith.constant 0 : i32
    return %arg0, %c0_i32, %c0_i32_0, %c0_i32_1 : i32, i32, i32, i32
  }
  func.func @transform_2(%arg0: i32) -> (i32, i32, i32, i32) {
    %c0_i32 = arith.constant 0 : i32
    %c0_i32_0 = arith.constant 0 : i32
    %c0_i32_1 = arith.constant 0 : i32
    %c0_i32_2 = arith.constant 0 : i32
    return %arg0, %c0_i32, %c0_i32_0, %c0_i32_1 : i32, i32, i32, i32
  }
  func.func @transform_3(%arg0: i32) -> (i32, i32) {
    %c0_i32 = arith.constant 0 : i32
    %c0_i32_0 = arith.constant 0 : i32
    %c0_i32_1 = arith.constant 0 : i32
    return %c0_i32, %c0_i32_0 : i32, i32
  }
  func.func @transform_4(%arg0: i32) -> (i32, i32) {
    %c0_i32 = arith.constant 0 : i32
    %c0_i32_0 = arith.constant 0 : i32
    %c0_i32_1 = arith.constant 0 : i32
    return %c0_i32, %c0_i32_0 : i32, i32
  }
  func.func @transform_5(%arg0: i32) -> (i32, i32, i32) {
    %c0_i32 = arith.constant 0 : i32
    %c0_i32_0 = arith.constant 0 : i32
    %c0_i32_1 = arith.constant 0 : i32
    %c0_i32_2 = arith.constant 0 : i32
    return %c0_i32, %c0_i32_0, %c0_i32_1 : i32, i32, i32
  }
  func.func @transform_6(%arg0: i32) -> (i32, i32) {
    %c0_i32 = arith.constant 0 : i32
    %c0_i32_0 = arith.constant 0 : i32
    %c0_i32_1 = arith.constant 0 : i32
    return %c0_i32, %c0_i32_0 : i32, i32
  }
  func.func @transform_7(%arg0: i32) -> (i32, i32) {
    %c0_i32 = arith.constant 0 : i32
    %c0_i32_0 = arith.constant 0 : i32
    %c0_i32_1 = arith.constant 0 : i32
    return %c0_i32, %c0_i32_0 : i32, i32
  }
  func.func @transform_8(%arg0: i32) -> (i32, i32, i32) {
    %c0_i32 = arith.constant 0 : i32
    %c0_i32_0 = arith.constant 0 : i32
    %c0_i32_1 = arith.constant 0 : i32
    %c0_i32_2 = arith.constant 0 : i32
    return %c0_i32, %c0_i32_0, %c0_i32_1 : i32, i32, i32
  }
  func.func @transform_9(%arg0: i32) -> (i32, i32) {
    %c0_i32 = arith.constant 0 : i32
    %c0_i32_0 = arith.constant 0 : i32
    %c0_i32_1 = arith.constant 0 : i32
    return %c0_i32, %c0_i32_0 : i32, i32
  }
  func.func @transform_10(%arg0: i32) -> (i32, i32) {
    %c0_i32 = arith.constant 0 : i32
    %c0_i32_0 = arith.constant 0 : i32
    %c0_i32_1 = arith.constant 0 : i32
    return %c0_i32, %c0_i32_0 : i32, i32
  }
  func.func @transform_11(%arg0: i32) -> (i32, i32) {
    %c0_i32 = arith.constant 0 : i32
    %c0_i32_0 = arith.constant 0 : i32
    %c0_i32_1 = arith.constant 0 : i32
    return %c0_i32, %c0_i32_0 : i32, i32
  }
  func.func @transform_12(%arg0: i32) -> (i32, i32) {
    %c0_i32 = arith.constant 0 : i32
    %c0_i32_0 = arith.constant 0 : i32
    %c0_i32_1 = arith.constant 0 : i32
    return %c0_i32, %c0_i32_0 : i32, i32
  }
  func.func @transform_13(%arg0: i32) -> (i32, i32, i32, i32) {
    %c0_i32 = arith.constant 0 : i32
    %c0_i32_0 = arith.constant 0 : i32
    %c0_i32_1 = arith.constant 0 : i32
    %c0_i32_2 = arith.constant 0 : i32
    return %arg0, %c0_i32, %c0_i32_0, %c0_i32_1 : i32, i32, i32, i32
  }
  func.func @transform_14(%arg0: i32) -> (i32, i32, i32, i32) {
    %c0_i32 = arith.constant 0 : i32
    %c0_i32_0 = arith.constant 0 : i32
    %c0_i32_1 = arith.constant 0 : i32
    %c0_i32_2 = arith.constant 0 : i32
    return %arg0, %c0_i32, %c0_i32_0, %c0_i32_1 : i32, i32, i32, i32
  }
}

</mosaic_0001>

<llo_original>
// kernel: decoder_block_forward.1
$region0: #{decoder_block_forward.1}
  #allocation0 [shape = 'u32[]', space=smem, size = 0x4, offset = 0x4, fixed_abs, tag = 'smem constant byte address 0x4 - core index']
  #allocation1 [shape = 'u32[144,128]{1,0:T(1,128)}', space=vmem, size = 0x12000, scoped, tag = 'internal scratch']
  #allocation2 [shape = 'f32[18,18,96]{2,1,0:T(8,128)}', space=vmem, size = 0x36000, scoped, tag = 'scratch operand']
  #allocation3 [shape = 'f32[18,18,96]{2,1,0:T(8,128)}', space=vmem, size = 0x36000, scoped, tag = 'scratch operand']
  #allocation4 [shape = 'f32[1,1]{1,0:T(1,128)S(1)}', space=vmem, size = 0x200, scoped, tag = 'scoped memory for decoder_block_forward.1']
  %s0 = inlined_call_operand.vmem [shape: f32[2,16,16,4], index: 0, kind: input, shape index: {}]
  %s1 = inlined_call_operand.vmem [shape: f32[2,16,16,2], index: 1, kind: input, shape index: {}]
  %s2 = inlined_call_operand.vmem [shape: f32[2,16,16,32], index: 2, kind: input, shape index: {}]
  %s3 = inlined_call_operand.vmem [shape: f32[4,32], index: 3, kind: input, shape index: {}]
  %s4 = inlined_call_operand.vmem [shape: f32[1,32], index: 4, kind: input, shape index: {}]
  %s5 = inlined_call_operand.vmem [shape: f32[9,96,96], index: 5, kind: input, shape index: {}]
  %s6 = inlined_call_operand.vmem [shape: f32[1,96], index: 6, kind: input, shape index: {}]
  %s7 = inlined_call_operand.vmem [shape: f32[1,96], index: 7, kind: input, shape index: {}]
  %s8 = inlined_call_operand.vmem [shape: f32[9,96,32], index: 8, kind: input, shape index: {}]
  %s9 = inlined_call_operand.vmem [shape: f32[1,32], index: 9, kind: input, shape index: {}]
  %s10 = inlined_call_operand.vmem [shape: f32[1,32], index: 10, kind: input, shape index: {}]
  %s11 = inlined_call_operand.vmem [shape: f32[1,32], index: 11, kind: input, shape index: {}]
  %s12 = inlined_call_operand.<no memory space> [shape: f32[1,1], index: 12, kind: input, shape index: {}]
  %s13 = inlined_call_operand.hbm [shape: f32[2,16,16,32], index: 13, kind: output, shape index: {0}]
  %s14 = inlined_call_operand.vmem [shape: f32[2,16,16,1], index: 14, kind: output, shape index: {1}]
  %15 = xla_tuple %s13, %s14
  %s16 = sld [smem:[#allocation0]]
  $region93: #{decoder_block_forward.1} parent=0
    _
  %s18 = ssub.s32 1, %s16
  %s19 = scalar_select 0, %s18, %s16
  %v20 = vstv %s12
  %21 = vst [vmem:[#allocation4] sm:$0x1] %v20
  $region1: #{decoder_block_forward.1} parent=0
    #allocation5 [shape = 'u8[262144]{0}', space=vmem, size = 0x40000, scoped, tag = 'output window, operand 0']
    #allocation6 [shape = 's32[2]{0}', space=sflag, size = 0x8, scoped, tag = 'scoped memory for decoder_block_forward.1']
    %22 = vsyncpa [#allocation6], 0
    %s23 = scalar_lea.sflag [#allocation6], 1
    %24 = vsyncpa %s23, 0
    loop: start=0, step=1, limit=4
    $region2: #{decoder_block_forward.1} parent=1 // loop_pre_header
      _
    $region3: #{decoder_block_forward.1} parent=1 // loop_header
      %s26 = sphi 0, %s30
      %p27 = scmp.ge.s32.totalorder %s26, 4
      %s36 = sphi 0, %s38
      %s39 = sphi 0, %s36
      %s40 = sphi 0, %s39
      %s56 = sphi 0, %s40
      %s62 = sphi 0, %s64
      %s65 = sphi 0, %s62
      %s66 = sphi 0, %s65
      %s82 = sphi 0, %s66
      %s88 = sphi 0, %s90
      %s91 = sphi 0, %s88
      %s92 = sphi 0, %s91
      %s108 = sphi 0, %s92
      %s112 = sphi 0, %s112
      %s114 = sphi 0, %s112
      %s115 = sphi 0, %s114
      %s129 = sphi 0, %s115
      %s133 = sphi 0, %s133
      %s135 = sphi 0, %s133
      %s136 = sphi 0, %s135
      %s150 = sphi 0, %s136
      %s154 = sphi 0, %s154
      %s156 = sphi 0, %s154
      %s157 = sphi 0, %s156
      %s171 = sphi 0, %s157
      %s175 = sphi 0, %s175
      %s177 = sphi 0, %s175
      %s178 = sphi 0, %s177
      %s192 = sphi 0, %s178
      %s196 = sphi 0, %s196
      %s198 = sphi 0, %s196
      %s199 = sphi 0, %s198
      %s213 = sphi 0, %s199
      %s217 = sphi 0, %s217
      %s219 = sphi 0, %s217
      %s220 = sphi 0, %s219
      %s234 = sphi 0, %s220
      %s238 = sphi 0, %s238
      %s240 = sphi 0, %s238
      %s241 = sphi 0, %s240
      %s255 = sphi 0, %s241
      %s259 = sphi 0, %s259
      %s261 = sphi 0, %s259
      %s262 = sphi 0, %s261
      %s276 = sphi 0, %s262
      %s280 = sphi 0, %s280
      %s282 = sphi 0, %s280
      %s283 = sphi 0, %s282
      %s297 = sphi 0, %s283
      %s301 = sphi 0, %s301
      %s303 = sphi 0, %s301
      %s304 = sphi 0, %s303
      %s318 = sphi 0, %s304
      %s324 = sphi 0, %s326
      %s327 = sphi 0, %s324
      %s328 = sphi 0, %s327
      %s344 = sphi 0, %s328
      %s350 = sphi 0, %s352
      %s353 = sphi 0, %s350
      %s354 = sphi 0, %s353
      %s370 = sphi 0, %s354
    $region4: #{decoder_block_forward.1} parent=1 // loop_header_branch
      %29 = sbr.rel (%p27) target = $region8
    $region5: #{decoder_block_forward.1} parent=1 // loop_body
      %s31 = ssub.s32 %s26, 1
      %s32 = ssub.s32 %s26, 2
      %s33 = sadd.s32 %s26, 1
      %s34 = ssub.s32 %s26, %s33
      %p35 = scmp.eq.s32.totalorder %s34, 0
      %s37 = sadd.s32 %s36, 1
      %s38 = scalar_select %p35, %s36, %s37
      %p41 = pneg %p35
      %p42 = scmp.eq.s32.totalorder %s26, 1
      %p43 = por %p41, %p42
      %p44 = scmp.ne.s32.totalorder %s36, %s39
      %p45 = scmp.eq.s32.totalorder %s26, 0
      %p46 = por %p44, %p45
      %p47 = scmp.ne.s32.totalorder %s36, %s39
      %p48 = scmp.eq.s32.totalorder %s31, 1
      %p49 = por %p47, %p48
      %p50 = scmp.ne.s32.totalorder %s39, %s40
      %p51 = scmp.eq.s32.totalorder %s31, 0
      %p52 = por %p50, %p51
      %p53 = scmp.ne.s32.totalorder %s39, %s40
      %p54 = scmp.eq.s32.totalorder %s32, 1
      %p55 = por %p53, %p54
      %p57 = scmp.ne.s32.totalorder %s40, %s56
      %p58 = scmp.eq.s32.totalorder %s32, 0
      %p59 = por %p57, %p58
      %s60 = ssub.s32 %s26, %s33
      %p61 = scmp.eq.s32.totalorder %s60, 0
      %s63 = sadd.s32 %s62, 1
      %s64 = scalar_select %p61, %s62, %s63
      %p67 = pneg %p61
      %p68 = scmp.eq.s32.totalorder %s26, 1
      %p69 = por %p67, %p68
      %p70 = scmp.ne.s32.totalorder %s62, %s65
      %p71 = scmp.eq.s32.totalorder %s26, 0
      %p72 = por %p70, %p71
      %p73 = scmp.ne.s32.totalorder %s62, %s65
      %p74 = scmp.eq.s32.totalorder %s31, 1
      %p75 = por %p73, %p74
      %p76 = scmp.ne.s32.totalorder %s65, %s66
      %p77 = scmp.eq.s32.totalorder %s31, 0
      %p78 = por %p76, %p77
      %p79 = scmp.ne.s32.totalorder %s65, %s66
      %p80 = scmp.eq.s32.totalorder %s32, 1
      %p81 = por %p79, %p80
      %p83 = scmp.ne.s32.totalorder %s66, %s82
      %p84 = scmp.eq.s32.totalorder %s32, 0
      %p85 = por %p83, %p84
      %s86 = ssub.s32 %s26, %s33
      %p87 = scmp.eq.s32.totalorder %s86, 0
      %s89 = sadd.s32 %s88, 1
      %s90 = scalar_select %p87, %s88, %s89
      %p93 = pneg %p87
      %p94 = scmp.eq.s32.totalorder %s26, 1
      %p95 = por %p93, %p94
      %p96 = scmp.ne.s32.totalorder %s88, %s91
      %p97 = scmp.eq.s32.totalorder %s26, 0
      %p98 = por %p96, %p97
      %p99 = scmp.ne.s32.totalorder %s88, %s91
      %p100 = scmp.eq.s32.totalorder %s31, 1
      %p101 = por %p99, %p100
      %p102 = scmp.ne.s32.totalorder %s91, %s92
      %p103 = scmp.eq.s32.totalorder %s31, 0
      %p104 = por %p102, %p103
      %p105 = scmp.ne.s32.totalorder %s91, %s92
      %p106 = scmp.eq.s32.totalorder %s32, 1
      %p107 = por %p105, %p106
      %p109 = scmp.ne.s32.totalorder %s92, %s108
      %p110 = scmp.eq.s32.totalorder %s32, 0
      %p111 = por %p109, %p110
      %s113 = sadd.s32 %s112, 1
      %p116 = scmp.eq.s32.totalorder %s26, 1
      %p117 = scmp.ne.s32.totalorder %s112, %s114
      %p118 = scmp.eq.s32.totalorder %s26, 0
      %p119 = por %p117, %p118
      %p120 = scmp.ne.s32.totalorder %s112, %s114
      %p121 = scmp.eq.s32.totalorder %s31, 1
      %p122 = por %p120, %p121
      %p123 = scmp.ne.s32.totalorder %s114, %s115
      %p124 = scmp.eq.s32.totalorder %s31, 0
      %p125 = por %p123, %p124
      %p126 = scmp.ne.s32.totalorder %s114, %s115
      %p127 = scmp.eq.s32.totalorder %s32, 1
      %p128 = por %p126, %p127
      %p130 = scmp.ne.s32.totalorder %s115, %s129
      %p131 = scmp.eq.s32.totalorder %s32, 0
      %p132 = por %p130, %p131
      %s134 = sadd.s32 %s133, 1
      %p137 = scmp.eq.s32.totalorder %s26, 1
      %p138 = scmp.ne.s32.totalorder %s133, %s135
      %p139 = scmp.eq.s32.totalorder %s26, 0
      %p140 = por %p138, %p139
      %p141 = scmp.ne.s32.totalorder %s133, %s135
      %p142 = scmp.eq.s32.totalorder %s31, 1
      %p143 = por %p141, %p142
      %p144 = scmp.ne.s32.totalorder %s135, %s136
      %p145 = scmp.eq.s32.totalorder %s31, 0
      %p146 = por %p144, %p145
      %p147 = scmp.ne.s32.totalorder %s135, %s136
      %p148 = scmp.eq.s32.totalorder %s32, 1
      %p149 = por %p147, %p148
      %p151 = scmp.ne.s32.totalorder %s136, %s150
      %p152 = scmp.eq.s32.totalorder %s32, 0
      %p153 = por %p151, %p152
      %s155 = sadd.s32 %s154, 1
      %p158 = scmp.eq.s32.totalorder %s26, 1
      %p159 = scmp.ne.s32.totalorder %s154, %s156
      %p160 = scmp.eq.s32.totalorder %s26, 0
      %p161 = por %p159, %p160
      %p162 = scmp.ne.s32.totalorder %s154, %s156
      %p163 = scmp.eq.s32.totalorder %s31, 1
      %p164 = por %p162, %p163
      %p165 = scmp.ne.s32.totalorder %s156, %s157
      %p166 = scmp.eq.s32.totalorder %s31, 0
      %p167 = por %p165, %p166
      %p168 = scmp.ne.s32.totalorder %s156, %s157
      %p169 = scmp.eq.s32.totalorder %s32, 1
      %p170 = por %p168, %p169
      %p172 = scmp.ne.s32.totalorder %s157, %s171
      %p173 = scmp.eq.s32.totalorder %s32, 0
      %p174 = por %p172, %p173
      %s176 = sadd.s32 %s175, 1
      %p179 = scmp.eq.s32.totalorder %s26, 1
      %p180 = scmp.ne.s32.totalorder %s175, %s177
      %p181 = scmp.eq.s32.totalorder %s26, 0
      %p182 = por %p180, %p181
      %p183 = scmp.ne.s32.totalorder %s175, %s177
      %p184 = scmp.eq.s32.totalorder %s31, 1
      %p185 = por %p183, %p184
      %p186 = scmp.ne.s32.totalorder %s177, %s178
      %p187 = scmp.eq.s32.totalorder %s31, 0
      %p188 = por %p186, %p187
      %p189 = scmp.ne.s32.totalorder %s177, %s178
      %p190 = scmp.eq.s32.totalorder %s32, 1
      %p191 = por %p189, %p190
      %p193 = scmp.ne.s32.totalorder %s178, %s192
      %p194 = scmp.eq.s32.totalorder %s32, 0
      %p195 = por %p193, %p194
      %s197 = sadd.s32 %s196, 1
      %p200 = scmp.eq.s32.totalorder %s26, 1
      %p201 = scmp.ne.s32.totalorder %s196, %s198
      %p202 = scmp.eq.s32.totalorder %s26, 0
      %p203 = por %p201, %p202
      %p204 = scmp.ne.s32.totalorder %s196, %s198
      %p205 = scmp.eq.s32.totalorder %s31, 1
      %p206 = por %p204, %p205
      %p207 = scmp.ne.s32.totalorder %s198, %s199
      %p208 = scmp.eq.s32.totalorder %s31, 0
      %p209 = por %p207, %p208
      %p210 = scmp.ne.s32.totalorder %s198, %s199
      %p211 = scmp.eq.s32.totalorder %s32, 1
      %p212 = por %p210, %p211
      %p214 = scmp.ne.s32.totalorder %s199, %s213
      %p215 = scmp.eq.s32.totalorder %s32, 0
      %p216 = por %p214, %p215
      %s218 = sadd.s32 %s217, 1
      %p221 = scmp.eq.s32.totalorder %s26, 1
      %p222 = scmp.ne.s32.totalorder %s217, %s219
      %p223 = scmp.eq.s32.totalorder %s26, 0
      %p224 = por %p222, %p223
      %p225 = scmp.ne.s32.totalorder %s217, %s219
      %p226 = scmp.eq.s32.totalorder %s31, 1
      %p227 = por %p225, %p226
      %p228 = scmp.ne.s32.totalorder %s219, %s220
      %p229 = scmp.eq.s32.totalorder %s31, 0
      %p230 = por %p228, %p229
      %p231 = scmp.ne.s32.totalorder %s219, %s220
      %p232 = scmp.eq.s32.totalorder %s32, 1
      %p233 = por %p231, %p232
      %p235 = scmp.ne.s32.totalorder %s220, %s234
      %p236 = scmp.eq.s32.totalorder %s32, 0
      %p237 = por %p235, %p236
      %s239 = sadd.s32 %s238, 1
      %p242 = scmp.eq.s32.totalorder %s26, 1
      %p243 = scmp.ne.s32.totalorder %s238, %s240
      %p244 = scmp.eq.s32.totalorder %s26, 0
      %p245 = por %p243, %p244
      %p246 = scmp.ne.s32.totalorder %s238, %s240
      %p247 = scmp.eq.s32.totalorder %s31, 1
      %p248 = por %p246, %p247
      %p249 = scmp.ne.s32.totalorder %s240, %s241
      %p250 = scmp.eq.s32.totalorder %s31, 0
      %p251 = por %p249, %p250
      %p252 = scmp.ne.s32.totalorder %s240, %s241
      %p253 = scmp.eq.s32.totalorder %s32, 1
      %p254 = por %p252, %p253
      %p256 = scmp.ne.s32.totalorder %s241, %s255
      %p257 = scmp.eq.s32.totalorder %s32, 0
      %p258 = por %p256, %p257
      %s260 = sadd.s32 %s259, 1
      %p263 = scmp.eq.s32.totalorder %s26, 1
      %p264 = scmp.ne.s32.totalorder %s259, %s261
      %p265 = scmp.eq.s32.totalorder %s26, 0
      %p266 = por %p264, %p265
      %p267 = scmp.ne.s32.totalorder %s259, %s261
      %p268 = scmp.eq.s32.totalorder %s31, 1
      %p269 = por %p267, %p268
      %p270 = scmp.ne.s32.totalorder %s261, %s262
      %p271 = scmp.eq.s32.totalorder %s31, 0
      %p272 = por %p270, %p271
      %p273 = scmp.ne.s32.totalorder %s261, %s262
      %p274 = scmp.eq.s32.totalorder %s32, 1
      %p275 = por %p273, %p274
      %p277 = scmp.ne.s32.totalorder %s262, %s276
      %p278 = scmp.eq.s32.totalorder %s32, 0
      %p279 = por %p277, %p278
      %s281 = sadd.s32 %s280, 1
      %p284 = scmp.eq.s32.totalorder %s26, 1
      %p285 = scmp.ne.s32.totalorder %s280, %s282
      %p286 = scmp.eq.s32.totalorder %s26, 0
      %p287 = por %p285, %p286
      %p288 = scmp.ne.s32.totalorder %s280, %s282
      %p289 = scmp.eq.s32.totalorder %s31, 1
      %p290 = por %p288, %p289
      %p291 = scmp.ne.s32.totalorder %s282, %s283
      %p292 = scmp.eq.s32.totalorder %s31, 0
      %p293 = por %p291, %p292
      %p294 = scmp.ne.s32.totalorder %s282, %s283
      %p295 = scmp.eq.s32.totalorder %s32, 1
      %p296 = por %p294, %p295
      %p298 = scmp.ne.s32.totalorder %s283, %s297
      %p299 = scmp.eq.s32.totalorder %s32, 0
      %p300 = por %p298, %p299
      %s302 = sadd.s32 %s301, 1
      %p305 = scmp.eq.s32.totalorder %s26, 1
      %p306 = scmp.ne.s32.totalorder %s301, %s303
      %p307 = scmp.eq.s32.totalorder %s26, 0
      %p308 = por %p306, %p307
      %p309 = scmp.ne.s32.totalorder %s301, %s303
      %p310 = scmp.eq.s32.totalorder %s31, 1
      %p311 = por %p309, %p310
      %p312 = scmp.ne.s32.totalorder %s303, %s304
      %p313 = scmp.eq.s32.totalorder %s31, 0
      %p314 = por %p312, %p313
      %p315 = scmp.ne.s32.totalorder %s303, %s304
      %p316 = scmp.eq.s32.totalorder %s32, 1
      %p317 = por %p315, %p316
      %p319 = scmp.ne.s32.totalorder %s304, %s318
      %p320 = scmp.eq.s32.totalorder %s32, 0
      %p321 = por %p319, %p320
      %s322 = ssub.s32 %s26, %s33
      %p323 = scmp.eq.s32.totalorder %s322, 0
      %s325 = sadd.s32 %s324, 1
      %s326 = scalar_select %p323, %s324, %s325
      %p329 = pneg %p323
      %p330 = scmp.eq.s32.totalorder %s26, 1
      %p331 = por %p329, %p330
      %p332 = scmp.ne.s32.totalorder %s324, %s327
      %p333 = scmp.eq.s32.totalorder %s26, 0
      %p334 = por %p332, %p333
      %p335 = scmp.ne.s32.totalorder %s324, %s327
      %p336 = scmp.eq.s32.totalorder %s31, 1
      %p337 = por %p335, %p336
      %p338 = scmp.ne.s32.totalorder %s327, %s328
      %p339 = scmp.eq.s32.totalorder %s31, 0
      %p340 = por %p338, %p339
      %p341 = scmp.ne.s32.totalorder %s327, %s328
      %p342 = scmp.eq.s32.totalorder %s32, 1
      %p343 = por %p341, %p342
      %p345 = scmp.ne.s32.totalorder %s328, %s344
      %p346 = scmp.eq.s32.totalorder %s32, 0
      %p347 = por %p345, %p346
      %s348 = ssub.s32 %s26, %s33
      %p349 = scmp.eq.s32.totalorder %s348, 0
      %s351 = sadd.s32 %s350, 1
      %s352 = scalar_select %p349, %s350, %s351
      %p355 = pneg %p349
      %p356 = scmp.eq.s32.totalorder %s26, 1
      %p357 = por %p355, %p356
      %p358 = scmp.ne.s32.totalorder %s350, %s353
      %p359 = scmp.eq.s32.totalorder %s26, 0
      %p360 = por %p358, %p359
      %p361 = scmp.ne.s32.totalorder %s350, %s353
      %p362 = scmp.eq.s32.totalorder %s31, 1
      %p363 = por %p361, %p362
      %p364 = scmp.ne.s32.totalorder %s353, %s354
      %p365 = scmp.eq.s32.totalorder %s31, 0
      %p366 = por %p364, %p365
      %p367 = scmp.ne.s32.totalorder %s353, %s354
      %p368 = scmp.eq.s32.totalorder %s32, 1
      %p369 = por %p367, %p368
      %p371 = scmp.ne.s32.totalorder %s354, %s370
      %p372 = scmp.eq.s32.totalorder %s32, 0
      %p373 = por %p371, %p372
      %p374 = scmp.le.s32.totalorder 1, %s26
      %p375 = scmp.lt.s32.totalorder %s26, 3
      %p376 = pnand %p374, %p375
      %p377 = pneg %p376
      // Predicated region
      $region9: #{decoder_block_forward.1} parent=5 // pred_check
        _
      $region10: #{decoder_block_forward.1} parent=5 // pred_check_branch
        %379 = sbr.rel (%p376) target = $region12
      $region11: #{decoder_block_forward.1} parent=5 // pred_region
        %s380 = ssub.s32 %s26, 1
        // Predicated region
        $region13: #{decoder_block_forward.1} parent=11 // pred_check
          %p381 = pneg %p125
        $region14: #{decoder_block_forward.1} parent=11 // pred_check_branch
          %383 = sbr.rel (%p381) target = $region16
        $region15: #{decoder_block_forward.1} parent=11 // pred_region
          _
        $region16: #{decoder_block_forward.1} parent=11 // pred_fallthru
          _
        // Predicated region
        $region17: #{decoder_block_forward.1} parent=11 // pred_check
          %p384 = pneg %p146
        $region18: #{decoder_block_forward.1} parent=11 // pred_check_branch
          %386 = sbr.rel (%p384) target = $region20
        $region19: #{decoder_block_forward.1} parent=11 // pred_region
          _
        $region20: #{decoder_block_forward.1} parent=11 // pred_fallthru
          _
        // Predicated region
        $region21: #{decoder_block_forward.1} parent=11 // pred_check
          %p387 = pneg %p167
        $region22: #{decoder_block_forward.1} parent=11 // pred_check_branch
          %389 = sbr.rel (%p387) target = $region24
        $region23: #{decoder_block_forward.1} parent=11 // pred_region
          _
        $region24: #{decoder_block_forward.1} parent=11 // pred_fallthru
          _
        // Predicated region
        $region25: #{decoder_block_forward.1} parent=11 // pred_check
          %p390 = pneg %p188
        $region26: #{decoder_block_forward.1} parent=11 // pred_check_branch
          %392 = sbr.rel (%p390) target = $region28
        $region27: #{decoder_block_forward.1} parent=11 // pred_region
          _
        $region28: #{decoder_block_forward.1} parent=11 // pred_fallthru
          _
        // Predicated region
        $region29: #{decoder_block_forward.1} parent=11 // pred_check
          %p393 = pneg %p209
        $region30: #{decoder_block_forward.1} parent=11 // pred_check_branch
          %395 = sbr.rel (%p393) target = $region32
        $region31: #{decoder_block_forward.1} parent=11 // pred_region
          _
        $region32: #{decoder_block_forward.1} parent=11 // pred_fallthru
          _
        // Predicated region
        $region33: #{decoder_block_forward.1} parent=11 // pred_check
          %p396 = pneg %p230
        $region34: #{decoder_block_forward.1} parent=11 // pred_check_branch
          %398 = sbr.rel (%p396) target = $region36
        $region35: #{decoder_block_forward.1} parent=11 // pred_region
          _
        $region36: #{decoder_block_forward.1} parent=11 // pred_fallthru
          _
        // Predicated region
        $region37: #{decoder_block_forward.1} parent=11 // pred_check
          %p399 = pneg %p251
        $region38: #{decoder_block_forward.1} parent=11 // pred_check_branch
          %401 = sbr.rel (%p399) target = $region40
        $region39: #{decoder_block_forward.1} parent=11 // pred_region
          _
        $region40: #{decoder_block_forward.1} parent=11 // pred_fallthru
          _
        // Predicated region
        $region41: #{decoder_block_forward.1} parent=11 // pred_check
          %p402 = pneg %p272
        $region42: #{decoder_block_forward.1} parent=11 // pred_check_branch
          %404 = sbr.rel (%p402) target = $region44
        $region43: #{decoder_block_forward.1} parent=11 // pred_region
          _
        $region44: #{decoder_block_forward.1} parent=11 // pred_fallthru
          _
        // Predicated region
        $region45: #{decoder_block_forward.1} parent=11 // pred_check
          %p405 = pneg %p293
        $region46: #{decoder_block_forward.1} parent=11 // pred_check_branch
          %407 = sbr.rel (%p405) target = $region48
        $region47: #{decoder_block_forward.1} parent=11 // pred_region
          _
        $region48: #{decoder_block_forward.1} parent=11 // pred_fallthru
          _
        // Predicated region
        $region49: #{decoder_block_forward.1} parent=11 // pred_check
          %p408 = pneg %p314
        $region50: #{decoder_block_forward.1} parent=11 // pred_check_branch
          %410 = sbr.rel (%p408) target = $region52
        $region51: #{decoder_block_forward.1} parent=11 // pred_region
          _
        $region52: #{decoder_block_forward.1} parent=11 // pred_fallthru
          _
      $region12: #{decoder_block_forward.1} parent=5 // pred_fallthru
        _
      %p411 = scmp.lt.s32.totalorder %s26, 2
      // Predicated region
      $region53: #{decoder_block_forward.1} parent=5 // pred_check
        %p412 = pneg %p411
      $region54: #{decoder_block_forward.1} parent=5 // pred_check_branch
        %414 = sbr.rel (%p412) target = $region56
      $region55: #{decoder_block_forward.1} parent=5 // pred_region
        // Predicated region
        $region57: #{decoder_block_forward.1} parent=55 // pred_check
          %p415 = pneg %p46
        $region58: #{decoder_block_forward.1} parent=55 // pred_check_branch
          %417 = sbr.rel (%p415) target = $region60
        $region59: #{decoder_block_forward.1} parent=55 // pred_region
          %p418 = scmp.lt.s32.totalorder %s26, 1
          %s419 = scalar_select %p418, %s26, 1
          %s420 = smul.addr %s419, 32
          %s421 = smul.addr %s420, 8
          %s422 = scalar_lea.vmem %s0, %s421
        $region60: #{decoder_block_forward.1} parent=55 // pred_fallthru
          _
        // Predicated region
        $region61: #{decoder_block_forward.1} parent=55 // pred_check
          %p423 = pneg %p72
        $region62: #{decoder_block_forward.1} parent=55 // pred_check_branch
          %425 = sbr.rel (%p423) target = $region64
        $region63: #{decoder_block_forward.1} parent=55 // pred_region
          %p426 = scmp.lt.s32.totalorder %s26, 1
          %s427 = scalar_select %p426, %s26, 1
          %s428 = smul.addr %s427, 32
          %s429 = smul.addr %s428, 8
          %s430 = scalar_lea.vmem %s1, %s429
        $region64: #{decoder_block_forward.1} parent=55 // pred_fallthru
          _
        // Predicated region
        $region65: #{decoder_block_forward.1} parent=55 // pred_check
          %p431 = pneg %p98
        $region66: #{decoder_block_forward.1} parent=55 // pred_check_branch
          %433 = sbr.rel (%p431) target = $region68
        $region67: #{decoder_block_forward.1} parent=55 // pred_region
          %p434 = scmp.lt.s32.totalorder %s26, 1
          %s435 = scalar_select %p434, %s26, 1
          %s436 = smul.addr %s435, 32
          %s437 = smul.addr %s436, 8
          %s438 = scalar_lea.vmem %s2, %s437
        $region68: #{decoder_block_forward.1} parent=55 // pred_fallthru
          _
      $region56: #{decoder_block_forward.1} parent=5 // pred_fallthru
        _
      %p439 = scmp.le.s32.totalorder 1, %s26
      %p440 = scmp.lt.s32.totalorder %s26, 3
      %p441 = pnand %p439, %p440
      %p442 = pneg %p441
      // Predicated region
      $region69: #{decoder_block_forward.1} parent=5 // pred_check
        _
      $region70: #{decoder_block_forward.1} parent=5 // pred_check_branch
        %444 = sbr.rel (%p441) target = $region72
      $region71: #{decoder_block_forward.1} parent=5 // pred_region
        %s445 = ssub.s32 %s26, 1
        %p446 = scmp.lt.s32.totalorder %s31, 1
        %s447 = scalar_select %p446, %s31, 1
        %s448 = smul.addr %s447, 32
        %s449 = smul.addr %s448, 8
        %s450 = scalar_lea.vmem %s0, %s449
        %p451 = pneg %p52
        %p452 = pneg %p49
        %p453 = scmp.lt.s32.totalorder %s31, 1
        %s454 = scalar_select %p453, %s31, 1
        %s455 = smul.addr %s454, 32
        %s456 = smul.addr %s455, 8
        %s457 = scalar_lea.vmem %s1, %s456
        %p458 = pneg %p78
        %p459 = pneg %p75
        %p460 = scmp.lt.s32.totalorder %s31, 1
        %s461 = scalar_select %p460, %s31, 1
        %s462 = smul.addr %s461, 32
        %s463 = smul.addr %s462, 8
        %s464 = scalar_lea.vmem %s2, %s463
        %p465 = pneg %p104
        %p466 = pneg %p101
        %p467 = pneg %p125
        %p468 = pneg %p122
        %p469 = pneg %p146
        %p470 = pneg %p143
        %p471 = pneg %p167
        %p472 = pneg %p164
        %p473 = pneg %p188
        %p474 = pneg %p185
        %p475 = pneg %p209
        %p476 = pneg %p206
        %p477 = pneg %p230
        %p478 = pneg %p227
        %p479 = pneg %p251
        %p480 = pneg %p248
        %p481 = pneg %p272
        %p482 = pneg %p269
        %p483 = pneg %p293
        %p484 = pneg %p290
        %p485 = pneg %p314
        %p486 = pneg %p311
        %p487 = pneg %p340
        %p488 = pneg %p337
        %s489 = sand.u32 %s327, 1
        %s490 = scalar_lea.sflag [#allocation6], %s489
        %s491 = sand.u32 %s327, 1
        %s492 = smul.addr %s491, 256
        %s493 = scalar_lea.vmem [#allocation5], %s492
        %p494 = pneg %p366
        %p495 = pneg %p363
        %p496 = scmp.lt.s32.totalorder %s31, 1
        %s497 = scalar_select %p496, %s31, 1
        %s498 = smul.addr %s497, 32
        %s499 = smul.addr %s498, 8
        %s500 = scalar_lea.vmem %s14, %s499
        %p501 = scmp.lt.s32.totalorder %s31, 1
        %s502 = scalar_select %p501, %s31, 1
        %s503 = smul.addr %s502, 32
        %s504 = smul.addr %s503, 8
        %s505 = scalar_lea.vmem %s0, %s504
        %p506 = scmp.lt.s32.totalorder %s31, 1
        %s507 = scalar_select %p506, %s31, 1
        %s508 = smul.addr %s507, 32
        %s509 = smul.addr %s508, 8
        %s510 = scalar_lea.vmem %s1, %s509
        %p511 = scmp.lt.s32.totalorder %s31, 1
        %s512 = scalar_select %p511, %s31, 1
        %s513 = smul.addr %s512, 32
        %s514 = smul.addr %s513, 8
        %s515 = scalar_lea.vmem %s2, %s514
        %p516 = scmp.lt.s32.totalorder %s31, 1
        %s517 = scalar_select %p516, %s31, 1
        %s518 = smul.addr %s517, 32
        %s519 = smul.addr %s518, 8
        %s520 = scalar_lea.vmem %s14, %s519
        %vm521 = vcmask 785408
        %522 = vst.msk [vmem:[#allocation2] sm:$0xff] %vm521, 0.0
        %523 = vst.msk [vmem:[#allocation2 + $0x8] sm:$0xff] %vm521, 0.0
        %vm524 = vcmask 779264
        %525 = vst.msk [vmem:[#allocation2 + $0x10] sm:$0x3] %vm524, 0.0
        %526 = vst.msk [vmem:[#allocation2 + $0x18] sm:$0xff] %vm521, 0.0
        %527 = vst.msk [vmem:[#allocation2 + $0x20] sm:$0xff] %vm521, 0.0
        %528 = vst.msk [vmem:[#allocation2 + $0x28] sm:$0x3] %vm524, 0.0
        %529 = vst.msk [vmem:[#allocation2 + $0x30] sm:$0xff] %vm521, 0.0
        %530 = vst.msk [vmem:[#allocation2 + $0x38] sm:$0xff] %vm521, 0.0
        %531 = vst.msk [vmem:[#allocation2 + $0x40] sm:$0x3] %vm524, 0.0
        %532 = vst.msk [vmem:[#allocation2 + $0x48] sm:$0xff] %vm521, 0.0
        %533 = vst.msk [vmem:[#allocation2 + $0x50] sm:$0xff] %vm521, 0.0
        %534 = vst.msk [vmem:[#allocation2 + $0x58] sm:$0x3] %vm524, 0.0
        %535 = vst.msk [vmem:[#allocation2 + $0x60] sm:$0xff] %vm521, 0.0
        %536 = vst.msk [vmem:[#allocation2 + $0x68] sm:$0xff] %vm521, 0.0
        %537 = vst.msk [vmem:[#allocation2 + $0x70] sm:$0x3] %vm524, 0.0
        %538 = vst.msk [vmem:[#allocation2 + $0x78] sm:$0xff] %vm521, 0.0
        %539 = vst.msk [vmem:[#allocation2 + $0x80] sm:$0xff] %vm521, 0.0
        %540 = vst.msk [vmem:[#allocation2 + $0x88] sm:$0x3] %vm524, 0.0
        %541 = vst.msk [vmem:[#allocation2 + $0x90] sm:$0xff] %vm521, 0.0
        %542 = vst.msk [vmem:[#allocation2 + $0x98] sm:$0xff] %vm521, 0.0
        %543 = vst.msk [vmem:[#allocation2 + $0xa0] sm:$0x3] %vm524, 0.0
        %544 = vst.msk [vmem:[#allocation2 + $0xa8] sm:$0xff] %vm521, 0.0
        %545 = vst.msk [vmem:[#allocation2 + $0xb0] sm:$0xff] %vm521, 0.0
        %546 = vst.msk [vmem:[#allocation2 + $0xb8] sm:$0x3] %vm524, 0.0
        %547 = vst.msk [vmem:[#allocation2 + $0xc0] sm:$0xff] %vm521, 0.0
        %548 = vst.msk [vmem:[#allocation2 + $0xc8] sm:$0xff] %vm521, 0.0
        %549 = vst.msk [vmem:[#allocation2 + $0xd0] sm:$0x3] %vm524, 0.0
        %550 = vst.msk [vmem:[#allocation2 + $0xd8] sm:$0xff] %vm521, 0.0
        %551 = vst.msk [vmem:[#allocation2 + $0xe0] sm:$0xff] %vm521, 0.0
        %552 = vst.msk [vmem:[#allocation2 + $0xe8] sm:$0x3] %vm524, 0.0
        %553 = vst.msk [vmem:[#allocation2 + $0xf0] sm:$0xff] %vm521, 0.0
        %554 = vst.msk [vmem:[#allocation2 + $0xf8] sm:$0xff] %vm521, 0.0
        %555 = vst.msk [vmem:[#allocation2 + $0x100] sm:$0x3] %vm524, 0.0
        %556 = vst.msk [vmem:[#allocation2 + $0x108] sm:$0xff] %vm521, 0.0
        %557 = vst.msk [vmem:[#allocation2 + $0x110] sm:$0xff] %vm521, 0.0
        %558 = vst.msk [vmem:[#allocation2 + $0x118] sm:$0x3] %vm524, 0.0
        %559 = vst.msk [vmem:[#allocation2 + $0x120] sm:$0xff] %vm521, 0.0
        %560 = vst.msk [vmem:[#allocation2 + $0x128] sm:$0xff] %vm521, 0.0
        %561 = vst.msk [vmem:[#allocation2 + $0x130] sm:$0x3] %vm524, 0.0
        %562 = vst.msk [vmem:[#allocation2 + $0x138] sm:$0xff] %vm521, 0.0
        %563 = vst.msk [vmem:[#allocation2 + $0x140] sm:$0xff] %vm521, 0.0
        %564 = vst.msk [vmem:[#allocation2 + $0x148] sm:$0x3] %vm524, 0.0
        %565 = vst.msk [vmem:[#allocation2 + $0x150] sm:$0xff] %vm521, 0.0
        %566 = vst.msk [vmem:[#allocation2 + $0x158] sm:$0xff] %vm521, 0.0
        %567 = vst.msk [vmem:[#allocation2 + $0x160] sm:$0x3] %vm524, 0.0
        %568 = vst.msk [vmem:[#allocation2 + $0x168] sm:$0xff] %vm521, 0.0
        %569 = vst.msk [vmem:[#allocation2 + $0x170] sm:$0xff] %vm521, 0.0
        %570 = vst.msk [vmem:[#allocation2 + $0x178] sm:$0x3] %vm524, 0.0
        %571 = vst.msk [vmem:[#allocation2 + $0x180] sm:$0xff] %vm521, 0.0
        %572 = vst.msk [vmem:[#allocation2 + $0x188] sm:$0xff] %vm521, 0.0
        %573 = vst.msk [vmem:[#allocation2 + $0x190] sm:$0x3] %vm524, 0.0
        %574 = vst.msk [vmem:[#allocation2 + $0x198] sm:$0xff] %vm521, 0.0
        %575 = vst.msk [vmem:[#allocation2 + $0x1a0] sm:$0xff] %vm521, 0.0
        %576 = vst.msk [vmem:[#allocation2 + $0x1a8] sm:$0x3] %vm524, 0.0
        %577 = vst.msk [vmem:[#allocation3] sm:$0xff] %vm521, 0.0
        %578 = vst.msk [vmem:[#allocation3 + $0x8] sm:$0xff] %vm521, 0.0
        %579 = vst.msk [vmem:[#allocation3 + $0x10] sm:$0x3] %vm524, 0.0
        %580 = vst.msk [vmem:[#allocation3 + $0x18] sm:$0xff] %vm521, 0.0
        %581 = vst.msk [vmem:[#allocation3 + $0x20] sm:$0xff] %vm521, 0.0
        %582 = vst.msk [vmem:[#allocation3 + $0x28] sm:$0x3] %vm524, 0.0
        %583 = vst.msk [vmem:[#allocation3 + $0x30] sm:$0xff] %vm521, 0.0
        %584 = vst.msk [vmem:[#allocation3 + $0x38] sm:$0xff] %vm521, 0.0
        %585 = vst.msk [vmem:[#allocation3 + $0x40] sm:$0x3] %vm524, 0.0
        %586 = vst.msk [vmem:[#allocation3 + $0x48] sm:$0xff] %vm521, 0.0
        %587 = vst.msk [vmem:[#allocation3 + $0x50] sm:$0xff] %vm521, 0.0
        %588 = vst.msk [vmem:[#allocation3 + $0x58] sm:$0x3] %vm524, 0.0
        %589 = vst.msk [vmem:[#allocation3 + $0x60] sm:$0xff] %vm521, 0.0
        %590 = vst.msk [vmem:[#allocation3 + $0x68] sm:$0xff] %vm521, 0.0
        %591 = vst.msk [vmem:[#allocation3 + $0x70] sm:$0x3] %vm524, 0.0
        %592 = vst.msk [vmem:[#allocation3 + $0x78] sm:$0xff] %vm521, 0.0
        %593 = vst.msk [vmem:[#allocation3 + $0x80] sm:$0xff] %vm521, 0.0
        %594 = vst.msk [vmem:[#allocation3 + $0x88] sm:$0x3] %vm524, 0.0
        %595 = vst.msk [vmem:[#allocation3 + $0x90] sm:$0xff] %vm521, 0.0
        %596 = vst.msk [vmem:[#allocation3 + $0x98] sm:$0xff] %vm521, 0.0
        %597 = vst.msk [vmem:[#allocation3 + $0xa0] sm:$0x3] %vm524, 0.0
        %598 = vst.msk [vmem:[#allocation3 + $0xa8] sm:$0xff] %vm521, 0.0
        %599 = vst.msk [vmem:[#allocation3 + $0xb0] sm:$0xff] %vm521, 0.0
        %600 = vst.msk [vmem:[#allocation3 + $0xb8] sm:$0x3] %vm524, 0.0
        %601 = vst.msk [vmem:[#allocation3 + $0xc0] sm:$0xff] %vm521, 0.0
        %602 = vst.msk [vmem:[#allocation3 + $0xc8] sm:$0xff] %vm521, 0.0
        %603 = vst.msk [vmem:[#allocation3 + $0xd0] sm:$0x3] %vm524, 0.0
        %604 = vst.msk [vmem:[#allocation3 + $0xd8] sm:$0xff] %vm521, 0.0
        %605 = vst.msk [vmem:[#allocation3 + $0xe0] sm:$0xff] %vm521, 0.0
        %606 = vst.msk [vmem:[#allocation3 + $0xe8] sm:$0x3] %vm524, 0.0
        %607 = vst.msk [vmem:[#allocation3 + $0xf0] sm:$0xff] %vm521, 0.0
        %608 = vst.msk [vmem:[#allocation3 + $0xf8] sm:$0xff] %vm521, 0.0
        %609 = vst.msk [vmem:[#allocation3 + $0x100] sm:$0x3] %vm524, 0.0
        %610 = vst.msk [vmem:[#allocation3 + $0x108] sm:$0xff] %vm521, 0.0
        %611 = vst.msk [vmem:[#allocation3 + $0x110] sm:$0xff] %vm521, 0.0
        %612 = vst.msk [vmem:[#allocation3 + $0x118] sm:$0x3] %vm524, 0.0
        %613 = vst.msk [vmem:[#allocation3 + $0x120] sm:$0xff] %vm521, 0.0
        %614 = vst.msk [vmem:[#allocation3 + $0x128] sm:$0xff] %vm521, 0.0
        %615 = vst.msk [vmem:[#allocation3 + $0x130] sm:$0x3] %vm524, 0.0
        %616 = vst.msk [vmem:[#allocation3 + $0x138] sm:$0xff] %vm521, 0.0
        %617 = vst.msk [vmem:[#allocation3 + $0x140] sm:$0xff] %vm521, 0.0
        %618 = vst.msk [vmem:[#allocation3 + $0x148] sm:$0x3] %vm524, 0.0
        %619 = vst.msk [vmem:[#allocation3 + $0x150] sm:$0xff] %vm521, 0.0
        %620 = vst.msk [vmem:[#allocation3 + $0x158] sm:$0xff] %vm521, 0.0
        %621 = vst.msk [vmem:[#allocation3 + $0x160] sm:$0x3] %vm524, 0.0
        %622 = vst.msk [vmem:[#allocation3 + $0x168] sm:$0xff] %vm521, 0.0
        %623 = vst.msk [vmem:[#allocation3 + $0x170] sm:$0xff] %vm521, 0.0
        %624 = vst.msk [vmem:[#allocation3 + $0x178] sm:$0x3] %vm524, 0.0
        %625 = vst.msk [vmem:[#allocation3 + $0x180] sm:$0xff] %vm521, 0.0
        %626 = vst.msk [vmem:[#allocation3 + $0x188] sm:$0xff] %vm521, 0.0
        %627 = vst.msk [vmem:[#allocation3 + $0x190] sm:$0x3] %vm524, 0.0
        %628 = vst.msk [vmem:[#allocation3 + $0x198] sm:$0xff] %vm521, 0.0
        %629 = vst.msk [vmem:[#allocation3 + $0x1a0] sm:$0xff] %vm521, 0.0
        %630 = vst.msk [vmem:[#allocation3 + $0x1a8] sm:$0x3] %vm524, 0.0
        %v631 = vld [vmem:[%s505] sm:$0xff]
        %v632 = vld [vmem:[%s505 + $0x8] sm:$0xff]
        %v633 = vld [vmem:[%s505 + $0x10] sm:$0xff]
        %v634 = vld [vmem:[%s505 + $0x18] sm:$0xff]
        %v635 = vld [vmem:[%s505 + $0x20] sm:$0xff]
        %v636 = vld [vmem:[%s505 + $0x28] sm:$0xff]
        %v637 = vld [vmem:[%s505 + $0x30] sm:$0xff]
        %v638 = vld [vmem:[%s505 + $0x38] sm:$0xff]
        %v639 = vld [vmem:[%s505 + $0x40] sm:$0xff]
        %v640 = vld [vmem:[%s505 + $0x48] sm:$0xff]
        %v641 = vld [vmem:[%s505 + $0x50] sm:$0xff]
        %v642 = vld [vmem:[%s505 + $0x58] sm:$0xff]
        %v643 = vld [vmem:[%s505 + $0x60] sm:$0xff]
        %v644 = vld [vmem:[%s505 + $0x68] sm:$0xff]
        %v645 = vld [vmem:[%s505 + $0x70] sm:$0xff]
        %v646 = vld [vmem:[%s505 + $0x78] sm:$0xff]
        %v647 = vld [vmem:[%s505 + $0x80] sm:$0xff]
        %v648 = vld [vmem:[%s505 + $0x88] sm:$0xff]
        %v649 = vld [vmem:[%s505 + $0x90] sm:$0xff]
        %v650 = vld [vmem:[%s505 + $0x98] sm:$0xff]
        %v651 = vld [vmem:[%s505 + $0xa0] sm:$0xff]
        %v652 = vld [vmem:[%s505 + $0xa8] sm:$0xff]
        %v653 = vld [vmem:[%s505 + $0xb0] sm:$0xff]
        %v654 = vld [vmem:[%s505 + $0xb8] sm:$0xff]
        %v655 = vld [vmem:[%s505 + $0xc0] sm:$0xff]
        %v656 = vld [vmem:[%s505 + $0xc8] sm:$0xff]
        %v657 = vld [vmem:[%s505 + $0xd0] sm:$0xff]
        %v658 = vld [vmem:[%s505 + $0xd8] sm:$0xff]
        %v659 = vld [vmem:[%s505 + $0xe0] sm:$0xff]
        %v660 = vld [vmem:[%s505 + $0xe8] sm:$0xff]
        %v661 = vld [vmem:[%s505 + $0xf0] sm:$0xff]
        %v662 = vld [vmem:[%s505 + $0xf8] sm:$0xff]
        %v663 = vld [vmem:[%s510] sm:$0xff]
        %v664 = vld [vmem:[%s510 + $0x8] sm:$0xff]
        %v665 = vld [vmem:[%s510 + $0x10] sm:$0xff]
        %v666 = vld [vmem:[%s510 + $0x18] sm:$0xff]
        %v667 = vld [vmem:[%s510 + $0x20] sm:$0xff]
        %v668 = vld [vmem:[%s510 + $0x28] sm:$0xff]
        %v669 = vld [vmem:[%s510 + $0x30] sm:$0xff]
        %v670 = vld [vmem:[%s510 + $0x38] sm:$0xff]
        %v671 = vld [vmem:[%s510 + $0x40] sm:$0xff]
        %v672 = vld [vmem:[%s510 + $0x48] sm:$0xff]
        %v673 = vld [vmem:[%s510 + $0x50] sm:$0xff]
        %v674 = vld [vmem:[%s510 + $0x58] sm:$0xff]
        %v675 = vld [vmem:[%s510 + $0x60] sm:$0xff]
        %v676 = vld [vmem:[%s510 + $0x68] sm:$0xff]
        %v677 = vld [vmem:[%s510 + $0x70] sm:$0xff]
        %v678 = vld [vmem:[%s510 + $0x78] sm:$0xff]
        %v679 = vld [vmem:[%s510 + $0x80] sm:$0xff]
        %v680 = vld [vmem:[%s510 + $0x88] sm:$0xff]
        %v681 = vld [vmem:[%s510 + $0x90] sm:$0xff]
        %v682 = vld [vmem:[%s510 + $0x98] sm:$0xff]
        %v683 = vld [vmem:[%s510 + $0xa0] sm:$0xff]
        %v684 = vld [vmem:[%s510 + $0xa8] sm:$0xff]
        %v685 = vld [vmem:[%s510 + $0xb0] sm:$0xff]
        %v686 = vld [vmem:[%s510 + $0xb8] sm:$0xff]
        %v687 = vld [vmem:[%s510 + $0xc0] sm:$0xff]
        %v688 = vld [vmem:[%s510 + $0xc8] sm:$0xff]
        %v689 = vld [vmem:[%s510 + $0xd0] sm:$0xff]
        %v690 = vld [vmem:[%s510 + $0xd8] sm:$0xff]
        %v691 = vld [vmem:[%s510 + $0xe0] sm:$0xff]
        %v692 = vld [vmem:[%s510 + $0xe8] sm:$0xff]
        %v693 = vld [vmem:[%s510 + $0xf0] sm:$0xff]
        %v694 = vld [vmem:[%s510 + $0xf8] sm:$0xff]
        %v695 = vld [vmem:[%s515] sm:$0xff]
        %v696 = vld [vmem:[%s515 + $0x8] sm:$0xff]
        %v697 = vld [vmem:[%s515 + $0x10] sm:$0xff]
        %v698 = vld [vmem:[%s515 + $0x18] sm:$0xff]
        %v699 = vld [vmem:[%s515 + $0x20] sm:$0xff]
        %v700 = vld [vmem:[%s515 + $0x28] sm:$0xff]
        %v701 = vld [vmem:[%s515 + $0x30] sm:$0xff]
        %v702 = vld [vmem:[%s515 + $0x38] sm:$0xff]
        %v703 = vld [vmem:[%s515 + $0x40] sm:$0xff]
        %v704 = vld [vmem:[%s515 + $0x48] sm:$0xff]
        %v705 = vld [vmem:[%s515 + $0x50] sm:$0xff]
        %v706 = vld [vmem:[%s515 + $0x58] sm:$0xff]
        %v707 = vld [vmem:[%s515 + $0x60] sm:$0xff]
        %v708 = vld [vmem:[%s515 + $0x68] sm:$0xff]
        %v709 = vld [vmem:[%s515 + $0x70] sm:$0xff]
        %v710 = vld [vmem:[%s515 + $0x78] sm:$0xff]
        %v711 = vld [vmem:[%s515 + $0x80] sm:$0xff]
        %v712 = vld [vmem:[%s515 + $0x88] sm:$0xff]
        %v713 = vld [vmem:[%s515 + $0x90] sm:$0xff]
        %v714 = vld [vmem:[%s515 + $0x98] sm:$0xff]
        %v715 = vld [vmem:[%s515 + $0xa0] sm:$0xff]
        %v716 = vld [vmem:[%s515 + $0xa8] sm:$0xff]
        %v717 = vld [vmem:[%s515 + $0xb0] sm:$0xff]
        %v718 = vld [vmem:[%s515 + $0xb8] sm:$0xff]
        %v719 = vld [vmem:[%s515 + $0xc0] sm:$0xff]
        %v720 = vld [vmem:[%s515 + $0xc8] sm:$0xff]
        %v721 = vld [vmem:[%s515 + $0xd0] sm:$0xff]
        %v722 = vld [vmem:[%s515 + $0xd8] sm:$0xff]
        %v723 = vld [vmem:[%s515 + $0xe0] sm:$0xff]
        %v724 = vld [vmem:[%s515 + $0xe8] sm:$0xff]
        %v725 = vld [vmem:[%s515 + $0xf0] sm:$0xff]
        %v726 = vld [vmem:[%s515 + $0xf8] sm:$0xff]
        %v727 = vld [vmem:[%s3] sm:$0xf]
        %v728 = vld [vmem:[%s4] sm:$0x1]
        %730 = vset.pattern.permute.xlu0 0
        %731 = vperm.xlu0 %730, %v631
        %v732 = vpop.permute.xlu0 %731
        %735 = vset.pattern.permute.xlu0 0
        %736 = vperm.xlu0 %735, %v632
        %v737 = vpop.permute.xlu0 %736
        %740 = vset.pattern.permute.xlu0 0
        %741 = vperm.xlu0 %740, %v633
        %v742 = vpop.permute.xlu0 %741
        %745 = vset.pattern.permute.xlu0 0
        %746 = vperm.xlu0 %745, %v634
        %v747 = vpop.permute.xlu0 %746
        %750 = vset.pattern.permute.xlu0 0
        %751 = vperm.xlu0 %750, %v635
        %v752 = vpop.permute.xlu0 %751
        %755 = vset.pattern.permute.xlu0 0
        %756 = vperm.xlu0 %755, %v636
        %v757 = vpop.permute.xlu0 %756
        %760 = vset.pattern.permute.xlu0 0
        %761 = vperm.xlu0 %760, %v637
        %v762 = vpop.permute.xlu0 %761
        %765 = vset.pattern.permute.xlu0 0
        %766 = vperm.xlu0 %765, %v638
        %v767 = vpop.permute.xlu0 %766
        %770 = vset.pattern.permute.xlu0 0
        %771 = vperm.xlu0 %770, %v639
        %v772 = vpop.permute.xlu0 %771
        %775 = vset.pattern.permute.xlu0 0
        %776 = vperm.xlu0 %775, %v640
        %v777 = vpop.permute.xlu0 %776
        %780 = vset.pattern.permute.xlu0 0
        %781 = vperm.xlu0 %780, %v641
        %v782 = vpop.permute.xlu0 %781
        %785 = vset.pattern.permute.xlu0 0
        %786 = vperm.xlu0 %785, %v642
        %v787 = vpop.permute.xlu0 %786
        %790 = vset.pattern.permute.xlu0 0
        %791 = vperm.xlu0 %790, %v643
        %v792 = vpop.permute.xlu0 %791
        %795 = vset.pattern.permute.xlu0 0
        %796 = vperm.xlu0 %795, %v644
        %v797 = vpop.permute.xlu0 %796
        %800 = vset.pattern.permute.xlu0 0
        %801 = vperm.xlu0 %800, %v645
        %v802 = vpop.permute.xlu0 %801
        %805 = vset.pattern.permute.xlu0 0
        %806 = vperm.xlu0 %805, %v646
        %v807 = vpop.permute.xlu0 %806
        %810 = vset.pattern.permute.xlu0 0
        %811 = vperm.xlu0 %810, %v647
        %v812 = vpop.permute.xlu0 %811
        %815 = vset.pattern.permute.xlu0 0
        %816 = vperm.xlu0 %815, %v648
        %v817 = vpop.permute.xlu0 %816
        %820 = vset.pattern.permute.xlu0 0
        %821 = vperm.xlu0 %820, %v649
        %v822 = vpop.permute.xlu0 %821
        %825 = vset.pattern.permute.xlu0 0
        %826 = vperm.xlu0 %825, %v650
        %v827 = vpop.permute.xlu0 %826
        %830 = vset.pattern.permute.xlu0 0
        %831 = vperm.xlu0 %830, %v651
        %v832 = vpop.permute.xlu0 %831
        %835 = vset.pattern.permute.xlu0 0
        %836 = vperm.xlu0 %835, %v652
        %v837 = vpop.permute.xlu0 %836
        %840 = vset.pattern.permute.xlu0 0
        %841 = vperm.xlu0 %840, %v653
        %v842 = vpop.permute.xlu0 %841
        %845 = vset.pattern.permute.xlu0 0
        %846 = vperm.xlu0 %845, %v654
        %v847 = vpop.permute.xlu0 %846
        %850 = vset.pattern.permute.xlu0 0
        %851 = vperm.xlu0 %850, %v655
        %v852 = vpop.permute.xlu0 %851
        %855 = vset.pattern.permute.xlu0 0
        %856 = vperm.xlu0 %855, %v656
        %v857 = vpop.permute.xlu0 %856
        %860 = vset.pattern.permute.xlu0 0
        %861 = vperm.xlu0 %860, %v657
        %v862 = vpop.permute.xlu0 %861
        %865 = vset.pattern.permute.xlu0 0
        %866 = vperm.xlu0 %865, %v658
        %v867 = vpop.permute.xlu0 %866
        %870 = vset.pattern.permute.xlu0 0
        %871 = vperm.xlu0 %870, %v659
        %v872 = vpop.permute.xlu0 %871
        %875 = vset.pattern.permute.xlu0 0
        %876 = vperm.xlu0 %875, %v660
        %v877 = vpop.permute.xlu0 %876
        %880 = vset.pattern.permute.xlu0 0
        %881 = vperm.xlu0 %880, %v661
        %v882 = vpop.permute.xlu0 %881
        %885 = vset.pattern.permute.xlu0 0
        %886 = vperm.xlu0 %885, %v662
        %v887 = vpop.permute.xlu0 %886
        %v889 = vlaneseq
        %v890 = vshrl.u32 %v889, 7
        %v891 = vsub.s32 0, %v890
        %v892 = vrot.slane %v727, %v891
        %v893 = vmul.f32 %v732, %v892
        %v894 = vmul.f32 %v737, %v892
        %v895 = vmul.f32 %v742, %v892
        %v896 = vmul.f32 %v747, %v892
        %v897 = vmul.f32 %v752, %v892
        %v898 = vmul.f32 %v757, %v892
        %v899 = vmul.f32 %v762, %v892
        %v900 = vmul.f32 %v767, %v892
        %v901 = vmul.f32 %v772, %v892
        %v902 = vmul.f32 %v777, %v892
        %v903 = vmul.f32 %v782, %v892
        %v904 = vmul.f32 %v787, %v892
        %v905 = vmul.f32 %v792, %v892
        %v906 = vmul.f32 %v797, %v892
        %v907 = vmul.f32 %v802, %v892
        %v908 = vmul.f32 %v807, %v892
        %v909 = vmul.f32 %v812, %v892
        %v910 = vmul.f32 %v817, %v892
        %v911 = vmul.f32 %v822, %v892
        %v912 = vmul.f32 %v827, %v892
        %v913 = vmul.f32 %v832, %v892
        %v914 = vmul.f32 %v837, %v892
        %v915 = vmul.f32 %v842, %v892
        %v916 = vmul.f32 %v847, %v892
        %v917 = vmul.f32 %v852, %v892
        %v918 = vmul.f32 %v857, %v892
        %v919 = vmul.f32 %v862, %v892
        %v920 = vmul.f32 %v867, %v892
        %v921 = vmul.f32 %v872, %v892
        %v922 = vmul.f32 %v877, %v892
        %v923 = vmul.f32 %v882, %v892
        %v924 = vmul.f32 %v887, %v892
        %v926 = vlaneseq
        %v927 = vshrl.u32 %v926, 7
        %v928 = vsub.s32 0, %v927
        %v929 = vrot.slane %v728, %v928
        %v931 = vadd.f32 %v929, %v893
        %v932 = vadd.f32 %v929, %v894
        %v933 = vadd.f32 %v929, %v895
        %v934 = vadd.f32 %v929, %v896
        %v935 = vadd.f32 %v929, %v897
        %v936 = vadd.f32 %v929, %v898
        %v937 = vadd.f32 %v929, %v899
        %v938 = vadd.f32 %v929, %v900
        %v939 = vadd.f32 %v929, %v901
        %v940 = vadd.f32 %v929, %v902
        %v941 = vadd.f32 %v929, %v903
        %v942 = vadd.f32 %v929, %v904
        %v943 = vadd.f32 %v929, %v905
        %v944 = vadd.f32 %v929, %v906
        %v945 = vadd.f32 %v929, %v907
        %v946 = vadd.f32 %v929, %v908
        %v947 = vadd.f32 %v929, %v909
        %v948 = vadd.f32 %v929, %v910
        %v949 = vadd.f32 %v929, %v911
        %v950 = vadd.f32 %v929, %v912
        %v951 = vadd.f32 %v929, %v913
        %v952 = vadd.f32 %v929, %v914
        %v953 = vadd.f32 %v929, %v915
        %v954 = vadd.f32 %v929, %v916
        %v955 = vadd.f32 %v929, %v917
        %v956 = vadd.f32 %v929, %v918
        %v957 = vadd.f32 %v929, %v919
        %v958 = vadd.f32 %v929, %v920
        %v959 = vadd.f32 %v929, %v921
        %v960 = vadd.f32 %v929, %v922
        %v961 = vadd.f32 %v929, %v923
        %v962 = vadd.f32 %v929, %v924
        %963 = vset.pattern.permute.xlu0 1
        %964 = vperm.xlu0 %963, %v631
        %v965 = vpop.permute.xlu0 %964
        %967 = vset.pattern.permute.xlu0 1
        %968 = vperm.xlu0 %967, %v632
        %v969 = vpop.permute.xlu0 %968
        %971 = vset.pattern.permute.xlu0 1
        %972 = vperm.xlu0 %971, %v633
        %v973 = vpop.permute.xlu0 %972
        %975 = vset.pattern.permute.xlu0 1
        %976 = vperm.xlu0 %975, %v634
        %v977 = vpop.permute.xlu0 %976
        %979 = vset.pattern.permute.xlu0 1
        %980 = vperm.xlu0 %979, %v635
        %v981 = vpop.permute.xlu0 %980
        %983 = vset.pattern.permute.xlu0 1
        %984 = vperm.xlu0 %983, %v636
        %v985 = vpop.permute.xlu0 %984
        %987 = vset.pattern.permute.xlu0 1
        %988 = vperm.xlu0 %987, %v637
        %v989 = vpop.permute.xlu0 %988
        %991 = vset.pattern.permute.xlu0 1
        %992 = vperm.xlu0 %991, %v638
        %v993 = vpop.permute.xlu0 %992
        %995 = vset.pattern.permute.xlu0 1
        %996 = vperm.xlu0 %995, %v639
        %v997 = vpop.permute.xlu0 %996
        %999 = vset.pattern.permute.xlu0 1
        %1000 = vperm.xlu0 %999, %v640
        %v1001 = vpop.permute.xlu0 %1000
        %1003 = vset.pattern.permute.xlu0 1
        %1004 = vperm.xlu0 %1003, %v641
        %v1005 = vpop.permute.xlu0 %1004
        %1007 = vset.pattern.permute.xlu0 1
        %1008 = vperm.xlu0 %1007, %v642
        %v1009 = vpop.permute.xlu0 %1008
        %1011 = vset.pattern.permute.xlu0 1
        %1012 = vperm.xlu0 %1011, %v643
        %v1013 = vpop.permute.xlu0 %1012
        %1015 = vset.pattern.permute.xlu0 1
        %1016 = vperm.xlu0 %1015, %v644
        %v1017 = vpop.permute.xlu0 %1016
        %1019 = vset.pattern.permute.xlu0 1
        %1020 = vperm.xlu0 %1019, %v645
        %v1021 = vpop.permute.xlu0 %1020
        %1023 = vset.pattern.permute.xlu0 1
        %1024 = vperm.xlu0 %1023, %v646
        %v1025 = vpop.permute.xlu0 %1024
        %1027 = vset.pattern.permute.xlu0 1
        %1028 = vperm.xlu0 %1027, %v647
        %v1029 = vpop.permute.xlu0 %1028
        %1031 = vset.pattern.permute.xlu0 1
        %1032 = vperm.xlu0 %1031, %v648
        %v1033 = vpop.permute.xlu0 %1032
        %1035 = vset.pattern.permute.xlu0 1
        %1036 = vperm.xlu0 %1035, %v649
        %v1037 = vpop.permute.xlu0 %1036
        %1039 = vset.pattern.permute.xlu0 1
        %1040 = vperm.xlu0 %1039, %v650
        %v1041 = vpop.permute.xlu0 %1040
        %1043 = vset.pattern.permute.xlu0 1
        %1044 = vperm.xlu0 %1043, %v651
        %v1045 = vpop.permute.xlu0 %1044
        %1047 = vset.pattern.permute.xlu0 1
        %1048 = vperm.xlu0 %1047, %v652
        %v1049 = vpop.permute.xlu0 %1048
        %1051 = vset.pattern.permute.xlu0 1
        %1052 = vperm.xlu0 %1051, %v653
        %v1053 = vpop.permute.xlu0 %1052
        %1055 = vset.pattern.permute.xlu0 1
        %1056 = vperm.xlu0 %1055, %v654
        %v1057 = vpop.permute.xlu0 %1056
        %1059 = vset.pattern.permute.xlu0 1
        %1060 = vperm.xlu0 %1059, %v655
        %v1061 = vpop.permute.xlu0 %1060
        %1063 = vset.pattern.permute.xlu0 1
        %1064 = vperm.xlu0 %1063, %v656
        %v1065 = vpop.permute.xlu0 %1064
        %1067 = vset.pattern.permute.xlu0 1
        %1068 = vperm.xlu0 %1067, %v657
        %v1069 = vpop.permute.xlu0 %1068
        %1071 = vset.pattern.permute.xlu0 1
        %1072 = vperm.xlu0 %1071, %v658
        %v1073 = vpop.permute.xlu0 %1072
        %1075 = vset.pattern.permute.xlu0 1
        %1076 = vperm.xlu0 %1075, %v659
        %v1077 = vpop.permute.xlu0 %1076
        %1079 = vset.pattern.permute.xlu0 1
        %1080 = vperm.xlu0 %1079, %v660
        %v1081 = vpop.permute.xlu0 %1080
        %1083 = vset.pattern.permute.xlu0 1
        %1084 = vperm.xlu0 %1083, %v661
        %v1085 = vpop.permute.xlu0 %1084
        %1087 = vset.pattern.permute.xlu0 1
        %1088 = vperm.xlu0 %1087, %v662
        %v1089 = vpop.permute.xlu0 %1088
        %v1091 = vlaneseq
        %v1092 = vshrl.u32 %v1091, 7
        %v1093 = vsub.s32 1, %v1092
        %v1094 = vrot.slane %v727, %v1093
        %v1095 = vmul.f32 %v965, %v1094
        %v1096 = vmul.f32 %v969, %v1094
        %v1097 = vmul.f32 %v973, %v1094
        %v1098 = vmul.f32 %v977, %v1094
        %v1099 = vmul.f32 %v981, %v1094
        %v1100 = vmul.f32 %v985, %v1094
        %v1101 = vmul.f32 %v989, %v1094
        %v1102 = vmul.f32 %v993, %v1094
        %v1103 = vmul.f32 %v997, %v1094
        %v1104 = vmul.f32 %v1001, %v1094
        %v1105 = vmul.f32 %v1005, %v1094
        %v1106 = vmul.f32 %v1009, %v1094
        %v1107 = vmul.f32 %v1013, %v1094
        %v1108 = vmul.f32 %v1017, %v1094
        %v1109 = vmul.f32 %v1021, %v1094
        %v1110 = vmul.f32 %v1025, %v1094
        %v1111 = vmul.f32 %v1029, %v1094
        %v1112 = vmul.f32 %v1033, %v1094
        %v1113 = vmul.f32 %v1037, %v1094
        %v1114 = vmul.f32 %v1041, %v1094
        %v1115 = vmul.f32 %v1045, %v1094
        %v1116 = vmul.f32 %v1049, %v1094
        %v1117 = vmul.f32 %v1053, %v1094
        %v1118 = vmul.f32 %v1057, %v1094
        %v1119 = vmul.f32 %v1061, %v1094
        %v1120 = vmul.f32 %v1065, %v1094
        %v1121 = vmul.f32 %v1069, %v1094
        %v1122 = vmul.f32 %v1073, %v1094
        %v1123 = vmul.f32 %v1077, %v1094
        %v1124 = vmul.f32 %v1081, %v1094
        %v1125 = vmul.f32 %v1085, %v1094
        %v1126 = vmul.f32 %v1089, %v1094
        %v1127 = vadd.f32 %v931, %v1095
        %v1128 = vadd.f32 %v932, %v1096
        %v1129 = vadd.f32 %v933, %v1097
        %v1130 = vadd.f32 %v934, %v1098
        %v1131 = vadd.f32 %v935, %v1099
        %v1132 = vadd.f32 %v936, %v1100
        %v1133 = vadd.f32 %v937, %v1101
        %v1134 = vadd.f32 %v938, %v1102
        %v1135 = vadd.f32 %v939, %v1103
        %v1136 = vadd.f32 %v940, %v1104
        %v1137 = vadd.f32 %v941, %v1105
        %v1138 = vadd.f32 %v942, %v1106
        %v1139 = vadd.f32 %v943, %v1107
        %v1140 = vadd.f32 %v944, %v1108
        %v1141 = vadd.f32 %v945, %v1109
        %v1142 = vadd.f32 %v946, %v1110
        %v1143 = vadd.f32 %v947, %v1111
        %v1144 = vadd.f32 %v948, %v1112
        %v1145 = vadd.f32 %v949, %v1113
        %v1146 = vadd.f32 %v950, %v1114
        %v1147 = vadd.f32 %v951, %v1115
        %v1148 = vadd.f32 %v952, %v1116
        %v1149 = vadd.f32 %v953, %v1117
        %v1150 = vadd.f32 %v954, %v1118
        %v1151 = vadd.f32 %v955, %v1119
        %v1152 = vadd.f32 %v956, %v1120
        %v1153 = vadd.f32 %v957, %v1121
        %v1154 = vadd.f32 %v958, %v1122
        %v1155 = vadd.f32 %v959, %v1123
        %v1156 = vadd.f32 %v960, %v1124
        %v1157 = vadd.f32 %v961, %v1125
        %v1158 = vadd.f32 %v962, %v1126
        %1159 = vset.pattern.permute.xlu0 2
        %1160 = vperm.xlu0 %1159, %v631
        %v1161 = vpop.permute.xlu0 %1160
        %1163 = vset.pattern.permute.xlu0 2
        %1164 = vperm.xlu0 %1163, %v632
        %v1165 = vpop.permute.xlu0 %1164
        %1167 = vset.pattern.permute.xlu0 2
        %1168 = vperm.xlu0 %1167, %v633
        %v1169 = vpop.permute.xlu0 %1168
        %1171 = vset.pattern.permute.xlu0 2
        %1172 = vperm.xlu0 %1171, %v634
        %v1173 = vpop.permute.xlu0 %1172
        %1175 = vset.pattern.permute.xlu0 2
        %1176 = vperm.xlu0 %1175, %v635
        %v1177 = vpop.permute.xlu0 %1176
        %1179 = vset.pattern.permute.xlu0 2
        %1180 = vperm.xlu0 %1179, %v636
        %v1181 = vpop.permute.xlu0 %1180
        %1183 = vset.pattern.permute.xlu0 2
        %1184 = vperm.xlu0 %1183, %v637
        %v1185 = vpop.permute.xlu0 %1184
        %1187 = vset.pattern.permute.xlu0 2
        %1188 = vperm.xlu0 %1187, %v638
        %v1189 = vpop.permute.xlu0 %1188
        %1191 = vset.pattern.permute.xlu0 2
        %1192 = vperm.xlu0 %1191, %v639
        %v1193 = vpop.permute.xlu0 %1192
        %1195 = vset.pattern.permute.xlu0 2
        %1196 = vperm.xlu0 %1195, %v640
        %v1197 = vpop.permute.xlu0 %1196
        %1199 = vset.pattern.permute.xlu0 2
        %1200 = vperm.xlu0 %1199, %v641
        %v1201 = vpop.permute.xlu0 %1200
        %1203 = vset.pattern.permute.xlu0 2
        %1204 = vperm.xlu0 %1203, %v642
        %v1205 = vpop.permute.xlu0 %1204
        %1207 = vset.pattern.permute.xlu0 2
        %1208 = vperm.xlu0 %1207, %v643
        %v1209 = vpop.permute.xlu0 %1208
        %1211 = vset.pattern.permute.xlu0 2
        %1212 = vperm.xlu0 %1211, %v644
        %v1213 = vpop.permute.xlu0 %1212
        %1215 = vset.pattern.permute.xlu0 2
        %1216 = vperm.xlu0 %1215, %v645
        %v1217 = vpop.permute.xlu0 %1216
        %1219 = vset.pattern.permute.xlu0 2
        %1220 = vperm.xlu0 %1219, %v646
        %v1221 = vpop.permute.xlu0 %1220
        %1223 = vset.pattern.permute.xlu0 2
        %1224 = vperm.xlu0 %1223, %v647
        %v1225 = vpop.permute.xlu0 %1224
        %1227 = vset.pattern.permute.xlu0 2
        %1228 = vperm.xlu0 %1227, %v648
        %v1229 = vpop.permute.xlu0 %1228
        %1231 = vset.pattern.permute.xlu0 2
        %1232 = vperm.xlu0 %1231, %v649
        %v1233 = vpop.permute.xlu0 %1232
        %1235 = vset.pattern.permute.xlu0 2
        %1236 = vperm.xlu0 %1235, %v650
        %v1237 = vpop.permute.xlu0 %1236
        %1239 = vset.pattern.permute.xlu0 2
        %1240 = vperm.xlu0 %1239, %v651
        %v1241 = vpop.permute.xlu0 %1240
        %1243 = vset.pattern.permute.xlu0 2
        %1244 = vperm.xlu0 %1243, %v652
        %v1245 = vpop.permute.xlu0 %1244
        %1247 = vset.pattern.permute.xlu0 2
        %1248 = vperm.xlu0 %1247, %v653
        %v1249 = vpop.permute.xlu0 %1248
        %1251 = vset.pattern.permute.xlu0 2
        %1252 = vperm.xlu0 %1251, %v654
        %v1253 = vpop.permute.xlu0 %1252
        %1255 = vset.pattern.permute.xlu0 2
        %1256 = vperm.xlu0 %1255, %v655
        %v1257 = vpop.permute.xlu0 %1256
        %1259 = vset.pattern.permute.xlu0 2
        %1260 = vperm.xlu0 %1259, %v656
        %v1261 = vpop.permute.xlu0 %1260
        %1263 = vset.pattern.permute.xlu0 2
        %1264 = vperm.xlu0 %1263, %v657
        %v1265 = vpop.permute.xlu0 %1264
        %1267 = vset.pattern.permute.xlu0 2
        %1268 = vperm.xlu0 %1267, %v658
        %v1269 = vpop.permute.xlu0 %1268
        %1271 = vset.pattern.permute.xlu0 2
        %1272 = vperm.xlu0 %1271, %v659
        %v1273 = vpop.permute.xlu0 %1272
        %1275 = vset.pattern.permute.xlu0 2
        %1276 = vperm.xlu0 %1275, %v660
        %v1277 = vpop.permute.xlu0 %1276
        %1279 = vset.pattern.permute.xlu0 2
        %1280 = vperm.xlu0 %1279, %v661
        %v1281 = vpop.permute.xlu0 %1280
        %1283 = vset.pattern.permute.xlu0 2
        %1284 = vperm.xlu0 %1283, %v662
        %v1285 = vpop.permute.xlu0 %1284
        %v1287 = vlaneseq
        %v1288 = vshrl.u32 %v1287, 7
        %v1289 = vsub.s32 2, %v1288
        %v1290 = vrot.slane %v727, %v1289
        %v1291 = vmul.f32 %v1161, %v1290
        %v1292 = vmul.f32 %v1165, %v1290
        %v1293 = vmul.f32 %v1169, %v1290
        %v1294 = vmul.f32 %v1173, %v1290
        %v1295 = vmul.f32 %v1177, %v1290
        %v1296 = vmul.f32 %v1181, %v1290
        %v1297 = vmul.f32 %v1185, %v1290
        %v1298 = vmul.f32 %v1189, %v1290
        %v1299 = vmul.f32 %v1193, %v1290
        %v1300 = vmul.f32 %v1197, %v1290
        %v1301 = vmul.f32 %v1201, %v1290
        %v1302 = vmul.f32 %v1205, %v1290
        %v1303 = vmul.f32 %v1209, %v1290
        %v1304 = vmul.f32 %v1213, %v1290
        %v1305 = vmul.f32 %v1217, %v1290
        %v1306 = vmul.f32 %v1221, %v1290
        %v1307 = vmul.f32 %v1225, %v1290
        %v1308 = vmul.f32 %v1229, %v1290
        %v1309 = vmul.f32 %v1233, %v1290
        %v1310 = vmul.f32 %v1237, %v1290
        %v1311 = vmul.f32 %v1241, %v1290
        %v1312 = vmul.f32 %v1245, %v1290
        %v1313 = vmul.f32 %v1249, %v1290
        %v1314 = vmul.f32 %v1253, %v1290
        %v1315 = vmul.f32 %v1257, %v1290
        %v1316 = vmul.f32 %v1261, %v1290
        %v1317 = vmul.f32 %v1265, %v1290
        %v1318 = vmul.f32 %v1269, %v1290
        %v1319 = vmul.f32 %v1273, %v1290
        %v1320 = vmul.f32 %v1277, %v1290
        %v1321 = vmul.f32 %v1281, %v1290
        %v1322 = vmul.f32 %v1285, %v1290
        %v1323 = vadd.f32 %v1127, %v1291
        %v1324 = vadd.f32 %v1128, %v1292
        %v1325 = vadd.f32 %v1129, %v1293
        %v1326 = vadd.f32 %v1130, %v1294
        %v1327 = vadd.f32 %v1131, %v1295
        %v1328 = vadd.f32 %v1132, %v1296
        %v1329 = vadd.f32 %v1133, %v1297
        %v1330 = vadd.f32 %v1134, %v1298
        %v1331 = vadd.f32 %v1135, %v1299
        %v1332 = vadd.f32 %v1136, %v1300
        %v1333 = vadd.f32 %v1137, %v1301
        %v1334 = vadd.f32 %v1138, %v1302
        %v1335 = vadd.f32 %v1139, %v1303
        %v1336 = vadd.f32 %v1140, %v1304
        %v1337 = vadd.f32 %v1141, %v1305
        %v1338 = vadd.f32 %v1142, %v1306
        %v1339 = vadd.f32 %v1143, %v1307
        %v1340 = vadd.f32 %v1144, %v1308
        %v1341 = vadd.f32 %v1145, %v1309
        %v1342 = vadd.f32 %v1146, %v1310
        %v1343 = vadd.f32 %v1147, %v1311
        %v1344 = vadd.f32 %v1148, %v1312
        %v1345 = vadd.f32 %v1149, %v1313
        %v1346 = vadd.f32 %v1150, %v1314
        %v1347 = vadd.f32 %v1151, %v1315
        %v1348 = vadd.f32 %v1152, %v1316
        %v1349 = vadd.f32 %v1153, %v1317
        %v1350 = vadd.f32 %v1154, %v1318
        %v1351 = vadd.f32 %v1155, %v1319
        %v1352 = vadd.f32 %v1156, %v1320
        %v1353 = vadd.f32 %v1157, %v1321
        %v1354 = vadd.f32 %v1158, %v1322
        %1355 = vset.pattern.permute.xlu0 3
        %1356 = vperm.xlu0 %1355, %v631
        %v1357 = vpop.permute.xlu0 %1356
        %1359 = vset.pattern.permute.xlu0 3
        %1360 = vperm.xlu0 %1359, %v632
        %v1361 = vpop.permute.xlu0 %1360
        %1363 = vset.pattern.permute.xlu0 3
        %1364 = vperm.xlu0 %1363, %v633
        %v1365 = vpop.permute.xlu0 %1364
        %1367 = vset.pattern.permute.xlu0 3
        %1368 = vperm.xlu0 %1367, %v634
        %v1369 = vpop.permute.xlu0 %1368
        %1371 = vset.pattern.permute.xlu0 3
        %1372 = vperm.xlu0 %1371, %v635
        %v1373 = vpop.permute.xlu0 %1372
        %1375 = vset.pattern.permute.xlu0 3
        %1376 = vperm.xlu0 %1375, %v636
        %v1377 = vpop.permute.xlu0 %1376
        %1379 = vset.pattern.permute.xlu0 3
        %1380 = vperm.xlu0 %1379, %v637
        %v1381 = vpop.permute.xlu0 %1380
        %1383 = vset.pattern.permute.xlu0 3
        %1384 = vperm.xlu0 %1383, %v638
        %v1385 = vpop.permute.xlu0 %1384
        %1387 = vset.pattern.permute.xlu0 3
        %1388 = vperm.xlu0 %1387, %v639
        %v1389 = vpop.permute.xlu0 %1388
        %1391 = vset.pattern.permute.xlu0 3
        %1392 = vperm.xlu0 %1391, %v640
        %v1393 = vpop.permute.xlu0 %1392
        %1395 = vset.pattern.permute.xlu0 3
        %1396 = vperm.xlu0 %1395, %v641
        %v1397 = vpop.permute.xlu0 %1396
        %1399 = vset.pattern.permute.xlu0 3
        %1400 = vperm.xlu0 %1399, %v642
        %v1401 = vpop.permute.xlu0 %1400
        %1403 = vset.pattern.permute.xlu0 3
        %1404 = vperm.xlu0 %1403, %v643
        %v1405 = vpop.permute.xlu0 %1404
        %1407 = vset.pattern.permute.xlu0 3
        %1408 = vperm.xlu0 %1407, %v644
        %v1409 = vpop.permute.xlu0 %1408
        %1411 = vset.pattern.permute.xlu0 3
        %1412 = vperm.xlu0 %1411, %v645
        %v1413 = vpop.permute.xlu0 %1412
        %1415 = vset.pattern.permute.xlu0 3
        %1416 = vperm.xlu0 %1415, %v646
        %v1417 = vpop.permute.xlu0 %1416
        %1419 = vset.pattern.permute.xlu0 3
        %1420 = vperm.xlu0 %1419, %v647
        %v1421 = vpop.permute.xlu0 %1420
        %1423 = vset.pattern.permute.xlu0 3
        %1424 = vperm.xlu0 %1423, %v648
        %v1425 = vpop.permute.xlu0 %1424
        %1427 = vset.pattern.permute.xlu0 3
        %1428 = vperm.xlu0 %1427, %v649
        %v1429 = vpop.permute.xlu0 %1428
        %1431 = vset.pattern.permute.xlu0 3
        %1432 = vperm.xlu0 %1431, %v650
        %v1433 = vpop.permute.xlu0 %1432
        %1435 = vset.pattern.permute.xlu0 3
        %1436 = vperm.xlu0 %1435, %v651
        %v1437 = vpop.permute.xlu0 %1436
        %1439 = vset.pattern.permute.xlu0 3
        %1440 = vperm.xlu0 %1439, %v652
        %v1441 = vpop.permute.xlu0 %1440
        %1443 = vset.pattern.permute.xlu0 3
        %1444 = vperm.xlu0 %1443, %v653
        %v1445 = vpop.permute.xlu0 %1444
        %1447 = vset.pattern.permute.xlu0 3
        %1448 = vperm.xlu0 %1447, %v654
        %v1449 = vpop.permute.xlu0 %1448
        %1451 = vset.pattern.permute.xlu0 3
        %1452 = vperm.xlu0 %1451, %v655
        %v1453 = vpop.permute.xlu0 %1452
        %1455 = vset.pattern.permute.xlu0 3
        %1456 = vperm.xlu0 %1455, %v656
        %v1457 = vpop.permute.xlu0 %1456
        %1459 = vset.pattern.permute.xlu0 3
        %1460 = vperm.xlu0 %1459, %v657
        %v1461 = vpop.permute.xlu0 %1460
        %1463 = vset.pattern.permute.xlu0 3
        %1464 = vperm.xlu0 %1463, %v658
        %v1465 = vpop.permute.xlu0 %1464
        %1467 = vset.pattern.permute.xlu0 3
        %1468 = vperm.xlu0 %1467, %v659
        %v1469 = vpop.permute.xlu0 %1468
        %1471 = vset.pattern.permute.xlu0 3
        %1472 = vperm.xlu0 %1471, %v660
        %v1473 = vpop.permute.xlu0 %1472
        %1475 = vset.pattern.permute.xlu0 3
        %1476 = vperm.xlu0 %1475, %v661
        %v1477 = vpop.permute.xlu0 %1476
        %1479 = vset.pattern.permute.xlu0 3
        %1480 = vperm.xlu0 %1479, %v662
        %v1481 = vpop.permute.xlu0 %1480
        %v1483 = vlaneseq
        %v1484 = vshrl.u32 %v1483, 7
        %v1485 = vsub.s32 3, %v1484
        %v1486 = vrot.slane %v727, %v1485
        %v1487 = vmul.f32 %v1357, %v1486
        %v1488 = vmul.f32 %v1361, %v1486
        %v1489 = vmul.f32 %v1365, %v1486
        %v1490 = vmul.f32 %v1369, %v1486
        %v1491 = vmul.f32 %v1373, %v1486
        %v1492 = vmul.f32 %v1377, %v1486
        %v1493 = vmul.f32 %v1381, %v1486
        %v1494 = vmul.f32 %v1385, %v1486
        %v1495 = vmul.f32 %v1389, %v1486
        %v1496 = vmul.f32 %v1393, %v1486
        %v1497 = vmul.f32 %v1397, %v1486
        %v1498 = vmul.f32 %v1401, %v1486
        %v1499 = vmul.f32 %v1405, %v1486
        %v1500 = vmul.f32 %v1409, %v1486
        %v1501 = vmul.f32 %v1413, %v1486
        %v1502 = vmul.f32 %v1417, %v1486
        %v1503 = vmul.f32 %v1421, %v1486
        %v1504 = vmul.f32 %v1425, %v1486
        %v1505 = vmul.f32 %v1429, %v1486
        %v1506 = vmul.f32 %v1433, %v1486
        %v1507 = vmul.f32 %v1437, %v1486
        %v1508 = vmul.f32 %v1441, %v1486
        %v1509 = vmul.f32 %v1445, %v1486
        %v1510 = vmul.f32 %v1449, %v1486
        %v1511 = vmul.f32 %v1453, %v1486
        %v1512 = vmul.f32 %v1457, %v1486
        %v1513 = vmul.f32 %v1461, %v1486
        %v1514 = vmul.f32 %v1465, %v1486
        %v1515 = vmul.f32 %v1469, %v1486
        %v1516 = vmul.f32 %v1473, %v1486
        %v1517 = vmul.f32 %v1477, %v1486
        %v1518 = vmul.f32 %v1481, %v1486
        %v1519 = vadd.f32 %v1323, %v1487
        %v1520 = vadd.f32 %v1324, %v1488
        %v1521 = vadd.f32 %v1325, %v1489
        %v1522 = vadd.f32 %v1326, %v1490
        %v1523 = vadd.f32 %v1327, %v1491
        %v1524 = vadd.f32 %v1328, %v1492
        %v1525 = vadd.f32 %v1329, %v1493
        %v1526 = vadd.f32 %v1330, %v1494
        %v1527 = vadd.f32 %v1331, %v1495
        %v1528 = vadd.f32 %v1332, %v1496
        %v1529 = vadd.f32 %v1333, %v1497
        %v1530 = vadd.f32 %v1334, %v1498
        %v1531 = vadd.f32 %v1335, %v1499
        %v1532 = vadd.f32 %v1336, %v1500
        %v1533 = vadd.f32 %v1337, %v1501
        %v1534 = vadd.f32 %v1338, %v1502
        %v1535 = vadd.f32 %v1339, %v1503
        %v1536 = vadd.f32 %v1340, %v1504
        %v1537 = vadd.f32 %v1341, %v1505
        %v1538 = vadd.f32 %v1342, %v1506
        %v1539 = vadd.f32 %v1343, %v1507
        %v1540 = vadd.f32 %v1344, %v1508
        %v1541 = vadd.f32 %v1345, %v1509
        %v1542 = vadd.f32 %v1346, %v1510
        %v1543 = vadd.f32 %v1347, %v1511
        %v1544 = vadd.f32 %v1348, %v1512
        %v1545 = vadd.f32 %v1349, %v1513
        %v1546 = vadd.f32 %v1350, %v1514
        %v1547 = vadd.f32 %v1351, %v1515
        %v1548 = vadd.f32 %v1352, %v1516
        %v1549 = vadd.f32 %v1353, %v1517
        %v1550 = vadd.f32 %v1354, %v1518
        %1552 = vset.pattern.permute.xlu0 0
        %1553 = vperm.xlu0 %1552, %v663
        %v1554 = vpop.permute.xlu0 %1553
        %1557 = vset.pattern.permute.xlu0 0
        %1558 = vperm.xlu0 %1557, %v664
        %v1559 = vpop.permute.xlu0 %1558
        %1562 = vset.pattern.permute.xlu0 0
        %1563 = vperm.xlu0 %1562, %v665
        %v1564 = vpop.permute.xlu0 %1563
        %1567 = vset.pattern.permute.xlu0 0
        %1568 = vperm.xlu0 %1567, %v666
        %v1569 = vpop.permute.xlu0 %1568
        %1572 = vset.pattern.permute.xlu0 0
        %1573 = vperm.xlu0 %1572, %v667
        %v1574 = vpop.permute.xlu0 %1573
        %1577 = vset.pattern.permute.xlu0 0
        %1578 = vperm.xlu0 %1577, %v668
        %v1579 = vpop.permute.xlu0 %1578
        %1582 = vset.pattern.permute.xlu0 0
        %1583 = vperm.xlu0 %1582, %v669
        %v1584 = vpop.permute.xlu0 %1583
        %1587 = vset.pattern.permute.xlu0 0
        %1588 = vperm.xlu0 %1587, %v670
        %v1589 = vpop.permute.xlu0 %1588
        %1592 = vset.pattern.permute.xlu0 0
        %1593 = vperm.xlu0 %1592, %v671
        %v1594 = vpop.permute.xlu0 %1593
        %1597 = vset.pattern.permute.xlu0 0
        %1598 = vperm.xlu0 %1597, %v672
        %v1599 = vpop.permute.xlu0 %1598
        %1602 = vset.pattern.permute.xlu0 0
        %1603 = vperm.xlu0 %1602, %v673
        %v1604 = vpop.permute.xlu0 %1603
        %1607 = vset.pattern.permute.xlu0 0
        %1608 = vperm.xlu0 %1607, %v674
        %v1609 = vpop.permute.xlu0 %1608
        %1612 = vset.pattern.permute.xlu0 0
        %1613 = vperm.xlu0 %1612, %v675
        %v1614 = vpop.permute.xlu0 %1613
        %1617 = vset.pattern.permute.xlu0 0
        %1618 = vperm.xlu0 %1617, %v676
        %v1619 = vpop.permute.xlu0 %1618
        %1622 = vset.pattern.permute.xlu0 0
        %1623 = vperm.xlu0 %1622, %v677
        %v1624 = vpop.permute.xlu0 %1623
        %1627 = vset.pattern.permute.xlu0 0
        %1628 = vperm.xlu0 %1627, %v678
        %v1629 = vpop.permute.xlu0 %1628
        %1632 = vset.pattern.permute.xlu0 0
        %1633 = vperm.xlu0 %1632, %v679
        %v1634 = vpop.permute.xlu0 %1633
        %1637 = vset.pattern.permute.xlu0 0
        %1638 = vperm.xlu0 %1637, %v680
        %v1639 = vpop.permute.xlu0 %1638
        %1642 = vset.pattern.permute.xlu0 0
        %1643 = vperm.xlu0 %1642, %v681
        %v1644 = vpop.permute.xlu0 %1643
        %1647 = vset.pattern.permute.xlu0 0
        %1648 = vperm.xlu0 %1647, %v682
        %v1649 = vpop.permute.xlu0 %1648
        %1652 = vset.pattern.permute.xlu0 0
        %1653 = vperm.xlu0 %1652, %v683
        %v1654 = vpop.permute.xlu0 %1653
        %1657 = vset.pattern.permute.xlu0 0
        %1658 = vperm.xlu0 %1657, %v684
        %v1659 = vpop.permute.xlu0 %1658
        %1662 = vset.pattern.permute.xlu0 0
        %1663 = vperm.xlu0 %1662, %v685
        %v1664 = vpop.permute.xlu0 %1663
        %1667 = vset.pattern.permute.xlu0 0
        %1668 = vperm.xlu0 %1667, %v686
        %v1669 = vpop.permute.xlu0 %1668
        %1672 = vset.pattern.permute.xlu0 0
        %1673 = vperm.xlu0 %1672, %v687
        %v1674 = vpop.permute.xlu0 %1673
        %1677 = vset.pattern.permute.xlu0 0
        %1678 = vperm.xlu0 %1677, %v688
        %v1679 = vpop.permute.xlu0 %1678
        %1682 = vset.pattern.permute.xlu0 0
        %1683 = vperm.xlu0 %1682, %v689
        %v1684 = vpop.permute.xlu0 %1683
        %1687 = vset.pattern.permute.xlu0 0
        %1688 = vperm.xlu0 %1687, %v690
        %v1689 = vpop.permute.xlu0 %1688
        %1692 = vset.pattern.permute.xlu0 0
        %1693 = vperm.xlu0 %1692, %v691
        %v1694 = vpop.permute.xlu0 %1693
        %1697 = vset.pattern.permute.xlu0 0
        %1698 = vperm.xlu0 %1697, %v692
        %v1699 = vpop.permute.xlu0 %1698
        %1702 = vset.pattern.permute.xlu0 0
        %1703 = vperm.xlu0 %1702, %v693
        %v1704 = vpop.permute.xlu0 %1703
        %1707 = vset.pattern.permute.xlu0 0
        %1708 = vperm.xlu0 %1707, %v694
        %v1709 = vpop.permute.xlu0 %1708
        %v1711 = vmul.f32 %v1519, %v1554
        %v1712 = vmul.f32 %v1520, %v1559
        %v1713 = vmul.f32 %v1521, %v1564
        %v1714 = vmul.f32 %v1522, %v1569
        %v1715 = vmul.f32 %v1523, %v1574
        %v1716 = vmul.f32 %v1524, %v1579
        %v1717 = vmul.f32 %v1525, %v1584
        %v1718 = vmul.f32 %v1526, %v1589
        %v1719 = vmul.f32 %v1527, %v1594
        %v1720 = vmul.f32 %v1528, %v1599
        %v1721 = vmul.f32 %v1529, %v1604
        %v1722 = vmul.f32 %v1530, %v1609
        %v1723 = vmul.f32 %v1531, %v1614
        %v1724 = vmul.f32 %v1532, %v1619
        %v1725 = vmul.f32 %v1533, %v1624
        %v1726 = vmul.f32 %v1534, %v1629
        %v1727 = vmul.f32 %v1535, %v1634
        %v1728 = vmul.f32 %v1536, %v1639
        %v1729 = vmul.f32 %v1537, %v1644
        %v1730 = vmul.f32 %v1538, %v1649
        %v1731 = vmul.f32 %v1539, %v1654
        %v1732 = vmul.f32 %v1540, %v1659
        %v1733 = vmul.f32 %v1541, %v1664
        %v1734 = vmul.f32 %v1542, %v1669
        %v1735 = vmul.f32 %v1543, %v1674
        %v1736 = vmul.f32 %v1544, %v1679
        %v1737 = vmul.f32 %v1545, %v1684
        %v1738 = vmul.f32 %v1546, %v1689
        %v1739 = vmul.f32 %v1547, %v1694
        %v1740 = vmul.f32 %v1548, %v1699
        %v1741 = vmul.f32 %v1549, %v1704
        %v1742 = vmul.f32 %v1550, %v1709
        %1743 = vset.pattern.permute.xlu0 1
        %1744 = vperm.xlu0 %1743, %v663
        %v1745 = vpop.permute.xlu0 %1744
        %1747 = vset.pattern.permute.xlu0 1
        %1748 = vperm.xlu0 %1747, %v664
        %v1749 = vpop.permute.xlu0 %1748
        %1751 = vset.pattern.permute.xlu0 1
        %1752 = vperm.xlu0 %1751, %v665
        %v1753 = vpop.permute.xlu0 %1752
        %1755 = vset.pattern.permute.xlu0 1
        %1756 = vperm.xlu0 %1755, %v666
        %v1757 = vpop.permute.xlu0 %1756
        %1759 = vset.pattern.permute.xlu0 1
        %1760 = vperm.xlu0 %1759, %v667
        %v1761 = vpop.permute.xlu0 %1760
        %1763 = vset.pattern.permute.xlu0 1
        %1764 = vperm.xlu0 %1763, %v668
        %v1765 = vpop.permute.xlu0 %1764
        %1767 = vset.pattern.permute.xlu0 1
        %1768 = vperm.xlu0 %1767, %v669
        %v1769 = vpop.permute.xlu0 %1768
        %1771 = vset.pattern.permute.xlu0 1
        %1772 = vperm.xlu0 %1771, %v670
        %v1773 = vpop.permute.xlu0 %1772
        %1775 = vset.pattern.permute.xlu0 1
        %1776 = vperm.xlu0 %1775, %v671
        %v1777 = vpop.permute.xlu0 %1776
        %1779 = vset.pattern.permute.xlu0 1
        %1780 = vperm.xlu0 %1779, %v672
        %v1781 = vpop.permute.xlu0 %1780
        %1783 = vset.pattern.permute.xlu0 1
        %1784 = vperm.xlu0 %1783, %v673
        %v1785 = vpop.permute.xlu0 %1784
        %1787 = vset.pattern.permute.xlu0 1
        %1788 = vperm.xlu0 %1787, %v674
        %v1789 = vpop.permute.xlu0 %1788
        %1791 = vset.pattern.permute.xlu0 1
        %1792 = vperm.xlu0 %1791, %v675
        %v1793 = vpop.permute.xlu0 %1792
        %1795 = vset.pattern.permute.xlu0 1
        %1796 = vperm.xlu0 %1795, %v676
        %v1797 = vpop.permute.xlu0 %1796
        %1799 = vset.pattern.permute.xlu0 1
        %1800 = vperm.xlu0 %1799, %v677
        %v1801 = vpop.permute.xlu0 %1800
        %1803 = vset.pattern.permute.xlu0 1
        %1804 = vperm.xlu0 %1803, %v678
        %v1805 = vpop.permute.xlu0 %1804
        %1807 = vset.pattern.permute.xlu0 1
        %1808 = vperm.xlu0 %1807, %v679
        %v1809 = vpop.permute.xlu0 %1808
        %1811 = vset.pattern.permute.xlu0 1
        %1812 = vperm.xlu0 %1811, %v680
        %v1813 = vpop.permute.xlu0 %1812
        %1815 = vset.pattern.permute.xlu0 1
        %1816 = vperm.xlu0 %1815, %v681
        %v1817 = vpop.permute.xlu0 %1816
        %1819 = vset.pattern.permute.xlu0 1
        %1820 = vperm.xlu0 %1819, %v682
        %v1821 = vpop.permute.xlu0 %1820
        %1823 = vset.pattern.permute.xlu0 1
        %1824 = vperm.xlu0 %1823, %v683
        %v1825 = vpop.permute.xlu0 %1824
        %1827 = vset.pattern.permute.xlu0 1
        %1828 = vperm.xlu0 %1827, %v684
        %v1829 = vpop.permute.xlu0 %1828
        %1831 = vset.pattern.permute.xlu0 1
        %1832 = vperm.xlu0 %1831, %v685
        %v1833 = vpop.permute.xlu0 %1832
        %1835 = vset.pattern.permute.xlu0 1
        %1836 = vperm.xlu0 %1835, %v686
        %v1837 = vpop.permute.xlu0 %1836
        %1839 = vset.pattern.permute.xlu0 1
        %1840 = vperm.xlu0 %1839, %v687
        %v1841 = vpop.permute.xlu0 %1840
        %1843 = vset.pattern.permute.xlu0 1
        %1844 = vperm.xlu0 %1843, %v688
        %v1845 = vpop.permute.xlu0 %1844
        %1847 = vset.pattern.permute.xlu0 1
        %1848 = vperm.xlu0 %1847, %v689
        %v1849 = vpop.permute.xlu0 %1848
        %1851 = vset.pattern.permute.xlu0 1
        %1852 = vperm.xlu0 %1851, %v690
        %v1853 = vpop.permute.xlu0 %1852
        %1855 = vset.pattern.permute.xlu0 1
        %1856 = vperm.xlu0 %1855, %v691
        %v1857 = vpop.permute.xlu0 %1856
        %1859 = vset.pattern.permute.xlu0 1
        %1860 = vperm.xlu0 %1859, %v692
        %v1861 = vpop.permute.xlu0 %1860
        %1863 = vset.pattern.permute.xlu0 1
        %1864 = vperm.xlu0 %1863, %v693
        %v1865 = vpop.permute.xlu0 %1864
        %1867 = vset.pattern.permute.xlu0 1
        %1868 = vperm.xlu0 %1867, %v694
        %v1869 = vpop.permute.xlu0 %1868
        %v1871 = vmul.f32 %v1519, %v1745
        %v1872 = vmul.f32 %v1520, %v1749
        %v1873 = vmul.f32 %v1521, %v1753
        %v1874 = vmul.f32 %v1522, %v1757
        %v1875 = vmul.f32 %v1523, %v1761
        %v1876 = vmul.f32 %v1524, %v1765
        %v1877 = vmul.f32 %v1525, %v1769
        %v1878 = vmul.f32 %v1526, %v1773
        %v1879 = vmul.f32 %v1527, %v1777
        %v1880 = vmul.f32 %v1528, %v1781
        %v1881 = vmul.f32 %v1529, %v1785
        %v1882 = vmul.f32 %v1530, %v1789
        %v1883 = vmul.f32 %v1531, %v1793
        %v1884 = vmul.f32 %v1532, %v1797
        %v1885 = vmul.f32 %v1533, %v1801
        %v1886 = vmul.f32 %v1534, %v1805
        %v1887 = vmul.f32 %v1535, %v1809
        %v1888 = vmul.f32 %v1536, %v1813
        %v1889 = vmul.f32 %v1537, %v1817
        %v1890 = vmul.f32 %v1538, %v1821
        %v1891 = vmul.f32 %v1539, %v1825
        %v1892 = vmul.f32 %v1540, %v1829
        %v1893 = vmul.f32 %v1541, %v1833
        %v1894 = vmul.f32 %v1542, %v1837
        %v1895 = vmul.f32 %v1543, %v1841
        %v1896 = vmul.f32 %v1544, %v1845
        %v1897 = vmul.f32 %v1545, %v1849
        %v1898 = vmul.f32 %v1546, %v1853
        %v1899 = vmul.f32 %v1547, %v1857
        %v1900 = vmul.f32 %v1548, %v1861
        %v1901 = vmul.f32 %v1549, %v1865
        %v1902 = vmul.f32 %v1550, %v1869
        %1935 = vrot.lane.b32.xlu0 %v1871, 32
        %v1936 = vpop.permute.xlu0 %1935
        %1937 = vrot.lane.b32.xlu0 %v1872, 32
        %v1938 = vpop.permute.xlu0 %1937
        %1939 = vrot.lane.b32.xlu0 %v1873, 32
        %v1940 = vpop.permute.xlu0 %1939
        %1941 = vrot.lane.b32.xlu0 %v1874, 32
        %v1942 = vpop.permute.xlu0 %1941
        %1943 = vrot.lane.b32.xlu0 %v1875, 32
        %v1944 = vpop.permute.xlu0 %1943
        %1945 = vrot.lane.b32.xlu0 %v1876, 32
        %v1946 = vpop.permute.xlu0 %1945
        %1947 = vrot.lane.b32.xlu0 %v1877, 32
        %v1948 = vpop.permute.xlu0 %1947
        %1949 = vrot.lane.b32.xlu0 %v1878, 32
        %v1950 = vpop.permute.xlu0 %1949
        %1951 = vrot.lane.b32.xlu0 %v1879, 32
        %v1952 = vpop.permute.xlu0 %1951
        %1953 = vrot.lane.b32.xlu0 %v1880, 32
        %v1954 = vpop.permute.xlu0 %1953
        %1955 = vrot.lane.b32.xlu0 %v1881, 32
        %v1956 = vpop.permute.xlu0 %1955
        %1957 = vrot.lane.b32.xlu0 %v1882, 32
        %v1958 = vpop.permute.xlu0 %1957
        %1959 = vrot.lane.b32.xlu0 %v1883, 32
        %v1960 = vpop.permute.xlu0 %1959
        %1961 = vrot.lane.b32.xlu0 %v1884, 32
        %v1962 = vpop.permute.xlu0 %1961
        %1963 = vrot.lane.b32.xlu0 %v1885, 32
        %v1964 = vpop.permute.xlu0 %1963
        %1965 = vrot.lane.b32.xlu0 %v1886, 32
        %v1966 = vpop.permute.xlu0 %1965
        %1967 = vrot.lane.b32.xlu0 %v1887, 32
        %v1968 = vpop.permute.xlu0 %1967
        %1969 = vrot.lane.b32.xlu0 %v1888, 32
        %v1970 = vpop.permute.xlu0 %1969
        %1971 = vrot.lane.b32.xlu0 %v1889, 32
        %v1972 = vpop.permute.xlu0 %1971
        %1973 = vrot.lane.b32.xlu0 %v1890, 32
        %v1974 = vpop.permute.xlu0 %1973
        %1975 = vrot.lane.b32.xlu0 %v1891, 32
        %v1976 = vpop.permute.xlu0 %1975
        %1977 = vrot.lane.b32.xlu0 %v1892, 32
        %v1978 = vpop.permute.xlu0 %1977
        %1979 = vrot.lane.b32.xlu0 %v1893, 32
        %v1980 = vpop.permute.xlu0 %1979
        %1981 = vrot.lane.b32.xlu0 %v1894, 32
        %v1982 = vpop.permute.xlu0 %1981
        %1983 = vrot.lane.b32.xlu0 %v1895, 32
        %v1984 = vpop.permute.xlu0 %1983
        %1985 = vrot.lane.b32.xlu0 %v1896, 32
        %v1986 = vpop.permute.xlu0 %1985
        %1987 = vrot.lane.b32.xlu0 %v1897, 32
        %v1988 = vpop.permute.xlu0 %1987
        %1989 = vrot.lane.b32.xlu0 %v1898, 32
        %v1990 = vpop.permute.xlu0 %1989
        %1991 = vrot.lane.b32.xlu0 %v1899, 32
        %v1992 = vpop.permute.xlu0 %1991
        %1993 = vrot.lane.b32.xlu0 %v1900, 32
        %v1994 = vpop.permute.xlu0 %1993
        %1995 = vrot.lane.b32.xlu0 %v1901, 32
        %v1996 = vpop.permute.xlu0 %1995
        %1997 = vrot.lane.b32.xlu0 %v1902, 32
        %v1998 = vpop.permute.xlu0 %1997
        %2063 = vrot.lane.b32.xlu0 %v695, 64
        %v2064 = vpop.permute.xlu0 %2063
        %2065 = vrot.lane.b32.xlu0 %v696, 64
        %v2066 = vpop.permute.xlu0 %2065
        %2067 = vrot.lane.b32.xlu0 %v697, 64
        %v2068 = vpop.permute.xlu0 %2067
        %2069 = vrot.lane.b32.xlu0 %v698, 64
        %v2070 = vpop.permute.xlu0 %2069
        %2071 = vrot.lane.b32.xlu0 %v699, 64
        %v2072 = vpop.permute.xlu0 %2071
        %2073 = vrot.lane.b32.xlu0 %v700, 64
        %v2074 = vpop.permute.xlu0 %2073
        %2075 = vrot.lane.b32.xlu0 %v701, 64
        %v2076 = vpop.permute.xlu0 %2075
        %2077 = vrot.lane.b32.xlu0 %v702, 64
        %v2078 = vpop.permute.xlu0 %2077
        %2079 = vrot.lane.b32.xlu0 %v703, 64
        %v2080 = vpop.permute.xlu0 %2079
        %2081 = vrot.lane.b32.xlu0 %v704, 64
        %v2082 = vpop.permute.xlu0 %2081
        %2083 = vrot.lane.b32.xlu0 %v705, 64
        %v2084 = vpop.permute.xlu0 %2083
        %2085 = vrot.lane.b32.xlu0 %v706, 64
        %v2086 = vpop.permute.xlu0 %2085
        %2087 = vrot.lane.b32.xlu0 %v707, 64
        %v2088 = vpop.permute.xlu0 %2087
        %2089 = vrot.lane.b32.xlu0 %v708, 64
        %v2090 = vpop.permute.xlu0 %2089
        %2091 = vrot.lane.b32.xlu0 %v709, 64
        %v2092 = vpop.permute.xlu0 %2091
        %2093 = vrot.lane.b32.xlu0 %v710, 64
        %v2094 = vpop.permute.xlu0 %2093
        %2095 = vrot.lane.b32.xlu0 %v711, 64
        %v2096 = vpop.permute.xlu0 %2095
        %2097 = vrot.lane.b32.xlu0 %v712, 64
        %v2098 = vpop.permute.xlu0 %2097
        %2099 = vrot.lane.b32.xlu0 %v713, 64
        %v2100 = vpop.permute.xlu0 %2099
        %2101 = vrot.lane.b32.xlu0 %v714, 64
        %v2102 = vpop.permute.xlu0 %2101
        %2103 = vrot.lane.b32.xlu0 %v715, 64
        %v2104 = vpop.permute.xlu0 %2103
        %2105 = vrot.lane.b32.xlu0 %v716, 64
        %v2106 = vpop.permute.xlu0 %2105
        %2107 = vrot.lane.b32.xlu0 %v717, 64
        %v2108 = vpop.permute.xlu0 %2107
        %2109 = vrot.lane.b32.xlu0 %v718, 64
        %v2110 = vpop.permute.xlu0 %2109
        %2111 = vrot.lane.b32.xlu0 %v719, 64
        %v2112 = vpop.permute.xlu0 %2111
        %2113 = vrot.lane.b32.xlu0 %v720, 64
        %v2114 = vpop.permute.xlu0 %2113
        %2115 = vrot.lane.b32.xlu0 %v721, 64
        %v2116 = vpop.permute.xlu0 %2115
        %2117 = vrot.lane.b32.xlu0 %v722, 64
        %v2118 = vpop.permute.xlu0 %2117
        %2119 = vrot.lane.b32.xlu0 %v723, 64
        %v2120 = vpop.permute.xlu0 %2119
        %2121 = vrot.lane.b32.xlu0 %v724, 64
        %v2122 = vpop.permute.xlu0 %2121
        %2123 = vrot.lane.b32.xlu0 %v725, 64
        %v2124 = vpop.permute.xlu0 %2123
        %2125 = vrot.lane.b32.xlu0 %v726, 64
        %v2126 = vpop.permute.xlu0 %2125
        %vm2159 = vcmask 261120
        %v2160 = vsel %vm2159, %v1711, %v1936
        %v2161 = vsel %vm2159, %v1712, %v1938
        %v2162 = vsel %vm2159, %v1713, %v1940
        %v2163 = vsel %vm2159, %v1714, %v1942
        %v2164 = vsel %vm2159, %v1715, %v1944
        %v2165 = vsel %vm2159, %v1716, %v1946
        %v2166 = vsel %vm2159, %v1717, %v1948
        %v2167 = vsel %vm2159, %v1718, %v1950
        %v2168 = vsel %vm2159, %v1719, %v1952
        %v2169 = vsel %vm2159, %v1720, %v1954
        %v2170 = vsel %vm2159, %v1721, %v1956
        %v2171 = vsel %vm2159, %v1722, %v1958
        %v2172 = vsel %vm2159, %v1723, %v1960
        %v2173 = vsel %vm2159, %v1724, %v1962
        %v2174 = vsel %vm2159, %v1725, %v1964
        %v2175 = vsel %vm2159, %v1726, %v1966
        %v2176 = vsel %vm2159, %v1727, %v1968
        %v2177 = vsel %vm2159, %v1728, %v1970
        %v2178 = vsel %vm2159, %v1729, %v1972
        %v2179 = vsel %vm2159, %v1730, %v1974
        %v2180 = vsel %vm2159, %v1731, %v1976
        %v2181 = vsel %vm2159, %v1732, %v1978
        %v2182 = vsel %vm2159, %v1733, %v1980
        %v2183 = vsel %vm2159, %v1734, %v1982
        %v2184 = vsel %vm2159, %v1735, %v1984
        %v2185 = vsel %vm2159, %v1736, %v1986
        %v2186 = vsel %vm2159, %v1737, %v1988
        %v2187 = vsel %vm2159, %v1738, %v1990
        %v2188 = vsel %vm2159, %v1739, %v1992
        %v2189 = vsel %vm2159, %v1740, %v1994
        %v2190 = vsel %vm2159, %v1741, %v1996
        %v2191 = vsel %vm2159, %v1742, %v1998
        %vm2192 = vcmask 523264
        %v2193 = vsel %vm2192, %v2160, %v2064
        %v2194 = vsel %vm2192, %v2161, %v2066
        %v2195 = vsel %vm2192, %v2162, %v2068
        %v2196 = vsel %vm2192, %v2163, %v2070
        %v2197 = vsel %vm2192, %v2164, %v2072
        %v2198 = vsel %vm2192, %v2165, %v2074
        %v2199 = vsel %vm2192, %v2166, %v2076
        %v2200 = vsel %vm2192, %v2167, %v2078
        %v2201 = vsel %vm2192, %v2168, %v2080
        %v2202 = vsel %vm2192, %v2169, %v2082
        %v2203 = vsel %vm2192, %v2170, %v2084
        %v2204 = vsel %vm2192, %v2171, %v2086
        %v2205 = vsel %vm2192, %v2172, %v2088
        %v2206 = vsel %vm2192, %v2173, %v2090
        %v2207 = vsel %vm2192, %v2174, %v2092
        %v2208 = vsel %vm2192, %v2175, %v2094
        %v2209 = vsel %vm2192, %v2176, %v2096
        %v2210 = vsel %vm2192, %v2177, %v2098
        %v2211 = vsel %vm2192, %v2178, %v2100
        %v2212 = vsel %vm2192, %v2179, %v2102
        %v2213 = vsel %vm2192, %v2180, %v2104
        %v2214 = vsel %vm2192, %v2181, %v2106
        %v2215 = vsel %vm2192, %v2182, %v2108
        %v2216 = vsel %vm2192, %v2183, %v2110
        %v2217 = vsel %vm2192, %v2184, %v2112
        %v2218 = vsel %vm2192, %v2185, %v2114
        %v2219 = vsel %vm2192, %v2186, %v2116
        %v2220 = vsel %vm2192, %v2187, %v2118
        %v2221 = vsel %vm2192, %v2188, %v2120
        %v2222 = vsel %vm2192, %v2189, %v2122
        %v2223 = vsel %vm2192, %v2190, %v2124
        %v2224 = vsel %vm2192, %v2191, %v2126
        %s2225 = scalar_lea.vmem [#allocation2], 24
        %2226 = vst.msk [vmem:[%s2225 + $0x1] sm:$0xff] %vm521, %v2193
        %2227 = vst.msk [vmem:[%s2225 + $0x9] sm:$0xff] %vm521, %v2194
        %2228 = vst.msk [vmem:[%s2225 + $0x19] sm:$0xff] %vm521, %v2195
        %2229 = vst.msk [vmem:[%s2225 + $0x21] sm:$0xff] %vm521, %v2196
        %2230 = vst.msk [vmem:[%s2225 + $0x31] sm:$0xff] %vm521, %v2197
        %2231 = vst.msk [vmem:[%s2225 + $0x39] sm:$0xff] %vm521, %v2198
        %2232 = vst.msk [vmem:[%s2225 + $0x49] sm:$0xff] %vm521, %v2199
        %2233 = vst.msk [vmem:[%s2225 + $0x51] sm:$0xff] %vm521, %v2200
        %2234 = vst.msk [vmem:[%s2225 + $0x61] sm:$0xff] %vm521, %v2201
        %2235 = vst.msk [vmem:[%s2225 + $0x69] sm:$0xff] %vm521, %v2202
        %2236 = vst.msk [vmem:[%s2225 + $0x79] sm:$0xff] %vm521, %v2203
        %2237 = vst.msk [vmem:[%s2225 + $0x81] sm:$0xff] %vm521, %v2204
        %2238 = vst.msk [vmem:[%s2225 + $0x91] sm:$0xff] %vm521, %v2205
        %2239 = vst.msk [vmem:[%s2225 + $0x99] sm:$0xff] %vm521, %v2206
        %2240 = vst.msk [vmem:[%s2225 + $0xa9] sm:$0xff] %vm521, %v2207
        %2241 = vst.msk [vmem:[%s2225 + $0xb1] sm:$0xff] %vm521, %v2208
        %2242 = vst.msk [vmem:[%s2225 + $0xc1] sm:$0xff] %vm521, %v2209
        %2243 = vst.msk [vmem:[%s2225 + $0xc9] sm:$0xff] %vm521, %v2210
        %2244 = vst.msk [vmem:[%s2225 + $0xd9] sm:$0xff] %vm521, %v2211
        %2245 = vst.msk [vmem:[%s2225 + $0xe1] sm:$0xff] %vm521, %v2212
        %2246 = vst.msk [vmem:[%s2225 + $0xf1] sm:$0xff] %vm521, %v2213
        %2247 = vst.msk [vmem:[%s2225 + $0xf9] sm:$0xff] %vm521, %v2214
        %2248 = vst.msk [vmem:[%s2225 + $0x109] sm:$0xff] %vm521, %v2215
        %2249 = vst.msk [vmem:[%s2225 + $0x111] sm:$0xff] %vm521, %v2216
        %2250 = vst.msk [vmem:[%s2225 + $0x121] sm:$0xff] %vm521, %v2217
        %2251 = vst.msk [vmem:[%s2225 + $0x129] sm:$0xff] %vm521, %v2218
        %2252 = vst.msk [vmem:[%s2225 + $0x139] sm:$0xff] %vm521, %v2219
        %2253 = vst.msk [vmem:[%s2225 + $0x141] sm:$0xff] %vm521, %v2220
        %2254 = vst.msk [vmem:[%s2225 + $0x151] sm:$0xff] %vm521, %v2221
        %2255 = vst.msk [vmem:[%s2225 + $0x159] sm:$0xff] %vm521, %v2222
        %2256 = vst.msk [vmem:[%s2225 + $0x169] sm:$0xff] %vm521, %v2223
        %2257 = vst.msk [vmem:[%s2225 + $0x171] sm:$0xff] %vm521, %v2224
        %v2258 = vld [vmem:[#allocation2] sm:$0xff]
        %v2259 = vld [vmem:[#allocation2 + $0x8] sm:$0xff]
        %v2260 = vld [vmem:[#allocation2 + $0x18] sm:$0xff]
        %v2261 = vld [vmem:[#allocation2 + $0x20] sm:$0xff]
        %v2262 = vld [vmem:[#allocation2 + $0x30] sm:$0xff]
        %v2263 = vld [vmem:[#allocation2 + $0x38] sm:$0xff]
        %v2264 = vld [vmem:[#allocation2 + $0x48] sm:$0xff]
        %v2265 = vld [vmem:[#allocation2 + $0x50] sm:$0xff]
        %v2266 = vld [vmem:[#allocation2 + $0x60] sm:$0xff]
        %v2267 = vld [vmem:[#allocation2 + $0x68] sm:$0xff]
        %v2268 = vld [vmem:[#allocation2 + $0x78] sm:$0xff]
        %v2269 = vld [vmem:[#allocation2 + $0x80] sm:$0xff]
        %v2270 = vld [vmem:[#allocation2 + $0x90] sm:$0xff]
        %v2271 = vld [vmem:[#allocation2 + $0x98] sm:$0xff]
        %v2272 = vld [vmem:[#allocation2 + $0xa8] sm:$0xff]
        %v2273 = vld [vmem:[#allocation2 + $0xb0] sm:$0xff]
        %v2274 = vld [vmem:[#allocation2 + $0xc0] sm:$0xff]
        %v2275 = vld [vmem:[#allocation2 + $0xc8] sm:$0xff]
        %v2276 = vld [vmem:[#allocation2 + $0xd8] sm:$0xff]
        %v2277 = vld [vmem:[#allocation2 + $0xe0] sm:$0xff]
        %v2278 = vld [vmem:[#allocation2 + $0xf0] sm:$0xff]
        %v2279 = vld [vmem:[#allocation2 + $0xf8] sm:$0xff]
        %v2280 = vld [vmem:[#allocation2 + $0x108] sm:$0xff]
        %v2281 = vld [vmem:[#allocation2 + $0x110] sm:$0xff]
        %v2282 = vld [vmem:[#allocation2 + $0x120] sm:$0xff]
        %v2283 = vld [vmem:[#allocation2 + $0x128] sm:$0xff]
        %v2284 = vld [vmem:[#allocation2 + $0x138] sm:$0xff]
        %v2285 = vld [vmem:[#allocation2 + $0x140] sm:$0xff]
        %v2286 = vld [vmem:[#allocation2 + $0x150] sm:$0xff]
        %v2287 = vld [vmem:[#allocation2 + $0x158] sm:$0xff]
        %v2288 = vld [vmem:[#allocation2 + $0x168] sm:$0xff]
        %v2289 = vld [vmem:[#allocation2 + $0x170] sm:$0xff]
        %v2290 = vld [vmem:[%s5] sm:$0xff]
        %v2291 = vld [vmem:[%s5 + $0x8] sm:$0xff]
        %v2292 = vld [vmem:[%s5 + $0x10] sm:$0xff]
        %v2293 = vld [vmem:[%s5 + $0x18] sm:$0xff]
        %v2294 = vld [vmem:[%s5 + $0x20] sm:$0xff]
        %v2295 = vld [vmem:[%s5 + $0x28] sm:$0xff]
        %v2296 = vld [vmem:[%s5 + $0x30] sm:$0xff]
        %v2297 = vld [vmem:[%s5 + $0x38] sm:$0xff]
        %v2298 = vld [vmem:[%s5 + $0x40] sm:$0xff]
        %v2299 = vld [vmem:[%s5 + $0x48] sm:$0xff]
        %v2300 = vld [vmem:[%s5 + $0x50] sm:$0xff]
        %v2301 = vld [vmem:[%s5 + $0x58] sm:$0xff]
        %v2302 = vld [vmem:[#allocation2 + $0x1] sm:$0xff]
        %v2303 = vld [vmem:[#allocation2 + $0x9] sm:$0xff]
        %v2304 = vld [vmem:[#allocation2 + $0x19] sm:$0xff]
        %v2305 = vld [vmem:[#allocation2 + $0x21] sm:$0xff]
        %v2306 = vld [vmem:[#allocation2 + $0x31] sm:$0xff]
        %v2307 = vld [vmem:[#allocation2 + $0x39] sm:$0xff]
        %v2308 = vld [vmem:[#allocation2 + $0x49] sm:$0xff]
        %v2309 = vld [vmem:[#allocation2 + $0x51] sm:$0xff]
        %v2310 = vld [vmem:[#allocation2 + $0x61] sm:$0xff]
        %v2311 = vld [vmem:[#allocation2 + $0x69] sm:$0xff]
        %v2312 = vld [vmem:[#allocation2 + $0x79] sm:$0xff]
        %v2313 = vld [vmem:[#allocation2 + $0x81] sm:$0xff]
        %v2314 = vld [vmem:[#allocation2 + $0x91] sm:$0xff]
        %v2315 = vld [vmem:[#allocation2 + $0x99] sm:$0xff]
        %v2316 = vld [vmem:[#allocation2 + $0xa9] sm:$0xff]
        %v2317 = vld [vmem:[#allocation2 + $0xb1] sm:$0xff]
        %v2318 = vld [vmem:[#allocation2 + $0xc1] sm:$0xff]
        %v2319 = vld [vmem:[#allocation2 + $0xc9] sm:$0xff]
        %v2320 = vld [vmem:[#allocation2 + $0xd9] sm:$0xff]
        %v2321 = vld [vmem:[#allocation2 + $0xe1] sm:$0xff]
        %v2322 = vld [vmem:[#allocation2 + $0xf1] sm:$0xff]
        %v2323 = vld [vmem:[#allocation2 + $0xf9] sm:$0xff]
        %v2324 = vld [vmem:[#allocation2 + $0x109] sm:$0xff]
        %v2325 = vld [vmem:[#allocation2 + $0x111] sm:$0xff]
        %v2326 = vld [vmem:[#allocation2 + $0x121] sm:$0xff]
        %v2327 = vld [vmem:[#allocation2 + $0x129] sm:$0xff]
        %v2328 = vld [vmem:[#allocation2 + $0x139] sm:$0xff]
        %v2329 = vld [vmem:[#allocation2 + $0x141] sm:$0xff]
        %v2330 = vld [vmem:[#allocation2 + $0x151] sm:$0xff]
        %v2331 = vld [vmem:[#allocation2 + $0x159] sm:$0xff]
        %v2332 = vld [vmem:[#allocation2 + $0x169] sm:$0xff]
        %v2333 = vld [vmem:[#allocation2 + $0x171] sm:$0xff]
        %s2334 = scalar_lea.vmem %s5, 96
        %v2335 = vld [vmem:[%s2334] sm:$0xff]
        %v2336 = vld [vmem:[%s2334 + $0x8] sm:$0xff]
        %v2337 = vld [vmem:[%s2334 + $0x10] sm:$0xff]
        %v2338 = vld [vmem:[%s2334 + $0x18] sm:$0xff]
        %v2339 = vld [vmem:[%s2334 + $0x20] sm:$0xff]
        %v2340 = vld [vmem:[%s2334 + $0x28] sm:$0xff]
        %v2341 = vld [vmem:[%s2334 + $0x30] sm:$0xff]
        %v2342 = vld [vmem:[%s2334 + $0x38] sm:$0xff]
        %v2343 = vld [vmem:[%s2334 + $0x40] sm:$0xff]
        %v2344 = vld [vmem:[%s2334 + $0x48] sm:$0xff]
        %v2345 = vld [vmem:[%s2334 + $0x50] sm:$0xff]
        %v2346 = vld [vmem:[%s2334 + $0x58] sm:$0xff]
        %v2348 = vsel %vm521, %v2302, 0
        %v2351 = vsel %vm521, %v2303, 0
        %v2354 = vsel %vm521, %v2304, 0
        %v2357 = vsel %vm521, %v2305, 0
        %v2360 = vsel %vm521, %v2306, 0
        %v2363 = vsel %vm521, %v2307, 0
        %v2366 = vsel %vm521, %v2308, 0
        %v2369 = vsel %vm521, %v2309, 0
        %v2372 = vsel %vm521, %v2310, 0
        %v2375 = vsel %vm521, %v2311, 0
        %v2378 = vsel %vm521, %v2312, 0
        %v2381 = vsel %vm521, %v2313, 0
        %v2384 = vsel %vm521, %v2314, 0
        %v2387 = vsel %vm521, %v2315, 0
        %v2390 = vsel %vm521, %v2316, 0
        %v2393 = vsel %vm521, %v2317, 0
        %v2396 = vsel %vm521, %v2318, 0
        %v2399 = vsel %vm521, %v2319, 0
        %v2402 = vsel %vm521, %v2320, 0
        %v2405 = vsel %vm521, %v2321, 0
        %v2408 = vsel %vm521, %v2322, 0
        %v2411 = vsel %vm521, %v2323, 0
        %v2414 = vsel %vm521, %v2324, 0
        %v2417 = vsel %vm521, %v2325, 0
        %v2420 = vsel %vm521, %v2326, 0
        %v2423 = vsel %vm521, %v2327, 0
        %v2426 = vsel %vm521, %v2328, 0
        %v2429 = vsel %vm521, %v2329, 0
        %v2432 = vsel %vm521, %v2330, 0
        %v2435 = vsel %vm521, %v2331, 0
        %v2438 = vsel %vm521, %v2332, 0
        %v2441 = vsel %vm521, %v2333, 0
        %2443 = vmatprep.subr.mxu0 0.0
        %2444 = vmatpush1.msra.mxu0 %v2335
        %2445 = vmatprep.subr.mxu0 0.0
        %2446 = vmatpush1.msra.mxu0 %v2336
        %2447 = vmatprep.subr.mxu0 0.0
        %2448 = vmatpush1.msra.mxu0 %v2337
        %2449 = vmatprep.subr.mxu0 0.0
        %2450 = vmatpush1.msra.mxu0 %v2338
        %2451 = vmatprep.subr.mxu0 0.0
        %2452 = vmatpush1.msra.mxu0 %v2339
        %2453 = vmatprep.subr.mxu0 0.0
        %2454 = vmatpush1.msra.mxu0 %v2340
        %2455 = vmatprep.subr.mxu0 0.0
        %2456 = vmatpush1.msra.mxu0 %v2341
        %2457 = vmatprep.subr.mxu0 0.0
        %2458 = vmatpush1.msra.mxu0 %v2342
        %2459 = vmatprep.subr.mxu0 0.0
        %2460 = vmatpush1.msra.mxu0 %v2343
        %2461 = vmatprep.subr.mxu0 0.0
        %2462 = vmatpush1.msra.mxu0 %v2344
        %2463 = vmatprep.subr.mxu0 0.0
        %2464 = vmatpush1.msra.mxu0 %v2345
        %2465 = vmatprep.subr.mxu0 0.0
        %2466 = vmatpush1.msra.mxu0 %v2346
        %2467 = vmatprep.subr.mxu0 0.0
        %2468 = vmatpush1.msra.mxu0 0.0
        %2469 = vmatprep.subr.mxu0 0.0
        %2470 = vmatpush1.msra.mxu0 0.0
        %2471 = vmatprep.subr.mxu0 0.0
        %2472 = vmatpush1.msra.mxu0 0.0
        %2473 = vmatprep.subr.mxu0 0.0
        %2474 = vmatpush1.msra.mxu0 0.0
        %2475 = vmatprep.subr.mxu0 0.0
        %2476 = vmatpush1.msra.mxu0 0.0
        %2477 = vmatprep.subr.mxu0 0.0
        %2478 = vmatpush1.msra.mxu0 0.0
        %2479 = vmatprep.subr.mxu0 0.0
        %2480 = vmatpush1.msra.mxu0 0.0
        %2481 = vmatprep.subr.mxu0 0.0
        %2482 = vmatpush1.msra.mxu0 0.0
        %2483 = vmatprep.subr.mxu0 0.0
        %2484 = vmatpush1.msra.mxu0 0.0
        %2485 = vmatprep.subr.mxu0 0.0
        %2486 = vmatpush1.msra.mxu0 0.0
        %2487 = vmatprep.subr.mxu0 0.0
        %2488 = vmatpush1.msra.mxu0 0.0
        %2489 = vmatprep.subr.mxu0 0.0
        %2490 = vmatpush1.msra.mxu0 0.0
        %2491 = vmatprep.subr.mxu0 0.0
        %2492 = vmatpush1.msra.mxu0 0.0
        %2493 = vmatprep.subr.mxu0 0.0
        %2494 = vmatpush1.msra.mxu0 0.0
        %2495 = vmatprep.subr.mxu0 0.0
        %2496 = vmatpush1.msra.mxu0 0.0
        %2497 = vmatprep.subr.mxu0 0.0
        %2498 = vmatpush1.msra.mxu0 0.0
        %2499 = vmatprep.subr.mxu0 0.0
        %2500 = vmatpush1.msra.mxu0 0.0
        %2501 = vmatprep.subr.mxu0 0.0
        %2502 = vmatpush1.msra.mxu0 0.0
        %2503 = vmatprep.subr.mxu0 0.0
        %2504 = vmatpush1.msra.mxu0 0.0
        %2505 = vmatprep.subr.mxu0 0.0
        %2506 = vmatpush1.msra.mxu0 0.0
        %2507 = vmatprep.mubr.f32.mxu0 0.0
        %2508 = vmatmul.mubr.f32.gmra.mrb[0].mxu0 %v2348
        %v2509 = vpop.f32.mrb[0].mxu0
        %v2510 = vadd.f32 0.0, %v2509
        %v2511 = vpop.f32.mrb[0].mxu0
        %2512 = vmatprep.mubr.f32.mxu0 0.0
        %2513 = vmatmul.mubr.f32.gmra.mrb[0].mxu0 %v2351
        %v2514 = vpop.f32.mrb[0].mxu0
        %v2515 = vadd.f32 0.0, %v2514
        %v2516 = vpop.f32.mrb[0].mxu0
        %2517 = vmatprep.mubr.f32.mxu0 0.0
        %2518 = vmatmul.mubr.f32.gmra.mrb[0].mxu0 %v2354
        %v2519 = vpop.f32.mrb[0].mxu0
        %v2520 = vadd.f32 0.0, %v2519
        %v2521 = vpop.f32.mrb[0].mxu0
        %2522 = vmatprep.mubr.f32.mxu0 0.0
        %2523 = vmatmul.mubr.f32.gmra.mrb[0].mxu0 %v2357
        %v2524 = vpop.f32.mrb[0].mxu0
        %v2525 = vadd.f32 0.0, %v2524
        %v2526 = vpop.f32.mrb[0].mxu0
        %2527 = vmatprep.mubr.f32.mxu0 0.0
        %2528 = vmatmul.mubr.f32.gmra.mrb[0].mxu0 %v2360
        %v2529 = vpop.f32.mrb[0].mxu0
        %v2530 = vadd.f32 0.0, %v2529
        %v2531 = vpop.f32.mrb[0].mxu0
        %2532 = vmatprep.mubr.f32.mxu0 0.0
        %2533 = vmatmul.mubr.f32.gmra.mrb[0].mxu0 %v2363
        %v2534 = vpop.f32.mrb[0].mxu0
        %v2535 = vadd.f32 0.0, %v2534
        %v2536 = vpop.f32.mrb[0].mxu0
        %2537 = vmatprep.mubr.f32.mxu0 0.0
        %2538 = vmatmul.mubr.f32.gmra.mrb[0].mxu0 %v2366
        %v2539 = vpop.f32.mrb[0].mxu0
        %v2540 = vadd.f32 0.0, %v2539
        %v2541 = vpop.f32.mrb[0].mxu0
        %2542 = vmatprep.mubr.f32.mxu0 0.0
        %2543 = vmatmul.mubr.f32.gmra.mrb[0].mxu0 %v2369
        %v2544 = vpop.f32.mrb[0].mxu0
        %v2545 = vadd.f32 0.0, %v2544
        %v2546 = vpop.f32.mrb[0].mxu0
        %2547 = vmatprep.mubr.f32.mxu0 0.0
        %2548 = vmatmul.mubr.f32.gmra.mrb[0].mxu0 %v2372
        %v2549 = vpop.f32.mrb[0].mxu0
        %v2550 = vadd.f32 0.0, %v2549
        %v2551 = vpop.f32.mrb[0].mxu0
        %2552 = vmatprep.mubr.f32.mxu0 0.0
        %2553 = vmatmul.mubr.f32.gmra.mrb[0].mxu0 %v2375
        %v2554 = vpop.f32.mrb[0].mxu0
        %v2555 = vadd.f32 0.0, %v2554
        %v2556 = vpop.f32.mrb[0].mxu0
        %2557 = vmatprep.mubr.f32.mxu0 0.0
        %2558 = vmatmul.mubr.f32.gmra.mrb[0].mxu0 %v2378
        %v2559 = vpop.f32.mrb[0].mxu0
        %v2560 = vadd.f32 0.0, %v2559
        %v2561 = vpop.f32.mrb[0].mxu0
        %2562 = vmatprep.mubr.f32.mxu0 0.0
        %2563 = vmatmul.mubr.f32.gmra.mrb[0].mxu0 %v2381
        %v2564 = vpop.f32.mrb[0].mxu0
        %v2565 = vadd.f32 0.0, %v2564
        %v2566 = vpop.f32.mrb[0].mxu0
        %2567 = vmatprep.mubr.f32.mxu0 0.0
        %2568 = vmatmul.mubr.f32.gmra.mrb[0].mxu0 %v2384
        %v2569 = vpop.f32.mrb[0].mxu0
        %v2570 = vadd.f32 0.0, %v2569
        %v2571 = vpop.f32.mrb[0].mxu0
        %2572 = vmatprep.mubr.f32.mxu0 0.0
        %2573 = vmatmul.mubr.f32.gmra.mrb[0].mxu0 %v2387
        %v2574 = vpop.f32.mrb[0].mxu0
        %v2575 = vadd.f32 0.0, %v2574
        %v2576 = vpop.f32.mrb[0].mxu0
        %2577 = vmatprep.mubr.f32.mxu0 0.0
        %2578 = vmatmul.mubr.f32.gmra.mrb[0].mxu0 %v2390
        %v2579 = vpop.f32.mrb[0].mxu0
        %v2580 = vadd.f32 0.0, %v2579
        %v2581 = vpop.f32.mrb[0].mxu0
        %2582 = vmatprep.mubr.f32.mxu0 0.0
        %2583 = vmatmul.mubr.f32.gmra.mrb[0].mxu0 %v2393
        %v2584 = vpop.f32.mrb[0].mxu0
        %v2585 = vadd.f32 0.0, %v2584
        %v2586 = vpop.f32.mrb[0].mxu0
        %2587 = vmatprep.mubr.f32.mxu0 0.0
        %2588 = vmatmul.mubr.f32.gmra.mrb[0].mxu0 %v2396
        %v2589 = vpop.f32.mrb[0].mxu0
        %v2590 = vadd.f32 0.0, %v2589
        %v2591 = vpop.f32.mrb[0].mxu0
        %2592 = vmatprep.mubr.f32.mxu0 0.0
        %2593 = vmatmul.mubr.f32.gmra.mrb[0].mxu0 %v2399
        %v2594 = vpop.f32.mrb[0].mxu0
        %v2595 = vadd.f32 0.0, %v2594
        %v2596 = vpop.f32.mrb[0].mxu0
        %2597 = vmatprep.mubr.f32.mxu0 0.0
        %2598 = vmatmul.mubr.f32.gmra.mrb[0].mxu0 %v2402
        %v2599 = vpop.f32.mrb[0].mxu0
        %v2600 = vadd.f32 0.0, %v2599
        %v2601 = vpop.f32.mrb[0].mxu0
        %2602 = vmatprep.mubr.f32.mxu0 0.0
        %2603 = vmatmul.mubr.f32.gmra.mrb[0].mxu0 %v2405
        %v2604 = vpop.f32.mrb[0].mxu0
        %v2605 = vadd.f32 0.0, %v2604
        %v2606 = vpop.f32.mrb[0].mxu0
        %2607 = vmatprep.mubr.f32.mxu0 0.0
        %2608 = vmatmul.mubr.f32.gmra.mrb[0].mxu0 %v2408
        %v2609 = vpop.f32.mrb[0].mxu0
        %v2610 = vadd.f32 0.0, %v2609
        %v2611 = vpop.f32.mrb[0].mxu0
        %2612 = vmatprep.mubr.f32.mxu0 0.0
        %2613 = vmatmul.mubr.f32.gmra.mrb[0].mxu0 %v2411
        %v2614 = vpop.f32.mrb[0].mxu0
        %v2615 = vadd.f32 0.0, %v2614
        %v2616 = vpop.f32.mrb[0].mxu0
        %2617 = vmatprep.mubr.f32.mxu0 0.0
        %2618 = vmatmul.mubr.f32.gmra.mrb[0].mxu0 %v2414
        %v2619 = vpop.f32.mrb[0].mxu0
        %v2620 = vadd.f32 0.0, %v2619
        %v2621 = vpop.f32.mrb[0].mxu0
        %2622 = vmatprep.mubr.f32.mxu0 0.0
        %2623 = vmatmul.mubr.f32.gmra.mrb[0].mxu0 %v2417
        %v2624 = vpop.f32.mrb[0].mxu0
        %v2625 = vadd.f32 0.0, %v2624
        %v2626 = vpop.f32.mrb[0].mxu0
        %2627 = vmatprep.mubr.f32.mxu0 0.0
        %2628 = vmatmul.mubr.f32.gmra.mrb[0].mxu0 %v2420
        %v2629 = vpop.f32.mrb[0].mxu0
        %v2630 = vadd.f32 0.0, %v2629
        %v2631 = vpop.f32.mrb[0].mxu0
        %2632 = vmatprep.mubr.f32.mxu0 0.0
        %2633 = vmatmul.mubr.f32.gmra.mrb[0].mxu0 %v2423
        %v2634 = vpop.f32.mrb[0].mxu0
        %v2635 = vadd.f32 0.0, %v2634
        %v2636 = vpop.f32.mrb[0].mxu0
        %2637 = vmatprep.mubr.f32.mxu0 0.0
        %2638 = vmatmul.mubr.f32.gmra.mrb[0].mxu0 %v2426
        %v2639 = vpop.f32.mrb[0].mxu0
        %v2640 = vadd.f32 0.0, %v2639
        %v2641 = vpop.f32.mrb[0].mxu0
        %2642 = vmatprep.mubr.f32.mxu0 0.0
        %2643 = vmatmul.mubr.f32.gmra.mrb[0].mxu0 %v2429
        %v2644 = vpop.f32.mrb[0].mxu0
        %v2645 = vadd.f32 0.0, %v2644
        %v2646 = vpop.f32.mrb[0].mxu0
        %2647 = vmatprep.mubr.f32.mxu0 0.0
        %2648 = vmatmul.mubr.f32.gmra.mrb[0].mxu0 %v2432
        %v2649 = vpop.f32.mrb[0].mxu0
        %v2650 = vadd.f32 0.0, %v2649
        %v2651 = vpop.f32.mrb[0].mxu0
        %2652 = vmatprep.mubr.f32.mxu0 0.0
        %2653 = vmatmul.mubr.f32.gmra.mrb[0].mxu0 %v2435
        %v2654 = vpop.f32.mrb[0].mxu0
        %v2655 = vadd.f32 0.0, %v2654
        %v2656 = vpop.f32.mrb[0].mxu0
        %2657 = vmatprep.mubr.f32.mxu0 0.0
        %2658 = vmatmul.mubr.f32.gmra.mrb[0].mxu0 %v2438
        %v2659 = vpop.f32.mrb[0].mxu0
        %v2660 = vadd.f32 0.0, %v2659
        %v2661 = vpop.f32.mrb[0].mxu0
        %2662 = vmatprep.mubr.f32.mxu0 0.0
        %2663 = vmatmul.mubr.f32.gmra.mrb[0].mxu0 %v2441
        %v2664 = vpop.f32.mrb[0].mxu0
        %v2665 = vadd.f32 0.0, %v2664
        %v2666 = vpop.f32.mrb[0].mxu0
        %2667 = vdwg.mxu0
        %v2669 = vsel %vm521, %v2258, 0
        %v2672 = vsel %vm521, %v2259, 0
        %v2675 = vsel %vm521, %v2260, 0
        %v2678 = vsel %vm521, %v2261, 0
        %v2681 = vsel %vm521, %v2262, 0
        %v2684 = vsel %vm521, %v2263, 0
        %v2687 = vsel %vm521, %v2264, 0
        %v2690 = vsel %vm521, %v2265, 0
        %v2693 = vsel %vm521, %v2266, 0
        %v2696 = vsel %vm521, %v2267, 0
        %v2699 = vsel %vm521, %v2268, 0
        %v2702 = vsel %vm521, %v2269, 0
        %v2705 = vsel %vm521, %v2270, 0
        %v2708 = vsel %vm521, %v2271, 0
        %v2711 = vsel %vm521, %v2272, 0
        %v2714 = vsel %vm521, %v2273, 0
        %v2717 = vsel %vm521, %v2274, 0
        %v2720 = vsel %vm521, %v2275, 0
        %v2723 = vsel %vm521, %v2276, 0
        %v2726 = vsel %vm521, %v2277, 0
        %v2729 = vsel %vm521, %v2278, 0
        %v2732 = vsel %vm521, %v2279, 0
        %v2735 = vsel %vm521, %v2280, 0
        %v2738 = vsel %vm521, %v2281, 0
        %v2741 = vsel %vm521, %v2282, 0
        %v2744 = vsel %vm521, %v2283, 0
        %v2747 = vsel %vm521, %v2284, 0
        %v2750 = vsel %vm521, %v2285, 0
        %v2753 = vsel %vm521, %v2286, 0
        %v2756 = vsel %vm521, %v2287, 0
        %v2759 = vsel %vm521, %v2288, 0
        %v2762 = vsel %vm521, %v2289, 0
        %2764 = vmatprep.subr.mxu0 0.0
        %2765 = vmatpush1.msra.mxu0 %v2290
        %2766 = vmatprep.subr.mxu0 0.0
        %2767 = vmatpush1.msra.mxu0 %v2291
        %2768 = vmatprep.subr.mxu0 0.0
        %2769 = vmatpush1.msra.mxu0 %v2292
        %2770 = vmatprep.subr.mxu0 0.0
        %2771 = vmatpush1.msra.mxu0 %v2293
        %2772 = vmatprep.subr.mxu0 0.0
        %2773 = vmatpush1.msra.mxu0 %v2294
        %2774 = vmatprep.subr.mxu0 0.0
        %2775 = vmatpush1.msra.mxu0 %v2295
        %2776 = vmatprep.subr.mxu0 0.0
        %2777 = vmatpush1.msra.mxu0 %v2296
        %2778 = vmatprep.subr.mxu0 0.0
        %2779 = vmatpush1.msra.mxu0 %v2297
        %2780 = vmatprep.subr.mxu0 0.0
        %2781 = vmatpush1.msra.mxu0 %v2298
        %2782 = vmatprep.subr.mxu0 0.0
        %2783 = vmatpush1.msra.mxu0 %v2299
        %2784 = vmatprep.subr.mxu0 0.0
        %2785 = vmatpush1.msra.mxu0 %v2300
        %2786 = vmatprep.subr.mxu0 0.0
        %2787 = vmatpush1.msra.mxu0 %v2301
        %2788 = vmatprep.subr.mxu0 0.0
        %2789 = vmatpush1.msra.mxu0 0.0
        %2790 = vmatprep.subr.mxu0 0.0
        %2791 = vmatpush1.msra.mxu0 0.0
        %2792 = vmatprep.subr.mxu0 0.0
        %2793 = vmatpush1.msra.mxu0 0.0
        %2794 = vmatprep.subr.mxu0 0.0
        %2795 = vmatpush1.msra.mxu0 0.0
        %2796 = vmatprep.subr.mxu0 0.0
        %2797 = vmatpush1.msra.mxu0 0.0
        %2798 = vmatprep.subr.mxu0 0.0
        %2799 = vmatpush1.msra.mxu0 0.0
        %2800 = vmatprep.subr.mxu0 0.0
        %2801 = vmatpush1.msra.mxu0 0.0
        %2802 = vmatprep.subr.mxu0 0.0
        %2803 = vmatpush1.msra.mxu0 0.0
        %2804 = vmatprep.subr.mxu0 0.0
        %2805 = vmatpush1.msra.mxu0 0.0
        %2806 = vmatprep.subr.mxu0 0.0
        %2807 = vmatpush1.msra.mxu0 0.0
        %2808 = vmatprep.subr.mxu0 0.0
        %2809 = vmatpush1.msra.mxu0 0.0
        %2810 = vmatprep.subr.mxu0 0.0
        %2811 = vmatpush1.msra.mxu0 0.0
        %2812 = vmatprep.subr.mxu0 0.0
        %2813 = vmatpush1.msra.mxu0 0.0
        %2814 = vmatprep.subr.mxu0 0.0
        %2815 = vmatpush1.msra.mxu0 0.0
        %2816 = vmatprep.subr.mxu0 0.0
        %2817 = vmatpush1.msra.mxu0 0.0
        %2818 = vmatprep.subr.mxu0 0.0
        %2819 = vmatpush1.msra.mxu0 0.0
        %2820 = vmatprep.subr.mxu0 0.0
        %2821 = vmatpush1.msra.mxu0 0.0
        %2822 = vmatprep.subr.mxu0 0.0
        %2823 = vmatpush1.msra.mxu0 0.0
        %2824 = vmatprep.subr.mxu0 0.0
        %2825 = vmatpush1.msra.mxu0 0.0
        %2826 = vmatprep.subr.mxu0 0.0
        %2827 = vmatpush1.msra.mxu0 0.0
        %2828 = vmatprep.mubr.f32.mxu0 0.0
        %2829 = vmatmul.mubr.f32.gmra.mrb[0].mxu0 %v2669
        %v2830 = vpop.f32.mrb[0].mxu0
        %v2831 = vadd.f32 %v2510, %v2830
        %v2832 = vpop.f32.mrb[0].mxu0
        %2833 = vmatprep.mubr.f32.mxu0 0.0
        %2834 = vmatmul.mubr.f32.gmra.mrb[0].mxu0 %v2672
        %v2835 = vpop.f32.mrb[0].mxu0
        %v2836 = vadd.f32 %v2515, %v2835
        %v2837 = vpop.f32.mrb[0].mxu0
        %2838 = vmatprep.mubr.f32.mxu0 0.0
        %2839 = vmatmul.mubr.f32.gmra.mrb[0].mxu0 %v2675
        %v2840 = vpop.f32.mrb[0].mxu0
        %v2841 = vadd.f32 %v2520, %v2840
        %v2842 = vpop.f32.mrb[0].mxu0
        %2843 = vmatprep.mubr.f32.mxu0 0.0
        %2844 = vmatmul.mubr.f32.gmra.mrb[0].mxu0 %v2678
        %v2845 = vpop.f32.mrb[0].mxu0
        %v2846 = vadd.f32 %v2525, %v2845
        %v2847 = vpop.f32.mrb[0].mxu0
        %2848 = vmatprep.mubr.f32.mxu0 0.0
        %2849 = vmatmul.mubr.f32.gmra.mrb[0].mxu0 %v2681
        %v2850 = vpop.f32.mrb[0].mxu0
        %v2851 = vadd.f32 %v2530, %v2850
        %v2852 = vpop.f32.mrb[0].mxu0
        %2853 = vmatprep.mubr.f32.mxu0 0.0
        %2854 = vmatmul.mubr.f32.gmra.mrb[0].mxu0 %v2684
        %v2855 = vpop.f32.mrb[0].mxu0
        %v2856 = vadd.f32 %v2535, %v2855
        %v2857 = vpop.f32.mrb[0].mxu0
        %2858 = vmatprep.mubr.f32.mxu0 0.0
        %2859 = vmatmul.mubr.f32.gmra.mrb[0].mxu0 %v2687
        %v2860 = vpop.f32.mrb[0].mxu0
        %v2861 = vadd.f32 %v2540, %v2860
        %v2862 = vpop.f32.mrb[0].mxu0
        %2863 = vmatprep.mubr.f32.mxu0 0.0
        %2864 = vmatmul.mubr.f32.gmra.mrb[0].mxu0 %v2690
        %v2865 = vpop.f32.mrb[0].mxu0
        %v2866 = vadd.f32 %v2545, %v2865
        %v2867 = vpop.f32.mrb[0].mxu0
        %2868 = vmatprep.mubr.f32.mxu0 0.0
        %2869 = vmatmul.mubr.f32.gmra.mrb[0].mxu0 %v2693
        %v2870 = vpop.f32.mrb[0].mxu0
        %v2871 = vadd.f32 %v2550, %v2870
        %v2872 = vpop.f32.mrb[0].mxu0
        %2873 = vmatprep.mubr.f32.mxu0 0.0
        %2874 = vmatmul.mubr.f32.gmra.mrb[0].mxu0 %v2696
        %v2875 = vpop.f32.mrb[0].mxu0
        %v2876 = vadd.f32 %v2555, %v2875
        %v2877 = vpop.f32.mrb[0].mxu0
        %2878 = vmatprep.mubr.f32.mxu0 0.0
        %2879 = vmatmul.mubr.f32.gmra.mrb[0].mxu0 %v2699
        %v2880 = vpop.f32.mrb[0].mxu0
        %v2881 = vadd.f32 %v2560, %v2880
        %v2882 = vpop.f32.mrb[0].mxu0
        %2883 = vmatprep.mubr.f32.mxu0 0.0
        %2884 = vmatmul.mubr.f32.gmra.mrb[0].mxu0 %v2702
        %v2885 = vpop.f32.mrb[0].mxu0
        %v2886 = vadd.f32 %v2565, %v2885
        %v2887 = vpop.f32.mrb[0].mxu0
        %2888 = vmatprep.mubr.f32.mxu0 0.0
        %2889 = vmatmul.mubr.f32.gmra.mrb[0].mxu0 %v2705
        %v2890 = vpop.f32.mrb[0].mxu0
        %v2891 = vadd.f32 %v2570, %v2890
        %v2892 = vpop.f32.mrb[0].mxu0
        %2893 = vmatprep.mubr.f32.mxu0 0.0
        %2894 = vmatmul.mubr.f32.gmra.mrb[0].mxu0 %v2708
        %v2895 = vpop.f32.mrb[0].mxu0
        %v2896 = vadd.f32 %v2575, %v2895
        %v2897 = vpop.f32.mrb[0].mxu0
        %2898 = vmatprep.mubr.f32.mxu0 0.0
        %2899 = vmatmul.mubr.f32.gmra.mrb[0].mxu0 %v2711
        %v2900 = vpop.f32.mrb[0].mxu0
        %v2901 = vadd.f32 %v2580, %v2900
        %v2902 = vpop.f32.mrb[0].mxu0
        %2903 = vmatprep.mubr.f32.mxu0 0.0
        %2904 = vmatmul.mubr.f32.gmra.mrb[0].mxu0 %v2714
        %v2905 = vpop.f32.mrb[0].mxu0
        %v2906 = vadd.f32 %v2585, %v2905
        %v2907 = vpop.f32.mrb[0].mxu0
        %2908 = vmatprep.mubr.f32.mxu0 0.0
        %2909 = vmatmul.mubr.f32.gmra.mrb[0].mxu0 %v2717
        %v2910 = vpop.f32.mrb[0].mxu0
        %v2911 = vadd.f32 %v2590, %v2910
        %v2912 = vpop.f32.mrb[0].mxu0
        %2913 = vmatprep.mubr.f32.mxu0 0.0
        %2914 = vmatmul.mubr.f32.gmra.mrb[0].mxu0 %v2720
        %v2915 = vpop.f32.mrb[0].mxu0
        %v2916 = vadd.f32 %v2595, %v2915
        %v2917 = vpop.f32.mrb[0].mxu0
        %2918 = vmatprep.mubr.f32.mxu0 0.0
        %2919 = vmatmul.mubr.f32.gmra.mrb[0].mxu0 %v2723
        %v2920 = vpop.f32.mrb[0].mxu0
        %v2921 = vadd.f32 %v2600, %v2920
        %v2922 = vpop.f32.mrb[0].mxu0
        %2923 = vmatprep.mubr.f32.mxu0 0.0
        %2924 = vmatmul.mubr.f32.gmra.mrb[0].mxu0 %v2726
        %v2925 = vpop.f32.mrb[0].mxu0
        %v2926 = vadd.f32 %v2605, %v2925
        %v2927 = vpop.f32.mrb[0].mxu0
        %2928 = vmatprep.mubr.f32.mxu0 0.0
        %2929 = vmatmul.mubr.f32.gmra.mrb[0].mxu0 %v2729
        %v2930 = vpop.f32.mrb[0].mxu0
        %v2931 = vadd.f32 %v2610, %v2930
        %v2932 = vpop.f32.mrb[0].mxu0
        %2933 = vmatprep.mubr.f32.mxu0 0.0
        %2934 = vmatmul.mubr.f32.gmra.mrb[0].mxu0 %v2732
        %v2935 = vpop.f32.mrb[0].mxu0
        %v2936 = vadd.f32 %v2615, %v2935
        %v2937 = vpop.f32.mrb[0].mxu0
        %2938 = vmatprep.mubr.f32.mxu0 0.0
        %2939 = vmatmul.mubr.f32.gmra.mrb[0].mxu0 %v2735
        %v2940 = vpop.f32.mrb[0].mxu0
        %v2941 = vadd.f32 %v2620, %v2940
        %v2942 = vpop.f32.mrb[0].mxu0
        %2943 = vmatprep.mubr.f32.mxu0 0.0
        %2944 = vmatmul.mubr.f32.gmra.mrb[0].mxu0 %v2738
        %v2945 = vpop.f32.mrb[0].mxu0
        %v2946 = vadd.f32 %v2625, %v2945
        %v2947 = vpop.f32.mrb[0].mxu0
        %2948 = vmatprep.mubr.f32.mxu0 0.0
        %2949 = vmatmul.mubr.f32.gmra.mrb[0].mxu0 %v2741
        %v2950 = vpop.f32.mrb[0].mxu0
        %v2951 = vadd.f32 %v2630, %v2950
        %v2952 = vpop.f32.mrb[0].mxu0
        %2953 = vmatprep.mubr.f32.mxu0 0.0
        %2954 = vmatmul.mubr.f32.gmra.mrb[0].mxu0 %v2744
        %v2955 = vpop.f32.mrb[0].mxu0
        %v2956 = vadd.f32 %v2635, %v2955
        %v2957 = vpop.f32.mrb[0].mxu0
        %2958 = vmatprep.mubr.f32.mxu0 0.0
        %2959 = vmatmul.mubr.f32.gmra.mrb[0].mxu0 %v2747
        %v2960 = vpop.f32.mrb[0].mxu0
        %v2961 = vadd.f32 %v2640, %v2960
        %v2962 = vpop.f32.mrb[0].mxu0
        %2963 = vmatprep.mubr.f32.mxu0 0.0
        %2964 = vmatmul.mubr.f32.gmra.mrb[0].mxu0 %v2750
        %v2965 = vpop.f32.mrb[0].mxu0
        %v2966 = vadd.f32 %v2645, %v2965
        %v2967 = vpop.f32.mrb[0].mxu0
        %2968 = vmatprep.mubr.f32.mxu0 0.0
        %2969 = vmatmul.mubr.f32.gmra.mrb[0].mxu0 %v2753
        %v2970 = vpop.f32.mrb[0].mxu0
        %v2971 = vadd.f32 %v2650, %v2970
        %v2972 = vpop.f32.mrb[0].mxu0
        %2973 = vmatprep.mubr.f32.mxu0 0.0
        %2974 = vmatmul.mubr.f32.gmra.mrb[0].mxu0 %v2756
        %v2975 = vpop.f32.mrb[0].mxu0
        %v2976 = vadd.f32 %v2655, %v2975
        %v2977 = vpop.f32.mrb[0].mxu0
        %2978 = vmatprep.mubr.f32.mxu0 0.0
        %2979 = vmatmul.mubr.f32.gmra.mrb[0].mxu0 %v2759
        %v2980 = vpop.f32.mrb[0].mxu0
        %v2981 = vadd.f32 %v2660, %v2980
        %v2982 = vpop.f32.mrb[0].mxu0
        %2983 = vmatprep.mubr.f32.mxu0 0.0
        %2984 = vmatmul.mubr.f32.gmra.mrb[0].mxu0 %v2762
        %v2985 = vpop.f32.mrb[0].mxu0
        %v2986 = vadd.f32 %v2665, %v2985
        %v2987 = vpop.f32.mrb[0].mxu0
        %2988 = vdwg.mxu0
        %v2989 = vld [vmem:[#allocation2 + $0x2] sm:$0xff]
        %v2990 = vld [vmem:[#allocation2 + $0xa] sm:$0xff]
        %v2991 = vld [vmem:[#allocation2 + $0x1a] sm:$0xff]
        %v2992 = vld [vmem:[#allocation2 + $0x22] sm:$0xff]
        %v2993 = vld [vmem:[#allocation2 + $0x32] sm:$0xff]
        %v2994 = vld [vmem:[#allocation2 + $0x3a] sm:$0xff]
        %v2995 = vld [vmem:[#allocation2 + $0x4a] sm:$0xff]
        %v2996 = vld [vmem:[#allocation2 + $0x52] sm:$0xff]
        %v2997 = vld [vmem:[#allocation2 + $0x62] sm:$0xff]
        %v2998 = vld [vmem:[#allocation2 + $0x6a] sm:$0xff]
        %v2999 = vld [vmem:[#allocation2 + $0x7a] sm:$0xff]
        %v3000 = vld [vmem:[#allocation2 + $0x82] sm:$0xff]
        %v3001 = vld [vmem:[#allocation2 + $0x92] sm:$0xff]
        %v3002 = vld [vmem:[#allocation2 + $0x9a] sm:$0xff]
        %v3003 = vld [vmem:[#allocation2 + $0xaa] sm:$0xff]
        %v3004 = vld [vmem:[#allocation2 + $0xb2] sm:$0xff]
        %v3005 = vld [vmem:[#allocation2 + $0xc2] sm:$0xff]
        %v3006 = vld [vmem:[#allocation2 + $0xca] sm:$0xff]
        %v3007 = vld [vmem:[#allocation2 + $0xda] sm:$0xff]
        %v3008 = vld [vmem:[#allocation2 + $0xe2] sm:$0xff]
        %v3009 = vld [vmem:[#allocation2 + $0xf2] sm:$0xff]
        %v3010 = vld [vmem:[#allocation2 + $0xfa] sm:$0xff]
        %v3011 = vld [vmem:[#allocation2 + $0x10a] sm:$0xff]
        %v3012 = vld [vmem:[#allocation2 + $0x112] sm:$0xff]
        %v3013 = vld [vmem:[#allocation2 + $0x122] sm:$0xff]
        %v3014 = vld [vmem:[#allocation2 + $0x12a] sm:$0xff]
        %v3015 = vld [vmem:[#allocation2 + $0x13a] sm:$0xff]
        %v3016 = vld [vmem:[#allocation2 + $0x142] sm:$0xff]
        %v3017 = vld [vmem:[#allocation2 + $0x152] sm:$0xff]
        %v3018 = vld [vmem:[#allocation2 + $0x15a] sm:$0xff]
        %v3019 = vld [vmem:[#allocation2 + $0x16a] sm:$0xff]
        %v3020 = vld [vmem:[#allocation2 + $0x172] sm:$0xff]
        %s3021 = scalar_lea.vmem %s5, 192
        %v3022 = vld [vmem:[%s3021] sm:$0xff]
        %v3023 = vld [vmem:[%s3021 + $0x8] sm:$0xff]
        %v3024 = vld [vmem:[%s3021 + $0x10] sm:$0xff]
        %v3025 = vld [vmem:[%s3021 + $0x18] sm:$0xff]
        %v3026 = vld [vmem:[%s3021 + $0x20] sm:$0xff]
        %v3027 = vld [vmem:[%s3021 + $0x28] sm:$0xff]
        %v3028 = vld [vmem:[%s3021 + $0x30] sm:$0xff]
        %v3029 = vld [vmem:[%s3021 + $0x38] sm:$0xff]
        %v3030 = vld [vmem:[%s3021 + $0x40] sm:$0xff]
        %v3031 = vld [vmem:[%s3021 + $0x48] sm:$0xff]
        %v3032 = vld [vmem:[%s3021 + $0x50] sm:$0xff]
        %v3033 = vld [vmem:[%s3021 + $0x58] sm:$0xff]
        %v3035 = vsel %vm521, %v2989, 0
        %v3038 = vsel %vm521, %v2990, 0
        %v3041 = vsel %vm521, %v2991, 0
        %v3044 = vsel %vm521, %v2992, 0
        %v3047 = vsel %vm521, %v2993, 0
        %v3050 = vsel %vm521, %v2994, 0
        %v3053 = vsel %vm521, %v2995, 0
        %v3056 = vsel %vm521, %v2996, 0
        %v3059 = vsel %vm521, %v2997, 0
        %v3062 = vsel %vm521, %v2998, 0
        %v3065 = vsel %vm521, %v2999, 0
        %v3068 = vsel %vm521, %v3000, 0
        %v3071 = vsel %vm521, %v3001, 0
        %v3074 = vsel %vm521, %v3002, 0
        %v3077 = vsel %vm521, %v3003, 0
        %v3080 = vsel %vm521, %v3004, 0
        %v3083 = vsel %vm521, %v3005, 0
        %v3086 = vsel %vm521, %v3006, 0
        %v3089 = vsel %vm521, %v3007, 0
        %v3092 = vsel %vm521, %v3008, 0
        %v3095 = vsel %vm521, %v3009, 0
        %v3098 = vsel %vm521, %v3010, 0
        %v3101 = vsel %vm521, %v3011, 0
        %v3104 = vsel %vm521, %v3012, 0
        %v3107 = vsel %vm521, %v3013, 0
        %v3110 = vsel %vm521, %v3014, 0
        %v3113 = vsel %vm521, %v3015, 0
        %v3116 = vsel %vm521, %v3016, 0
        %v3119 = vsel %vm521, %v3017, 0
        %v3122 = vsel %vm521, %v3018, 0
        %v3125 = vsel %vm521, %v3019, 0
        %v3128 = vsel %vm521, %v3020, 0
        %3130 = vmatprep.subr.mxu0 0.0
        %3131 = vmatpush1.msra.mxu0 %v3022
        %3132 = vmatprep.subr.mxu0 0.0
        %3133 = vmatpush1.msra.mxu0 %v3023
        %3134 = vmatprep.subr.mxu0 0.0
        %3135 = vmatpush1.msra.mxu0 %v3024
        %3136 = vmatprep.subr.mxu0 0.0
        %3137 = vmatpush1.msra.mxu0 %v3025
        %3138 = vmatprep.subr.mxu0 0.0
        %3139 = vmatpush1.msra.mxu0 %v3026
        %3140 = vmatprep.subr.mxu0 0.0
        %3141 = vmatpush1.msra.mxu0 %v3027
        %3142 = vmatprep.subr.mxu0 0.0
        %3143 = vmatpush1.msra.mxu0 %v3028
        %3144 = vmatprep.subr.mxu0 0.0
        %3145 = vmatpush1.msra.mxu0 %v3029
        %3146 = vmatprep.subr.mxu0 0.0
        %3147 = vmatpush1.msra.mxu0 %v3030
        %3148 = vmatprep.subr.mxu0 0.0
        %3149 = vmatpush1.msra.mxu0 %v3031
        %3150 = vmatprep.subr.mxu0 0.0
        %3151 = vmatpush1.msra.mxu0 %v3032
        %3152 = vmatprep.subr.mxu0 0.0
        %3153 = vmatpush1.msra.mxu0 %v3033
        %3154 = vmatprep.subr.mxu0 0.0
        %3155 = vmatpush1.msra.mxu0 0.0
        %3156 = vmatprep.subr.mxu0 0.0
        %3157 = vmatpush1.msra.mxu0 0.0
        %3158 = vmatprep.subr.mxu0 0.0
        %3159 = vmatpush1.msra.mxu0 0.0
        %3160 = vmatprep.subr.mxu0 0.0
        %3161 = vmatpush1.msra.mxu0 0.0
        %3162 = vmatprep.subr.mxu0 0.0
        %3163 = vmatpush1.msra.mxu0 0.0
        %3164 = vmatprep.subr.mxu0 0.0
        %3165 = vmatpush1.msra.mxu0 0.0
        %3166 = vmatprep.subr.mxu0 0.0
        %3167 = vmatpush1.msra.mxu0 0.0
        %3168 = vmatprep.subr.mxu0 0.0
        %3169 = vmatpush1.msra.mxu0 0.0
        %3170 = vmatprep.subr.mxu0 0.0
        %3171 = vmatpush1.msra.mxu0 0.0
        %3172 = vmatprep.subr.mxu0 0.0
        %3173 = vmatpush1.msra.mxu0 0.0
        %3174 = vmatprep.subr.mxu0 0.0
        %3175 = vmatpush1.msra.mxu0 0.0
        %3176 = vmatprep.subr.mxu0 0.0
        %3177 = vmatpush1.msra.mxu0 0.0
        %3178 = vmatprep.subr.mxu0 0.0
        %3179 = vmatpush1.msra.mxu0 0.0
        %3180 = vmatprep.subr.mxu0 0.0
        %3181 = vmatpush1.msra.mxu0 0.0
        %3182 = vmatprep.subr.mxu0 0.0
        %3183 = vmatpush1.msra.mxu0 0.0
        %3184 = vmatprep.subr.mxu0 0.0
        %3185 = vmatpush1.msra.mxu0 0.0
        %3186 = vmatprep.subr.mxu0 0.0
        %3187 = vmatpush1.msra.mxu0 0.0
        %3188 = vmatprep.subr.mxu0 0.0
        %3189 = vmatpush1.msra.mxu0 0.0
        %3190 = vmatprep.subr.mxu0 0.0
        %3191 = vmatpush1.msra.mxu0 0.0
        %3192 = vmatprep.subr.mxu0 0.0
        %3193 = vmatpush1.msra.mxu0 0.0
        %3194 = vmatprep.mubr.f32.mxu0 0.0
        %3195 = vmatmul.mubr.f32.gmra.mrb[0].mxu0 %v3035
        %v3196 = vpop.f32.mrb[0].mxu0
        %v3197 = vadd.f32 0.0, %v3196
        %v3198 = vpop.f32.mrb[0].mxu0
        %3199 = vmatprep.mubr.f32.mxu0 0.0
        %3200 = vmatmul.mubr.f32.gmra.mrb[0].mxu0 %v3038
        %v3201 = vpop.f32.mrb[0].mxu0
        %v3202 = vadd.f32 0.0, %v3201
        %v3203 = vpop.f32.mrb[0].mxu0
        %3204 = vmatprep.mubr.f32.mxu0 0.0
        %3205 = vmatmul.mubr.f32.gmra.mrb[0].mxu0 %v3041
        %v3206 = vpop.f32.mrb[0].mxu0
        %v3207 = vadd.f32 0.0, %v3206
        %v3208 = vpop.f32.mrb[0].mxu0
        %3209 = vmatprep.mubr.f32.mxu0 0.0
        %3210 = vmatmul.mubr.f32.gmra.mrb[0].mxu0 %v3044
        %v3211 = vpop.f32.mrb[0].mxu0
        %v3212 = vadd.f32 0.0, %v3211
        %v3213 = vpop.f32.mrb[0].mxu0
        %3214 = vmatprep.mubr.f32.mxu0 0.0
        %3215 = vmatmul.mubr.f32.gmra.mrb[0].mxu0 %v3047
        %v3216 = vpop.f32.mrb[0].mxu0
        %v3217 = vadd.f32 0.0, %v3216
        %v3218 = vpop.f32.mrb[0].mxu0
        %3219 = vmatprep.mubr.f32.mxu0 0.0
        %3220 = vmatmul.mubr.f32.gmra.mrb[0].mxu0 %v3050
        %v3221 = vpop.f32.mrb[0].mxu0
        %v3222 = vadd.f32 0.0, %v3221
        %v3223 = vpop.f32.mrb[0].mxu0
        %3224 = vmatprep.mubr.f32.mxu0 0.0
        %3225 = vmatmul.mubr.f32.gmra.mrb[0].mxu0 %v3053
        %v3226 = vpop.f32.mrb[0].mxu0
        %v3227 = vadd.f32 0.0, %v3226
        %v3228 = vpop.f32.mrb[0].mxu0
        %3229 = vmatprep.mubr.f32.mxu0 0.0
        %3230 = vmatmul.mubr.f32.gmra.mrb[0].mxu0 %v3056
        %v3231 = vpop.f32.mrb[0].mxu0
        %v3232 = vadd.f32 0.0, %v3231
        %v3233 = vpop.f32.mrb[0].mxu0
        %3234 = vmatprep.mubr.f32.mxu0 0.0
        %3235 = vmatmul.mubr.f32.gmra.mrb[0].mxu0 %v3059
        %v3236 = vpop.f32.mrb[0].mxu0
        %v3237 = vadd.f32 0.0, %v3236
        %v3238 = vpop.f32.mrb[0].mxu0
        %3239 = vmatprep.mubr.f32.mxu0 0.0
        %3240 = vmatmul.mubr.f32.gmra.mrb[0].mxu0 %v3062
        %v3241 = vpop.f32.mrb[0].mxu0
        %v3242 = vadd.f32 0.0, %v3241
        %v3243 = vpop.f32.mrb[0].mxu0
        %3244 = vmatprep.mubr.f32.mxu0 0.0
        %3245 = vmatmul.mubr.f32.gmra.mrb[0].mxu0 %v3065
        %v3246 = vpop.f32.mrb[0].mxu0
        %v3247 = vadd.f32 0.0, %v3246
        %v3248 = vpop.f32.mrb[0].mxu0
        %3249 = vmatprep.mubr.f32.mxu0 0.0
        %3250 = vmatmul.mubr.f32.gmra.mrb[0].mxu0 %v3068
        %v3251 = vpop.f32.mrb[0].mxu0
        %v3252 = vadd.f32 0.0, %v3251
        %v3253 = vpop.f32.mrb[0].mxu0
        %3254 = vmatprep.mubr.f32.mxu0 0.0
        %3255 = vmatmul.mubr.f32.gmra.mrb[0].mxu0 %v3071
        %v3256 = vpop.f32.mrb[0].mxu0
        %v3257 = vadd.f32 0.0, %v3256
        %v3258 = vpop.f32.mrb[0].mxu0
        %3259 = vmatprep.mubr.f32.mxu0 0.0
        %3260 = vmatmul.mubr.f32.gmra.mrb[0].mxu0 %v3074
        %v3261 = vpop.f32.mrb[0].mxu0
        %v3262 = vadd.f32 0.0, %v3261
        %v3263 = vpop.f32.mrb[0].mxu0
        %3264 = vmatprep.mubr.f32.mxu0 0.0
        %3265 = vmatmul.mubr.f32.gmra.mrb[0].mxu0 %v3077
        %v3266 = vpop.f32.mrb[0].mxu0
        %v3267 = vadd.f32 0.0, %v3266
        %v3268 = vpop.f32.mrb[0].mxu0
        %3269 = vmatprep.mubr.f32.mxu0 0.0
        %3270 = vmatmul.mubr.f32.gmra.mrb[0].mxu0 %v3080
        %v3271 = vpop.f32.mrb[0].mxu0
        %v3272 = vadd.f32 0.0, %v3271
        %v3273 = vpop.f32.mrb[0].mxu0
        %3274 = vmatprep.mubr.f32.mxu0 0.0
        %3275 = vmatmul.mubr.f32.gmra.mrb[0].mxu0 %v3083
        %v3276 = vpop.f32.mrb[0].mxu0
        %v3277 = vadd.f32 0.0, %v3276
        %v3278 = vpop.f32.mrb[0].mxu0
        %3279 = vmatprep.mubr.f32.mxu0 0.0
        %3280 = vmatmul.mubr.f32.gmra.mrb[0].mxu0 %v3086
        %v3281 = vpop.f32.mrb[0].mxu0
        %v3282 = vadd.f32 0.0, %v3281
        %v3283 = vpop.f32.mrb[0].mxu0
        %3284 = vmatprep.mubr.f32.mxu0 0.0
        %3285 = vmatmul.mubr.f32.gmra.mrb[0].mxu0 %v3089
        %v3286 = vpop.f32.mrb[0].mxu0
        %v3287 = vadd.f32 0.0, %v3286
        %v3288 = vpop.f32.mrb[0].mxu0
        %3289 = vmatprep.mubr.f32.mxu0 0.0
        %3290 = vmatmul.mubr.f32.gmra.mrb[0].mxu0 %v3092
        %v3291 = vpop.f32.mrb[0].mxu0
        %v3292 = vadd.f32 0.0, %v3291
        %v3293 = vpop.f32.mrb[0].mxu0
        %3294 = vmatprep.mubr.f32.mxu0 0.0
        %3295 = vmatmul.mubr.f32.gmra.mrb[0].mxu0 %v3095
        %v3296 = vpop.f32.mrb[0].mxu0
        %v3297 = vadd.f32 0.0, %v3296
        %v3298 = vpop.f32.mrb[0].mxu0
        %3299 = vmatprep.mubr.f32.mxu0 0.0
        %3300 = vmatmul.mubr.f32.gmra.mrb[0].mxu0 %v3098
        %v3301 = vpop.f32.mrb[0].mxu0
        %v3302 = vadd.f32 0.0, %v3301
        %v3303 = vpop.f32.mrb[0].mxu0
        %3304 = vmatprep.mubr.f32.mxu0 0.0
        %3305 = vmatmul.mubr.f32.gmra.mrb[0].mxu0 %v3101
        %v3306 = vpop.f32.mrb[0].mxu0
        %v3307 = vadd.f32 0.0, %v3306
        %v3308 = vpop.f32.mrb[0].mxu0
        %3309 = vmatprep.mubr.f32.mxu0 0.0
        %3310 = vmatmul.mubr.f32.gmra.mrb[0].mxu0 %v3104
        %v3311 = vpop.f32.mrb[0].mxu0
        %v3312 = vadd.f32 0.0, %v3311
        %v3313 = vpop.f32.mrb[0].mxu0
        %3314 = vmatprep.mubr.f32.mxu0 0.0
        %3315 = vmatmul.mubr.f32.gmra.mrb[0].mxu0 %v3107
        %v3316 = vpop.f32.mrb[0].mxu0
        %v3317 = vadd.f32 0.0, %v3316
        %v3318 = vpop.f32.mrb[0].mxu0
        %3319 = vmatprep.mubr.f32.mxu0 0.0
        %3320 = vmatmul.mubr.f32.gmra.mrb[0].mxu0 %v3110
        %v3321 = vpop.f32.mrb[0].mxu0
        %v3322 = vadd.f32 0.0, %v3321
        %v3323 = vpop.f32.mrb[0].mxu0
        %3324 = vmatprep.mubr.f32.mxu0 0.0
        %3325 = vmatmul.mubr.f32.gmra.mrb[0].mxu0 %v3113
        %v3326 = vpop.f32.mrb[0].mxu0
        %v3327 = vadd.f32 0.0, %v3326
        %v3328 = vpop.f32.mrb[0].mxu0
        %3329 = vmatprep.mubr.f32.mxu0 0.0
        %3330 = vmatmul.mubr.f32.gmra.mrb[0].mxu0 %v3116
        %v3331 = vpop.f32.mrb[0].mxu0
        %v3332 = vadd.f32 0.0, %v3331
        %v3333 = vpop.f32.mrb[0].mxu0
        %3334 = vmatprep.mubr.f32.mxu0 0.0
        %3335 = vmatmul.mubr.f32.gmra.mrb[0].mxu0 %v3119
        %v3336 = vpop.f32.mrb[0].mxu0
        %v3337 = vadd.f32 0.0, %v3336
        %v3338 = vpop.f32.mrb[0].mxu0
        %3339 = vmatprep.mubr.f32.mxu0 0.0
        %3340 = vmatmul.mubr.f32.gmra.mrb[0].mxu0 %v3122
        %v3341 = vpop.f32.mrb[0].mxu0
        %v3342 = vadd.f32 0.0, %v3341
        %v3343 = vpop.f32.mrb[0].mxu0
        %3344 = vmatprep.mubr.f32.mxu0 0.0
        %3345 = vmatmul.mubr.f32.gmra.mrb[0].mxu0 %v3125
        %v3346 = vpop.f32.mrb[0].mxu0
        %v3347 = vadd.f32 0.0, %v3346
        %v3348 = vpop.f32.mrb[0].mxu0
        %3349 = vmatprep.mubr.f32.mxu0 0.0
        %3350 = vmatmul.mubr.f32.gmra.mrb[0].mxu0 %v3128
        %v3351 = vpop.f32.mrb[0].mxu0
        %v3352 = vadd.f32 0.0, %v3351
        %v3353 = vpop.f32.mrb[0].mxu0
        %3354 = vdwg.mxu0
        %v3355 = vadd.f32 %v2831, %v3197
        %v3356 = vadd.f32 %v2836, %v3202
        %v3357 = vadd.f32 %v2841, %v3207
        %v3358 = vadd.f32 %v2846, %v3212
        %v3359 = vadd.f32 %v2851, %v3217
        %v3360 = vadd.f32 %v2856, %v3222
        %v3361 = vadd.f32 %v2861, %v3227
        %v3362 = vadd.f32 %v2866, %v3232
        %v3363 = vadd.f32 %v2871, %v3237
        %v3364 = vadd.f32 %v2876, %v3242
        %v3365 = vadd.f32 %v2881, %v3247
        %v3366 = vadd.f32 %v2886, %v3252
        %v3367 = vadd.f32 %v2891, %v3257
        %v3368 = vadd.f32 %v2896, %v3262
        %v3369 = vadd.f32 %v2901, %v3267
        %v3370 = vadd.f32 %v2906, %v3272
        %v3371 = vadd.f32 %v2911, %v3277
        %v3372 = vadd.f32 %v2916, %v3282
        %v3373 = vadd.f32 %v2921, %v3287
        %v3374 = vadd.f32 %v2926, %v3292
        %v3375 = vadd.f32 %v2931, %v3297
        %v3376 = vadd.f32 %v2936, %v3302
        %v3377 = vadd.f32 %v2941, %v3307
        %v3378 = vadd.f32 %v2946, %v3312
        %v3379 = vadd.f32 %v2951, %v3317
        %v3380 = vadd.f32 %v2956, %v3322
        %v3381 = vadd.f32 %v2961, %v3327
        %v3382 = vadd.f32 %v2966, %v3332
        %v3383 = vadd.f32 %v2971, %v3337
        %v3384 = vadd.f32 %v2976, %v3342
        %v3385 = vadd.f32 %v2981, %v3347
        %v3386 = vadd.f32 %v2986, %v3352
        %v3387 = vld [vmem:[%s2225] sm:$0xff]
        %v3388 = vld [vmem:[%s2225 + $0x8] sm:$0xff]
        %v3389 = vld [vmem:[%s2225 + $0x18] sm:$0xff]
        %v3390 = vld [vmem:[%s2225 + $0x20] sm:$0xff]
        %v3391 = vld [vmem:[%s2225 + $0x30] sm:$0xff]
        %v3392 = vld [vmem:[%s2225 + $0x38] sm:$0xff]
        %v3393 = vld [vmem:[%s2225 + $0x48] sm:$0xff]
        %v3394 = vld [vmem:[%s2225 + $0x50] sm:$0xff]
        %v3395 = vld [vmem:[%s2225 + $0x60] sm:$0xff]
        %v3396 = vld [vmem:[%s2225 + $0x68] sm:$0xff]
        %v3397 = vld [vmem:[%s2225 + $0x78] sm:$0xff]
        %v3398 = vld [vmem:[%s2225 + $0x80] sm:$0xff]
        %v3399 = vld [vmem:[%s2225 + $0x90] sm:$0xff]
        %v3400 = vld [vmem:[%s2225 + $0x98] sm:$0xff]
        %v3401 = vld [vmem:[%s2225 + $0xa8] sm:$0xff]
        %v3402 = vld [vmem:[%s2225 + $0xb0] sm:$0xff]
        %v3403 = vld [vmem:[%s2225 + $0xc0] sm:$0xff]
        %v3404 = vld [vmem:[%s2225 + $0xc8] sm:$0xff]
        %v3405 = vld [vmem:[%s2225 + $0xd8] sm:$0xff]
        %v3406 = vld [vmem:[%s2225 + $0xe0] sm:$0xff]
        %v3407 = vld [vmem:[%s2225 + $0xf0] sm:$0xff]
        %v3408 = vld [vmem:[%s2225 + $0xf8] sm:$0xff]
        %v3409 = vld [vmem:[%s2225 + $0x108] sm:$0xff]
        %v3410 = vld [vmem:[%s2225 + $0x110] sm:$0xff]
        %v3411 = vld [vmem:[%s2225 + $0x120] sm:$0xff]
        %v3412 = vld [vmem:[%s2225 + $0x128] sm:$0xff]
        %v3413 = vld [vmem:[%s2225 + $0x138] sm:$0xff]
        %v3414 = vld [vmem:[%s2225 + $0x140] sm:$0xff]
        %v3415 = vld [vmem:[%s2225 + $0x150] sm:$0xff]
        %v3416 = vld [vmem:[%s2225 + $0x158] sm:$0xff]
        %v3417 = vld [vmem:[%s2225 + $0x168] sm:$0xff]
        %v3418 = vld [vmem:[%s2225 + $0x170] sm:$0xff]
        %s3419 = scalar_lea.vmem %s5, 288
        %v3420 = vld [vmem:[%s3419] sm:$0xff]
        %v3421 = vld [vmem:[%s3419 + $0x8] sm:$0xff]
        %v3422 = vld [vmem:[%s3419 + $0x10] sm:$0xff]
        %v3423 = vld [vmem:[%s3419 + $0x18] sm:$0xff]
        %v3424 = vld [vmem:[%s3419 + $0x20] sm:$0xff]
        %v3425 = vld [vmem:[%s3419 + $0x28] sm:$0xff]
        %v3426 = vld [vmem:[%s3419 + $0x30] sm:$0xff]
        %v3427 = vld [vmem:[%s3419 + $0x38] sm:$0xff]
        %v3428 = vld [vmem:[%s3419 + $0x40] sm:$0xff]
        %v3429 = vld [vmem:[%s3419 + $0x48] sm:$0xff]
        %v3430 = vld [vmem:[%s3419 + $0x50] sm:$0xff]
        %v3431 = vld [vmem:[%s3419 + $0x58] sm:$0xff]
        %v3433 = vsel %vm521, %v3387, 0
        %v3436 = vsel %vm521, %v3388, 0
        %v3439 = vsel %vm521, %v3389, 0
        %v3442 = vsel %vm521, %v3390, 0
        %v3445 = vsel %vm521, %v3391, 0
        %v3448 = vsel %vm521, %v3392, 0
        %v3451 = vsel %vm521, %v3393, 0
        %v3454 = vsel %vm521, %v3394, 0
        %v3457 = vsel %vm521, %v3395, 0
        %v3460 = vsel %vm521, %v3396, 0
        %v3463 = vsel %vm521, %v3397, 0
        %v3466 = vsel %vm521, %v3398, 0
        %v3469 = vsel %vm521, %v3399, 0
        %v3472 = vsel %vm521, %v3400, 0
        %v3475 = vsel %vm521, %v3401, 0
        %v3478 = vsel %vm521, %v3402, 0
        %v3481 = vsel %vm521, %v3403, 0
        %v3484 = vsel %vm521, %v3404, 0
        %v3487 = vsel %vm521, %v3405, 0
        %v3490 = vsel %vm521, %v3406, 0
        %v3493 = vsel %vm521, %v3407, 0
        %v3496 = vsel %vm521, %v3408, 0
        %v3499 = vsel %vm521, %v3409, 0
        %v3502 = vsel %vm521, %v3410, 0
        %v3505 = vsel %vm521, %v3411, 0
        %v3508 = vsel %vm521, %v3412, 0
        %v3511 = vsel %vm521, %v3413, 0
        %v3514 = vsel %vm521, %v3414, 0
        %v3517 = vsel %vm521, %v3415, 0
        %v3520 = vsel %vm521, %v3416, 0
        %v3523 = vsel %vm521, %v3417, 0
        %v3526 = vsel %vm521, %v3418, 0
        %3528 = vmatprep.subr.mxu0 0.0
        %3529 = vmatpush1.msra.mxu0 %v3420
        %3530 = vmatprep.subr.mxu0 0.0
        %3531 = vmatpush1.msra.mxu0 %v3421
        %3532 = vmatprep.subr.mxu0 0.0
        %3533 = vmatpush1.msra.mxu0 %v3422
        %3534 = vmatprep.subr.mxu0 0.0
        %3535 = vmatpush1.msra.mxu0 %v3423
        %3536 = vmatprep.subr.mxu0 0.0
        %3537 = vmatpush1.msra.mxu0 %v3424
        %3538 = vmatprep.subr.mxu0 0.0
        %3539 = vmatpush1.msra.mxu0 %v3425
        %3540 = vmatprep.subr.mxu0 0.0
        %3541 = vmatpush1.msra.mxu0 %v3426
        %3542 = vmatprep.subr.mxu0 0.0
        %3543 = vmatpush1.msra.mxu0 %v3427
        %3544 = vmatprep.subr.mxu0 0.0
        %3545 = vmatpush1.msra.mxu0 %v3428
        %3546 = vmatprep.subr.mxu0 0.0
        %3547 = vmatpush1.msra.mxu0 %v3429
        %3548 = vmatprep.subr.mxu0 0.0
        %3549 = vmatpush1.msra.mxu0 %v3430
        %3550 = vmatprep.subr.mxu0 0.0
        %3551 = vmatpush1.msra.mxu0 %v3431
        %3552 = vmatprep.subr.mxu0 0.0
        %3553 = vmatpush1.msra.mxu0 0.0
        %3554 = vmatprep.subr.mxu0 0.0
        %3555 = vmatpush1.msra.mxu0 0.0
        %3556 = vmatprep.subr.mxu0 0.0
        %3557 = vmatpush1.msra.mxu0 0.0
        %3558 = vmatprep.subr.mxu0 0.0
        %3559 = vmatpush1.msra.mxu0 0.0
        %3560 = vmatprep.subr.mxu0 0.0
        %3561 = vmatpush1.msra.mxu0 0.0
        %3562 = vmatprep.subr.mxu0 0.0
        %3563 = vmatpush1.msra.mxu0 0.0
        %3564 = vmatprep.subr.mxu0 0.0
        %3565 = vmatpush1.msra.mxu0 0.0
        %3566 = vmatprep.subr.mxu0 0.0
        %3567 = vmatpush1.msra.mxu0 0.0
        %3568 = vmatprep.subr.mxu0 0.0
        %3569 = vmatpush1.msra.mxu0 0.0
        %3570 = vmatprep.subr.mxu0 0.0
        %3571 = vmatpush1.msra.mxu0 0.0
        %3572 = vmatprep.subr.mxu0 0.0
        %3573 = vmatpush1.msra.mxu0 0.0
        %3574 = vmatprep.subr.mxu0 0.0
        %3575 = vmatpush1.msra.mxu0 0.0
        %3576 = vmatprep.subr.mxu0 0.0
        %3577 = vmatpush1.msra.mxu0 0.0
        %3578 = vmatprep.subr.mxu0 0.0
        %3579 = vmatpush1.msra.mxu0 0.0
        %3580 = vmatprep.subr.mxu0 0.0
        %3581 = vmatpush1.msra.mxu0 0.0
        %3582 = vmatprep.subr.mxu0 0.0
        %3583 = vmatpush1.msra.mxu0 0.0
        %3584 = vmatprep.subr.mxu0 0.0
        %3585 = vmatpush1.msra.mxu0 0.0
        %3586 = vmatprep.subr.mxu0 0.0
        %3587 = vmatpush1.msra.mxu0 0.0
        %3588 = vmatprep.subr.mxu0 0.0
        %3589 = vmatpush1.msra.mxu0 0.0
        %3590 = vmatprep.subr.mxu0 0.0
        %3591 = vmatpush1.msra.mxu0 0.0
        %3592 = vmatprep.mubr.f32.mxu0 0.0
        %3593 = vmatmul.mubr.f32.gmra.mrb[0].mxu0 %v3433
        %v3594 = vpop.f32.mrb[0].mxu0
        %v3595 = vadd.f32 0.0, %v3594
        %v3596 = vpop.f32.mrb[0].mxu0
        %3597 = vmatprep.mubr.f32.mxu0 0.0
        %3598 = vmatmul.mubr.f32.gmra.mrb[0].mxu0 %v3436
        %v3599 = vpop.f32.mrb[0].mxu0
        %v3600 = vadd.f32 0.0, %v3599
        %v3601 = vpop.f32.mrb[0].mxu0
        %3602 = vmatprep.mubr.f32.mxu0 0.0
        %3603 = vmatmul.mubr.f32.gmra.mrb[0].mxu0 %v3439
        %v3604 = vpop.f32.mrb[0].mxu0
        %v3605 = vadd.f32 0.0, %v3604
        %v3606 = vpop.f32.mrb[0].mxu0
        %3607 = vmatprep.mubr.f32.mxu0 0.0
        %3608 = vmatmul.mubr.f32.gmra.mrb[0].mxu0 %v3442
        %v3609 = vpop.f32.mrb[0].mxu0
        %v3610 = vadd.f32 0.0, %v3609
        %v3611 = vpop.f32.mrb[0].mxu0
        %3612 = vmatprep.mubr.f32.mxu0 0.0
        %3613 = vmatmul.mubr.f32.gmra.mrb[0].mxu0 %v3445
        %v3614 = vpop.f32.mrb[0].mxu0
        %v3615 = vadd.f32 0.0, %v3614
        %v3616 = vpop.f32.mrb[0].mxu0
        %3617 = vmatprep.mubr.f32.mxu0 0.0
        %3618 = vmatmul.mubr.f32.gmra.mrb[0].mxu0 %v3448
        %v3619 = vpop.f32.mrb[0].mxu0
        %v3620 = vadd.f32 0.0, %v3619
        %v3621 = vpop.f32.mrb[0].mxu0
        %3622 = vmatprep.mubr.f32.mxu0 0.0
        %3623 = vmatmul.mubr.f32.gmra.mrb[0].mxu0 %v3451
        %v3624 = vpop.f32.mrb[0].mxu0
        %v3625 = vadd.f32 0.0, %v3624
        %v3626 = vpop.f32.mrb[0].mxu0
        %3627 = vmatprep.mubr.f32.mxu0 0.0
        %3628 = vmatmul.mubr.f32.gmra.mrb[0].mxu0 %v3454
        %v3629 = vpop.f32.mrb[0].mxu0
        %v3630 = vadd.f32 0.0, %v3629
        %v3631 = vpop.f32.mrb[0].mxu0
        %3632 = vmatprep.mubr.f32.mxu0 0.0
        %3633 = vmatmul.mubr.f32.gmra.mrb[0].mxu0 %v3457
        %v3634 = vpop.f32.mrb[0].mxu0
        %v3635 = vadd.f32 0.0, %v3634
        %v3636 = vpop.f32.mrb[0].mxu0
        %3637 = vmatprep.mubr.f32.mxu0 0.0
        %3638 = vmatmul.mubr.f32.gmra.mrb[0].mxu0 %v3460
        %v3639 = vpop.f32.mrb[0].mxu0
        %v3640 = vadd.f32 0.0, %v3639
        %v3641 = vpop.f32.mrb[0].mxu0
        %3642 = vmatprep.mubr.f32.mxu0 0.0
        %3643 = vmatmul.mubr.f32.gmra.mrb[0].mxu0 %v3463
        %v3644 = vpop.f32.mrb[0].mxu0
        %v3645 = vadd.f32 0.0, %v3644
        %v3646 = vpop.f32.mrb[0].mxu0
        %3647 = vmatprep.mubr.f32.mxu0 0.0
        %3648 = vmatmul.mubr.f32.gmra.mrb[0].mxu0 %v3466
        %v3649 = vpop.f32.mrb[0].mxu0
        %v3650 = vadd.f32 0.0, %v3649
        %v3651 = vpop.f32.mrb[0].mxu0
        %3652 = vmatprep.mubr.f32.mxu0 0.0
        %3653 = vmatmul.mubr.f32.gmra.mrb[0].mxu0 %v3469
        %v3654 = vpop.f32.mrb[0].mxu0
        %v3655 = vadd.f32 0.0, %v3654
        %v3656 = vpop.f32.mrb[0].mxu0
        %3657 = vmatprep.mubr.f32.mxu0 0.0
        %3658 = vmatmul.mubr.f32.gmra.mrb[0].mxu0 %v3472
        %v3659 = vpop.f32.mrb[0].mxu0
        %v3660 = vadd.f32 0.0, %v3659
        %v3661 = vpop.f32.mrb[0].mxu0
        %3662 = vmatprep.mubr.f32.mxu0 0.0
        %3663 = vmatmul.mubr.f32.gmra.mrb[0].mxu0 %v3475
        %v3664 = vpop.f32.mrb[0].mxu0
        %v3665 = vadd.f32 0.0, %v3664
        %v3666 = vpop.f32.mrb[0].mxu0
        %3667 = vmatprep.mubr.f32.mxu0 0.0
        %3668 = vmatmul.mubr.f32.gmra.mrb[0].mxu0 %v3478
        %v3669 = vpop.f32.mrb[0].mxu0
        %v3670 = vadd.f32 0.0, %v3669
        %v3671 = vpop.f32.mrb[0].mxu0
        %3672 = vmatprep.mubr.f32.mxu0 0.0
        %3673 = vmatmul.mubr.f32.gmra.mrb[0].mxu0 %v3481
        %v3674 = vpop.f32.mrb[0].mxu0
        %v3675 = vadd.f32 0.0, %v3674
        %v3676 = vpop.f32.mrb[0].mxu0
        %3677 = vmatprep.mubr.f32.mxu0 0.0
        %3678 = vmatmul.mubr.f32.gmra.mrb[0].mxu0 %v3484
        %v3679 = vpop.f32.mrb[0].mxu0
        %v3680 = vadd.f32 0.0, %v3679
        %v3681 = vpop.f32.mrb[0].mxu0
        %3682 = vmatprep.mubr.f32.mxu0 0.0
        %3683 = vmatmul.mubr.f32.gmra.mrb[0].mxu0 %v3487
        %v3684 = vpop.f32.mrb[0].mxu0
        %v3685 = vadd.f32 0.0, %v3684
        %v3686 = vpop.f32.mrb[0].mxu0
        %3687 = vmatprep.mubr.f32.mxu0 0.0
        %3688 = vmatmul.mubr.f32.gmra.mrb[0].mxu0 %v3490
        %v3689 = vpop.f32.mrb[0].mxu0
        %v3690 = vadd.f32 0.0, %v3689
        %v3691 = vpop.f32.mrb[0].mxu0
        %3692 = vmatprep.mubr.f32.mxu0 0.0
        %3693 = vmatmul.mubr.f32.gmra.mrb[0].mxu0 %v3493
        %v3694 = vpop.f32.mrb[0].mxu0
        %v3695 = vadd.f32 0.0, %v3694
        %v3696 = vpop.f32.mrb[0].mxu0
        %3697 = vmatprep.mubr.f32.mxu0 0.0
        %3698 = vmatmul.mubr.f32.gmra.mrb[0].mxu0 %v3496
        %v3699 = vpop.f32.mrb[0].mxu0
        %v3700 = vadd.f32 0.0, %v3699
        %v3701 = vpop.f32.mrb[0].mxu0
        %3702 = vmatprep.mubr.f32.mxu0 0.0
        %3703 = vmatmul.mubr.f32.gmra.mrb[0].mxu0 %v3499
        %v3704 = vpop.f32.mrb[0].mxu0
        %v3705 = vadd.f32 0.0, %v3704
        %v3706 = vpop.f32.mrb[0].mxu0
        %3707 = vmatprep.mubr.f32.mxu0 0.0
        %3708 = vmatmul.mubr.f32.gmra.mrb[0].mxu0 %v3502
        %v3709 = vpop.f32.mrb[0].mxu0
        %v3710 = vadd.f32 0.0, %v3709
        %v3711 = vpop.f32.mrb[0].mxu0
        %3712 = vmatprep.mubr.f32.mxu0 0.0
        %3713 = vmatmul.mubr.f32.gmra.mrb[0].mxu0 %v3505
        %v3714 = vpop.f32.mrb[0].mxu0
        %v3715 = vadd.f32 0.0, %v3714
        %v3716 = vpop.f32.mrb[0].mxu0
        %3717 = vmatprep.mubr.f32.mxu0 0.0
        %3718 = vmatmul.mubr.f32.gmra.mrb[0].mxu0 %v3508
        %v3719 = vpop.f32.mrb[0].mxu0
        %v3720 = vadd.f32 0.0, %v3719
        %v3721 = vpop.f32.mrb[0].mxu0
        %3722 = vmatprep.mubr.f32.mxu0 0.0
        %3723 = vmatmul.mubr.f32.gmra.mrb[0].mxu0 %v3511
        %v3724 = vpop.f32.mrb[0].mxu0
        %v3725 = vadd.f32 0.0, %v3724
        %v3726 = vpop.f32.mrb[0].mxu0
        %3727 = vmatprep.mubr.f32.mxu0 0.0
        %3728 = vmatmul.mubr.f32.gmra.mrb[0].mxu0 %v3514
        %v3729 = vpop.f32.mrb[0].mxu0
        %v3730 = vadd.f32 0.0, %v3729
        %v3731 = vpop.f32.mrb[0].mxu0
        %3732 = vmatprep.mubr.f32.mxu0 0.0
        %3733 = vmatmul.mubr.f32.gmra.mrb[0].mxu0 %v3517
        %v3734 = vpop.f32.mrb[0].mxu0
        %v3735 = vadd.f32 0.0, %v3734
        %v3736 = vpop.f32.mrb[0].mxu0
        %3737 = vmatprep.mubr.f32.mxu0 0.0
        %3738 = vmatmul.mubr.f32.gmra.mrb[0].mxu0 %v3520
        %v3739 = vpop.f32.mrb[0].mxu0
        %v3740 = vadd.f32 0.0, %v3739
        %v3741 = vpop.f32.mrb[0].mxu0
        %3742 = vmatprep.mubr.f32.mxu0 0.0
        %3743 = vmatmul.mubr.f32.gmra.mrb[0].mxu0 %v3523
        %v3744 = vpop.f32.mrb[0].mxu0
        %v3745 = vadd.f32 0.0, %v3744
        %v3746 = vpop.f32.mrb[0].mxu0
        %3747 = vmatprep.mubr.f32.mxu0 0.0
        %3748 = vmatmul.mubr.f32.gmra.mrb[0].mxu0 %v3526
        %v3749 = vpop.f32.mrb[0].mxu0
        %v3750 = vadd.f32 0.0, %v3749
        %v3751 = vpop.f32.mrb[0].mxu0
        %3752 = vdwg.mxu0
        %v3753 = vadd.f32 %v3355, %v3595
        %v3754 = vadd.f32 %v3356, %v3600
        %v3755 = vadd.f32 %v3357, %v3605
        %v3756 = vadd.f32 %v3358, %v3610
        %v3757 = vadd.f32 %v3359, %v3615
        %v3758 = vadd.f32 %v3360, %v3620
        %v3759 = vadd.f32 %v3361, %v3625
        %v3760 = vadd.f32 %v3362, %v3630
        %v3761 = vadd.f32 %v3363, %v3635
        %v3762 = vadd.f32 %v3364, %v3640
        %v3763 = vadd.f32 %v3365, %v3645
        %v3764 = vadd.f32 %v3366, %v3650
        %v3765 = vadd.f32 %v3367, %v3655
        %v3766 = vadd.f32 %v3368, %v3660
        %v3767 = vadd.f32 %v3369, %v3665
        %v3768 = vadd.f32 %v3370, %v3670
        %v3769 = vadd.f32 %v3371, %v3675
        %v3770 = vadd.f32 %v3372, %v3680
        %v3771 = vadd.f32 %v3373, %v3685
        %v3772 = vadd.f32 %v3374, %v3690
        %v3773 = vadd.f32 %v3375, %v3695
        %v3774 = vadd.f32 %v3376, %v3700
        %v3775 = vadd.f32 %v3377, %v3705
        %v3776 = vadd.f32 %v3378, %v3710
        %v3777 = vadd.f32 %v3379, %v3715
        %v3778 = vadd.f32 %v3380, %v3720
        %v3779 = vadd.f32 %v3381, %v3725
        %v3780 = vadd.f32 %v3382, %v3730
        %v3781 = vadd.f32 %v3383, %v3735
        %v3782 = vadd.f32 %v3384, %v3740
        %v3783 = vadd.f32 %v3385, %v3745
        %v3784 = vadd.f32 %v3386, %v3750
        %v3785 = vld [vmem:[%s2225 + $0x1] sm:$0xff]
        %v3786 = vld [vmem:[%s2225 + $0x9] sm:$0xff]
        %v3787 = vld [vmem:[%s2225 + $0x19] sm:$0xff]
        %v3788 = vld [vmem:[%s2225 + $0x21] sm:$0xff]
        %v3789 = vld [vmem:[%s2225 + $0x31] sm:$0xff]
        %v3790 = vld [vmem:[%s2225 + $0x39] sm:$0xff]
        %v3791 = vld [vmem:[%s2225 + $0x49] sm:$0xff]
        %v3792 = vld [vmem:[%s2225 + $0x51] sm:$0xff]
        %v3793 = vld [vmem:[%s2225 + $0x61] sm:$0xff]
        %v3794 = vld [vmem:[%s2225 + $0x69] sm:$0xff]
        %v3795 = vld [vmem:[%s2225 + $0x79] sm:$0xff]
        %v3796 = vld [vmem:[%s2225 + $0x81] sm:$0xff]
        %v3797 = vld [vmem:[%s2225 + $0x91] sm:$0xff]
        %v3798 = vld [vmem:[%s2225 + $0x99] sm:$0xff]
        %v3799 = vld [vmem:[%s2225 + $0xa9] sm:$0xff]
        %v3800 = vld [vmem:[%s2225 + $0xb1] sm:$0xff]
        %v3801 = vld [vmem:[%s2225 + $0xc1] sm:$0xff]
        %v3802 = vld [vmem:[%s2225 + $0xc9] sm:$0xff]
        %v3803 = vld [vmem:[%s2225 + $0xd9] sm:$0xff]
        %v3804 = vld [vmem:[%s2225 + $0xe1] sm:$0xff]
        %v3805 = vld [vmem:[%s2225 + $0xf1] sm:$0xff]
        %v3806 = vld [vmem:[%s2225 + $0xf9] sm:$0xff]
        %v3807 = vld [vmem:[%s2225 + $0x109] sm:$0xff]
        %v3808 = vld [vmem:[%s2225 + $0x111] sm:$0xff]
        %v3809 = vld [vmem:[%s2225 + $0x121] sm:$0xff]
        %v3810 = vld [vmem:[%s2225 + $0x129] sm:$0xff]
        %v3811 = vld [vmem:[%s2225 + $0x139] sm:$0xff]
        %v3812 = vld [vmem:[%s2225 + $0x141] sm:$0xff]
        %v3813 = vld [vmem:[%s2225 + $0x151] sm:$0xff]
        %v3814 = vld [vmem:[%s2225 + $0x159] sm:$0xff]
        %v3815 = vld [vmem:[%s2225 + $0x169] sm:$0xff]
        %v3816 = vld [vmem:[%s2225 + $0x171] sm:$0xff]
        %s3817 = scalar_lea.vmem %s5, 384
        %v3818 = vld [vmem:[%s3817] sm:$0xff]
        %v3819 = vld [vmem:[%s3817 + $0x8] sm:$0xff]
        %v3820 = vld [vmem:[%s3817 + $0x10] sm:$0xff]
        %v3821 = vld [vmem:[%s3817 + $0x18] sm:$0xff]
        %v3822 = vld [vmem:[%s3817 + $0x20] sm:$0xff]
        %v3823 = vld [vmem:[%s3817 + $0x28] sm:$0xff]
        %v3824 = vld [vmem:[%s3817 + $0x30] sm:$0xff]
        %v3825 = vld [vmem:[%s3817 + $0x38] sm:$0xff]
        %v3826 = vld [vmem:[%s3817 + $0x40] sm:$0xff]
        %v3827 = vld [vmem:[%s3817 + $0x48] sm:$0xff]
        %v3828 = vld [vmem:[%s3817 + $0x50] sm:$0xff]
        %v3829 = vld [vmem:[%s3817 + $0x58] sm:$0xff]
        %v3831 = vsel %vm521, %v3785, 0
        %v3834 = vsel %vm521, %v3786, 0
        %v3837 = vsel %vm521, %v3787, 0
        %v3840 = vsel %vm521, %v3788, 0
        %v3843 = vsel %vm521, %v3789, 0
        %v3846 = vsel %vm521, %v3790, 0
        %v3849 = vsel %vm521, %v3791, 0
        %v3852 = vsel %vm521, %v3792, 0
        %v3855 = vsel %vm521, %v3793, 0
        %v3858 = vsel %vm521, %v3794, 0
        %v3861 = vsel %vm521, %v3795, 0
        %v3864 = vsel %vm521, %v3796, 0
        %v3867 = vsel %vm521, %v3797, 0
        %v3870 = vsel %vm521, %v3798, 0
        %v3873 = vsel %vm521, %v3799, 0
        %v3876 = vsel %vm521, %v3800, 0
        %v3879 = vsel %vm521, %v3801, 0
        %v3882 = vsel %vm521, %v3802, 0
        %v3885 = vsel %vm521, %v3803, 0
        %v3888 = vsel %vm521, %v3804, 0
        %v3891 = vsel %vm521, %v3805, 0
        %v3894 = vsel %vm521, %v3806, 0
        %v3897 = vsel %vm521, %v3807, 0
        %v3900 = vsel %vm521, %v3808, 0
        %v3903 = vsel %vm521, %v3809, 0
        %v3906 = vsel %vm521, %v3810, 0
        %v3909 = vsel %vm521, %v3811, 0
        %v3912 = vsel %vm521, %v3812, 0
        %v3915 = vsel %vm521, %v3813, 0
        %v3918 = vsel %vm521, %v3814, 0
        %v3921 = vsel %vm521, %v3815, 0
        %v3924 = vsel %vm521, %v3816, 0
        %3926 = vmatprep.subr.mxu0 0.0
        %3927 = vmatpush1.msra.mxu0 %v3818
        %3928 = vmatprep.subr.mxu0 0.0
        %3929 = vmatpush1.msra.mxu0 %v3819
        %3930 = vmatprep.subr.mxu0 0.0
        %3931 = vmatpush1.msra.mxu0 %v3820
        %3932 = vmatprep.subr.mxu0 0.0
        %3933 = vmatpush1.msra.mxu0 %v3821
        %3934 = vmatprep.subr.mxu0 0.0
        %3935 = vmatpush1.msra.mxu0 %v3822
        %3936 = vmatprep.subr.mxu0 0.0
        %3937 = vmatpush1.msra.mxu0 %v3823
        %3938 = vmatprep.subr.mxu0 0.0
        %3939 = vmatpush1.msra.mxu0 %v3824
        %3940 = vmatprep.subr.mxu0 0.0
        %3941 = vmatpush1.msra.mxu0 %v3825
        %3942 = vmatprep.subr.mxu0 0.0
        %3943 = vmatpush1.msra.mxu0 %v3826
        %3944 = vmatprep.subr.mxu0 0.0
        %3945 = vmatpush1.msra.mxu0 %v3827
        %3946 = vmatprep.subr.mxu0 0.0
        %3947 = vmatpush1.msra.mxu0 %v3828
        %3948 = vmatprep.subr.mxu0 0.0
        %3949 = vmatpush1.msra.mxu0 %v3829
        %3950 = vmatprep.subr.mxu0 0.0
        %3951 = vmatpush1.msra.mxu0 0.0
        %3952 = vmatprep.subr.mxu0 0.0
        %3953 = vmatpush1.msra.mxu0 0.0
        %3954 = vmatprep.subr.mxu0 0.0
        %3955 = vmatpush1.msra.mxu0 0.0
        %3956 = vmatprep.subr.mxu0 0.0
        %3957 = vmatpush1.msra.mxu0 0.0
        %3958 = vmatprep.subr.mxu0 0.0
        %3959 = vmatpush1.msra.mxu0 0.0
        %3960 = vmatprep.subr.mxu0 0.0
        %3961 = vmatpush1.msra.mxu0 0.0
        %3962 = vmatprep.subr.mxu0 0.0
        %3963 = vmatpush1.msra.mxu0 0.0
        %3964 = vmatprep.subr.mxu0 0.0
        %3965 = vmatpush1.msra.mxu0 0.0
        %3966 = vmatprep.subr.mxu0 0.0
        %3967 = vmatpush1.msra.mxu0 0.0
        %3968 = vmatprep.subr.mxu0 0.0
        %3969 = vmatpush1.msra.mxu0 0.0
        %3970 = vmatprep.subr.mxu0 0.0
        %3971 = vmatpush1.msra.mxu0 0.0
        %3972 = vmatprep.subr.mxu0 0.0
        %3973 = vmatpush1.msra.mxu0 0.0
        %3974 = vmatprep.subr.mxu0 0.0
        %3975 = vmatpush1.msra.mxu0 0.0
        %3976 = vmatprep.subr.mxu0 0.0
        %3977 = vmatpush1.msra.mxu0 0.0
        %3978 = vmatprep.subr.mxu0 0.0
        %3979 = vmatpush1.msra.mxu0 0.0
        %3980 = vmatprep.subr.mxu0 0.0
        %3981 = vmatpush1.msra.mxu0 0.0
        %3982 = vmatprep.subr.mxu0 0.0
        %3983 = vmatpush1.msra.mxu0 0.0
        %3984 = vmatprep.subr.mxu0 0.0
        %3985 = vmatpush1.msra.mxu0 0.0
        %3986 = vmatprep.subr.mxu0 0.0
        %3987 = vmatpush1.msra.mxu0 0.0
        %3988 = vmatprep.subr.mxu0 0.0
        %3989 = vmatpush1.msra.mxu0 0.0
        %3990 = vmatprep.mubr.f32.mxu0 0.0
        %3991 = vmatmul.mubr.f32.gmra.mrb[0].mxu0 %v3831
        %v3992 = vpop.f32.mrb[0].mxu0
        %v3993 = vadd.f32 0.0, %v3992
        %v3994 = vpop.f32.mrb[0].mxu0
        %3995 = vmatprep.mubr.f32.mxu0 0.0
        %3996 = vmatmul.mubr.f32.gmra.mrb[0].mxu0 %v3834
        %v3997 = vpop.f32.mrb[0].mxu0
        %v3998 = vadd.f32 0.0, %v3997
        %v3999 = vpop.f32.mrb[0].mxu0
        %4000 = vmatprep.mubr.f32.mxu0 0.0
        %4001 = vmatmul.mubr.f32.gmra.mrb[0].mxu0 %v3837
        %v4002 = vpop.f32.mrb[0].mxu0
        %v4003 = vadd.f32 0.0, %v4002
        %v4004 = vpop.f32.mrb[0].mxu0
        %4005 = vmatprep.mubr.f32.mxu0 0.0
        %4006 = vmatmul.mubr.f32.gmra.mrb[0].mxu0 %v3840
        %v4007 = vpop.f32.mrb[0].mxu0
        %v4008 = vadd.f32 0.0, %v4007
        %v4009 = vpop.f32.mrb[0].mxu0
        %4010 = vmatprep.mubr.f32.mxu0 0.0
        %4011 = vmatmul.mubr.f32.gmra.mrb[0].mxu0 %v3843
        %v4012 = vpop.f32.mrb[0].mxu0
        %v4013 = vadd.f32 0.0, %v4012
        %v4014 = vpop.f32.mrb[0].mxu0
        %4015 = vmatprep.mubr.f32.mxu0 0.0
        %4016 = vmatmul.mubr.f32.gmra.mrb[0].mxu0 %v3846
        %v4017 = vpop.f32.mrb[0].mxu0
        %v4018 = vadd.f32 0.0, %v4017
        %v4019 = vpop.f32.mrb[0].mxu0
        %4020 = vmatprep.mubr.f32.mxu0 0.0
        %4021 = vmatmul.mubr.f32.gmra.mrb[0].mxu0 %v3849
        %v4022 = vpop.f32.mrb[0].mxu0
        %v4023 = vadd.f32 0.0, %v4022
        %v4024 = vpop.f32.mrb[0].mxu0
        %4025 = vmatprep.mubr.f32.mxu0 0.0
        %4026 = vmatmul.mubr.f32.gmra.mrb[0].mxu0 %v3852
        %v4027 = vpop.f32.mrb[0].mxu0
        %v4028 = vadd.f32 0.0, %v4027
        %v4029 = vpop.f32.mrb[0].mxu0
        %4030 = vmatprep.mubr.f32.mxu0 0.0
        %4031 = vmatmul.mubr.f32.gmra.mrb[0].mxu0 %v3855
        %v4032 = vpop.f32.mrb[0].mxu0
        %v4033 = vadd.f32 0.0, %v4032
        %v4034 = vpop.f32.mrb[0].mxu0
        %4035 = vmatprep.mubr.f32.mxu0 0.0
        %4036 = vmatmul.mubr.f32.gmra.mrb[0].mxu0 %v3858
        %v4037 = vpop.f32.mrb[0].mxu0
        %v4038 = vadd.f32 0.0, %v4037
        %v4039 = vpop.f32.mrb[0].mxu0
        %4040 = vmatprep.mubr.f32.mxu0 0.0
        %4041 = vmatmul.mubr.f32.gmra.mrb[0].mxu0 %v3861
        %v4042 = vpop.f32.mrb[0].mxu0
        %v4043 = vadd.f32 0.0, %v4042
        %v4044 = vpop.f32.mrb[0].mxu0
        %4045 = vmatprep.mubr.f32.mxu0 0.0
        %4046 = vmatmul.mubr.f32.gmra.mrb[0].mxu0 %v3864
        %v4047 = vpop.f32.mrb[0].mxu0
        %v4048 = vadd.f32 0.0, %v4047
        %v4049 = vpop.f32.mrb[0].mxu0
        %4050 = vmatprep.mubr.f32.mxu0 0.0
        %4051 = vmatmul.mubr.f32.gmra.mrb[0].mxu0 %v3867
        %v4052 = vpop.f32.mrb[0].mxu0
        %v4053 = vadd.f32 0.0, %v4052
        %v4054 = vpop.f32.mrb[0].mxu0
        %4055 = vmatprep.mubr.f32.mxu0 0.0
        %4056 = vmatmul.mubr.f32.gmra.mrb[0].mxu0 %v3870
        %v4057 = vpop.f32.mrb[0].mxu0
        %v4058 = vadd.f32 0.0, %v4057
        %v4059 = vpop.f32.mrb[0].mxu0
        %4060 = vmatprep.mubr.f32.mxu0 0.0
        %4061 = vmatmul.mubr.f32.gmra.mrb[0].mxu0 %v3873
        %v4062 = vpop.f32.mrb[0].mxu0
        %v4063 = vadd.f32 0.0, %v4062
        %v4064 = vpop.f32.mrb[0].mxu0
        %4065 = vmatprep.mubr.f32.mxu0 0.0
        %4066 = vmatmul.mubr.f32.gmra.mrb[0].mxu0 %v3876
        %v4067 = vpop.f32.mrb[0].mxu0
        %v4068 = vadd.f32 0.0, %v4067
        %v4069 = vpop.f32.mrb[0].mxu0
        %4070 = vmatprep.mubr.f32.mxu0 0.0
        %4071 = vmatmul.mubr.f32.gmra.mrb[0].mxu0 %v3879
        %v4072 = vpop.f32.mrb[0].mxu0
        %v4073 = vadd.f32 0.0, %v4072
        %v4074 = vpop.f32.mrb[0].mxu0
        %4075 = vmatprep.mubr.f32.mxu0 0.0
        %4076 = vmatmul.mubr.f32.gmra.mrb[0].mxu0 %v3882
        %v4077 = vpop.f32.mrb[0].mxu0
        %v4078 = vadd.f32 0.0, %v4077
        %v4079 = vpop.f32.mrb[0].mxu0
        %4080 = vmatprep.mubr.f32.mxu0 0.0
        %4081 = vmatmul.mubr.f32.gmra.mrb[0].mxu0 %v3885
        %v4082 = vpop.f32.mrb[0].mxu0
        %v4083 = vadd.f32 0.0, %v4082
        %v4084 = vpop.f32.mrb[0].mxu0
        %4085 = vmatprep.mubr.f32.mxu0 0.0
        %4086 = vmatmul.mubr.f32.gmra.mrb[0].mxu0 %v3888
        %v4087 = vpop.f32.mrb[0].mxu0
        %v4088 = vadd.f32 0.0, %v4087
        %v4089 = vpop.f32.mrb[0].mxu0
        %4090 = vmatprep.mubr.f32.mxu0 0.0
        %4091 = vmatmul.mubr.f32.gmra.mrb[0].mxu0 %v3891
        %v4092 = vpop.f32.mrb[0].mxu0
        %v4093 = vadd.f32 0.0, %v4092
        %v4094 = vpop.f32.mrb[0].mxu0
        %4095 = vmatprep.mubr.f32.mxu0 0.0
        %4096 = vmatmul.mubr.f32.gmra.mrb[0].mxu0 %v3894
        %v4097 = vpop.f32.mrb[0].mxu0
        %v4098 = vadd.f32 0.0, %v4097
        %v4099 = vpop.f32.mrb[0].mxu0
        %4100 = vmatprep.mubr.f32.mxu0 0.0
        %4101 = vmatmul.mubr.f32.gmra.mrb[0].mxu0 %v3897
        %v4102 = vpop.f32.mrb[0].mxu0
        %v4103 = vadd.f32 0.0, %v4102
        %v4104 = vpop.f32.mrb[0].mxu0
        %4105 = vmatprep.mubr.f32.mxu0 0.0
        %4106 = vmatmul.mubr.f32.gmra.mrb[0].mxu0 %v3900
        %v4107 = vpop.f32.mrb[0].mxu0
        %v4108 = vadd.f32 0.0, %v4107
        %v4109 = vpop.f32.mrb[0].mxu0
        %4110 = vmatprep.mubr.f32.mxu0 0.0
        %4111 = vmatmul.mubr.f32.gmra.mrb[0].mxu0 %v3903
        %v4112 = vpop.f32.mrb[0].mxu0
        %v4113 = vadd.f32 0.0, %v4112
        %v4114 = vpop.f32.mrb[0].mxu0
        %4115 = vmatprep.mubr.f32.mxu0 0.0
        %4116 = vmatmul.mubr.f32.gmra.mrb[0].mxu0 %v3906
        %v4117 = vpop.f32.mrb[0].mxu0
        %v4118 = vadd.f32 0.0, %v4117
        %v4119 = vpop.f32.mrb[0].mxu0
        %4120 = vmatprep.mubr.f32.mxu0 0.0
        %4121 = vmatmul.mubr.f32.gmra.mrb[0].mxu0 %v3909
        %v4122 = vpop.f32.mrb[0].mxu0
        %v4123 = vadd.f32 0.0, %v4122
        %v4124 = vpop.f32.mrb[0].mxu0
        %4125 = vmatprep.mubr.f32.mxu0 0.0
        %4126 = vmatmul.mubr.f32.gmra.mrb[0].mxu0 %v3912
        %v4127 = vpop.f32.mrb[0].mxu0
        %v4128 = vadd.f32 0.0, %v4127
        %v4129 = vpop.f32.mrb[0].mxu0
        %4130 = vmatprep.mubr.f32.mxu0 0.0
        %4131 = vmatmul.mubr.f32.gmra.mrb[0].mxu0 %v3915
        %v4132 = vpop.f32.mrb[0].mxu0
        %v4133 = vadd.f32 0.0, %v4132
        %v4134 = vpop.f32.mrb[0].mxu0
        %4135 = vmatprep.mubr.f32.mxu0 0.0
        %4136 = vmatmul.mubr.f32.gmra.mrb[0].mxu0 %v3918
        %v4137 = vpop.f32.mrb[0].mxu0
        %v4138 = vadd.f32 0.0, %v4137
        %v4139 = vpop.f32.mrb[0].mxu0
        %4140 = vmatprep.mubr.f32.mxu0 0.0
        %4141 = vmatmul.mubr.f32.gmra.mrb[0].mxu0 %v3921
        %v4142 = vpop.f32.mrb[0].mxu0
        %v4143 = vadd.f32 0.0, %v4142
        %v4144 = vpop.f32.mrb[0].mxu0
        %4145 = vmatprep.mubr.f32.mxu0 0.0
        %4146 = vmatmul.mubr.f32.gmra.mrb[0].mxu0 %v3924
        %v4147 = vpop.f32.mrb[0].mxu0
        %v4148 = vadd.f32 0.0, %v4147
        %v4149 = vpop.f32.mrb[0].mxu0
        %4150 = vdwg.mxu0
        %v4151 = vadd.f32 %v3753, %v3993
        %v4152 = vadd.f32 %v3754, %v3998
        %v4153 = vadd.f32 %v3755, %v4003
        %v4154 = vadd.f32 %v3756, %v4008
        %v4155 = vadd.f32 %v3757, %v4013
        %v4156 = vadd.f32 %v3758, %v4018
        %v4157 = vadd.f32 %v3759, %v4023
        %v4158 = vadd.f32 %v3760, %v4028
        %v4159 = vadd.f32 %v3761, %v4033
        %v4160 = vadd.f32 %v3762, %v4038
        %v4161 = vadd.f32 %v3763, %v4043
        %v4162 = vadd.f32 %v3764, %v4048
        %v4163 = vadd.f32 %v3765, %v4053
        %v4164 = vadd.f32 %v3766, %v4058
        %v4165 = vadd.f32 %v3767, %v4063
        %v4166 = vadd.f32 %v3768, %v4068
        %v4167 = vadd.f32 %v3769, %v4073
        %v4168 = vadd.f32 %v3770, %v4078
        %v4169 = vadd.f32 %v3771, %v4083
        %v4170 = vadd.f32 %v3772, %v4088
        %v4171 = vadd.f32 %v3773, %v4093
        %v4172 = vadd.f32 %v3774, %v4098
        %v4173 = vadd.f32 %v3775, %v4103
        %v4174 = vadd.f32 %v3776, %v4108
        %v4175 = vadd.f32 %v3777, %v4113
        %v4176 = vadd.f32 %v3778, %v4118
        %v4177 = vadd.f32 %v3779, %v4123
        %v4178 = vadd.f32 %v3780, %v4128
        %v4179 = vadd.f32 %v3781, %v4133
        %v4180 = vadd.f32 %v3782, %v4138
        %v4181 = vadd.f32 %v3783, %v4143
        %v4182 = vadd.f32 %v3784, %v4148
        %v4183 = vld [vmem:[%s2225 + $0x2] sm:$0xff]
        %v4184 = vld [vmem:[%s2225 + $0xa] sm:$0xff]
        %v4185 = vld [vmem:[%s2225 + $0x1a] sm:$0xff]
        %v4186 = vld [vmem:[%s2225 + $0x22] sm:$0xff]
        %v4187 = vld [vmem:[%s2225 + $0x32] sm:$0xff]
        %v4188 = vld [vmem:[%s2225 + $0x3a] sm:$0xff]
        %v4189 = vld [vmem:[%s2225 + $0x4a] sm:$0xff]
        %v4190 = vld [vmem:[%s2225 + $0x52] sm:$0xff]
        %v4191 = vld [vmem:[%s2225 + $0x62] sm:$0xff]
        %v4192 = vld [vmem:[%s2225 + $0x6a] sm:$0xff]
        %v4193 = vld [vmem:[%s2225 + $0x7a] sm:$0xff]
        %v4194 = vld [vmem:[%s2225 + $0x82] sm:$0xff]
        %v4195 = vld [vmem:[%s2225 + $0x92] sm:$0xff]
        %v4196 = vld [vmem:[%s2225 + $0x9a] sm:$0xff]
        %v4197 = vld [vmem:[%s2225 + $0xaa] sm:$0xff]
        %v4198 = vld [vmem:[%s2225 + $0xb2] sm:$0xff]
        %v4199 = vld [vmem:[%s2225 + $0xc2] sm:$0xff]
        %v4200 = vld [vmem:[%s2225 + $0xca] sm:$0xff]
        %v4201 = vld [vmem:[%s2225 + $0xda] sm:$0xff]
        %v4202 = vld [vmem:[%s2225 + $0xe2] sm:$0xff]
        %v4203 = vld [vmem:[%s2225 + $0xf2] sm:$0xff]
        %v4204 = vld [vmem:[%s2225 + $0xfa] sm:$0xff]
        %v4205 = vld [vmem:[%s2225 + $0x10a] sm:$0xff]
        %v4206 = vld [vmem:[%s2225 + $0x112] sm:$0xff]
        %v4207 = vld [vmem:[%s2225 + $0x122] sm:$0xff]
        %v4208 = vld [vmem:[%s2225 + $0x12a] sm:$0xff]
        %v4209 = vld [vmem:[%s2225 + $0x13a] sm:$0xff]
        %v4210 = vld [vmem:[%s2225 + $0x142] sm:$0xff]
        %v4211 = vld [vmem:[%s2225 + $0x152] sm:$0xff]
        %v4212 = vld [vmem:[%s2225 + $0x15a] sm:$0xff]
        %v4213 = vld [vmem:[%s2225 + $0x16a] sm:$0xff]
        %v4214 = vld [vmem:[%s2225 + $0x172] sm:$0xff]
        %s4215 = scalar_lea.vmem %s5, 480
        %v4216 = vld [vmem:[%s4215] sm:$0xff]
        %v4217 = vld [vmem:[%s4215 + $0x8] sm:$0xff]
        %v4218 = vld [vmem:[%s4215 + $0x10] sm:$0xff]
        %v4219 = vld [vmem:[%s4215 + $0x18] sm:$0xff]
        %v4220 = vld [vmem:[%s4215 + $0x20] sm:$0xff]
        %v4221 = vld [vmem:[%s4215 + $0x28] sm:$0xff]
        %v4222 = vld [vmem:[%s4215 + $0x30] sm:$0xff]
        %v4223 = vld [vmem:[%s4215 + $0x38] sm:$0xff]
        %v4224 = vld [vmem:[%s4215 + $0x40] sm:$0xff]
        %v4225 = vld [vmem:[%s4215 + $0x48] sm:$0xff]
        %v4226 = vld [vmem:[%s4215 + $0x50] sm:$0xff]
        %v4227 = vld [vmem:[%s4215 + $0x58] sm:$0xff]
        %v4229 = vsel %vm521, %v4183, 0
        %v4232 = vsel %vm521, %v4184, 0
        %v4235 = vsel %vm521, %v4185, 0
        %v4238 = vsel %vm521, %v4186, 0
        %v4241 = vsel %vm521, %v4187, 0
        %v4244 = vsel %vm521, %v4188, 0
        %v4247 = vsel %vm521, %v4189, 0
        %v4250 = vsel %vm521, %v4190, 0
        %v4253 = vsel %vm521, %v4191, 0
        %v4256 = vsel %vm521, %v4192, 0
        %v4259 = vsel %vm521, %v4193, 0
        %v4262 = vsel %vm521, %v4194, 0
        %v4265 = vsel %vm521, %v4195, 0
        %v4268 = vsel %vm521, %v4196, 0
        %v4271 = vsel %vm521, %v4197, 0
        %v4274 = vsel %vm521, %v4198, 0
        %v4277 = vsel %vm521, %v4199, 0
        %v4280 = vsel %vm521, %v4200, 0
        %v4283 = vsel %vm521, %v4201, 0
        %v4286 = vsel %vm521, %v4202, 0
        %v4289 = vsel %vm521, %v4203, 0
        %v4292 = vsel %vm521, %v4204, 0
        %v4295 = vsel %vm521, %v4205, 0
        %v4298 = vsel %vm521, %v4206, 0
        %v4301 = vsel %vm521, %v4207, 0
        %v4304 = vsel %vm521, %v4208, 0
        %v4307 = vsel %vm521, %v4209, 0
        %v4310 = vsel %vm521, %v4210, 0
        %v4313 = vsel %vm521, %v4211, 0
        %v4316 = vsel %vm521, %v4212, 0
        %v4319 = vsel %vm521, %v4213, 0
        %v4322 = vsel %vm521, %v4214, 0
        %4324 = vmatprep.subr.mxu0 0.0
        %4325 = vmatpush1.msra.mxu0 %v4216
        %4326 = vmatprep.subr.mxu0 0.0
        %4327 = vmatpush1.msra.mxu0 %v4217
        %4328 = vmatprep.subr.mxu0 0.0
        %4329 = vmatpush1.msra.mxu0 %v4218
        %4330 = vmatprep.subr.mxu0 0.0
        %4331 = vmatpush1.msra.mxu0 %v4219
        %4332 = vmatprep.subr.mxu0 0.0
        %4333 = vmatpush1.msra.mxu0 %v4220
        %4334 = vmatprep.subr.mxu0 0.0
        %4335 = vmatpush1.msra.mxu0 %v4221
        %4336 = vmatprep.subr.mxu0 0.0
        %4337 = vmatpush1.msra.mxu0 %v4222
        %4338 = vmatprep.subr.mxu0 0.0
        %4339 = vmatpush1.msra.mxu0 %v4223
        %4340 = vmatprep.subr.mxu0 0.0
        %4341 = vmatpush1.msra.mxu0 %v4224
        %4342 = vmatprep.subr.mxu0 0.0
        %4343 = vmatpush1.msra.mxu0 %v4225
        %4344 = vmatprep.subr.mxu0 0.0
        %4345 = vmatpush1.msra.mxu0 %v4226
        %4346 = vmatprep.subr.mxu0 0.0
        %4347 = vmatpush1.msra.mxu0 %v4227
        %4348 = vmatprep.subr.mxu0 0.0
        %4349 = vmatpush1.msra.mxu0 0.0
        %4350 = vmatprep.subr.mxu0 0.0
        %4351 = vmatpush1.msra.mxu0 0.0
        %4352 = vmatprep.subr.mxu0 0.0
        %4353 = vmatpush1.msra.mxu0 0.0
        %4354 = vmatprep.subr.mxu0 0.0
        %4355 = vmatpush1.msra.mxu0 0.0
        %4356 = vmatprep.subr.mxu0 0.0
        %4357 = vmatpush1.msra.mxu0 0.0
        %4358 = vmatprep.subr.mxu0 0.0
        %4359 = vmatpush1.msra.mxu0 0.0
        %4360 = vmatprep.subr.mxu0 0.0
        %4361 = vmatpush1.msra.mxu0 0.0
        %4362 = vmatprep.subr.mxu0 0.0
        %4363 = vmatpush1.msra.mxu0 0.0
        %4364 = vmatprep.subr.mxu0 0.0
        %4365 = vmatpush1.msra.mxu0 0.0
        %4366 = vmatprep.subr.mxu0 0.0
        %4367 = vmatpush1.msra.mxu0 0.0
        %4368 = vmatprep.subr.mxu0 0.0
        %4369 = vmatpush1.msra.mxu0 0.0
        %4370 = vmatprep.subr.mxu0 0.0
        %4371 = vmatpush1.msra.mxu0 0.0
        %4372 = vmatprep.subr.mxu0 0.0
        %4373 = vmatpush1.msra.mxu0 0.0
        %4374 = vmatprep.subr.mxu0 0.0
        %4375 = vmatpush1.msra.mxu0 0.0
        %4376 = vmatprep.subr.mxu0 0.0
        %4377 = vmatpush1.msra.mxu0 0.0
        %4378 = vmatprep.subr.mxu0 0.0
        %4379 = vmatpush1.msra.mxu0 0.0
        %4380 = vmatprep.subr.mxu0 0.0
        %4381 = vmatpush1.msra.mxu0 0.0
        %4382 = vmatprep.subr.mxu0 0.0
        %4383 = vmatpush1.msra.mxu0 0.0
        %4384 = vmatprep.subr.mxu0 0.0
        %4385 = vmatpush1.msra.mxu0 0.0
        %4386 = vmatprep.subr.mxu0 0.0
        %4387 = vmatpush1.msra.mxu0 0.0
        %4388 = vmatprep.mubr.f32.mxu0 0.0
        %4389 = vmatmul.mubr.f32.gmra.mrb[0].mxu0 %v4229
        %v4390 = vpop.f32.mrb[0].mxu0
        %v4391 = vadd.f32 0.0, %v4390
        %v4392 = vpop.f32.mrb[0].mxu0
        %4393 = vmatprep.mubr.f32.mxu0 0.0
        %4394 = vmatmul.mubr.f32.gmra.mrb[0].mxu0 %v4232
        %v4395 = vpop.f32.mrb[0].mxu0
        %v4396 = vadd.f32 0.0, %v4395
        %v4397 = vpop.f32.mrb[0].mxu0
        %4398 = vmatprep.mubr.f32.mxu0 0.0
        %4399 = vmatmul.mubr.f32.gmra.mrb[0].mxu0 %v4235
        %v4400 = vpop.f32.mrb[0].mxu0
        %v4401 = vadd.f32 0.0, %v4400
        %v4402 = vpop.f32.mrb[0].mxu0
        %4403 = vmatprep.mubr.f32.mxu0 0.0
        %4404 = vmatmul.mubr.f32.gmra.mrb[0].mxu0 %v4238
        %v4405 = vpop.f32.mrb[0].mxu0
        %v4406 = vadd.f32 0.0, %v4405
        %v4407 = vpop.f32.mrb[0].mxu0
        %4408 = vmatprep.mubr.f32.mxu0 0.0
        %4409 = vmatmul.mubr.f32.gmra.mrb[0].mxu0 %v4241
        %v4410 = vpop.f32.mrb[0].mxu0
        %v4411 = vadd.f32 0.0, %v4410
        %v4412 = vpop.f32.mrb[0].mxu0
        %4413 = vmatprep.mubr.f32.mxu0 0.0
        %4414 = vmatmul.mubr.f32.gmra.mrb[0].mxu0 %v4244
        %v4415 = vpop.f32.mrb[0].mxu0
        %v4416 = vadd.f32 0.0, %v4415
        %v4417 = vpop.f32.mrb[0].mxu0
        %4418 = vmatprep.mubr.f32.mxu0 0.0
        %4419 = vmatmul.mubr.f32.gmra.mrb[0].mxu0 %v4247
        %v4420 = vpop.f32.mrb[0].mxu0
        %v4421 = vadd.f32 0.0, %v4420
        %v4422 = vpop.f32.mrb[0].mxu0
        %4423 = vmatprep.mubr.f32.mxu0 0.0
        %4424 = vmatmul.mubr.f32.gmra.mrb[0].mxu0 %v4250
        %v4425 = vpop.f32.mrb[0].mxu0
        %v4426 = vadd.f32 0.0, %v4425
        %v4427 = vpop.f32.mrb[0].mxu0
        %4428 = vmatprep.mubr.f32.mxu0 0.0
        %4429 = vmatmul.mubr.f32.gmra.mrb[0].mxu0 %v4253
        %v4430 = vpop.f32.mrb[0].mxu0
        %v4431 = vadd.f32 0.0, %v4430
        %v4432 = vpop.f32.mrb[0].mxu0
        %4433 = vmatprep.mubr.f32.mxu0 0.0
        %4434 = vmatmul.mubr.f32.gmra.mrb[0].mxu0 %v4256
        %v4435 = vpop.f32.mrb[0].mxu0
        %v4436 = vadd.f32 0.0, %v4435
        %v4437 = vpop.f32.mrb[0].mxu0
        %4438 = vmatprep.mubr.f32.mxu0 0.0
        %4439 = vmatmul.mubr.f32.gmra.mrb[0].mxu0 %v4259
        %v4440 = vpop.f32.mrb[0].mxu0
        %v4441 = vadd.f32 0.0, %v4440
        %v4442 = vpop.f32.mrb[0].mxu0
        %4443 = vmatprep.mubr.f32.mxu0 0.0
        %4444 = vmatmul.mubr.f32.gmra.mrb[0].mxu0 %v4262
        %v4445 = vpop.f32.mrb[0].mxu0
        %v4446 = vadd.f32 0.0, %v4445
        %v4447 = vpop.f32.mrb[0].mxu0
        %4448 = vmatprep.mubr.f32.mxu0 0.0
        %4449 = vmatmul.mubr.f32.gmra.mrb[0].mxu0 %v4265
        %v4450 = vpop.f32.mrb[0].mxu0
        %v4451 = vadd.f32 0.0, %v4450
        %v4452 = vpop.f32.mrb[0].mxu0
        %4453 = vmatprep.mubr.f32.mxu0 0.0
        %4454 = vmatmul.mubr.f32.gmra.mrb[0].mxu0 %v4268
        %v4455 = vpop.f32.mrb[0].mxu0
        %v4456 = vadd.f32 0.0, %v4455
        %v4457 = vpop.f32.mrb[0].mxu0
        %4458 = vmatprep.mubr.f32.mxu0 0.0
        %4459 = vmatmul.mubr.f32.gmra.mrb[0].mxu0 %v4271
        %v4460 = vpop.f32.mrb[0].mxu0
        %v4461 = vadd.f32 0.0, %v4460
        %v4462 = vpop.f32.mrb[0].mxu0
        %4463 = vmatprep.mubr.f32.mxu0 0.0
        %4464 = vmatmul.mubr.f32.gmra.mrb[0].mxu0 %v4274
        %v4465 = vpop.f32.mrb[0].mxu0
        %v4466 = vadd.f32 0.0, %v4465
        %v4467 = vpop.f32.mrb[0].mxu0
        %4468 = vmatprep.mubr.f32.mxu0 0.0
        %4469 = vmatmul.mubr.f32.gmra.mrb[0].mxu0 %v4277
        %v4470 = vpop.f32.mrb[0].mxu0
        %v4471 = vadd.f32 0.0, %v4470
        %v4472 = vpop.f32.mrb[0].mxu0
        %4473 = vmatprep.mubr.f32.mxu0 0.0
        %4474 = vmatmul.mubr.f32.gmra.mrb[0].mxu0 %v4280
        %v4475 = vpop.f32.mrb[0].mxu0
        %v4476 = vadd.f32 0.0, %v4475
        %v4477 = vpop.f32.mrb[0].mxu0
        %4478 = vmatprep.mubr.f32.mxu0 0.0
        %4479 = vmatmul.mubr.f32.gmra.mrb[0].mxu0 %v4283
        %v4480 = vpop.f32.mrb[0].mxu0
        %v4481 = vadd.f32 0.0, %v4480
        %v4482 = vpop.f32.mrb[0].mxu0
        %4483 = vmatprep.mubr.f32.mxu0 0.0
        %4484 = vmatmul.mubr.f32.gmra.mrb[0].mxu0 %v4286
        %v4485 = vpop.f32.mrb[0].mxu0
        %v4486 = vadd.f32 0.0, %v4485
        %v4487 = vpop.f32.mrb[0].mxu0
        %4488 = vmatprep.mubr.f32.mxu0 0.0
        %4489 = vmatmul.mubr.f32.gmra.mrb[0].mxu0 %v4289
        %v4490 = vpop.f32.mrb[0].mxu0
        %v4491 = vadd.f32 0.0, %v4490
        %v4492 = vpop.f32.mrb[0].mxu0
        %4493 = vmatprep.mubr.f32.mxu0 0.0
        %4494 = vmatmul.mubr.f32.gmra.mrb[0].mxu0 %v4292
        %v4495 = vpop.f32.mrb[0].mxu0
        %v4496 = vadd.f32 0.0, %v4495
        %v4497 = vpop.f32.mrb[0].mxu0
        %4498 = vmatprep.mubr.f32.mxu0 0.0
        %4499 = vmatmul.mubr.f32.gmra.mrb[0].mxu0 %v4295
        %v4500 = vpop.f32.mrb[0].mxu0
        %v4501 = vadd.f32 0.0, %v4500
        %v4502 = vpop.f32.mrb[0].mxu0
        %4503 = vmatprep.mubr.f32.mxu0 0.0
        %4504 = vmatmul.mubr.f32.gmra.mrb[0].mxu0 %v4298
        %v4505 = vpop.f32.mrb[0].mxu0
        %v4506 = vadd.f32 0.0, %v4505
        %v4507 = vpop.f32.mrb[0].mxu0
        %4508 = vmatprep.mubr.f32.mxu0 0.0
        %4509 = vmatmul.mubr.f32.gmra.mrb[0].mxu0 %v4301
        %v4510 = vpop.f32.mrb[0].mxu0
        %v4511 = vadd.f32 0.0, %v4510
        %v4512 = vpop.f32.mrb[0].mxu0
        %4513 = vmatprep.mubr.f32.mxu0 0.0
        %4514 = vmatmul.mubr.f32.gmra.mrb[0].mxu0 %v4304
        %v4515 = vpop.f32.mrb[0].mxu0
        %v4516 = vadd.f32 0.0, %v4515
        %v4517 = vpop.f32.mrb[0].mxu0
        %4518 = vmatprep.mubr.f32.mxu0 0.0
        %4519 = vmatmul.mubr.f32.gmra.mrb[0].mxu0 %v4307
        %v4520 = vpop.f32.mrb[0].mxu0
        %v4521 = vadd.f32 0.0, %v4520
        %v4522 = vpop.f32.mrb[0].mxu0
        %4523 = vmatprep.mubr.f32.mxu0 0.0
        %4524 = vmatmul.mubr.f32.gmra.mrb[0].mxu0 %v4310
        %v4525 = vpop.f32.mrb[0].mxu0
        %v4526 = vadd.f32 0.0, %v4525
        %v4527 = vpop.f32.mrb[0].mxu0
        %4528 = vmatprep.mubr.f32.mxu0 0.0
        %4529 = vmatmul.mubr.f32.gmra.mrb[0].mxu0 %v4313
        %v4530 = vpop.f32.mrb[0].mxu0
        %v4531 = vadd.f32 0.0, %v4530
        %v4532 = vpop.f32.mrb[0].mxu0
        %4533 = vmatprep.mubr.f32.mxu0 0.0
        %4534 = vmatmul.mubr.f32.gmra.mrb[0].mxu0 %v4316
        %v4535 = vpop.f32.mrb[0].mxu0
        %v4536 = vadd.f32 0.0, %v4535
        %v4537 = vpop.f32.mrb[0].mxu0
        %4538 = vmatprep.mubr.f32.mxu0 0.0
        %4539 = vmatmul.mubr.f32.gmra.mrb[0].mxu0 %v4319
        %v4540 = vpop.f32.mrb[0].mxu0
        %v4541 = vadd.f32 0.0, %v4540
        %v4542 = vpop.f32.mrb[0].mxu0
        %4543 = vmatprep.mubr.f32.mxu0 0.0
        %4544 = vmatmul.mubr.f32.gmra.mrb[0].mxu0 %v4322
        %v4545 = vpop.f32.mrb[0].mxu0
        %v4546 = vadd.f32 0.0, %v4545
        %v4547 = vpop.f32.mrb[0].mxu0
        %4548 = vdwg.mxu0
        %v4549 = vadd.f32 %v4151, %v4391
        %v4550 = vadd.f32 %v4152, %v4396
        %v4551 = vadd.f32 %v4153, %v4401
        %v4552 = vadd.f32 %v4154, %v4406
        %v4553 = vadd.f32 %v4155, %v4411
        %v4554 = vadd.f32 %v4156, %v4416
        %v4555 = vadd.f32 %v4157, %v4421
        %v4556 = vadd.f32 %v4158, %v4426
        %v4557 = vadd.f32 %v4159, %v4431
        %v4558 = vadd.f32 %v4160, %v4436
        %v4559 = vadd.f32 %v4161, %v4441
        %v4560 = vadd.f32 %v4162, %v4446
        %v4561 = vadd.f32 %v4163, %v4451
        %v4562 = vadd.f32 %v4164, %v4456
        %v4563 = vadd.f32 %v4165, %v4461
        %v4564 = vadd.f32 %v4166, %v4466
        %v4565 = vadd.f32 %v4167, %v4471
        %v4566 = vadd.f32 %v4168, %v4476
        %v4567 = vadd.f32 %v4169, %v4481
        %v4568 = vadd.f32 %v4170, %v4486
        %v4569 = vadd.f32 %v4171, %v4491
        %v4570 = vadd.f32 %v4172, %v4496
        %v4571 = vadd.f32 %v4173, %v4501
        %v4572 = vadd.f32 %v4174, %v4506
        %v4573 = vadd.f32 %v4175, %v4511
        %v4574 = vadd.f32 %v4176, %v4516
        %v4575 = vadd.f32 %v4177, %v4521
        %v4576 = vadd.f32 %v4178, %v4526
        %v4577 = vadd.f32 %v4179, %v4531
        %v4578 = vadd.f32 %v4180, %v4536
        %v4579 = vadd.f32 %v4181, %v4541
        %v4580 = vadd.f32 %v4182, %v4546
        %s4581 = scalar_lea.vmem [#allocation2], 48
        %v4582 = vld [vmem:[%s4581] sm:$0xff]
        %v4583 = vld [vmem:[%s4581 + $0x8] sm:$0xff]
        %v4584 = vld [vmem:[%s4581 + $0x18] sm:$0xff]
        %v4585 = vld [vmem:[%s4581 + $0x20] sm:$0xff]
        %v4586 = vld [vmem:[%s4581 + $0x30] sm:$0xff]
        %v4587 = vld [vmem:[%s4581 + $0x38] sm:$0xff]
        %v4588 = vld [vmem:[%s4581 + $0x48] sm:$0xff]
        %v4589 = vld [vmem:[%s4581 + $0x50] sm:$0xff]
        %v4590 = vld [vmem:[%s4581 + $0x60] sm:$0xff]
        %v4591 = vld [vmem:[%s4581 + $0x68] sm:$0xff]
        %v4592 = vld [vmem:[%s4581 + $0x78] sm:$0xff]
        %v4593 = vld [vmem:[%s4581 + $0x80] sm:$0xff]
        %v4594 = vld [vmem:[%s4581 + $0x90] sm:$0xff]
        %v4595 = vld [vmem:[%s4581 + $0x98] sm:$0xff]
        %v4596 = vld [vmem:[%s4581 + $0xa8] sm:$0xff]
        %v4597 = vld [vmem:[%s4581 + $0xb0] sm:$0xff]
        %v4598 = vld [vmem:[%s4581 + $0xc0] sm:$0xff]
        %v4599 = vld [vmem:[%s4581 + $0xc8] sm:$0xff]
        %v4600 = vld [vmem:[%s4581 + $0xd8] sm:$0xff]
        %v4601 = vld [vmem:[%s4581 + $0xe0] sm:$0xff]
        %v4602 = vld [vmem:[%s4581 + $0xf0] sm:$0xff]
        %v4603 = vld [vmem:[%s4581 + $0xf8] sm:$0xff]
        %v4604 = vld [vmem:[%s4581 + $0x108] sm:$0xff]
        %v4605 = vld [vmem:[%s4581 + $0x110] sm:$0xff]
        %v4606 = vld [vmem:[%s4581 + $0x120] sm:$0xff]
        %v4607 = vld [vmem:[%s4581 + $0x128] sm:$0xff]
        %v4608 = vld [vmem:[%s4581 + $0x138] sm:$0xff]
        %v4609 = vld [vmem:[%s4581 + $0x140] sm:$0xff]
        %v4610 = vld [vmem:[%s4581 + $0x150] sm:$0xff]
        %v4611 = vld [vmem:[%s4581 + $0x158] sm:$0xff]
        %v4612 = vld [vmem:[%s4581 + $0x168] sm:$0xff]
        %v4613 = vld [vmem:[%s4581 + $0x170] sm:$0xff]
        %s4614 = scalar_lea.vmem %s5, 576
        %v4615 = vld [vmem:[%s4614] sm:$0xff]
        %v4616 = vld [vmem:[%s4614 + $0x8] sm:$0xff]
        %v4617 = vld [vmem:[%s4614 + $0x10] sm:$0xff]
        %v4618 = vld [vmem:[%s4614 + $0x18] sm:$0xff]
        %v4619 = vld [vmem:[%s4614 + $0x20] sm:$0xff]
        %v4620 = vld [vmem:[%s4614 + $0x28] sm:$0xff]
        %v4621 = vld [vmem:[%s4614 + $0x30] sm:$0xff]
        %v4622 = vld [vmem:[%s4614 + $0x38] sm:$0xff]
        %v4623 = vld [vmem:[%s4614 + $0x40] sm:$0xff]
        %v4624 = vld [vmem:[%s4614 + $0x48] sm:$0xff]
        %v4625 = vld [vmem:[%s4614 + $0x50] sm:$0xff]
        %v4626 = vld [vmem:[%s4614 + $0x58] sm:$0xff]
        %v4628 = vsel %vm521, %v4582, 0
        %v4631 = vsel %vm521, %v4583, 0
        %v4634 = vsel %vm521, %v4584, 0
        %v4637 = vsel %vm521, %v4585, 0
        %v4640 = vsel %vm521, %v4586, 0
        %v4643 = vsel %vm521, %v4587, 0
        %v4646 = vsel %vm521, %v4588, 0
        %v4649 = vsel %vm521, %v4589, 0
        %v4652 = vsel %vm521, %v4590, 0
        %v4655 = vsel %vm521, %v4591, 0
        %v4658 = vsel %vm521, %v4592, 0
        %v4661 = vsel %vm521, %v4593, 0
        %v4664 = vsel %vm521, %v4594, 0
        %v4667 = vsel %vm521, %v4595, 0
        %v4670 = vsel %vm521, %v4596, 0
        %v4673 = vsel %vm521, %v4597, 0
        %v4676 = vsel %vm521, %v4598, 0
        %v4679 = vsel %vm521, %v4599, 0
        %v4682 = vsel %vm521, %v4600, 0
        %v4685 = vsel %vm521, %v4601, 0
        %v4688 = vsel %vm521, %v4602, 0
        %v4691 = vsel %vm521, %v4603, 0
        %v4694 = vsel %vm521, %v4604, 0
        %v4697 = vsel %vm521, %v4605, 0
        %v4700 = vsel %vm521, %v4606, 0
        %v4703 = vsel %vm521, %v4607, 0
        %v4706 = vsel %vm521, %v4608, 0
        %v4709 = vsel %vm521, %v4609, 0
        %v4712 = vsel %vm521, %v4610, 0
        %v4715 = vsel %vm521, %v4611, 0
        %v4718 = vsel %vm521, %v4612, 0
        %v4721 = vsel %vm521, %v4613, 0
        %4723 = vmatprep.subr.mxu0 0.0
        %4724 = vmatpush1.msra.mxu0 %v4615
        %4725 = vmatprep.subr.mxu0 0.0
        %4726 = vmatpush1.msra.mxu0 %v4616
        %4727 = vmatprep.subr.mxu0 0.0
        %4728 = vmatpush1.msra.mxu0 %v4617
        %4729 = vmatprep.subr.mxu0 0.0
        %4730 = vmatpush1.msra.mxu0 %v4618
        %4731 = vmatprep.subr.mxu0 0.0
        %4732 = vmatpush1.msra.mxu0 %v4619
        %4733 = vmatprep.subr.mxu0 0.0
        %4734 = vmatpush1.msra.mxu0 %v4620
        %4735 = vmatprep.subr.mxu0 0.0
        %4736 = vmatpush1.msra.mxu0 %v4621
        %4737 = vmatprep.subr.mxu0 0.0
        %4738 = vmatpush1.msra.mxu0 %v4622
        %4739 = vmatprep.subr.mxu0 0.0
        %4740 = vmatpush1.msra.mxu0 %v4623
        %4741 = vmatprep.subr.mxu0 0.0
        %4742 = vmatpush1.msra.mxu0 %v4624
        %4743 = vmatprep.subr.mxu0 0.0
        %4744 = vmatpush1.msra.mxu0 %v4625
        %4745 = vmatprep.subr.mxu0 0.0
        %4746 = vmatpush1.msra.mxu0 %v4626
        %4747 = vmatprep.subr.mxu0 0.0
        %4748 = vmatpush1.msra.mxu0 0.0
        %4749 = vmatprep.subr.mxu0 0.0
        %4750 = vmatpush1.msra.mxu0 0.0
        %4751 = vmatprep.subr.mxu0 0.0
        %4752 = vmatpush1.msra.mxu0 0.0
        %4753 = vmatprep.subr.mxu0 0.0
        %4754 = vmatpush1.msra.mxu0 0.0
        %4755 = vmatprep.subr.mxu0 0.0
        %4756 = vmatpush1.msra.mxu0 0.0
        %4757 = vmatprep.subr.mxu0 0.0
        %4758 = vmatpush1.msra.mxu0 0.0
        %4759 = vmatprep.subr.mxu0 0.0
        %4760 = vmatpush1.msra.mxu0 0.0
        %4761 = vmatprep.subr.mxu0 0.0
        %4762 = vmatpush1.msra.mxu0 0.0
        %4763 = vmatprep.subr.mxu0 0.0
        %4764 = vmatpush1.msra.mxu0 0.0
        %4765 = vmatprep.subr.mxu0 0.0
        %4766 = vmatpush1.msra.mxu0 0.0
        %4767 = vmatprep.subr.mxu0 0.0
        %4768 = vmatpush1.msra.mxu0 0.0
        %4769 = vmatprep.subr.mxu0 0.0
        %4770 = vmatpush1.msra.mxu0 0.0
        %4771 = vmatprep.subr.mxu0 0.0
        %4772 = vmatpush1.msra.mxu0 0.0
        %4773 = vmatprep.subr.mxu0 0.0
        %4774 = vmatpush1.msra.mxu0 0.0
        %4775 = vmatprep.subr.mxu0 0.0
        %4776 = vmatpush1.msra.mxu0 0.0
        %4777 = vmatprep.subr.mxu0 0.0
        %4778 = vmatpush1.msra.mxu0 0.0
        %4779 = vmatprep.subr.mxu0 0.0
        %4780 = vmatpush1.msra.mxu0 0.0
        %4781 = vmatprep.subr.mxu0 0.0
        %4782 = vmatpush1.msra.mxu0 0.0
        %4783 = vmatprep.subr.mxu0 0.0
        %4784 = vmatpush1.msra.mxu0 0.0
        %4785 = vmatprep.subr.mxu0 0.0
        %4786 = vmatpush1.msra.mxu0 0.0
        %4787 = vmatprep.mubr.f32.mxu0 0.0
        %4788 = vmatmul.mubr.f32.gmra.mrb[0].mxu0 %v4628
        %v4789 = vpop.f32.mrb[0].mxu0
        %v4790 = vadd.f32 0.0, %v4789
        %v4791 = vpop.f32.mrb[0].mxu0
        %4792 = vmatprep.mubr.f32.mxu0 0.0
        %4793 = vmatmul.mubr.f32.gmra.mrb[0].mxu0 %v4631
        %v4794 = vpop.f32.mrb[0].mxu0
        %v4795 = vadd.f32 0.0, %v4794
        %v4796 = vpop.f32.mrb[0].mxu0
        %4797 = vmatprep.mubr.f32.mxu0 0.0
        %4798 = vmatmul.mubr.f32.gmra.mrb[0].mxu0 %v4634
        %v4799 = vpop.f32.mrb[0].mxu0
        %v4800 = vadd.f32 0.0, %v4799
        %v4801 = vpop.f32.mrb[0].mxu0
        %4802 = vmatprep.mubr.f32.mxu0 0.0
        %4803 = vmatmul.mubr.f32.gmra.mrb[0].mxu0 %v4637
        %v4804 = vpop.f32.mrb[0].mxu0
        %v4805 = vadd.f32 0.0, %v4804
        %v4806 = vpop.f32.mrb[0].mxu0
        %4807 = vmatprep.mubr.f32.mxu0 0.0
        %4808 = vmatmul.mubr.f32.gmra.mrb[0].mxu0 %v4640
        %v4809 = vpop.f32.mrb[0].mxu0
        %v4810 = vadd.f32 0.0, %v4809
        %v4811 = vpop.f32.mrb[0].mxu0
        %4812 = vmatprep.mubr.f32.mxu0 0.0
        %4813 = vmatmul.mubr.f32.gmra.mrb[0].mxu0 %v4643
        %v4814 = vpop.f32.mrb[0].mxu0
        %v4815 = vadd.f32 0.0, %v4814
        %v4816 = vpop.f32.mrb[0].mxu0
        %4817 = vmatprep.mubr.f32.mxu0 0.0
        %4818 = vmatmul.mubr.f32.gmra.mrb[0].mxu0 %v4646
        %v4819 = vpop.f32.mrb[0].mxu0
        %v4820 = vadd.f32 0.0, %v4819
        %v4821 = vpop.f32.mrb[0].mxu0
        %4822 = vmatprep.mubr.f32.mxu0 0.0
        %4823 = vmatmul.mubr.f32.gmra.mrb[0].mxu0 %v4649
        %v4824 = vpop.f32.mrb[0].mxu0
        %v4825 = vadd.f32 0.0, %v4824
        %v4826 = vpop.f32.mrb[0].mxu0
        %4827 = vmatprep.mubr.f32.mxu0 0.0
        %4828 = vmatmul.mubr.f32.gmra.mrb[0].mxu0 %v4652
        %v4829 = vpop.f32.mrb[0].mxu0
        %v4830 = vadd.f32 0.0, %v4829
        %v4831 = vpop.f32.mrb[0].mxu0
        %4832 = vmatprep.mubr.f32.mxu0 0.0
        %4833 = vmatmul.mubr.f32.gmra.mrb[0].mxu0 %v4655
        %v4834 = vpop.f32.mrb[0].mxu0
        %v4835 = vadd.f32 0.0, %v4834
        %v4836 = vpop.f32.mrb[0].mxu0
        %4837 = vmatprep.mubr.f32.mxu0 0.0
        %4838 = vmatmul.mubr.f32.gmra.mrb[0].mxu0 %v4658
        %v4839 = vpop.f32.mrb[0].mxu0
        %v4840 = vadd.f32 0.0, %v4839
        %v4841 = vpop.f32.mrb[0].mxu0
        %4842 = vmatprep.mubr.f32.mxu0 0.0
        %4843 = vmatmul.mubr.f32.gmra.mrb[0].mxu0 %v4661
        %v4844 = vpop.f32.mrb[0].mxu0
        %v4845 = vadd.f32 0.0, %v4844
        %v4846 = vpop.f32.mrb[0].mxu0
        %4847 = vmatprep.mubr.f32.mxu0 0.0
        %4848 = vmatmul.mubr.f32.gmra.mrb[0].mxu0 %v4664
        %v4849 = vpop.f32.mrb[0].mxu0
        %v4850 = vadd.f32 0.0, %v4849
        %v4851 = vpop.f32.mrb[0].mxu0
        %4852 = vmatprep.mubr.f32.mxu0 0.0
        %4853 = vmatmul.mubr.f32.gmra.mrb[0].mxu0 %v4667
        %v4854 = vpop.f32.mrb[0].mxu0
        %v4855 = vadd.f32 0.0, %v4854
        %v4856 = vpop.f32.mrb[0].mxu0
        %4857 = vmatprep.mubr.f32.mxu0 0.0
        %4858 = vmatmul.mubr.f32.gmra.mrb[0].mxu0 %v4670
        %v4859 = vpop.f32.mrb[0].mxu0
        %v4860 = vadd.f32 0.0, %v4859
        %v4861 = vpop.f32.mrb[0].mxu0
        %4862 = vmatprep.mubr.f32.mxu0 0.0
        %4863 = vmatmul.mubr.f32.gmra.mrb[0].mxu0 %v4673
        %v4864 = vpop.f32.mrb[0].mxu0
        %v4865 = vadd.f32 0.0, %v4864
        %v4866 = vpop.f32.mrb[0].mxu0
        %4867 = vmatprep.mubr.f32.mxu0 0.0
        %4868 = vmatmul.mubr.f32.gmra.mrb[0].mxu0 %v4676
        %v4869 = vpop.f32.mrb[0].mxu0
        %v4870 = vadd.f32 0.0, %v4869
        %v4871 = vpop.f32.mrb[0].mxu0
        %4872 = vmatprep.mubr.f32.mxu0 0.0
        %4873 = vmatmul.mubr.f32.gmra.mrb[0].mxu0 %v4679
        %v4874 = vpop.f32.mrb[0].mxu0
        %v4875 = vadd.f32 0.0, %v4874
        %v4876 = vpop.f32.mrb[0].mxu0
        %4877 = vmatprep.mubr.f32.mxu0 0.0
        %4878 = vmatmul.mubr.f32.gmra.mrb[0].mxu0 %v4682
        %v4879 = vpop.f32.mrb[0].mxu0
        %v4880 = vadd.f32 0.0, %v4879
        %v4881 = vpop.f32.mrb[0].mxu0
        %4882 = vmatprep.mubr.f32.mxu0 0.0
        %4883 = vmatmul.mubr.f32.gmra.mrb[0].mxu0 %v4685
        %v4884 = vpop.f32.mrb[0].mxu0
        %v4885 = vadd.f32 0.0, %v4884
        %v4886 = vpop.f32.mrb[0].mxu0
        %4887 = vmatprep.mubr.f32.mxu0 0.0
        %4888 = vmatmul.mubr.f32.gmra.mrb[0].mxu0 %v4688
        %v4889 = vpop.f32.mrb[0].mxu0
        %v4890 = vadd.f32 0.0, %v4889
        %v4891 = vpop.f32.mrb[0].mxu0
        %4892 = vmatprep.mubr.f32.mxu0 0.0
        %4893 = vmatmul.mubr.f32.gmra.mrb[0].mxu0 %v4691
        %v4894 = vpop.f32.mrb[0].mxu0
        %v4895 = vadd.f32 0.0, %v4894
        %v4896 = vpop.f32.mrb[0].mxu0
        %4897 = vmatprep.mubr.f32.mxu0 0.0
        %4898 = vmatmul.mubr.f32.gmra.mrb[0].mxu0 %v4694
        %v4899 = vpop.f32.mrb[0].mxu0
        %v4900 = vadd.f32 0.0, %v4899
        %v4901 = vpop.f32.mrb[0].mxu0
        %4902 = vmatprep.mubr.f32.mxu0 0.0
        %4903 = vmatmul.mubr.f32.gmra.mrb[0].mxu0 %v4697
        %v4904 = vpop.f32.mrb[0].mxu0
        %v4905 = vadd.f32 0.0, %v4904
        %v4906 = vpop.f32.mrb[0].mxu0
        %4907 = vmatprep.mubr.f32.mxu0 0.0
        %4908 = vmatmul.mubr.f32.gmra.mrb[0].mxu0 %v4700
        %v4909 = vpop.f32.mrb[0].mxu0
        %v4910 = vadd.f32 0.0, %v4909
        %v4911 = vpop.f32.mrb[0].mxu0
        %4912 = vmatprep.mubr.f32.mxu0 0.0
        %4913 = vmatmul.mubr.f32.gmra.mrb[0].mxu0 %v4703
        %v4914 = vpop.f32.mrb[0].mxu0
        %v4915 = vadd.f32 0.0, %v4914
        %v4916 = vpop.f32.mrb[0].mxu0
        %4917 = vmatprep.mubr.f32.mxu0 0.0
        %4918 = vmatmul.mubr.f32.gmra.mrb[0].mxu0 %v4706
        %v4919 = vpop.f32.mrb[0].mxu0
        %v4920 = vadd.f32 0.0, %v4919
        %v4921 = vpop.f32.mrb[0].mxu0
        %4922 = vmatprep.mubr.f32.mxu0 0.0
        %4923 = vmatmul.mubr.f32.gmra.mrb[0].mxu0 %v4709
        %v4924 = vpop.f32.mrb[0].mxu0
        %v4925 = vadd.f32 0.0, %v4924
        %v4926 = vpop.f32.mrb[0].mxu0
        %4927 = vmatprep.mubr.f32.mxu0 0.0
        %4928 = vmatmul.mubr.f32.gmra.mrb[0].mxu0 %v4712
        %v4929 = vpop.f32.mrb[0].mxu0
        %v4930 = vadd.f32 0.0, %v4929
        %v4931 = vpop.f32.mrb[0].mxu0
        %4932 = vmatprep.mubr.f32.mxu0 0.0
        %4933 = vmatmul.mubr.f32.gmra.mrb[0].mxu0 %v4715
        %v4934 = vpop.f32.mrb[0].mxu0
        %v4935 = vadd.f32 0.0, %v4934
        %v4936 = vpop.f32.mrb[0].mxu0
        %4937 = vmatprep.mubr.f32.mxu0 0.0
        %4938 = vmatmul.mubr.f32.gmra.mrb[0].mxu0 %v4718
        %v4939 = vpop.f32.mrb[0].mxu0
        %v4940 = vadd.f32 0.0, %v4939
        %v4941 = vpop.f32.mrb[0].mxu0
        %4942 = vmatprep.mubr.f32.mxu0 0.0
        %4943 = vmatmul.mubr.f32.gmra.mrb[0].mxu0 %v4721
        %v4944 = vpop.f32.mrb[0].mxu0
        %v4945 = vadd.f32 0.0, %v4944
        %v4946 = vpop.f32.mrb[0].mxu0
        %4947 = vdwg.mxu0
        %v4948 = vadd.f32 %v4549, %v4790
        %v4949 = vadd.f32 %v4550, %v4795
        %v4950 = vadd.f32 %v4551, %v4800
        %v4951 = vadd.f32 %v4552, %v4805
        %v4952 = vadd.f32 %v4553, %v4810
        %v4953 = vadd.f32 %v4554, %v4815
        %v4954 = vadd.f32 %v4555, %v4820
        %v4955 = vadd.f32 %v4556, %v4825
        %v4956 = vadd.f32 %v4557, %v4830
        %v4957 = vadd.f32 %v4558, %v4835
        %v4958 = vadd.f32 %v4559, %v4840
        %v4959 = vadd.f32 %v4560, %v4845
        %v4960 = vadd.f32 %v4561, %v4850
        %v4961 = vadd.f32 %v4562, %v4855
        %v4962 = vadd.f32 %v4563, %v4860
        %v4963 = vadd.f32 %v4564, %v4865
        %v4964 = vadd.f32 %v4565, %v4870
        %v4965 = vadd.f32 %v4566, %v4875
        %v4966 = vadd.f32 %v4567, %v4880
        %v4967 = vadd.f32 %v4568, %v4885
        %v4968 = vadd.f32 %v4569, %v4890
        %v4969 = vadd.f32 %v4570, %v4895
        %v4970 = vadd.f32 %v4571, %v4900
        %v4971 = vadd.f32 %v4572, %v4905
        %v4972 = vadd.f32 %v4573, %v4910
        %v4973 = vadd.f32 %v4574, %v4915
        %v4974 = vadd.f32 %v4575, %v4920
        %v4975 = vadd.f32 %v4576, %v4925
        %v4976 = vadd.f32 %v4577, %v4930
        %v4977 = vadd.f32 %v4578, %v4935
        %v4978 = vadd.f32 %v4579, %v4940
        %v4979 = vadd.f32 %v4580, %v4945
        %v4980 = vld [vmem:[%s4581 + $0x1] sm:$0xff]
        %v4981 = vld [vmem:[%s4581 + $0x9] sm:$0xff]
        %v4982 = vld [vmem:[%s4581 + $0x19] sm:$0xff]
        %v4983 = vld [vmem:[%s4581 + $0x21] sm:$0xff]
        %v4984 = vld [vmem:[%s4581 + $0x31] sm:$0xff]
        %v4985 = vld [vmem:[%s4581 + $0x39] sm:$0xff]
        %v4986 = vld [vmem:[%s4581 + $0x49] sm:$0xff]
        %v4987 = vld [vmem:[%s4581 + $0x51] sm:$0xff]
        %v4988 = vld [vmem:[%s4581 + $0x61] sm:$0xff]
        %v4989 = vld [vmem:[%s4581 + $0x69] sm:$0xff]
        %v4990 = vld [vmem:[%s4581 + $0x79] sm:$0xff]
        %v4991 = vld [vmem:[%s4581 + $0x81] sm:$0xff]
        %v4992 = vld [vmem:[%s4581 + $0x91] sm:$0xff]
        %v4993 = vld [vmem:[%s4581 + $0x99] sm:$0xff]
        %v4994 = vld [vmem:[%s4581 + $0xa9] sm:$0xff]
        %v4995 = vld [vmem:[%s4581 + $0xb1] sm:$0xff]
        %v4996 = vld [vmem:[%s4581 + $0xc1] sm:$0xff]
        %v4997 = vld [vmem:[%s4581 + $0xc9] sm:$0xff]
        %v4998 = vld [vmem:[%s4581 + $0xd9] sm:$0xff]
        %v4999 = vld [vmem:[%s4581 + $0xe1] sm:$0xff]
        %v5000 = vld [vmem:[%s4581 + $0xf1] sm:$0xff]
        %v5001 = vld [vmem:[%s4581 + $0xf9] sm:$0xff]
        %v5002 = vld [vmem:[%s4581 + $0x109] sm:$0xff]
        %v5003 = vld [vmem:[%s4581 + $0x111] sm:$0xff]
        %v5004 = vld [vmem:[%s4581 + $0x121] sm:$0xff]
        %v5005 = vld [vmem:[%s4581 + $0x129] sm:$0xff]
        %v5006 = vld [vmem:[%s4581 + $0x139] sm:$0xff]
        %v5007 = vld [vmem:[%s4581 + $0x141] sm:$0xff]
        %v5008 = vld [vmem:[%s4581 + $0x151] sm:$0xff]
        %v5009 = vld [vmem:[%s4581 + $0x159] sm:$0xff]
        %v5010 = vld [vmem:[%s4581 + $0x169] sm:$0xff]
        %v5011 = vld [vmem:[%s4581 + $0x171] sm:$0xff]
        %s5012 = scalar_lea.vmem %s5, 672
        %v5013 = vld [vmem:[%s5012] sm:$0xff]
        %v5014 = vld [vmem:[%s5012 + $0x8] sm:$0xff]
        %v5015 = vld [vmem:[%s5012 + $0x10] sm:$0xff]
        %v5016 = vld [vmem:[%s5012 + $0x18] sm:$0xff]
        %v5017 = vld [vmem:[%s5012 + $0x20] sm:$0xff]
        %v5018 = vld [vmem:[%s5012 + $0x28] sm:$0xff]
        %v5019 = vld [vmem:[%s5012 + $0x30] sm:$0xff]
        %v5020 = vld [vmem:[%s5012 + $0x38] sm:$0xff]
        %v5021 = vld [vmem:[%s5012 + $0x40] sm:$0xff]
        %v5022 = vld [vmem:[%s5012 + $0x48] sm:$0xff]
        %v5023 = vld [vmem:[%s5012 + $0x50] sm:$0xff]
        %v5024 = vld [vmem:[%s5012 + $0x58] sm:$0xff]
        %v5026 = vsel %vm521, %v4980, 0
        %v5029 = vsel %vm521, %v4981, 0
        %v5032 = vsel %vm521, %v4982, 0
        %v5035 = vsel %vm521, %v4983, 0
        %v5038 = vsel %vm521, %v4984, 0
        %v5041 = vsel %vm521, %v4985, 0
        %v5044 = vsel %vm521, %v4986, 0
        %v5047 = vsel %vm521, %v4987, 0
        %v5050 = vsel %vm521, %v4988, 0
        %v5053 = vsel %vm521, %v4989, 0
        %v5056 = vsel %vm521, %v4990, 0
        %v5059 = vsel %vm521, %v4991, 0
        %v5062 = vsel %vm521, %v4992, 0
        %v5065 = vsel %vm521, %v4993, 0
        %v5068 = vsel %vm521, %v4994, 0
        %v5071 = vsel %vm521, %v4995, 0
        %v5074 = vsel %vm521, %v4996, 0
        %v5077 = vsel %vm521, %v4997, 0
        %v5080 = vsel %vm521, %v4998, 0
        %v5083 = vsel %vm521, %v4999, 0
        %v5086 = vsel %vm521, %v5000, 0
        %v5089 = vsel %vm521, %v5001, 0
        %v5092 = vsel %vm521, %v5002, 0
        %v5095 = vsel %vm521, %v5003, 0
        %v5098 = vsel %vm521, %v5004, 0
        %v5101 = vsel %vm521, %v5005, 0
        %v5104 = vsel %vm521, %v5006, 0
        %v5107 = vsel %vm521, %v5007, 0
        %v5110 = vsel %vm521, %v5008, 0
        %v5113 = vsel %vm521, %v5009, 0
        %v5116 = vsel %vm521, %v5010, 0
        %v5119 = vsel %vm521, %v5011, 0
        %5121 = vmatprep.subr.mxu0 0.0
        %5122 = vmatpush1.msra.mxu0 %v5013
        %5123 = vmatprep.subr.mxu0 0.0
        %5124 = vmatpush1.msra.mxu0 %v5014
        %5125 = vmatprep.subr.mxu0 0.0
        %5126 = vmatpush1.msra.mxu0 %v5015
        %5127 = vmatprep.subr.mxu0 0.0
        %5128 = vmatpush1.msra.mxu0 %v5016
        %5129 = vmatprep.subr.mxu0 0.0
        %5130 = vmatpush1.msra.mxu0 %v5017
        %5131 = vmatprep.subr.mxu0 0.0
        %5132 = vmatpush1.msra.mxu0 %v5018
        %5133 = vmatprep.subr.mxu0 0.0
        %5134 = vmatpush1.msra.mxu0 %v5019
        %5135 = vmatprep.subr.mxu0 0.0
        %5136 = vmatpush1.msra.mxu0 %v5020
        %5137 = vmatprep.subr.mxu0 0.0
        %5138 = vmatpush1.msra.mxu0 %v5021
        %5139 = vmatprep.subr.mxu0 0.0
        %5140 = vmatpush1.msra.mxu0 %v5022
        %5141 = vmatprep.subr.mxu0 0.0
        %5142 = vmatpush1.msra.mxu0 %v5023
        %5143 = vmatprep.subr.mxu0 0.0
        %5144 = vmatpush1.msra.mxu0 %v5024
        %5145 = vmatprep.subr.mxu0 0.0
        %5146 = vmatpush1.msra.mxu0 0.0
        %5147 = vmatprep.subr.mxu0 0.0
        %5148 = vmatpush1.msra.mxu0 0.0
        %5149 = vmatprep.subr.mxu0 0.0
        %5150 = vmatpush1.msra.mxu0 0.0
        %5151 = vmatprep.subr.mxu0 0.0
        %5152 = vmatpush1.msra.mxu0 0.0
        %5153 = vmatprep.subr.mxu0 0.0
        %5154 = vmatpush1.msra.mxu0 0.0
        %5155 = vmatprep.subr.mxu0 0.0
        %5156 = vmatpush1.msra.mxu0 0.0
        %5157 = vmatprep.subr.mxu0 0.0
        %5158 = vmatpush1.msra.mxu0 0.0
        %5159 = vmatprep.subr.mxu0 0.0
        %5160 = vmatpush1.msra.mxu0 0.0
        %5161 = vmatprep.subr.mxu0 0.0
        %5162 = vmatpush1.msra.mxu0 0.0
        %5163 = vmatprep.subr.mxu0 0.0
        %5164 = vmatpush1.msra.mxu0 0.0
        %5165 = vmatprep.subr.mxu0 0.0
        %5166 = vmatpush1.msra.mxu0 0.0
        %5167 = vmatprep.subr.mxu0 0.0
        %5168 = vmatpush1.msra.mxu0 0.0
        %5169 = vmatprep.subr.mxu0 0.0
        %5170 = vmatpush1.msra.mxu0 0.0
        %5171 = vmatprep.subr.mxu0 0.0
        %5172 = vmatpush1.msra.mxu0 0.0
        %5173 = vmatprep.subr.mxu0 0.0
        %5174 = vmatpush1.msra.mxu0 0.0
        %5175 = vmatprep.subr.mxu0 0.0
        %5176 = vmatpush1.msra.mxu0 0.0
        %5177 = vmatprep.subr.mxu0 0.0
        %5178 = vmatpush1.msra.mxu0 0.0
        %5179 = vmatprep.subr.mxu0 0.0
        %5180 = vmatpush1.msra.mxu0 0.0
        %5181 = vmatprep.subr.mxu0 0.0
        %5182 = vmatpush1.msra.mxu0 0.0
        %5183 = vmatprep.subr.mxu0 0.0
        %5184 = vmatpush1.msra.mxu0 0.0
        %5185 = vmatprep.mubr.f32.mxu0 0.0
        %5186 = vmatmul.mubr.f32.gmra.mrb[0].mxu0 %v5026
        %v5187 = vpop.f32.mrb[0].mxu0
        %v5188 = vadd.f32 0.0, %v5187
        %v5189 = vpop.f32.mrb[0].mxu0
        %5190 = vmatprep.mubr.f32.mxu0 0.0
        %5191 = vmatmul.mubr.f32.gmra.mrb[0].mxu0 %v5029
        %v5192 = vpop.f32.mrb[0].mxu0
        %v5193 = vadd.f32 0.0, %v5192
        %v5194 = vpop.f32.mrb[0].mxu0
        %5195 = vmatprep.mubr.f32.mxu0 0.0
        %5196 = vmatmul.mubr.f32.gmra.mrb[0].mxu0 %v5032
        %v5197 = vpop.f32.mrb[0].mxu0
        %v5198 = vadd.f32 0.0, %v5197
        %v5199 = vpop.f32.mrb[0].mxu0
        %5200 = vmatprep.mubr.f32.mxu0 0.0
        %5201 = vmatmul.mubr.f32.gmra.mrb[0].mxu0 %v5035
        %v5202 = vpop.f32.mrb[0].mxu0
        %v5203 = vadd.f32 0.0, %v5202
        %v5204 = vpop.f32.mrb[0].mxu0
        %5205 = vmatprep.mubr.f32.mxu0 0.0
        %5206 = vmatmul.mubr.f32.gmra.mrb[0].mxu0 %v5038
        %v5207 = vpop.f32.mrb[0].mxu0
        %v5208 = vadd.f32 0.0, %v5207
        %v5209 = vpop.f32.mrb[0].mxu0
        %5210 = vmatprep.mubr.f32.mxu0 0.0
        %5211 = vmatmul.mubr.f32.gmra.mrb[0].mxu0 %v5041
        %v5212 = vpop.f32.mrb[0].mxu0
        %v5213 = vadd.f32 0.0, %v5212
        %v5214 = vpop.f32.mrb[0].mxu0
        %5215 = vmatprep.mubr.f32.mxu0 0.0
        %5216 = vmatmul.mubr.f32.gmra.mrb[0].mxu0 %v5044
        %v5217 = vpop.f32.mrb[0].mxu0
        %v5218 = vadd.f32 0.0, %v5217
        %v5219 = vpop.f32.mrb[0].mxu0
        %5220 = vmatprep.mubr.f32.mxu0 0.0
        %5221 = vmatmul.mubr.f32.gmra.mrb[0].mxu0 %v5047
        %v5222 = vpop.f32.mrb[0].mxu0
        %v5223 = vadd.f32 0.0, %v5222
        %v5224 = vpop.f32.mrb[0].mxu0
        %5225 = vmatprep.mubr.f32.mxu0 0.0
        %5226 = vmatmul.mubr.f32.gmra.mrb[0].mxu0 %v5050
        %v5227 = vpop.f32.mrb[0].mxu0
        %v5228 = vadd.f32 0.0, %v5227
        %v5229 = vpop.f32.mrb[0].mxu0
        %5230 = vmatprep.mubr.f32.mxu0 0.0
        %5231 = vmatmul.mubr.f32.gmra.mrb[0].mxu0 %v5053
        %v5232 = vpop.f32.mrb[0].mxu0
        %v5233 = vadd.f32 0.0, %v5232
        %v5234 = vpop.f32.mrb[0].mxu0
        %5235 = vmatprep.mubr.f32.mxu0 0.0
        %5236 = vmatmul.mubr.f32.gmra.mrb[0].mxu0 %v5056
        %v5237 = vpop.f32.mrb[0].mxu0
        %v5238 = vadd.f32 0.0, %v5237
        %v5239 = vpop.f32.mrb[0].mxu0
        %5240 = vmatprep.mubr.f32.mxu0 0.0
        %5241 = vmatmul.mubr.f32.gmra.mrb[0].mxu0 %v5059
        %v5242 = vpop.f32.mrb[0].mxu0
        %v5243 = vadd.f32 0.0, %v5242
        %v5244 = vpop.f32.mrb[0].mxu0
        %5245 = vmatprep.mubr.f32.mxu0 0.0
        %5246 = vmatmul.mubr.f32.gmra.mrb[0].mxu0 %v5062
        %v5247 = vpop.f32.mrb[0].mxu0
        %v5248 = vadd.f32 0.0, %v5247
        %v5249 = vpop.f32.mrb[0].mxu0
        %5250 = vmatprep.mubr.f32.mxu0 0.0
        %5251 = vmatmul.mubr.f32.gmra.mrb[0].mxu0 %v5065
        %v5252 = vpop.f32.mrb[0].mxu0
        %v5253 = vadd.f32 0.0, %v5252
        %v5254 = vpop.f32.mrb[0].mxu0
        %5255 = vmatprep.mubr.f32.mxu0 0.0
        %5256 = vmatmul.mubr.f32.gmra.mrb[0].mxu0 %v5068
        %v5257 = vpop.f32.mrb[0].mxu0
        %v5258 = vadd.f32 0.0, %v5257
        %v5259 = vpop.f32.mrb[0].mxu0
        %5260 = vmatprep.mubr.f32.mxu0 0.0
        %5261 = vmatmul.mubr.f32.gmra.mrb[0].mxu0 %v5071
        %v5262 = vpop.f32.mrb[0].mxu0
        %v5263 = vadd.f32 0.0, %v5262
        %v5264 = vpop.f32.mrb[0].mxu0
        %5265 = vmatprep.mubr.f32.mxu0 0.0
        %5266 = vmatmul.mubr.f32.gmra.mrb[0].mxu0 %v5074
        %v5267 = vpop.f32.mrb[0].mxu0
        %v5268 = vadd.f32 0.0, %v5267
        %v5269 = vpop.f32.mrb[0].mxu0
        %5270 = vmatprep.mubr.f32.mxu0 0.0
        %5271 = vmatmul.mubr.f32.gmra.mrb[0].mxu0 %v5077
        %v5272 = vpop.f32.mrb[0].mxu0
        %v5273 = vadd.f32 0.0, %v5272
        %v5274 = vpop.f32.mrb[0].mxu0
        %5275 = vmatprep.mubr.f32.mxu0 0.0
        %5276 = vmatmul.mubr.f32.gmra.mrb[0].mxu0 %v5080
        %v5277 = vpop.f32.mrb[0].mxu0
        %v5278 = vadd.f32 0.0, %v5277
        %v5279 = vpop.f32.mrb[0].mxu0
        %5280 = vmatprep.mubr.f32.mxu0 0.0
        %5281 = vmatmul.mubr.f32.gmra.mrb[0].mxu0 %v5083
        %v5282 = vpop.f32.mrb[0].mxu0
        %v5283 = vadd.f32 0.0, %v5282
        %v5284 = vpop.f32.mrb[0].mxu0
        %5285 = vmatprep.mubr.f32.mxu0 0.0
        %5286 = vmatmul.mubr.f32.gmra.mrb[0].mxu0 %v5086
        %v5287 = vpop.f32.mrb[0].mxu0
        %v5288 = vadd.f32 0.0, %v5287
        %v5289 = vpop.f32.mrb[0].mxu0
        %5290 = vmatprep.mubr.f32.mxu0 0.0
        %5291 = vmatmul.mubr.f32.gmra.mrb[0].mxu0 %v5089
        %v5292 = vpop.f32.mrb[0].mxu0
        %v5293 = vadd.f32 0.0, %v5292
        %v5294 = vpop.f32.mrb[0].mxu0
        %5295 = vmatprep.mubr.f32.mxu0 0.0
        %5296 = vmatmul.mubr.f32.gmra.mrb[0].mxu0 %v5092
        %v5297 = vpop.f32.mrb[0].mxu0
        %v5298 = vadd.f32 0.0, %v5297
        %v5299 = vpop.f32.mrb[0].mxu0
        %5300 = vmatprep.mubr.f32.mxu0 0.0
        %5301 = vmatmul.mubr.f32.gmra.mrb[0].mxu0 %v5095
        %v5302 = vpop.f32.mrb[0].mxu0
        %v5303 = vadd.f32 0.0, %v5302
        %v5304 = vpop.f32.mrb[0].mxu0
        %5305 = vmatprep.mubr.f32.mxu0 0.0
        %5306 = vmatmul.mubr.f32.gmra.mrb[0].mxu0 %v5098
        %v5307 = vpop.f32.mrb[0].mxu0
        %v5308 = vadd.f32 0.0, %v5307
        %v5309 = vpop.f32.mrb[0].mxu0
        %5310 = vmatprep.mubr.f32.mxu0 0.0
        %5311 = vmatmul.mubr.f32.gmra.mrb[0].mxu0 %v5101
        %v5312 = vpop.f32.mrb[0].mxu0
        %v5313 = vadd.f32 0.0, %v5312
        %v5314 = vpop.f32.mrb[0].mxu0
        %5315 = vmatprep.mubr.f32.mxu0 0.0
        %5316 = vmatmul.mubr.f32.gmra.mrb[0].mxu0 %v5104
        %v5317 = vpop.f32.mrb[0].mxu0
        %v5318 = vadd.f32 0.0, %v5317
        %v5319 = vpop.f32.mrb[0].mxu0
        %5320 = vmatprep.mubr.f32.mxu0 0.0
        %5321 = vmatmul.mubr.f32.gmra.mrb[0].mxu0 %v5107
        %v5322 = vpop.f32.mrb[0].mxu0
        %v5323 = vadd.f32 0.0, %v5322
        %v5324 = vpop.f32.mrb[0].mxu0
        %5325 = vmatprep.mubr.f32.mxu0 0.0
        %5326 = vmatmul.mubr.f32.gmra.mrb[0].mxu0 %v5110
        %v5327 = vpop.f32.mrb[0].mxu0
        %v5328 = vadd.f32 0.0, %v5327
        %v5329 = vpop.f32.mrb[0].mxu0
        %5330 = vmatprep.mubr.f32.mxu0 0.0
        %5331 = vmatmul.mubr.f32.gmra.mrb[0].mxu0 %v5113
        %v5332 = vpop.f32.mrb[0].mxu0
        %v5333 = vadd.f32 0.0, %v5332
        %v5334 = vpop.f32.mrb[0].mxu0
        %5335 = vmatprep.mubr.f32.mxu0 0.0
        %5336 = vmatmul.mubr.f32.gmra.mrb[0].mxu0 %v5116
        %v5337 = vpop.f32.mrb[0].mxu0
        %v5338 = vadd.f32 0.0, %v5337
        %v5339 = vpop.f32.mrb[0].mxu0
        %5340 = vmatprep.mubr.f32.mxu0 0.0
        %5341 = vmatmul.mubr.f32.gmra.mrb[0].mxu0 %v5119
        %v5342 = vpop.f32.mrb[0].mxu0
        %v5343 = vadd.f32 0.0, %v5342
        %v5344 = vpop.f32.mrb[0].mxu0
        %5345 = vdwg.mxu0
        %v5346 = vadd.f32 %v4948, %v5188
        %v5347 = vadd.f32 %v4949, %v5193
        %v5348 = vadd.f32 %v4950, %v5198
        %v5349 = vadd.f32 %v4951, %v5203
        %v5350 = vadd.f32 %v4952, %v5208
        %v5351 = vadd.f32 %v4953, %v5213
        %v5352 = vadd.f32 %v4954, %v5218
        %v5353 = vadd.f32 %v4955, %v5223
        %v5354 = vadd.f32 %v4956, %v5228
        %v5355 = vadd.f32 %v4957, %v5233
        %v5356 = vadd.f32 %v4958, %v5238
        %v5357 = vadd.f32 %v4959, %v5243
        %v5358 = vadd.f32 %v4960, %v5248
        %v5359 = vadd.f32 %v4961, %v5253
        %v5360 = vadd.f32 %v4962, %v5258
        %v5361 = vadd.f32 %v4963, %v5263
        %v5362 = vadd.f32 %v4964, %v5268
        %v5363 = vadd.f32 %v4965, %v5273
        %v5364 = vadd.f32 %v4966, %v5278
        %v5365 = vadd.f32 %v4967, %v5283
        %v5366 = vadd.f32 %v4968, %v5288
        %v5367 = vadd.f32 %v4969, %v5293
        %v5368 = vadd.f32 %v4970, %v5298
        %v5369 = vadd.f32 %v4971, %v5303
        %v5370 = vadd.f32 %v4972, %v5308
        %v5371 = vadd.f32 %v4973, %v5313
        %v5372 = vadd.f32 %v4974, %v5318
        %v5373 = vadd.f32 %v4975, %v5323
        %v5374 = vadd.f32 %v4976, %v5328
        %v5375 = vadd.f32 %v4977, %v5333
        %v5376 = vadd.f32 %v4978, %v5338
        %v5377 = vadd.f32 %v4979, %v5343
        %v5378 = vld [vmem:[%s4581 + $0x2] sm:$0xff]
        %v5379 = vld [vmem:[%s4581 + $0xa] sm:$0xff]
        %v5380 = vld [vmem:[%s4581 + $0x1a] sm:$0xff]
        %v5381 = vld [vmem:[%s4581 + $0x22] sm:$0xff]
        %v5382 = vld [vmem:[%s4581 + $0x32] sm:$0xff]
        %v5383 = vld [vmem:[%s4581 + $0x3a] sm:$0xff]
        %v5384 = vld [vmem:[%s4581 + $0x4a] sm:$0xff]
        %v5385 = vld [vmem:[%s4581 + $0x52] sm:$0xff]
        %v5386 = vld [vmem:[%s4581 + $0x62] sm:$0xff]
        %v5387 = vld [vmem:[%s4581 + $0x6a] sm:$0xff]
        %v5388 = vld [vmem:[%s4581 + $0x7a] sm:$0xff]
        %v5389 = vld [vmem:[%s4581 + $0x82] sm:$0xff]
        %v5390 = vld [vmem:[%s4581 + $0x92] sm:$0xff]
        %v5391 = vld [vmem:[%s4581 + $0x9a] sm:$0xff]
        %v5392 = vld [vmem:[%s4581 + $0xaa] sm:$0xff]
        %v5393 = vld [vmem:[%s4581 + $0xb2] sm:$0xff]
        %v5394 = vld [vmem:[%s4581 + $0xc2] sm:$0xff]
        %v5395 = vld [vmem:[%s4581 + $0xca] sm:$0xff]
        %v5396 = vld [vmem:[%s4581 + $0xda] sm:$0xff]
        %v5397 = vld [vmem:[%s4581 + $0xe2] sm:$0xff]
        %v5398 = vld [vmem:[%s4581 + $0xf2] sm:$0xff]
        %v5399 = vld [vmem:[%s4581 + $0xfa] sm:$0xff]
        %v5400 = vld [vmem:[%s4581 + $0x10a] sm:$0xff]
        %v5401 = vld [vmem:[%s4581 + $0x112] sm:$0xff]
        %v5402 = vld [vmem:[%s4581 + $0x122] sm:$0xff]
        %v5403 = vld [vmem:[%s4581 + $0x12a] sm:$0xff]
        %v5404 = vld [vmem:[%s4581 + $0x13a] sm:$0xff]
        %v5405 = vld [vmem:[%s4581 + $0x142] sm:$0xff]
        %v5406 = vld [vmem:[%s4581 + $0x152] sm:$0xff]
        %v5407 = vld [vmem:[%s4581 + $0x15a] sm:$0xff]
        %v5408 = vld [vmem:[%s4581 + $0x16a] sm:$0xff]
        %v5409 = vld [vmem:[%s4581 + $0x172] sm:$0xff]
        %s5410 = scalar_lea.vmem %s5, 768
        %v5411 = vld [vmem:[%s5410] sm:$0xff]
        %v5412 = vld [vmem:[%s5410 + $0x8] sm:$0xff]
        %v5413 = vld [vmem:[%s5410 + $0x10] sm:$0xff]
        %v5414 = vld [vmem:[%s5410 + $0x18] sm:$0xff]
        %v5415 = vld [vmem:[%s5410 + $0x20] sm:$0xff]
        %v5416 = vld [vmem:[%s5410 + $0x28] sm:$0xff]
        %v5417 = vld [vmem:[%s5410 + $0x30] sm:$0xff]
        %v5418 = vld [vmem:[%s5410 + $0x38] sm:$0xff]
        %v5419 = vld [vmem:[%s5410 + $0x40] sm:$0xff]
        %v5420 = vld [vmem:[%s5410 + $0x48] sm:$0xff]
        %v5421 = vld [vmem:[%s5410 + $0x50] sm:$0xff]
        %v5422 = vld [vmem:[%s5410 + $0x58] sm:$0xff]
        %v5424 = vsel %vm521, %v5378, 0
        %v5427 = vsel %vm521, %v5379, 0
        %v5430 = vsel %vm521, %v5380, 0
        %v5433 = vsel %vm521, %v5381, 0
        %v5436 = vsel %vm521, %v5382, 0
        %v5439 = vsel %vm521, %v5383, 0
        %v5442 = vsel %vm521, %v5384, 0
        %v5445 = vsel %vm521, %v5385, 0
        %v5448 = vsel %vm521, %v5386, 0
        %v5451 = vsel %vm521, %v5387, 0
        %v5454 = vsel %vm521, %v5388, 0
        %v5457 = vsel %vm521, %v5389, 0
        %v5460 = vsel %vm521, %v5390, 0
        %v5463 = vsel %vm521, %v5391, 0
        %v5466 = vsel %vm521, %v5392, 0
        %v5469 = vsel %vm521, %v5393, 0
        %v5472 = vsel %vm521, %v5394, 0
        %v5475 = vsel %vm521, %v5395, 0
        %v5478 = vsel %vm521, %v5396, 0
        %v5481 = vsel %vm521, %v5397, 0
        %v5484 = vsel %vm521, %v5398, 0
        %v5487 = vsel %vm521, %v5399, 0
        %v5490 = vsel %vm521, %v5400, 0
        %v5493 = vsel %vm521, %v5401, 0
        %v5496 = vsel %vm521, %v5402, 0
        %v5499 = vsel %vm521, %v5403, 0
        %v5502 = vsel %vm521, %v5404, 0
        %v5505 = vsel %vm521, %v5405, 0
        %v5508 = vsel %vm521, %v5406, 0
        %v5511 = vsel %vm521, %v5407, 0
        %v5514 = vsel %vm521, %v5408, 0
        %v5517 = vsel %vm521, %v5409, 0
        %5519 = vmatprep.subr.mxu0 0.0
        %5520 = vmatpush1.msra.mxu0 %v5411
        %5521 = vmatprep.subr.mxu0 0.0
        %5522 = vmatpush1.msra.mxu0 %v5412
        %5523 = vmatprep.subr.mxu0 0.0
        %5524 = vmatpush1.msra.mxu0 %v5413
        %5525 = vmatprep.subr.mxu0 0.0
        %5526 = vmatpush1.msra.mxu0 %v5414
        %5527 = vmatprep.subr.mxu0 0.0
        %5528 = vmatpush1.msra.mxu0 %v5415
        %5529 = vmatprep.subr.mxu0 0.0
        %5530 = vmatpush1.msra.mxu0 %v5416
        %5531 = vmatprep.subr.mxu0 0.0
        %5532 = vmatpush1.msra.mxu0 %v5417
        %5533 = vmatprep.subr.mxu0 0.0
        %5534 = vmatpush1.msra.mxu0 %v5418
        %5535 = vmatprep.subr.mxu0 0.0
        %5536 = vmatpush1.msra.mxu0 %v5419
        %5537 = vmatprep.subr.mxu0 0.0
        %5538 = vmatpush1.msra.mxu0 %v5420
        %5539 = vmatprep.subr.mxu0 0.0
        %5540 = vmatpush1.msra.mxu0 %v5421
        %5541 = vmatprep.subr.mxu0 0.0
        %5542 = vmatpush1.msra.mxu0 %v5422
        %5543 = vmatprep.subr.mxu0 0.0
        %5544 = vmatpush1.msra.mxu0 0.0
        %5545 = vmatprep.subr.mxu0 0.0
        %5546 = vmatpush1.msra.mxu0 0.0
        %5547 = vmatprep.subr.mxu0 0.0
        %5548 = vmatpush1.msra.mxu0 0.0
        %5549 = vmatprep.subr.mxu0 0.0
        %5550 = vmatpush1.msra.mxu0 0.0
        %5551 = vmatprep.subr.mxu0 0.0
        %5552 = vmatpush1.msra.mxu0 0.0
        %5553 = vmatprep.subr.mxu0 0.0
        %5554 = vmatpush1.msra.mxu0 0.0
        %5555 = vmatprep.subr.mxu0 0.0
        %5556 = vmatpush1.msra.mxu0 0.0
        %5557 = vmatprep.subr.mxu0 0.0
        %5558 = vmatpush1.msra.mxu0 0.0
        %5559 = vmatprep.subr.mxu0 0.0
        %5560 = vmatpush1.msra.mxu0 0.0
        %5561 = vmatprep.subr.mxu0 0.0
        %5562 = vmatpush1.msra.mxu0 0.0
        %5563 = vmatprep.subr.mxu0 0.0
        %5564 = vmatpush1.msra.mxu0 0.0
        %5565 = vmatprep.subr.mxu0 0.0
        %5566 = vmatpush1.msra.mxu0 0.0
        %5567 = vmatprep.subr.mxu0 0.0
        %5568 = vmatpush1.msra.mxu0 0.0
        %5569 = vmatprep.subr.mxu0 0.0
        %5570 = vmatpush1.msra.mxu0 0.0
        %5571 = vmatprep.subr.mxu0 0.0
        %5572 = vmatpush1.msra.mxu0 0.0
        %5573 = vmatprep.subr.mxu0 0.0
        %5574 = vmatpush1.msra.mxu0 0.0
        %5575 = vmatprep.subr.mxu0 0.0
        %5576 = vmatpush1.msra.mxu0 0.0
        %5577 = vmatprep.subr.mxu0 0.0
        %5578 = vmatpush1.msra.mxu0 0.0
        %5579 = vmatprep.subr.mxu0 0.0
        %5580 = vmatpush1.msra.mxu0 0.0
        %5581 = vmatprep.subr.mxu0 0.0
        %5582 = vmatpush1.msra.mxu0 0.0
        %5583 = vmatprep.mubr.f32.mxu0 0.0
        %5584 = vmatmul.mubr.f32.gmra.mrb[0].mxu0 %v5424
        %v5585 = vpop.f32.mrb[0].mxu0
        %v5586 = vadd.f32 0.0, %v5585
        %v5587 = vpop.f32.mrb[0].mxu0
        %5588 = vmatprep.mubr.f32.mxu0 0.0
        %5589 = vmatmul.mubr.f32.gmra.mrb[0].mxu0 %v5427
        %v5590 = vpop.f32.mrb[0].mxu0
        %v5591 = vadd.f32 0.0, %v5590
        %v5592 = vpop.f32.mrb[0].mxu0
        %5593 = vmatprep.mubr.f32.mxu0 0.0
        %5594 = vmatmul.mubr.f32.gmra.mrb[0].mxu0 %v5430
        %v5595 = vpop.f32.mrb[0].mxu0
        %v5596 = vadd.f32 0.0, %v5595
        %v5597 = vpop.f32.mrb[0].mxu0
        %5598 = vmatprep.mubr.f32.mxu0 0.0
        %5599 = vmatmul.mubr.f32.gmra.mrb[0].mxu0 %v5433
        %v5600 = vpop.f32.mrb[0].mxu0
        %v5601 = vadd.f32 0.0, %v5600
        %v5602 = vpop.f32.mrb[0].mxu0
        %5603 = vmatprep.mubr.f32.mxu0 0.0
        %5604 = vmatmul.mubr.f32.gmra.mrb[0].mxu0 %v5436
        %v5605 = vpop.f32.mrb[0].mxu0
        %v5606 = vadd.f32 0.0, %v5605
        %v5607 = vpop.f32.mrb[0].mxu0
        %5608 = vmatprep.mubr.f32.mxu0 0.0
        %5609 = vmatmul.mubr.f32.gmra.mrb[0].mxu0 %v5439
        %v5610 = vpop.f32.mrb[0].mxu0
        %v5611 = vadd.f32 0.0, %v5610
        %v5612 = vpop.f32.mrb[0].mxu0
        %5613 = vmatprep.mubr.f32.mxu0 0.0
        %5614 = vmatmul.mubr.f32.gmra.mrb[0].mxu0 %v5442
        %v5615 = vpop.f32.mrb[0].mxu0
        %v5616 = vadd.f32 0.0, %v5615
        %v5617 = vpop.f32.mrb[0].mxu0
        %5618 = vmatprep.mubr.f32.mxu0 0.0
        %5619 = vmatmul.mubr.f32.gmra.mrb[0].mxu0 %v5445
        %v5620 = vpop.f32.mrb[0].mxu0
        %v5621 = vadd.f32 0.0, %v5620
        %v5622 = vpop.f32.mrb[0].mxu0
        %5623 = vmatprep.mubr.f32.mxu0 0.0
        %5624 = vmatmul.mubr.f32.gmra.mrb[0].mxu0 %v5448
        %v5625 = vpop.f32.mrb[0].mxu0
        %v5626 = vadd.f32 0.0, %v5625
        %v5627 = vpop.f32.mrb[0].mxu0
        %5628 = vmatprep.mubr.f32.mxu0 0.0
        %5629 = vmatmul.mubr.f32.gmra.mrb[0].mxu0 %v5451
        %v5630 = vpop.f32.mrb[0].mxu0
        %v5631 = vadd.f32 0.0, %v5630
        %v5632 = vpop.f32.mrb[0].mxu0
        %5633 = vmatprep.mubr.f32.mxu0 0.0
        %5634 = vmatmul.mubr.f32.gmra.mrb[0].mxu0 %v5454
        %v5635 = vpop.f32.mrb[0].mxu0
        %v5636 = vadd.f32 0.0, %v5635
        %v5637 = vpop.f32.mrb[0].mxu0
        %5638 = vmatprep.mubr.f32.mxu0 0.0
        %5639 = vmatmul.mubr.f32.gmra.mrb[0].mxu0 %v5457
        %v5640 = vpop.f32.mrb[0].mxu0
        %v5641 = vadd.f32 0.0, %v5640
        %v5642 = vpop.f32.mrb[0].mxu0
        %5643 = vmatprep.mubr.f32.mxu0 0.0
        %5644 = vmatmul.mubr.f32.gmra.mrb[0].mxu0 %v5460
        %v5645 = vpop.f32.mrb[0].mxu0
        %v5646 = vadd.f32 0.0, %v5645
        %v5647 = vpop.f32.mrb[0].mxu0
        %5648 = vmatprep.mubr.f32.mxu0 0.0
        %5649 = vmatmul.mubr.f32.gmra.mrb[0].mxu0 %v5463
        %v5650 = vpop.f32.mrb[0].mxu0
        %v5651 = vadd.f32 0.0, %v5650
        %v5652 = vpop.f32.mrb[0].mxu0
        %5653 = vmatprep.mubr.f32.mxu0 0.0
        %5654 = vmatmul.mubr.f32.gmra.mrb[0].mxu0 %v5466
        %v5655 = vpop.f32.mrb[0].mxu0
        %v5656 = vadd.f32 0.0, %v5655
        %v5657 = vpop.f32.mrb[0].mxu0
        %5658 = vmatprep.mubr.f32.mxu0 0.0
        %5659 = vmatmul.mubr.f32.gmra.mrb[0].mxu0 %v5469
        %v5660 = vpop.f32.mrb[0].mxu0
        %v5661 = vadd.f32 0.0, %v5660
        %v5662 = vpop.f32.mrb[0].mxu0
        %5663 = vmatprep.mubr.f32.mxu0 0.0
        %5664 = vmatmul.mubr.f32.gmra.mrb[0].mxu0 %v5472
        %v5665 = vpop.f32.mrb[0].mxu0
        %v5666 = vadd.f32 0.0, %v5665
        %v5667 = vpop.f32.mrb[0].mxu0
        %5668 = vmatprep.mubr.f32.mxu0 0.0
        %5669 = vmatmul.mubr.f32.gmra.mrb[0].mxu0 %v5475
        %v5670 = vpop.f32.mrb[0].mxu0
        %v5671 = vadd.f32 0.0, %v5670
        %v5672 = vpop.f32.mrb[0].mxu0
        %5673 = vmatprep.mubr.f32.mxu0 0.0
        %5674 = vmatmul.mubr.f32.gmra.mrb[0].mxu0 %v5478
        %v5675 = vpop.f32.mrb[0].mxu0
        %v5676 = vadd.f32 0.0, %v5675
        %v5677 = vpop.f32.mrb[0].mxu0
        %5678 = vmatprep.mubr.f32.mxu0 0.0
        %5679 = vmatmul.mubr.f32.gmra.mrb[0].mxu0 %v5481
        %v5680 = vpop.f32.mrb[0].mxu0
        %v5681 = vadd.f32 0.0, %v5680
        %v5682 = vpop.f32.mrb[0].mxu0
        %5683 = vmatprep.mubr.f32.mxu0 0.0
        %5684 = vmatmul.mubr.f32.gmra.mrb[0].mxu0 %v5484
        %v5685 = vpop.f32.mrb[0].mxu0
        %v5686 = vadd.f32 0.0, %v5685
        %v5687 = vpop.f32.mrb[0].mxu0
        %5688 = vmatprep.mubr.f32.mxu0 0.0
        %5689 = vmatmul.mubr.f32.gmra.mrb[0].mxu0 %v5487
        %v5690 = vpop.f32.mrb[0].mxu0
        %v5691 = vadd.f32 0.0, %v5690
        %v5692 = vpop.f32.mrb[0].mxu0
        %5693 = vmatprep.mubr.f32.mxu0 0.0
        %5694 = vmatmul.mubr.f32.gmra.mrb[0].mxu0 %v5490
        %v5695 = vpop.f32.mrb[0].mxu0
        %v5696 = vadd.f32 0.0, %v5695
        %v5697 = vpop.f32.mrb[0].mxu0
        %5698 = vmatprep.mubr.f32.mxu0 0.0
        %5699 = vmatmul.mubr.f32.gmra.mrb[0].mxu0 %v5493
        %v5700 = vpop.f32.mrb[0].mxu0
        %v5701 = vadd.f32 0.0, %v5700
        %v5702 = vpop.f32.mrb[0].mxu0
        %5703 = vmatprep.mubr.f32.mxu0 0.0
        %5704 = vmatmul.mubr.f32.gmra.mrb[0].mxu0 %v5496
        %v5705 = vpop.f32.mrb[0].mxu0
        %v5706 = vadd.f32 0.0, %v5705
        %v5707 = vpop.f32.mrb[0].mxu0
        %5708 = vmatprep.mubr.f32.mxu0 0.0
        %5709 = vmatmul.mubr.f32.gmra.mrb[0].mxu0 %v5499
        %v5710 = vpop.f32.mrb[0].mxu0
        %v5711 = vadd.f32 0.0, %v5710
        %v5712 = vpop.f32.mrb[0].mxu0
        %5713 = vmatprep.mubr.f32.mxu0 0.0
        %5714 = vmatmul.mubr.f32.gmra.mrb[0].mxu0 %v5502
        %v5715 = vpop.f32.mrb[0].mxu0
        %v5716 = vadd.f32 0.0, %v5715
        %v5717 = vpop.f32.mrb[0].mxu0
        %5718 = vmatprep.mubr.f32.mxu0 0.0
        %5719 = vmatmul.mubr.f32.gmra.mrb[0].mxu0 %v5505
        %v5720 = vpop.f32.mrb[0].mxu0
        %v5721 = vadd.f32 0.0, %v5720
        %v5722 = vpop.f32.mrb[0].mxu0
        %5723 = vmatprep.mubr.f32.mxu0 0.0
        %5724 = vmatmul.mubr.f32.gmra.mrb[0].mxu0 %v5508
        %v5725 = vpop.f32.mrb[0].mxu0
        %v5726 = vadd.f32 0.0, %v5725
        %v5727 = vpop.f32.mrb[0].mxu0
        %5728 = vmatprep.mubr.f32.mxu0 0.0
        %5729 = vmatmul.mubr.f32.gmra.mrb[0].mxu0 %v5511
        %v5730 = vpop.f32.mrb[0].mxu0
        %v5731 = vadd.f32 0.0, %v5730
        %v5732 = vpop.f32.mrb[0].mxu0
        %5733 = vmatprep.mubr.f32.mxu0 0.0
        %5734 = vmatmul.mubr.f32.gmra.mrb[0].mxu0 %v5514
        %v5735 = vpop.f32.mrb[0].mxu0
        %v5736 = vadd.f32 0.0, %v5735
        %v5737 = vpop.f32.mrb[0].mxu0
        %5738 = vmatprep.mubr.f32.mxu0 0.0
        %5739 = vmatmul.mubr.f32.gmra.mrb[0].mxu0 %v5517
        %v5740 = vpop.f32.mrb[0].mxu0
        %v5741 = vadd.f32 0.0, %v5740
        %v5742 = vpop.f32.mrb[0].mxu0
        %5743 = vdwg.mxu0
        %v5744 = vadd.f32 %v5346, %v5586
        %v5745 = vadd.f32 %v5347, %v5591
        %v5746 = vadd.f32 %v5348, %v5596
        %v5747 = vadd.f32 %v5349, %v5601
        %v5748 = vadd.f32 %v5350, %v5606
        %v5749 = vadd.f32 %v5351, %v5611
        %v5750 = vadd.f32 %v5352, %v5616
        %v5751 = vadd.f32 %v5353, %v5621
        %v5752 = vadd.f32 %v5354, %v5626
        %v5753 = vadd.f32 %v5355, %v5631
        %v5754 = vadd.f32 %v5356, %v5636
        %v5755 = vadd.f32 %v5357, %v5641
        %v5756 = vadd.f32 %v5358, %v5646
        %v5757 = vadd.f32 %v5359, %v5651
        %v5758 = vadd.f32 %v5360, %v5656
        %v5759 = vadd.f32 %v5361, %v5661
        %v5760 = vadd.f32 %v5362, %v5666
        %v5761 = vadd.f32 %v5363, %v5671
        %v5762 = vadd.f32 %v5364, %v5676
        %v5763 = vadd.f32 %v5365, %v5681
        %v5764 = vadd.f32 %v5366, %v5686
        %v5765 = vadd.f32 %v5367, %v5691
        %v5766 = vadd.f32 %v5368, %v5696
        %v5767 = vadd.f32 %v5369, %v5701
        %v5768 = vadd.f32 %v5370, %v5706
        %v5769 = vadd.f32 %v5371, %v5711
        %v5770 = vadd.f32 %v5372, %v5716
        %v5771 = vadd.f32 %v5373, %v5721
        %v5772 = vadd.f32 %v5374, %v5726
        %v5773 = vadd.f32 %v5375, %v5731
        %v5774 = vadd.f32 %v5376, %v5736
        %v5775 = vadd.f32 %v5377, %v5741
        %v5776 = vld [vmem:[%s6] sm:$0x1]
        %v5778 = vlaneseq
        %v5779 = vshrl.u32 %v5778, 7
        %v5780 = vsub.s32 0, %v5779
        %v5781 = vrot.slane %v5776, %v5780
        %v5783 = vmul.f32 %v5744, %v5781
        %v5784 = vmul.f32 %v5745, %v5781
        %v5785 = vmul.f32 %v5746, %v5781
        %v5786 = vmul.f32 %v5747, %v5781
        %v5787 = vmul.f32 %v5748, %v5781
        %v5788 = vmul.f32 %v5749, %v5781
        %v5789 = vmul.f32 %v5750, %v5781
        %v5790 = vmul.f32 %v5751, %v5781
        %v5791 = vmul.f32 %v5752, %v5781
        %v5792 = vmul.f32 %v5753, %v5781
        %v5793 = vmul.f32 %v5754, %v5781
        %v5794 = vmul.f32 %v5755, %v5781
        %v5795 = vmul.f32 %v5756, %v5781
        %v5796 = vmul.f32 %v5757, %v5781
        %v5797 = vmul.f32 %v5758, %v5781
        %v5798 = vmul.f32 %v5759, %v5781
        %v5799 = vmul.f32 %v5760, %v5781
        %v5800 = vmul.f32 %v5761, %v5781
        %v5801 = vmul.f32 %v5762, %v5781
        %v5802 = vmul.f32 %v5763, %v5781
        %v5803 = vmul.f32 %v5764, %v5781
        %v5804 = vmul.f32 %v5765, %v5781
        %v5805 = vmul.f32 %v5766, %v5781
        %v5806 = vmul.f32 %v5767, %v5781
        %v5807 = vmul.f32 %v5768, %v5781
        %v5808 = vmul.f32 %v5769, %v5781
        %v5809 = vmul.f32 %v5770, %v5781
        %v5810 = vmul.f32 %v5771, %v5781
        %v5811 = vmul.f32 %v5772, %v5781
        %v5812 = vmul.f32 %v5773, %v5781
        %v5813 = vmul.f32 %v5774, %v5781
        %v5814 = vmul.f32 %v5775, %v5781
        %v5815 = vld [vmem:[%s7] sm:$0x1]
        %v5817 = vlaneseq
        %v5818 = vshrl.u32 %v5817, 7
        %v5819 = vsub.s32 0, %v5818
        %v5820 = vrot.slane %v5815, %v5819
        %v5822 = vadd.f32 %v5783, %v5820
        %v5823 = vadd.f32 %v5784, %v5820
        %v5824 = vadd.f32 %v5785, %v5820
        %v5825 = vadd.f32 %v5786, %v5820
        %v5826 = vadd.f32 %v5787, %v5820
        %v5827 = vadd.f32 %v5788, %v5820
        %v5828 = vadd.f32 %v5789, %v5820
        %v5829 = vadd.f32 %v5790, %v5820
        %v5830 = vadd.f32 %v5791, %v5820
        %v5831 = vadd.f32 %v5792, %v5820
        %v5832 = vadd.f32 %v5793, %v5820
        %v5833 = vadd.f32 %v5794, %v5820
        %v5834 = vadd.f32 %v5795, %v5820
        %v5835 = vadd.f32 %v5796, %v5820
        %v5836 = vadd.f32 %v5797, %v5820
        %v5837 = vadd.f32 %v5798, %v5820
        %v5838 = vadd.f32 %v5799, %v5820
        %v5839 = vadd.f32 %v5800, %v5820
        %v5840 = vadd.f32 %v5801, %v5820
        %v5841 = vadd.f32 %v5802, %v5820
        %v5842 = vadd.f32 %v5803, %v5820
        %v5843 = vadd.f32 %v5804, %v5820
        %v5844 = vadd.f32 %v5805, %v5820
        %v5845 = vadd.f32 %v5806, %v5820
        %v5846 = vadd.f32 %v5807, %v5820
        %v5847 = vadd.f32 %v5808, %v5820
        %v5848 = vadd.f32 %v5809, %v5820
        %v5849 = vadd.f32 %v5810, %v5820
        %v5850 = vadd.f32 %v5811, %v5820
        %v5851 = vadd.f32 %v5812, %v5820
        %v5852 = vadd.f32 %v5813, %v5820
        %v5853 = vadd.f32 %v5814, %v5820
        %v5854 = vmax.f32 %v5822, 0.0
        %v5855 = vmax.f32 %v5823, 0.0
        %v5856 = vmax.f32 %v5824, 0.0
        %v5857 = vmax.f32 %v5825, 0.0
        %v5858 = vmax.f32 %v5826, 0.0
        %v5859 = vmax.f32 %v5827, 0.0
        %v5860 = vmax.f32 %v5828, 0.0
        %v5861 = vmax.f32 %v5829, 0.0
        %v5862 = vmax.f32 %v5830, 0.0
        %v5863 = vmax.f32 %v5831, 0.0
        %v5864 = vmax.f32 %v5832, 0.0
        %v5865 = vmax.f32 %v5833, 0.0
        %v5866 = vmax.f32 %v5834, 0.0
        %v5867 = vmax.f32 %v5835, 0.0
        %v5868 = vmax.f32 %v5836, 0.0
        %v5869 = vmax.f32 %v5837, 0.0
        %v5870 = vmax.f32 %v5838, 0.0
        %v5871 = vmax.f32 %v5839, 0.0
        %v5872 = vmax.f32 %v5840, 0.0
        %v5873 = vmax.f32 %v5841, 0.0
        %v5874 = vmax.f32 %v5842, 0.0
        %v5875 = vmax.f32 %v5843, 0.0
        %v5876 = vmax.f32 %v5844, 0.0
        %v5877 = vmax.f32 %v5845, 0.0
        %v5878 = vmax.f32 %v5846, 0.0
        %v5879 = vmax.f32 %v5847, 0.0
        %v5880 = vmax.f32 %v5848, 0.0
        %v5881 = vmax.f32 %v5849, 0.0
        %v5882 = vmax.f32 %v5850, 0.0
        %v5883 = vmax.f32 %v5851, 0.0
        %v5884 = vmax.f32 %v5852, 0.0
        %v5885 = vmax.f32 %v5853, 0.0
        %s5886 = scalar_lea.vmem [#allocation3], 24
        %5887 = vst.msk [vmem:[%s5886 + $0x1] sm:$0xff] %vm521, %v5854
        %5888 = vst.msk [vmem:[%s5886 + $0x9] sm:$0xff] %vm521, %v5855
        %5889 = vst.msk [vmem:[%s5886 + $0x19] sm:$0xff] %vm521, %v5856
        %5890 = vst.msk [vmem:[%s5886 + $0x21] sm:$0xff] %vm521, %v5857
        %5891 = vst.msk [vmem:[%s5886 + $0x31] sm:$0xff] %vm521, %v5858
        %5892 = vst.msk [vmem:[%s5886 + $0x39] sm:$0xff] %vm521, %v5859
        %5893 = vst.msk [vmem:[%s5886 + $0x49] sm:$0xff] %vm521, %v5860
        %5894 = vst.msk [vmem:[%s5886 + $0x51] sm:$0xff] %vm521, %v5861
        %5895 = vst.msk [vmem:[%s5886 + $0x61] sm:$0xff] %vm521, %v5862
        %5896 = vst.msk [vmem:[%s5886 + $0x69] sm:$0xff] %vm521, %v5863
        %5897 = vst.msk [vmem:[%s5886 + $0x79] sm:$0xff] %vm521, %v5864
        %5898 = vst.msk [vmem:[%s5886 + $0x81] sm:$0xff] %vm521, %v5865
        %5899 = vst.msk [vmem:[%s5886 + $0x91] sm:$0xff] %vm521, %v5866
        %5900 = vst.msk [vmem:[%s5886 + $0x99] sm:$0xff] %vm521, %v5867
        %5901 = vst.msk [vmem:[%s5886 + $0xa9] sm:$0xff] %vm521, %v5868
        %5902 = vst.msk [vmem:[%s5886 + $0xb1] sm:$0xff] %vm521, %v5869
        %5903 = vst.msk [vmem:[%s5886 + $0xc1] sm:$0xff] %vm521, %v5870
        %5904 = vst.msk [vmem:[%s5886 + $0xc9] sm:$0xff] %vm521, %v5871
        %5905 = vst.msk [vmem:[%s5886 + $0xd9] sm:$0xff] %vm521, %v5872
        %5906 = vst.msk [vmem:[%s5886 + $0xe1] sm:$0xff] %vm521, %v5873
        %5907 = vst.msk [vmem:[%s5886 + $0xf1] sm:$0xff] %vm521, %v5874
        %5908 = vst.msk [vmem:[%s5886 + $0xf9] sm:$0xff] %vm521, %v5875
        %5909 = vst.msk [vmem:[%s5886 + $0x109] sm:$0xff] %vm521, %v5876
        %5910 = vst.msk [vmem:[%s5886 + $0x111] sm:$0xff] %vm521, %v5877
        %5911 = vst.msk [vmem:[%s5886 + $0x121] sm:$0xff] %vm521, %v5878
        %5912 = vst.msk [vmem:[%s5886 + $0x129] sm:$0xff] %vm521, %v5879
        %5913 = vst.msk [vmem:[%s5886 + $0x139] sm:$0xff] %vm521, %v5880
        %5914 = vst.msk [vmem:[%s5886 + $0x141] sm:$0xff] %vm521, %v5881
        %5915 = vst.msk [vmem:[%s5886 + $0x151] sm:$0xff] %vm521, %v5882
        %5916 = vst.msk [vmem:[%s5886 + $0x159] sm:$0xff] %vm521, %v5883
        %5917 = vst.msk [vmem:[%s5886 + $0x169] sm:$0xff] %vm521, %v5884
        %5918 = vst.msk [vmem:[%s5886 + $0x171] sm:$0xff] %vm521, %v5885
        %v5919 = vld [vmem:[#allocation3] sm:$0xff]
        %v5920 = vld [vmem:[#allocation3 + $0x8] sm:$0xff]
        %v5921 = vld [vmem:[#allocation3 + $0x18] sm:$0xff]
        %v5922 = vld [vmem:[#allocation3 + $0x20] sm:$0xff]
        %v5923 = vld [vmem:[#allocation3 + $0x30] sm:$0xff]
        %v5924 = vld [vmem:[#allocation3 + $0x38] sm:$0xff]
        %v5925 = vld [vmem:[#allocation3 + $0x48] sm:$0xff]
        %v5926 = vld [vmem:[#allocation3 + $0x50] sm:$0xff]
        %v5927 = vld [vmem:[#allocation3 + $0x60] sm:$0xff]
        %v5928 = vld [vmem:[#allocation3 + $0x68] sm:$0xff]
        %v5929 = vld [vmem:[#allocation3 + $0x78] sm:$0xff]
        %v5930 = vld [vmem:[#allocation3 + $0x80] sm:$0xff]
        %v5931 = vld [vmem:[#allocation3 + $0x90] sm:$0xff]
        %v5932 = vld [vmem:[#allocation3 + $0x98] sm:$0xff]
        %v5933 = vld [vmem:[#allocation3 + $0xa8] sm:$0xff]
        %v5934 = vld [vmem:[#allocation3 + $0xb0] sm:$0xff]
        %v5935 = vld [vmem:[#allocation3 + $0xc0] sm:$0xff]
        %v5936 = vld [vmem:[#allocation3 + $0xc8] sm:$0xff]
        %v5937 = vld [vmem:[#allocation3 + $0xd8] sm:$0xff]
        %v5938 = vld [vmem:[#allocation3 + $0xe0] sm:$0xff]
        %v5939 = vld [vmem:[#allocation3 + $0xf0] sm:$0xff]
        %v5940 = vld [vmem:[#allocation3 + $0xf8] sm:$0xff]
        %v5941 = vld [vmem:[#allocation3 + $0x108] sm:$0xff]
        %v5942 = vld [vmem:[#allocation3 + $0x110] sm:$0xff]
        %v5943 = vld [vmem:[#allocation3 + $0x120] sm:$0xff]
        %v5944 = vld [vmem:[#allocation3 + $0x128] sm:$0xff]
        %v5945 = vld [vmem:[#allocation3 + $0x138] sm:$0xff]
        %v5946 = vld [vmem:[#allocation3 + $0x140] sm:$0xff]
        %v5947 = vld [vmem:[#allocation3 + $0x150] sm:$0xff]
        %v5948 = vld [vmem:[#allocation3 + $0x158] sm:$0xff]
        %v5949 = vld [vmem:[#allocation3 + $0x168] sm:$0xff]
        %v5950 = vld [vmem:[#allocation3 + $0x170] sm:$0xff]
        %v5951 = vld [vmem:[%s8] sm:$0xff]
        %v5952 = vld [vmem:[%s8 + $0x8] sm:$0xff]
        %v5953 = vld [vmem:[%s8 + $0x10] sm:$0xff]
        %v5954 = vld [vmem:[%s8 + $0x18] sm:$0xff]
        %v5955 = vld [vmem:[%s8 + $0x20] sm:$0xff]
        %v5956 = vld [vmem:[%s8 + $0x28] sm:$0xff]
        %v5957 = vld [vmem:[%s8 + $0x30] sm:$0xff]
        %v5958 = vld [vmem:[%s8 + $0x38] sm:$0xff]
        %v5959 = vld [vmem:[%s8 + $0x40] sm:$0xff]
        %v5960 = vld [vmem:[%s8 + $0x48] sm:$0xff]
        %v5961 = vld [vmem:[%s8 + $0x50] sm:$0xff]
        %v5962 = vld [vmem:[%s8 + $0x58] sm:$0xff]
        %v5963 = vld [vmem:[#allocation3 + $0x1] sm:$0xff]
        %v5964 = vld [vmem:[#allocation3 + $0x9] sm:$0xff]
        %v5965 = vld [vmem:[#allocation3 + $0x19] sm:$0xff]
        %v5966 = vld [vmem:[#allocation3 + $0x21] sm:$0xff]
        %v5967 = vld [vmem:[#allocation3 + $0x31] sm:$0xff]
        %v5968 = vld [vmem:[#allocation3 + $0x39] sm:$0xff]
        %v5969 = vld [vmem:[#allocation3 + $0x49] sm:$0xff]
        %v5970 = vld [vmem:[#allocation3 + $0x51] sm:$0xff]
        %v5971 = vld [vmem:[#allocation3 + $0x61] sm:$0xff]
        %v5972 = vld [vmem:[#allocation3 + $0x69] sm:$0xff]
        %v5973 = vld [vmem:[#allocation3 + $0x79] sm:$0xff]
        %v5974 = vld [vmem:[#allocation3 + $0x81] sm:$0xff]
        %v5975 = vld [vmem:[#allocation3 + $0x91] sm:$0xff]
        %v5976 = vld [vmem:[#allocation3 + $0x99] sm:$0xff]
        %v5977 = vld [vmem:[#allocation3 + $0xa9] sm:$0xff]
        %v5978 = vld [vmem:[#allocation3 + $0xb1] sm:$0xff]
        %v5979 = vld [vmem:[#allocation3 + $0xc1] sm:$0xff]
        %v5980 = vld [vmem:[#allocation3 + $0xc9] sm:$0xff]
        %v5981 = vld [vmem:[#allocation3 + $0xd9] sm:$0xff]
        %v5982 = vld [vmem:[#allocation3 + $0xe1] sm:$0xff]
        %v5983 = vld [vmem:[#allocation3 + $0xf1] sm:$0xff]
        %v5984 = vld [vmem:[#allocation3 + $0xf9] sm:$0xff]
        %v5985 = vld [vmem:[#allocation3 + $0x109] sm:$0xff]
        %v5986 = vld [vmem:[#allocation3 + $0x111] sm:$0xff]
        %v5987 = vld [vmem:[#allocation3 + $0x121] sm:$0xff]
        %v5988 = vld [vmem:[#allocation3 + $0x129] sm:$0xff]
        %v5989 = vld [vmem:[#allocation3 + $0x139] sm:$0xff]
        %v5990 = vld [vmem:[#allocation3 + $0x141] sm:$0xff]
        %v5991 = vld [vmem:[#allocation3 + $0x151] sm:$0xff]
        %v5992 = vld [vmem:[#allocation3 + $0x159] sm:$0xff]
        %v5993 = vld [vmem:[#allocation3 + $0x169] sm:$0xff]
        %v5994 = vld [vmem:[#allocation3 + $0x171] sm:$0xff]
        %s5995 = scalar_lea.vmem %s8, 96
        %v5996 = vld [vmem:[%s5995] sm:$0xff]
        %v5997 = vld [vmem:[%s5995 + $0x8] sm:$0xff]
        %v5998 = vld [vmem:[%s5995 + $0x10] sm:$0xff]
        %v5999 = vld [vmem:[%s5995 + $0x18] sm:$0xff]
        %v6000 = vld [vmem:[%s5995 + $0x20] sm:$0xff]
        %v6001 = vld [vmem:[%s5995 + $0x28] sm:$0xff]
        %v6002 = vld [vmem:[%s5995 + $0x30] sm:$0xff]
        %v6003 = vld [vmem:[%s5995 + $0x38] sm:$0xff]
        %v6004 = vld [vmem:[%s5995 + $0x40] sm:$0xff]
        %v6005 = vld [vmem:[%s5995 + $0x48] sm:$0xff]
        %v6006 = vld [vmem:[%s5995 + $0x50] sm:$0xff]
        %v6007 = vld [vmem:[%s5995 + $0x58] sm:$0xff]
        %v6009 = vsel %vm521, %v5963, 0
        %v6012 = vsel %vm521, %v5964, 0
        %v6015 = vsel %vm521, %v5965, 0
        %v6018 = vsel %vm521, %v5966, 0
        %v6021 = vsel %vm521, %v5967, 0
        %v6024 = vsel %vm521, %v5968, 0
        %v6027 = vsel %vm521, %v5969, 0
        %v6030 = vsel %vm521, %v5970, 0
        %v6033 = vsel %vm521, %v5971, 0
        %v6036 = vsel %vm521, %v5972, 0
        %v6039 = vsel %vm521, %v5973, 0
        %v6042 = vsel %vm521, %v5974, 0
        %v6045 = vsel %vm521, %v5975, 0
        %v6048 = vsel %vm521, %v5976, 0
        %v6051 = vsel %vm521, %v5977, 0
        %v6054 = vsel %vm521, %v5978, 0
        %v6057 = vsel %vm521, %v5979, 0
        %v6060 = vsel %vm521, %v5980, 0
        %v6063 = vsel %vm521, %v5981, 0
        %v6066 = vsel %vm521, %v5982, 0
        %v6069 = vsel %vm521, %v5983, 0
        %v6072 = vsel %vm521, %v5984, 0
        %v6075 = vsel %vm521, %v5985, 0
        %v6078 = vsel %vm521, %v5986, 0
        %v6081 = vsel %vm521, %v5987, 0
        %v6084 = vsel %vm521, %v5988, 0
        %v6087 = vsel %vm521, %v5989, 0
        %v6090 = vsel %vm521, %v5990, 0
        %v6093 = vsel %vm521, %v5991, 0
        %v6096 = vsel %vm521, %v5992, 0
        %v6099 = vsel %vm521, %v5993, 0
        %v6102 = vsel %vm521, %v5994, 0
        %6104 = vmatprep.subr.mxu0 0.0
        %6105 = vmatpush1.msra.mxu0 %v5996
        %6106 = vmatprep.subr.mxu0 0.0
        %6107 = vmatpush1.msra.mxu0 %v5997
        %6108 = vmatprep.subr.mxu0 0.0
        %6109 = vmatpush1.msra.mxu0 %v5998
        %6110 = vmatprep.subr.mxu0 0.0
        %6111 = vmatpush1.msra.mxu0 %v5999
        %6112 = vmatprep.subr.mxu0 0.0
        %6113 = vmatpush1.msra.mxu0 %v6000
        %6114 = vmatprep.subr.mxu0 0.0
        %6115 = vmatpush1.msra.mxu0 %v6001
        %6116 = vmatprep.subr.mxu0 0.0
        %6117 = vmatpush1.msra.mxu0 %v6002
        %6118 = vmatprep.subr.mxu0 0.0
        %6119 = vmatpush1.msra.mxu0 %v6003
        %6120 = vmatprep.subr.mxu0 0.0
        %6121 = vmatpush1.msra.mxu0 %v6004
        %6122 = vmatprep.subr.mxu0 0.0
        %6123 = vmatpush1.msra.mxu0 %v6005
        %6124 = vmatprep.subr.mxu0 0.0
        %6125 = vmatpush1.msra.mxu0 %v6006
        %6126 = vmatprep.subr.mxu0 0.0
        %6127 = vmatpush1.msra.mxu0 %v6007
        %6128 = vmatprep.subr.mxu0 0.0
        %6129 = vmatpush1.msra.mxu0 0.0
        %6130 = vmatprep.subr.mxu0 0.0
        %6131 = vmatpush1.msra.mxu0 0.0
        %6132 = vmatprep.subr.mxu0 0.0
        %6133 = vmatpush1.msra.mxu0 0.0
        %6134 = vmatprep.subr.mxu0 0.0
        %6135 = vmatpush1.msra.mxu0 0.0
        %6136 = vmatprep.subr.mxu0 0.0
        %6137 = vmatpush1.msra.mxu0 0.0
        %6138 = vmatprep.subr.mxu0 0.0
        %6139 = vmatpush1.msra.mxu0 0.0
        %6140 = vmatprep.subr.mxu0 0.0
        %6141 = vmatpush1.msra.mxu0 0.0
        %6142 = vmatprep.subr.mxu0 0.0
        %6143 = vmatpush1.msra.mxu0 0.0
        %6144 = vmatprep.subr.mxu0 0.0
        %6145 = vmatpush1.msra.mxu0 0.0
        %6146 = vmatprep.subr.mxu0 0.0
        %6147 = vmatpush1.msra.mxu0 0.0
        %6148 = vmatprep.subr.mxu0 0.0
        %6149 = vmatpush1.msra.mxu0 0.0
        %6150 = vmatprep.subr.mxu0 0.0
        %6151 = vmatpush1.msra.mxu0 0.0
        %6152 = vmatprep.subr.mxu0 0.0
        %6153 = vmatpush1.msra.mxu0 0.0
        %6154 = vmatprep.subr.mxu0 0.0
        %6155 = vmatpush1.msra.mxu0 0.0
        %6156 = vmatprep.subr.mxu0 0.0
        %6157 = vmatpush1.msra.mxu0 0.0
        %6158 = vmatprep.subr.mxu0 0.0
        %6159 = vmatpush1.msra.mxu0 0.0
        %6160 = vmatprep.subr.mxu0 0.0
        %6161 = vmatpush1.msra.mxu0 0.0
        %6162 = vmatprep.subr.mxu0 0.0
        %6163 = vmatpush1.msra.mxu0 0.0
        %6164 = vmatprep.subr.mxu0 0.0
        %6165 = vmatpush1.msra.mxu0 0.0
        %6166 = vmatprep.subr.mxu0 0.0
        %6167 = vmatpush1.msra.mxu0 0.0
        %6168 = vmatprep.mubr.f32.mxu0 0.0
        %6169 = vmatmul.mubr.f32.gmra.mrb[0].mxu0 %v6009
        %v6170 = vpop.f32.mrb[0].mxu0
        %v6171 = vadd.f32 0.0, %v6170
        %v6172 = vpop.f32.mrb[0].mxu0
        %6173 = vmatprep.mubr.f32.mxu0 0.0
        %6174 = vmatmul.mubr.f32.gmra.mrb[0].mxu0 %v6012
        %v6175 = vpop.f32.mrb[0].mxu0
        %v6176 = vadd.f32 0.0, %v6175
        %v6177 = vpop.f32.mrb[0].mxu0
        %6178 = vmatprep.mubr.f32.mxu0 0.0
        %6179 = vmatmul.mubr.f32.gmra.mrb[0].mxu0 %v6015
        %v6180 = vpop.f32.mrb[0].mxu0
        %v6181 = vadd.f32 0.0, %v6180
        %v6182 = vpop.f32.mrb[0].mxu0
        %6183 = vmatprep.mubr.f32.mxu0 0.0
        %6184 = vmatmul.mubr.f32.gmra.mrb[0].mxu0 %v6018
        %v6185 = vpop.f32.mrb[0].mxu0
        %v6186 = vadd.f32 0.0, %v6185
        %v6187 = vpop.f32.mrb[0].mxu0
        %6188 = vmatprep.mubr.f32.mxu0 0.0
        %6189 = vmatmul.mubr.f32.gmra.mrb[0].mxu0 %v6021
        %v6190 = vpop.f32.mrb[0].mxu0
        %v6191 = vadd.f32 0.0, %v6190
        %v6192 = vpop.f32.mrb[0].mxu0
        %6193 = vmatprep.mubr.f32.mxu0 0.0
        %6194 = vmatmul.mubr.f32.gmra.mrb[0].mxu0 %v6024
        %v6195 = vpop.f32.mrb[0].mxu0
        %v6196 = vadd.f32 0.0, %v6195
        %v6197 = vpop.f32.mrb[0].mxu0
        %6198 = vmatprep.mubr.f32.mxu0 0.0
        %6199 = vmatmul.mubr.f32.gmra.mrb[0].mxu0 %v6027
        %v6200 = vpop.f32.mrb[0].mxu0
        %v6201 = vadd.f32 0.0, %v6200
        %v6202 = vpop.f32.mrb[0].mxu0
        %6203 = vmatprep.mubr.f32.mxu0 0.0
        %6204 = vmatmul.mubr.f32.gmra.mrb[0].mxu0 %v6030
        %v6205 = vpop.f32.mrb[0].mxu0
        %v6206 = vadd.f32 0.0, %v6205
        %v6207 = vpop.f32.mrb[0].mxu0
        %6208 = vmatprep.mubr.f32.mxu0 0.0
        %6209 = vmatmul.mubr.f32.gmra.mrb[0].mxu0 %v6033
        %v6210 = vpop.f32.mrb[0].mxu0
        %v6211 = vadd.f32 0.0, %v6210
        %v6212 = vpop.f32.mrb[0].mxu0
        %6213 = vmatprep.mubr.f32.mxu0 0.0
        %6214 = vmatmul.mubr.f32.gmra.mrb[0].mxu0 %v6036
        %v6215 = vpop.f32.mrb[0].mxu0
        %v6216 = vadd.f32 0.0, %v6215
        %v6217 = vpop.f32.mrb[0].mxu0
        %6218 = vmatprep.mubr.f32.mxu0 0.0
        %6219 = vmatmul.mubr.f32.gmra.mrb[0].mxu0 %v6039
        %v6220 = vpop.f32.mrb[0].mxu0
        %v6221 = vadd.f32 0.0, %v6220
        %v6222 = vpop.f32.mrb[0].mxu0
        %6223 = vmatprep.mubr.f32.mxu0 0.0
        %6224 = vmatmul.mubr.f32.gmra.mrb[0].mxu0 %v6042
        %v6225 = vpop.f32.mrb[0].mxu0
        %v6226 = vadd.f32 0.0, %v6225
        %v6227 = vpop.f32.mrb[0].mxu0
        %6228 = vmatprep.mubr.f32.mxu0 0.0
        %6229 = vmatmul.mubr.f32.gmra.mrb[0].mxu0 %v6045
        %v6230 = vpop.f32.mrb[0].mxu0
        %v6231 = vadd.f32 0.0, %v6230
        %v6232 = vpop.f32.mrb[0].mxu0
        %6233 = vmatprep.mubr.f32.mxu0 0.0
        %6234 = vmatmul.mubr.f32.gmra.mrb[0].mxu0 %v6048
        %v6235 = vpop.f32.mrb[0].mxu0
        %v6236 = vadd.f32 0.0, %v6235
        %v6237 = vpop.f32.mrb[0].mxu0
        %6238 = vmatprep.mubr.f32.mxu0 0.0
        %6239 = vmatmul.mubr.f32.gmra.mrb[0].mxu0 %v6051
        %v6240 = vpop.f32.mrb[0].mxu0
        %v6241 = vadd.f32 0.0, %v6240
        %v6242 = vpop.f32.mrb[0].mxu0
        %6243 = vmatprep.mubr.f32.mxu0 0.0
        %6244 = vmatmul.mubr.f32.gmra.mrb[0].mxu0 %v6054
        %v6245 = vpop.f32.mrb[0].mxu0
        %v6246 = vadd.f32 0.0, %v6245
        %v6247 = vpop.f32.mrb[0].mxu0
        %6248 = vmatprep.mubr.f32.mxu0 0.0
        %6249 = vmatmul.mubr.f32.gmra.mrb[0].mxu0 %v6057
        %v6250 = vpop.f32.mrb[0].mxu0
        %v6251 = vadd.f32 0.0, %v6250
        %v6252 = vpop.f32.mrb[0].mxu0
        %6253 = vmatprep.mubr.f32.mxu0 0.0
        %6254 = vmatmul.mubr.f32.gmra.mrb[0].mxu0 %v6060
        %v6255 = vpop.f32.mrb[0].mxu0
        %v6256 = vadd.f32 0.0, %v6255
        %v6257 = vpop.f32.mrb[0].mxu0
        %6258 = vmatprep.mubr.f32.mxu0 0.0
        %6259 = vmatmul.mubr.f32.gmra.mrb[0].mxu0 %v6063
        %v6260 = vpop.f32.mrb[0].mxu0
        %v6261 = vadd.f32 0.0, %v6260
        %v6262 = vpop.f32.mrb[0].mxu0
        %6263 = vmatprep.mubr.f32.mxu0 0.0
        %6264 = vmatmul.mubr.f32.gmra.mrb[0].mxu0 %v6066
        %v6265 = vpop.f32.mrb[0].mxu0
        %v6266 = vadd.f32 0.0, %v6265
        %v6267 = vpop.f32.mrb[0].mxu0
        %6268 = vmatprep.mubr.f32.mxu0 0.0
        %6269 = vmatmul.mubr.f32.gmra.mrb[0].mxu0 %v6069
        %v6270 = vpop.f32.mrb[0].mxu0
        %v6271 = vadd.f32 0.0, %v6270
        %v6272 = vpop.f32.mrb[0].mxu0
        %6273 = vmatprep.mubr.f32.mxu0 0.0
        %6274 = vmatmul.mubr.f32.gmra.mrb[0].mxu0 %v6072
        %v6275 = vpop.f32.mrb[0].mxu0
        %v6276 = vadd.f32 0.0, %v6275
        %v6277 = vpop.f32.mrb[0].mxu0
        %6278 = vmatprep.mubr.f32.mxu0 0.0
        %6279 = vmatmul.mubr.f32.gmra.mrb[0].mxu0 %v6075
        %v6280 = vpop.f32.mrb[0].mxu0
        %v6281 = vadd.f32 0.0, %v6280
        %v6282 = vpop.f32.mrb[0].mxu0
        %6283 = vmatprep.mubr.f32.mxu0 0.0
        %6284 = vmatmul.mubr.f32.gmra.mrb[0].mxu0 %v6078
        %v6285 = vpop.f32.mrb[0].mxu0
        %v6286 = vadd.f32 0.0, %v6285
        %v6287 = vpop.f32.mrb[0].mxu0
        %6288 = vmatprep.mubr.f32.mxu0 0.0
        %6289 = vmatmul.mubr.f32.gmra.mrb[0].mxu0 %v6081
        %v6290 = vpop.f32.mrb[0].mxu0
        %v6291 = vadd.f32 0.0, %v6290
        %v6292 = vpop.f32.mrb[0].mxu0
        %6293 = vmatprep.mubr.f32.mxu0 0.0
        %6294 = vmatmul.mubr.f32.gmra.mrb[0].mxu0 %v6084
        %v6295 = vpop.f32.mrb[0].mxu0
        %v6296 = vadd.f32 0.0, %v6295
        %v6297 = vpop.f32.mrb[0].mxu0
        %6298 = vmatprep.mubr.f32.mxu0 0.0
        %6299 = vmatmul.mubr.f32.gmra.mrb[0].mxu0 %v6087
        %v6300 = vpop.f32.mrb[0].mxu0
        %v6301 = vadd.f32 0.0, %v6300
        %v6302 = vpop.f32.mrb[0].mxu0
        %6303 = vmatprep.mubr.f32.mxu0 0.0
        %6304 = vmatmul.mubr.f32.gmra.mrb[0].mxu0 %v6090
        %v6305 = vpop.f32.mrb[0].mxu0
        %v6306 = vadd.f32 0.0, %v6305
        %v6307 = vpop.f32.mrb[0].mxu0
        %6308 = vmatprep.mubr.f32.mxu0 0.0
        %6309 = vmatmul.mubr.f32.gmra.mrb[0].mxu0 %v6093
        %v6310 = vpop.f32.mrb[0].mxu0
        %v6311 = vadd.f32 0.0, %v6310
        %v6312 = vpop.f32.mrb[0].mxu0
        %6313 = vmatprep.mubr.f32.mxu0 0.0
        %6314 = vmatmul.mubr.f32.gmra.mrb[0].mxu0 %v6096
        %v6315 = vpop.f32.mrb[0].mxu0
        %v6316 = vadd.f32 0.0, %v6315
        %v6317 = vpop.f32.mrb[0].mxu0
        %6318 = vmatprep.mubr.f32.mxu0 0.0
        %6319 = vmatmul.mubr.f32.gmra.mrb[0].mxu0 %v6099
        %v6320 = vpop.f32.mrb[0].mxu0
        %v6321 = vadd.f32 0.0, %v6320
        %v6322 = vpop.f32.mrb[0].mxu0
        %6323 = vmatprep.mubr.f32.mxu0 0.0
        %6324 = vmatmul.mubr.f32.gmra.mrb[0].mxu0 %v6102
        %v6325 = vpop.f32.mrb[0].mxu0
        %v6326 = vadd.f32 0.0, %v6325
        %v6327 = vpop.f32.mrb[0].mxu0
        %6328 = vdwg.mxu0
        %v6330 = vsel %vm521, %v5919, 0
        %v6333 = vsel %vm521, %v5920, 0
        %v6336 = vsel %vm521, %v5921, 0
        %v6339 = vsel %vm521, %v5922, 0
        %v6342 = vsel %vm521, %v5923, 0
        %v6345 = vsel %vm521, %v5924, 0
        %v6348 = vsel %vm521, %v5925, 0
        %v6351 = vsel %vm521, %v5926, 0
        %v6354 = vsel %vm521, %v5927, 0
        %v6357 = vsel %vm521, %v5928, 0
        %v6360 = vsel %vm521, %v5929, 0
        %v6363 = vsel %vm521, %v5930, 0
        %v6366 = vsel %vm521, %v5931, 0
        %v6369 = vsel %vm521, %v5932, 0
        %v6372 = vsel %vm521, %v5933, 0
        %v6375 = vsel %vm521, %v5934, 0
        %v6378 = vsel %vm521, %v5935, 0
        %v6381 = vsel %vm521, %v5936, 0
        %v6384 = vsel %vm521, %v5937, 0
        %v6387 = vsel %vm521, %v5938, 0
        %v6390 = vsel %vm521, %v5939, 0
        %v6393 = vsel %vm521, %v5940, 0
        %v6396 = vsel %vm521, %v5941, 0
        %v6399 = vsel %vm521, %v5942, 0
        %v6402 = vsel %vm521, %v5943, 0
        %v6405 = vsel %vm521, %v5944, 0
        %v6408 = vsel %vm521, %v5945, 0
        %v6411 = vsel %vm521, %v5946, 0
        %v6414 = vsel %vm521, %v5947, 0
        %v6417 = vsel %vm521, %v5948, 0
        %v6420 = vsel %vm521, %v5949, 0
        %v6423 = vsel %vm521, %v5950, 0
        %6425 = vmatprep.subr.mxu0 0.0
        %6426 = vmatpush1.msra.mxu0 %v5951
        %6427 = vmatprep.subr.mxu0 0.0
        %6428 = vmatpush1.msra.mxu0 %v5952
        %6429 = vmatprep.subr.mxu0 0.0
        %6430 = vmatpush1.msra.mxu0 %v5953
        %6431 = vmatprep.subr.mxu0 0.0
        %6432 = vmatpush1.msra.mxu0 %v5954
        %6433 = vmatprep.subr.mxu0 0.0
        %6434 = vmatpush1.msra.mxu0 %v5955
        %6435 = vmatprep.subr.mxu0 0.0
        %6436 = vmatpush1.msra.mxu0 %v5956
        %6437 = vmatprep.subr.mxu0 0.0
        %6438 = vmatpush1.msra.mxu0 %v5957
        %6439 = vmatprep.subr.mxu0 0.0
        %6440 = vmatpush1.msra.mxu0 %v5958
        %6441 = vmatprep.subr.mxu0 0.0
        %6442 = vmatpush1.msra.mxu0 %v5959
        %6443 = vmatprep.subr.mxu0 0.0
        %6444 = vmatpush1.msra.mxu0 %v5960
        %6445 = vmatprep.subr.mxu0 0.0
        %6446 = vmatpush1.msra.mxu0 %v5961
        %6447 = vmatprep.subr.mxu0 0.0
        %6448 = vmatpush1.msra.mxu0 %v5962
        %6449 = vmatprep.subr.mxu0 0.0
        %6450 = vmatpush1.msra.mxu0 0.0
        %6451 = vmatprep.subr.mxu0 0.0
        %6452 = vmatpush1.msra.mxu0 0.0
        %6453 = vmatprep.subr.mxu0 0.0
        %6454 = vmatpush1.msra.mxu0 0.0
        %6455 = vmatprep.subr.mxu0 0.0
        %6456 = vmatpush1.msra.mxu0 0.0
        %6457 = vmatprep.subr.mxu0 0.0
        %6458 = vmatpush1.msra.mxu0 0.0
        %6459 = vmatprep.subr.mxu0 0.0
        %6460 = vmatpush1.msra.mxu0 0.0
        %6461 = vmatprep.subr.mxu0 0.0
        %6462 = vmatpush1.msra.mxu0 0.0
        %6463 = vmatprep.subr.mxu0 0.0
        %6464 = vmatpush1.msra.mxu0 0.0
        %6465 = vmatprep.subr.mxu0 0.0
        %6466 = vmatpush1.msra.mxu0 0.0
        %6467 = vmatprep.subr.mxu0 0.0
        %6468 = vmatpush1.msra.mxu0 0.0
        %6469 = vmatprep.subr.mxu0 0.0
        %6470 = vmatpush1.msra.mxu0 0.0
        %6471 = vmatprep.subr.mxu0 0.0
        %6472 = vmatpush1.msra.mxu0 0.0
        %6473 = vmatprep.subr.mxu0 0.0
        %6474 = vmatpush1.msra.mxu0 0.0
        %6475 = vmatprep.subr.mxu0 0.0
        %6476 = vmatpush1.msra.mxu0 0.0
        %6477 = vmatprep.subr.mxu0 0.0
        %6478 = vmatpush1.msra.mxu0 0.0
        %6479 = vmatprep.subr.mxu0 0.0
        %6480 = vmatpush1.msra.mxu0 0.0
        %6481 = vmatprep.subr.mxu0 0.0
        %6482 = vmatpush1.msra.mxu0 0.0
        %6483 = vmatprep.subr.mxu0 0.0
        %6484 = vmatpush1.msra.mxu0 0.0
        %6485 = vmatprep.subr.mxu0 0.0
        %6486 = vmatpush1.msra.mxu0 0.0
        %6487 = vmatprep.subr.mxu0 0.0
        %6488 = vmatpush1.msra.mxu0 0.0
        %6489 = vmatprep.mubr.f32.mxu0 0.0
        %6490 = vmatmul.mubr.f32.gmra.mrb[0].mxu0 %v6330
        %v6491 = vpop.f32.mrb[0].mxu0
        %v6492 = vadd.f32 %v6171, %v6491
        %v6493 = vpop.f32.mrb[0].mxu0
        %6494 = vmatprep.mubr.f32.mxu0 0.0
        %6495 = vmatmul.mubr.f32.gmra.mrb[0].mxu0 %v6333
        %v6496 = vpop.f32.mrb[0].mxu0
        %v6497 = vadd.f32 %v6176, %v6496
        %v6498 = vpop.f32.mrb[0].mxu0
        %6499 = vmatprep.mubr.f32.mxu0 0.0
        %6500 = vmatmul.mubr.f32.gmra.mrb[0].mxu0 %v6336
        %v6501 = vpop.f32.mrb[0].mxu0
        %v6502 = vadd.f32 %v6181, %v6501
        %v6503 = vpop.f32.mrb[0].mxu0
        %6504 = vmatprep.mubr.f32.mxu0 0.0
        %6505 = vmatmul.mubr.f32.gmra.mrb[0].mxu0 %v6339
        %v6506 = vpop.f32.mrb[0].mxu0
        %v6507 = vadd.f32 %v6186, %v6506
        %v6508 = vpop.f32.mrb[0].mxu0
        %6509 = vmatprep.mubr.f32.mxu0 0.0
        %6510 = vmatmul.mubr.f32.gmra.mrb[0].mxu0 %v6342
        %v6511 = vpop.f32.mrb[0].mxu0
        %v6512 = vadd.f32 %v6191, %v6511
        %v6513 = vpop.f32.mrb[0].mxu0
        %6514 = vmatprep.mubr.f32.mxu0 0.0
        %6515 = vmatmul.mubr.f32.gmra.mrb[0].mxu0 %v6345
        %v6516 = vpop.f32.mrb[0].mxu0
        %v6517 = vadd.f32 %v6196, %v6516
        %v6518 = vpop.f32.mrb[0].mxu0
        %6519 = vmatprep.mubr.f32.mxu0 0.0
        %6520 = vmatmul.mubr.f32.gmra.mrb[0].mxu0 %v6348
        %v6521 = vpop.f32.mrb[0].mxu0
        %v6522 = vadd.f32 %v6201, %v6521
        %v6523 = vpop.f32.mrb[0].mxu0
        %6524 = vmatprep.mubr.f32.mxu0 0.0
        %6525 = vmatmul.mubr.f32.gmra.mrb[0].mxu0 %v6351
        %v6526 = vpop.f32.mrb[0].mxu0
        %v6527 = vadd.f32 %v6206, %v6526
        %v6528 = vpop.f32.mrb[0].mxu0
        %6529 = vmatprep.mubr.f32.mxu0 0.0
        %6530 = vmatmul.mubr.f32.gmra.mrb[0].mxu0 %v6354
        %v6531 = vpop.f32.mrb[0].mxu0
        %v6532 = vadd.f32 %v6211, %v6531
        %v6533 = vpop.f32.mrb[0].mxu0
        %6534 = vmatprep.mubr.f32.mxu0 0.0
        %6535 = vmatmul.mubr.f32.gmra.mrb[0].mxu0 %v6357
        %v6536 = vpop.f32.mrb[0].mxu0
        %v6537 = vadd.f32 %v6216, %v6536
        %v6538 = vpop.f32.mrb[0].mxu0
        %6539 = vmatprep.mubr.f32.mxu0 0.0
        %6540 = vmatmul.mubr.f32.gmra.mrb[0].mxu0 %v6360
        %v6541 = vpop.f32.mrb[0].mxu0
        %v6542 = vadd.f32 %v6221, %v6541
        %v6543 = vpop.f32.mrb[0].mxu0
        %6544 = vmatprep.mubr.f32.mxu0 0.0
        %6545 = vmatmul.mubr.f32.gmra.mrb[0].mxu0 %v6363
        %v6546 = vpop.f32.mrb[0].mxu0
        %v6547 = vadd.f32 %v6226, %v6546
        %v6548 = vpop.f32.mrb[0].mxu0
        %6549 = vmatprep.mubr.f32.mxu0 0.0
        %6550 = vmatmul.mubr.f32.gmra.mrb[0].mxu0 %v6366
        %v6551 = vpop.f32.mrb[0].mxu0
        %v6552 = vadd.f32 %v6231, %v6551
        %v6553 = vpop.f32.mrb[0].mxu0
        %6554 = vmatprep.mubr.f32.mxu0 0.0
        %6555 = vmatmul.mubr.f32.gmra.mrb[0].mxu0 %v6369
        %v6556 = vpop.f32.mrb[0].mxu0
        %v6557 = vadd.f32 %v6236, %v6556
        %v6558 = vpop.f32.mrb[0].mxu0
        %6559 = vmatprep.mubr.f32.mxu0 0.0
        %6560 = vmatmul.mubr.f32.gmra.mrb[0].mxu0 %v6372
        %v6561 = vpop.f32.mrb[0].mxu0
        %v6562 = vadd.f32 %v6241, %v6561
        %v6563 = vpop.f32.mrb[0].mxu0
        %6564 = vmatprep.mubr.f32.mxu0 0.0
        %6565 = vmatmul.mubr.f32.gmra.mrb[0].mxu0 %v6375
        %v6566 = vpop.f32.mrb[0].mxu0
        %v6567 = vadd.f32 %v6246, %v6566
        %v6568 = vpop.f32.mrb[0].mxu0
        %6569 = vmatprep.mubr.f32.mxu0 0.0
        %6570 = vmatmul.mubr.f32.gmra.mrb[0].mxu0 %v6378
        %v6571 = vpop.f32.mrb[0].mxu0
        %v6572 = vadd.f32 %v6251, %v6571
        %v6573 = vpop.f32.mrb[0].mxu0
        %6574 = vmatprep.mubr.f32.mxu0 0.0
        %6575 = vmatmul.mubr.f32.gmra.mrb[0].mxu0 %v6381
        %v6576 = vpop.f32.mrb[0].mxu0
        %v6577 = vadd.f32 %v6256, %v6576
        %v6578 = vpop.f32.mrb[0].mxu0
        %6579 = vmatprep.mubr.f32.mxu0 0.0
        %6580 = vmatmul.mubr.f32.gmra.mrb[0].mxu0 %v6384
        %v6581 = vpop.f32.mrb[0].mxu0
        %v6582 = vadd.f32 %v6261, %v6581
        %v6583 = vpop.f32.mrb[0].mxu0
        %6584 = vmatprep.mubr.f32.mxu0 0.0
        %6585 = vmatmul.mubr.f32.gmra.mrb[0].mxu0 %v6387
        %v6586 = vpop.f32.mrb[0].mxu0
        %v6587 = vadd.f32 %v6266, %v6586
        %v6588 = vpop.f32.mrb[0].mxu0
        %6589 = vmatprep.mubr.f32.mxu0 0.0
        %6590 = vmatmul.mubr.f32.gmra.mrb[0].mxu0 %v6390
        %v6591 = vpop.f32.mrb[0].mxu0
        %v6592 = vadd.f32 %v6271, %v6591
        %v6593 = vpop.f32.mrb[0].mxu0
        %6594 = vmatprep.mubr.f32.mxu0 0.0
        %6595 = vmatmul.mubr.f32.gmra.mrb[0].mxu0 %v6393
        %v6596 = vpop.f32.mrb[0].mxu0
        %v6597 = vadd.f32 %v6276, %v6596
        %v6598 = vpop.f32.mrb[0].mxu0
        %6599 = vmatprep.mubr.f32.mxu0 0.0
        %6600 = vmatmul.mubr.f32.gmra.mrb[0].mxu0 %v6396
        %v6601 = vpop.f32.mrb[0].mxu0
        %v6602 = vadd.f32 %v6281, %v6601
        %v6603 = vpop.f32.mrb[0].mxu0
        %6604 = vmatprep.mubr.f32.mxu0 0.0
        %6605 = vmatmul.mubr.f32.gmra.mrb[0].mxu0 %v6399
        %v6606 = vpop.f32.mrb[0].mxu0
        %v6607 = vadd.f32 %v6286, %v6606
        %v6608 = vpop.f32.mrb[0].mxu0
        %6609 = vmatprep.mubr.f32.mxu0 0.0
        %6610 = vmatmul.mubr.f32.gmra.mrb[0].mxu0 %v6402
        %v6611 = vpop.f32.mrb[0].mxu0
        %v6612 = vadd.f32 %v6291, %v6611
        %v6613 = vpop.f32.mrb[0].mxu0
        %6614 = vmatprep.mubr.f32.mxu0 0.0
        %6615 = vmatmul.mubr.f32.gmra.mrb[0].mxu0 %v6405
        %v6616 = vpop.f32.mrb[0].mxu0
        %v6617 = vadd.f32 %v6296, %v6616
        %v6618 = vpop.f32.mrb[0].mxu0
        %6619 = vmatprep.mubr.f32.mxu0 0.0
        %6620 = vmatmul.mubr.f32.gmra.mrb[0].mxu0 %v6408
        %v6621 = vpop.f32.mrb[0].mxu0
        %v6622 = vadd.f32 %v6301, %v6621
        %v6623 = vpop.f32.mrb[0].mxu0
        %6624 = vmatprep.mubr.f32.mxu0 0.0
        %6625 = vmatmul.mubr.f32.gmra.mrb[0].mxu0 %v6411
        %v6626 = vpop.f32.mrb[0].mxu0
        %v6627 = vadd.f32 %v6306, %v6626
        %v6628 = vpop.f32.mrb[0].mxu0
        %6629 = vmatprep.mubr.f32.mxu0 0.0
        %6630 = vmatmul.mubr.f32.gmra.mrb[0].mxu0 %v6414
        %v6631 = vpop.f32.mrb[0].mxu0
        %v6632 = vadd.f32 %v6311, %v6631
        %v6633 = vpop.f32.mrb[0].mxu0
        %6634 = vmatprep.mubr.f32.mxu0 0.0
        %6635 = vmatmul.mubr.f32.gmra.mrb[0].mxu0 %v6417
        %v6636 = vpop.f32.mrb[0].mxu0
        %v6637 = vadd.f32 %v6316, %v6636
        %v6638 = vpop.f32.mrb[0].mxu0
        %6639 = vmatprep.mubr.f32.mxu0 0.0
        %6640 = vmatmul.mubr.f32.gmra.mrb[0].mxu0 %v6420
        %v6641 = vpop.f32.mrb[0].mxu0
        %v6642 = vadd.f32 %v6321, %v6641
        %v6643 = vpop.f32.mrb[0].mxu0
        %6644 = vmatprep.mubr.f32.mxu0 0.0
        %6645 = vmatmul.mubr.f32.gmra.mrb[0].mxu0 %v6423
        %v6646 = vpop.f32.mrb[0].mxu0
        %v6647 = vadd.f32 %v6326, %v6646
        %v6648 = vpop.f32.mrb[0].mxu0
        %6649 = vdwg.mxu0
        %v6650 = vld [vmem:[#allocation3 + $0x2] sm:$0xff]
        %v6651 = vld [vmem:[#allocation3 + $0xa] sm:$0xff]
        %v6652 = vld [vmem:[#allocation3 + $0x1a] sm:$0xff]
        %v6653 = vld [vmem:[#allocation3 + $0x22] sm:$0xff]
        %v6654 = vld [vmem:[#allocation3 + $0x32] sm:$0xff]
        %v6655 = vld [vmem:[#allocation3 + $0x3a] sm:$0xff]
        %v6656 = vld [vmem:[#allocation3 + $0x4a] sm:$0xff]
        %v6657 = vld [vmem:[#allocation3 + $0x52] sm:$0xff]
        %v6658 = vld [vmem:[#allocation3 + $0x62] sm:$0xff]
        %v6659 = vld [vmem:[#allocation3 + $0x6a] sm:$0xff]
        %v6660 = vld [vmem:[#allocation3 + $0x7a] sm:$0xff]
        %v6661 = vld [vmem:[#allocation3 + $0x82] sm:$0xff]
        %v6662 = vld [vmem:[#allocation3 + $0x92] sm:$0xff]
        %v6663 = vld [vmem:[#allocation3 + $0x9a] sm:$0xff]
        %v6664 = vld [vmem:[#allocation3 + $0xaa] sm:$0xff]
        %v6665 = vld [vmem:[#allocation3 + $0xb2] sm:$0xff]
        %v6666 = vld [vmem:[#allocation3 + $0xc2] sm:$0xff]
        %v6667 = vld [vmem:[#allocation3 + $0xca] sm:$0xff]
        %v6668 = vld [vmem:[#allocation3 + $0xda] sm:$0xff]
        %v6669 = vld [vmem:[#allocation3 + $0xe2] sm:$0xff]
        %v6670 = vld [vmem:[#allocation3 + $0xf2] sm:$0xff]
        %v6671 = vld [vmem:[#allocation3 + $0xfa] sm:$0xff]
        %v6672 = vld [vmem:[#allocation3 + $0x10a] sm:$0xff]
        %v6673 = vld [vmem:[#allocation3 + $0x112] sm:$0xff]
        %v6674 = vld [vmem:[#allocation3 + $0x122] sm:$0xff]
        %v6675 = vld [vmem:[#allocation3 + $0x12a] sm:$0xff]
        %v6676 = vld [vmem:[#allocation3 + $0x13a] sm:$0xff]
        %v6677 = vld [vmem:[#allocation3 + $0x142] sm:$0xff]
        %v6678 = vld [vmem:[#allocation3 + $0x152] sm:$0xff]
        %v6679 = vld [vmem:[#allocation3 + $0x15a] sm:$0xff]
        %v6680 = vld [vmem:[#allocation3 + $0x16a] sm:$0xff]
        %v6681 = vld [vmem:[#allocation3 + $0x172] sm:$0xff]
        %s6682 = scalar_lea.vmem %s8, 192
        %v6683 = vld [vmem:[%s6682] sm:$0xff]
        %v6684 = vld [vmem:[%s6682 + $0x8] sm:$0xff]
        %v6685 = vld [vmem:[%s6682 + $0x10] sm:$0xff]
        %v6686 = vld [vmem:[%s6682 + $0x18] sm:$0xff]
        %v6687 = vld [vmem:[%s6682 + $0x20] sm:$0xff]
        %v6688 = vld [vmem:[%s6682 + $0x28] sm:$0xff]
        %v6689 = vld [vmem:[%s6682 + $0x30] sm:$0xff]
        %v6690 = vld [vmem:[%s6682 + $0x38] sm:$0xff]
        %v6691 = vld [vmem:[%s6682 + $0x40] sm:$0xff]
        %v6692 = vld [vmem:[%s6682 + $0x48] sm:$0xff]
        %v6693 = vld [vmem:[%s6682 + $0x50] sm:$0xff]
        %v6694 = vld [vmem:[%s6682 + $0x58] sm:$0xff]
        %v6696 = vsel %vm521, %v6650, 0
        %v6699 = vsel %vm521, %v6651, 0
        %v6702 = vsel %vm521, %v6652, 0
        %v6705 = vsel %vm521, %v6653, 0
        %v6708 = vsel %vm521, %v6654, 0
        %v6711 = vsel %vm521, %v6655, 0
        %v6714 = vsel %vm521, %v6656, 0
        %v6717 = vsel %vm521, %v6657, 0
        %v6720 = vsel %vm521, %v6658, 0
        %v6723 = vsel %vm521, %v6659, 0
        %v6726 = vsel %vm521, %v6660, 0
        %v6729 = vsel %vm521, %v6661, 0
        %v6732 = vsel %vm521, %v6662, 0
        %v6735 = vsel %vm521, %v6663, 0
        %v6738 = vsel %vm521, %v6664, 0
        %v6741 = vsel %vm521, %v6665, 0
        %v6744 = vsel %vm521, %v6666, 0
        %v6747 = vsel %vm521, %v6667, 0
        %v6750 = vsel %vm521, %v6668, 0
        %v6753 = vsel %vm521, %v6669, 0
        %v6756 = vsel %vm521, %v6670, 0
        %v6759 = vsel %vm521, %v6671, 0
        %v6762 = vsel %vm521, %v6672, 0
        %v6765 = vsel %vm521, %v6673, 0
        %v6768 = vsel %vm521, %v6674, 0
        %v6771 = vsel %vm521, %v6675, 0
        %v6774 = vsel %vm521, %v6676, 0
        %v6777 = vsel %vm521, %v6677, 0
        %v6780 = vsel %vm521, %v6678, 0
        %v6783 = vsel %vm521, %v6679, 0
        %v6786 = vsel %vm521, %v6680, 0
        %v6789 = vsel %vm521, %v6681, 0
        %6791 = vmatprep.subr.mxu0 0.0
        %6792 = vmatpush1.msra.mxu0 %v6683
        %6793 = vmatprep.subr.mxu0 0.0
        %6794 = vmatpush1.msra.mxu0 %v6684
        %6795 = vmatprep.subr.mxu0 0.0
        %6796 = vmatpush1.msra.mxu0 %v6685
        %6797 = vmatprep.subr.mxu0 0.0
        %6798 = vmatpush1.msra.mxu0 %v6686
        %6799 = vmatprep.subr.mxu0 0.0
        %6800 = vmatpush1.msra.mxu0 %v6687
        %6801 = vmatprep.subr.mxu0 0.0
        %6802 = vmatpush1.msra.mxu0 %v6688
        %6803 = vmatprep.subr.mxu0 0.0
        %6804 = vmatpush1.msra.mxu0 %v6689
        %6805 = vmatprep.subr.mxu0 0.0
        %6806 = vmatpush1.msra.mxu0 %v6690
        %6807 = vmatprep.subr.mxu0 0.0
        %6808 = vmatpush1.msra.mxu0 %v6691
        %6809 = vmatprep.subr.mxu0 0.0
        %6810 = vmatpush1.msra.mxu0 %v6692
        %6811 = vmatprep.subr.mxu0 0.0
        %6812 = vmatpush1.msra.mxu0 %v6693
        %6813 = vmatprep.subr.mxu0 0.0
        %6814 = vmatpush1.msra.mxu0 %v6694
        %6815 = vmatprep.subr.mxu0 0.0
        %6816 = vmatpush1.msra.mxu0 0.0
        %6817 = vmatprep.subr.mxu0 0.0
        %6818 = vmatpush1.msra.mxu0 0.0
        %6819 = vmatprep.subr.mxu0 0.0
        %6820 = vmatpush1.msra.mxu0 0.0
        %6821 = vmatprep.subr.mxu0 0.0
        %6822 = vmatpush1.msra.mxu0 0.0
        %6823 = vmatprep.subr.mxu0 0.0
        %6824 = vmatpush1.msra.mxu0 0.0
        %6825 = vmatprep.subr.mxu0 0.0
        %6826 = vmatpush1.msra.mxu0 0.0
        %6827 = vmatprep.subr.mxu0 0.0
        %6828 = vmatpush1.msra.mxu0 0.0
        %6829 = vmatprep.subr.mxu0 0.0
        %6830 = vmatpush1.msra.mxu0 0.0
        %6831 = vmatprep.subr.mxu0 0.0
        %6832 = vmatpush1.msra.mxu0 0.0
        %6833 = vmatprep.subr.mxu0 0.0
        %6834 = vmatpush1.msra.mxu0 0.0
        %6835 = vmatprep.subr.mxu0 0.0
        %6836 = vmatpush1.msra.mxu0 0.0
        %6837 = vmatprep.subr.mxu0 0.0
        %6838 = vmatpush1.msra.mxu0 0.0
        %6839 = vmatprep.subr.mxu0 0.0
        %6840 = vmatpush1.msra.mxu0 0.0
        %6841 = vmatprep.subr.mxu0 0.0
        %6842 = vmatpush1.msra.mxu0 0.0
        %6843 = vmatprep.subr.mxu0 0.0
        %6844 = vmatpush1.msra.mxu0 0.0
        %6845 = vmatprep.subr.mxu0 0.0
        %6846 = vmatpush1.msra.mxu0 0.0
        %6847 = vmatprep.subr.mxu0 0.0
        %6848 = vmatpush1.msra.mxu0 0.0
        %6849 = vmatprep.subr.mxu0 0.0
        %6850 = vmatpush1.msra.mxu0 0.0
        %6851 = vmatprep.subr.mxu0 0.0
        %6852 = vmatpush1.msra.mxu0 0.0
        %6853 = vmatprep.subr.mxu0 0.0
        %6854 = vmatpush1.msra.mxu0 0.0
        %6855 = vmatprep.mubr.f32.mxu0 0.0
        %6856 = vmatmul.mubr.f32.gmra.mrb[0].mxu0 %v6696
        %v6857 = vpop.f32.mrb[0].mxu0
        %v6858 = vadd.f32 0.0, %v6857
        %v6859 = vpop.f32.mrb[0].mxu0
        %6860 = vmatprep.mubr.f32.mxu0 0.0
        %6861 = vmatmul.mubr.f32.gmra.mrb[0].mxu0 %v6699
        %v6862 = vpop.f32.mrb[0].mxu0
        %v6863 = vadd.f32 0.0, %v6862
        %v6864 = vpop.f32.mrb[0].mxu0
        %6865 = vmatprep.mubr.f32.mxu0 0.0
        %6866 = vmatmul.mubr.f32.gmra.mrb[0].mxu0 %v6702
        %v6867 = vpop.f32.mrb[0].mxu0
        %v6868 = vadd.f32 0.0, %v6867
        %v6869 = vpop.f32.mrb[0].mxu0
        %6870 = vmatprep.mubr.f32.mxu0 0.0
        %6871 = vmatmul.mubr.f32.gmra.mrb[0].mxu0 %v6705
        %v6872 = vpop.f32.mrb[0].mxu0
        %v6873 = vadd.f32 0.0, %v6872
        %v6874 = vpop.f32.mrb[0].mxu0
        %6875 = vmatprep.mubr.f32.mxu0 0.0
        %6876 = vmatmul.mubr.f32.gmra.mrb[0].mxu0 %v6708
        %v6877 = vpop.f32.mrb[0].mxu0
        %v6878 = vadd.f32 0.0, %v6877
        %v6879 = vpop.f32.mrb[0].mxu0
        %6880 = vmatprep.mubr.f32.mxu0 0.0
        %6881 = vmatmul.mubr.f32.gmra.mrb[0].mxu0 %v6711
        %v6882 = vpop.f32.mrb[0].mxu0
        %v6883 = vadd.f32 0.0, %v6882
        %v6884 = vpop.f32.mrb[0].mxu0
        %6885 = vmatprep.mubr.f32.mxu0 0.0
        %6886 = vmatmul.mubr.f32.gmra.mrb[0].mxu0 %v6714
        %v6887 = vpop.f32.mrb[0].mxu0
        %v6888 = vadd.f32 0.0, %v6887
        %v6889 = vpop.f32.mrb[0].mxu0
        %6890 = vmatprep.mubr.f32.mxu0 0.0
        %6891 = vmatmul.mubr.f32.gmra.mrb[0].mxu0 %v6717
        %v6892 = vpop.f32.mrb[0].mxu0
        %v6893 = vadd.f32 0.0, %v6892
        %v6894 = vpop.f32.mrb[0].mxu0
        %6895 = vmatprep.mubr.f32.mxu0 0.0
        %6896 = vmatmul.mubr.f32.gmra.mrb[0].mxu0 %v6720
        %v6897 = vpop.f32.mrb[0].mxu0
        %v6898 = vadd.f32 0.0, %v6897
        %v6899 = vpop.f32.mrb[0].mxu0
        %6900 = vmatprep.mubr.f32.mxu0 0.0
        %6901 = vmatmul.mubr.f32.gmra.mrb[0].mxu0 %v6723
        %v6902 = vpop.f32.mrb[0].mxu0
        %v6903 = vadd.f32 0.0, %v6902
        %v6904 = vpop.f32.mrb[0].mxu0
        %6905 = vmatprep.mubr.f32.mxu0 0.0
        %6906 = vmatmul.mubr.f32.gmra.mrb[0].mxu0 %v6726
        %v6907 = vpop.f32.mrb[0].mxu0
        %v6908 = vadd.f32 0.0, %v6907
        %v6909 = vpop.f32.mrb[0].mxu0
        %6910 = vmatprep.mubr.f32.mxu0 0.0
        %6911 = vmatmul.mubr.f32.gmra.mrb[0].mxu0 %v6729
        %v6912 = vpop.f32.mrb[0].mxu0
        %v6913 = vadd.f32 0.0, %v6912
        %v6914 = vpop.f32.mrb[0].mxu0
        %6915 = vmatprep.mubr.f32.mxu0 0.0
        %6916 = vmatmul.mubr.f32.gmra.mrb[0].mxu0 %v6732
        %v6917 = vpop.f32.mrb[0].mxu0
        %v6918 = vadd.f32 0.0, %v6917
        %v6919 = vpop.f32.mrb[0].mxu0
        %6920 = vmatprep.mubr.f32.mxu0 0.0
        %6921 = vmatmul.mubr.f32.gmra.mrb[0].mxu0 %v6735
        %v6922 = vpop.f32.mrb[0].mxu0
        %v6923 = vadd.f32 0.0, %v6922
        %v6924 = vpop.f32.mrb[0].mxu0
        %6925 = vmatprep.mubr.f32.mxu0 0.0
        %6926 = vmatmul.mubr.f32.gmra.mrb[0].mxu0 %v6738
        %v6927 = vpop.f32.mrb[0].mxu0
        %v6928 = vadd.f32 0.0, %v6927
        %v6929 = vpop.f32.mrb[0].mxu0
        %6930 = vmatprep.mubr.f32.mxu0 0.0
        %6931 = vmatmul.mubr.f32.gmra.mrb[0].mxu0 %v6741
        %v6932 = vpop.f32.mrb[0].mxu0
        %v6933 = vadd.f32 0.0, %v6932
        %v6934 = vpop.f32.mrb[0].mxu0
        %6935 = vmatprep.mubr.f32.mxu0 0.0
        %6936 = vmatmul.mubr.f32.gmra.mrb[0].mxu0 %v6744
        %v6937 = vpop.f32.mrb[0].mxu0
        %v6938 = vadd.f32 0.0, %v6937
        %v6939 = vpop.f32.mrb[0].mxu0
        %6940 = vmatprep.mubr.f32.mxu0 0.0
        %6941 = vmatmul.mubr.f32.gmra.mrb[0].mxu0 %v6747
        %v6942 = vpop.f32.mrb[0].mxu0
        %v6943 = vadd.f32 0.0, %v6942
        %v6944 = vpop.f32.mrb[0].mxu0
        %6945 = vmatprep.mubr.f32.mxu0 0.0
        %6946 = vmatmul.mubr.f32.gmra.mrb[0].mxu0 %v6750
        %v6947 = vpop.f32.mrb[0].mxu0
        %v6948 = vadd.f32 0.0, %v6947
        %v6949 = vpop.f32.mrb[0].mxu0
        %6950 = vmatprep.mubr.f32.mxu0 0.0
        %6951 = vmatmul.mubr.f32.gmra.mrb[0].mxu0 %v6753
        %v6952 = vpop.f32.mrb[0].mxu0
        %v6953 = vadd.f32 0.0, %v6952
        %v6954 = vpop.f32.mrb[0].mxu0
        %6955 = vmatprep.mubr.f32.mxu0 0.0
        %6956 = vmatmul.mubr.f32.gmra.mrb[0].mxu0 %v6756
        %v6957 = vpop.f32.mrb[0].mxu0
        %v6958 = vadd.f32 0.0, %v6957
        %v6959 = vpop.f32.mrb[0].mxu0
        %6960 = vmatprep.mubr.f32.mxu0 0.0
        %6961 = vmatmul.mubr.f32.gmra.mrb[0].mxu0 %v6759
        %v6962 = vpop.f32.mrb[0].mxu0
        %v6963 = vadd.f32 0.0, %v6962
        %v6964 = vpop.f32.mrb[0].mxu0
        %6965 = vmatprep.mubr.f32.mxu0 0.0
        %6966 = vmatmul.mubr.f32.gmra.mrb[0].mxu0 %v6762
        %v6967 = vpop.f32.mrb[0].mxu0
        %v6968 = vadd.f32 0.0, %v6967
        %v6969 = vpop.f32.mrb[0].mxu0
        %6970 = vmatprep.mubr.f32.mxu0 0.0
        %6971 = vmatmul.mubr.f32.gmra.mrb[0].mxu0 %v6765
        %v6972 = vpop.f32.mrb[0].mxu0
        %v6973 = vadd.f32 0.0, %v6972
        %v6974 = vpop.f32.mrb[0].mxu0
        %6975 = vmatprep.mubr.f32.mxu0 0.0
        %6976 = vmatmul.mubr.f32.gmra.mrb[0].mxu0 %v6768
        %v6977 = vpop.f32.mrb[0].mxu0
        %v6978 = vadd.f32 0.0, %v6977
        %v6979 = vpop.f32.mrb[0].mxu0
        %6980 = vmatprep.mubr.f32.mxu0 0.0
        %6981 = vmatmul.mubr.f32.gmra.mrb[0].mxu0 %v6771
        %v6982 = vpop.f32.mrb[0].mxu0
        %v6983 = vadd.f32 0.0, %v6982
        %v6984 = vpop.f32.mrb[0].mxu0
        %6985 = vmatprep.mubr.f32.mxu0 0.0
        %6986 = vmatmul.mubr.f32.gmra.mrb[0].mxu0 %v6774
        %v6987 = vpop.f32.mrb[0].mxu0
        %v6988 = vadd.f32 0.0, %v6987
        %v6989 = vpop.f32.mrb[0].mxu0
        %6990 = vmatprep.mubr.f32.mxu0 0.0
        %6991 = vmatmul.mubr.f32.gmra.mrb[0].mxu0 %v6777
        %v6992 = vpop.f32.mrb[0].mxu0
        %v6993 = vadd.f32 0.0, %v6992
        %v6994 = vpop.f32.mrb[0].mxu0
        %6995 = vmatprep.mubr.f32.mxu0 0.0
        %6996 = vmatmul.mubr.f32.gmra.mrb[0].mxu0 %v6780
        %v6997 = vpop.f32.mrb[0].mxu0
        %v6998 = vadd.f32 0.0, %v6997
        %v6999 = vpop.f32.mrb[0].mxu0
        %7000 = vmatprep.mubr.f32.mxu0 0.0
        %7001 = vmatmul.mubr.f32.gmra.mrb[0].mxu0 %v6783
        %v7002 = vpop.f32.mrb[0].mxu0
        %v7003 = vadd.f32 0.0, %v7002
        %v7004 = vpop.f32.mrb[0].mxu0
        %7005 = vmatprep.mubr.f32.mxu0 0.0
        %7006 = vmatmul.mubr.f32.gmra.mrb[0].mxu0 %v6786
        %v7007 = vpop.f32.mrb[0].mxu0
        %v7008 = vadd.f32 0.0, %v7007
        %v7009 = vpop.f32.mrb[0].mxu0
        %7010 = vmatprep.mubr.f32.mxu0 0.0
        %7011 = vmatmul.mubr.f32.gmra.mrb[0].mxu0 %v6789
        %v7012 = vpop.f32.mrb[0].mxu0
        %v7013 = vadd.f32 0.0, %v7012
        %v7014 = vpop.f32.mrb[0].mxu0
        %7015 = vdwg.mxu0
        %v7016 = vadd.f32 %v6492, %v6858
        %v7017 = vadd.f32 %v6497, %v6863
        %v7018 = vadd.f32 %v6502, %v6868
        %v7019 = vadd.f32 %v6507, %v6873
        %v7020 = vadd.f32 %v6512, %v6878
        %v7021 = vadd.f32 %v6517, %v6883
        %v7022 = vadd.f32 %v6522, %v6888
        %v7023 = vadd.f32 %v6527, %v6893
        %v7024 = vadd.f32 %v6532, %v6898
        %v7025 = vadd.f32 %v6537, %v6903
        %v7026 = vadd.f32 %v6542, %v6908
        %v7027 = vadd.f32 %v6547, %v6913
        %v7028 = vadd.f32 %v6552, %v6918
        %v7029 = vadd.f32 %v6557, %v6923
        %v7030 = vadd.f32 %v6562, %v6928
        %v7031 = vadd.f32 %v6567, %v6933
        %v7032 = vadd.f32 %v6572, %v6938
        %v7033 = vadd.f32 %v6577, %v6943
        %v7034 = vadd.f32 %v6582, %v6948
        %v7035 = vadd.f32 %v6587, %v6953
        %v7036 = vadd.f32 %v6592, %v6958
        %v7037 = vadd.f32 %v6597, %v6963
        %v7038 = vadd.f32 %v6602, %v6968
        %v7039 = vadd.f32 %v6607, %v6973
        %v7040 = vadd.f32 %v6612, %v6978
        %v7041 = vadd.f32 %v6617, %v6983
        %v7042 = vadd.f32 %v6622, %v6988
        %v7043 = vadd.f32 %v6627, %v6993
        %v7044 = vadd.f32 %v6632, %v6998
        %v7045 = vadd.f32 %v6637, %v7003
        %v7046 = vadd.f32 %v6642, %v7008
        %v7047 = vadd.f32 %v6647, %v7013
        %v7048 = vld [vmem:[%s5886] sm:$0xff]
        %v7049 = vld [vmem:[%s5886 + $0x8] sm:$0xff]
        %v7050 = vld [vmem:[%s5886 + $0x18] sm:$0xff]
        %v7051 = vld [vmem:[%s5886 + $0x20] sm:$0xff]
        %v7052 = vld [vmem:[%s5886 + $0x30] sm:$0xff]
        %v7053 = vld [vmem:[%s5886 + $0x38] sm:$0xff]
        %v7054 = vld [vmem:[%s5886 + $0x48] sm:$0xff]
        %v7055 = vld [vmem:[%s5886 + $0x50] sm:$0xff]
        %v7056 = vld [vmem:[%s5886 + $0x60] sm:$0xff]
        %v7057 = vld [vmem:[%s5886 + $0x68] sm:$0xff]
        %v7058 = vld [vmem:[%s5886 + $0x78] sm:$0xff]
        %v7059 = vld [vmem:[%s5886 + $0x80] sm:$0xff]
        %v7060 = vld [vmem:[%s5886 + $0x90] sm:$0xff]
        %v7061 = vld [vmem:[%s5886 + $0x98] sm:$0xff]
        %v7062 = vld [vmem:[%s5886 + $0xa8] sm:$0xff]
        %v7063 = vld [vmem:[%s5886 + $0xb0] sm:$0xff]
        %v7064 = vld [vmem:[%s5886 + $0xc0] sm:$0xff]
        %v7065 = vld [vmem:[%s5886 + $0xc8] sm:$0xff]
        %v7066 = vld [vmem:[%s5886 + $0xd8] sm:$0xff]
        %v7067 = vld [vmem:[%s5886 + $0xe0] sm:$0xff]
        %v7068 = vld [vmem:[%s5886 + $0xf0] sm:$0xff]
        %v7069 = vld [vmem:[%s5886 + $0xf8] sm:$0xff]
        %v7070 = vld [vmem:[%s5886 + $0x108] sm:$0xff]
        %v7071 = vld [vmem:[%s5886 + $0x110] sm:$0xff]
        %v7072 = vld [vmem:[%s5886 + $0x120] sm:$0xff]
        %v7073 = vld [vmem:[%s5886 + $0x128] sm:$0xff]
        %v7074 = vld [vmem:[%s5886 + $0x138] sm:$0xff]
        %v7075 = vld [vmem:[%s5886 + $0x140] sm:$0xff]
        %v7076 = vld [vmem:[%s5886 + $0x150] sm:$0xff]
        %v7077 = vld [vmem:[%s5886 + $0x158] sm:$0xff]
        %v7078 = vld [vmem:[%s5886 + $0x168] sm:$0xff]
        %v7079 = vld [vmem:[%s5886 + $0x170] sm:$0xff]
        %s7080 = scalar_lea.vmem %s8, 288
        %v7081 = vld [vmem:[%s7080] sm:$0xff]
        %v7082 = vld [vmem:[%s7080 + $0x8] sm:$0xff]
        %v7083 = vld [vmem:[%s7080 + $0x10] sm:$0xff]
        %v7084 = vld [vmem:[%s7080 + $0x18] sm:$0xff]
        %v7085 = vld [vmem:[%s7080 + $0x20] sm:$0xff]
        %v7086 = vld [vmem:[%s7080 + $0x28] sm:$0xff]
        %v7087 = vld [vmem:[%s7080 + $0x30] sm:$0xff]
        %v7088 = vld [vmem:[%s7080 + $0x38] sm:$0xff]
        %v7089 = vld [vmem:[%s7080 + $0x40] sm:$0xff]
        %v7090 = vld [vmem:[%s7080 + $0x48] sm:$0xff]
        %v7091 = vld [vmem:[%s7080 + $0x50] sm:$0xff]
        %v7092 = vld [vmem:[%s7080 + $0x58] sm:$0xff]
        %v7094 = vsel %vm521, %v7048, 0
        %v7097 = vsel %vm521, %v7049, 0
        %v7100 = vsel %vm521, %v7050, 0
        %v7103 = vsel %vm521, %v7051, 0
        %v7106 = vsel %vm521, %v7052, 0
        %v7109 = vsel %vm521, %v7053, 0
        %v7112 = vsel %vm521, %v7054, 0
        %v7115 = vsel %vm521, %v7055, 0
        %v7118 = vsel %vm521, %v7056, 0
        %v7121 = vsel %vm521, %v7057, 0
        %v7124 = vsel %vm521, %v7058, 0
        %v7127 = vsel %vm521, %v7059, 0
        %v7130 = vsel %vm521, %v7060, 0
        %v7133 = vsel %vm521, %v7061, 0
        %v7136 = vsel %vm521, %v7062, 0
        %v7139 = vsel %vm521, %v7063, 0
        %v7142 = vsel %vm521, %v7064, 0
        %v7145 = vsel %vm521, %v7065, 0
        %v7148 = vsel %vm521, %v7066, 0
        %v7151 = vsel %vm521, %v7067, 0
        %v7154 = vsel %vm521, %v7068, 0
        %v7157 = vsel %vm521, %v7069, 0
        %v7160 = vsel %vm521, %v7070, 0
        %v7163 = vsel %vm521, %v7071, 0
        %v7166 = vsel %vm521, %v7072, 0
        %v7169 = vsel %vm521, %v7073, 0
        %v7172 = vsel %vm521, %v7074, 0
        %v7175 = vsel %vm521, %v7075, 0
        %v7178 = vsel %vm521, %v7076, 0
        %v7181 = vsel %vm521, %v7077, 0
        %v7184 = vsel %vm521, %v7078, 0
        %v7187 = vsel %vm521, %v7079, 0
        %7189 = vmatprep.subr.mxu0 0.0
        %7190 = vmatpush1.msra.mxu0 %v7081
        %7191 = vmatprep.subr.mxu0 0.0
        %7192 = vmatpush1.msra.mxu0 %v7082
        %7193 = vmatprep.subr.mxu0 0.0
        %7194 = vmatpush1.msra.mxu0 %v7083
        %7195 = vmatprep.subr.mxu0 0.0
        %7196 = vmatpush1.msra.mxu0 %v7084
        %7197 = vmatprep.subr.mxu0 0.0
        %7198 = vmatpush1.msra.mxu0 %v7085
        %7199 = vmatprep.subr.mxu0 0.0
        %7200 = vmatpush1.msra.mxu0 %v7086
        %7201 = vmatprep.subr.mxu0 0.0
        %7202 = vmatpush1.msra.mxu0 %v7087
        %7203 = vmatprep.subr.mxu0 0.0
        %7204 = vmatpush1.msra.mxu0 %v7088
        %7205 = vmatprep.subr.mxu0 0.0
        %7206 = vmatpush1.msra.mxu0 %v7089
        %7207 = vmatprep.subr.mxu0 0.0
        %7208 = vmatpush1.msra.mxu0 %v7090
        %7209 = vmatprep.subr.mxu0 0.0
        %7210 = vmatpush1.msra.mxu0 %v7091
        %7211 = vmatprep.subr.mxu0 0.0
        %7212 = vmatpush1.msra.mxu0 %v7092
        %7213 = vmatprep.subr.mxu0 0.0
        %7214 = vmatpush1.msra.mxu0 0.0
        %7215 = vmatprep.subr.mxu0 0.0
        %7216 = vmatpush1.msra.mxu0 0.0
        %7217 = vmatprep.subr.mxu0 0.0
        %7218 = vmatpush1.msra.mxu0 0.0
        %7219 = vmatprep.subr.mxu0 0.0
        %7220 = vmatpush1.msra.mxu0 0.0
        %7221 = vmatprep.subr.mxu0 0.0
        %7222 = vmatpush1.msra.mxu0 0.0
        %7223 = vmatprep.subr.mxu0 0.0
        %7224 = vmatpush1.msra.mxu0 0.0
        %7225 = vmatprep.subr.mxu0 0.0
        %7226 = vmatpush1.msra.mxu0 0.0
        %7227 = vmatprep.subr.mxu0 0.0
        %7228 = vmatpush1.msra.mxu0 0.0
        %7229 = vmatprep.subr.mxu0 0.0
        %7230 = vmatpush1.msra.mxu0 0.0
        %7231 = vmatprep.subr.mxu0 0.0
        %7232 = vmatpush1.msra.mxu0 0.0
        %7233 = vmatprep.subr.mxu0 0.0
        %7234 = vmatpush1.msra.mxu0 0.0
        %7235 = vmatprep.subr.mxu0 0.0
        %7236 = vmatpush1.msra.mxu0 0.0
        %7237 = vmatprep.subr.mxu0 0.0
        %7238 = vmatpush1.msra.mxu0 0.0
        %7239 = vmatprep.subr.mxu0 0.0
        %7240 = vmatpush1.msra.mxu0 0.0
        %7241 = vmatprep.subr.mxu0 0.0
        %7242 = vmatpush1.msra.mxu0 0.0
        %7243 = vmatprep.subr.mxu0 0.0
        %7244 = vmatpush1.msra.mxu0 0.0
        %7245 = vmatprep.subr.mxu0 0.0
        %7246 = vmatpush1.msra.mxu0 0.0
        %7247 = vmatprep.subr.mxu0 0.0
        %7248 = vmatpush1.msra.mxu0 0.0
        %7249 = vmatprep.subr.mxu0 0.0
        %7250 = vmatpush1.msra.mxu0 0.0
        %7251 = vmatprep.subr.mxu0 0.0
        %7252 = vmatpush1.msra.mxu0 0.0
        %7253 = vmatprep.mubr.f32.mxu0 0.0
        %7254 = vmatmul.mubr.f32.gmra.mrb[0].mxu0 %v7094
        %v7255 = vpop.f32.mrb[0].mxu0
        %v7256 = vadd.f32 0.0, %v7255
        %v7257 = vpop.f32.mrb[0].mxu0
        %7258 = vmatprep.mubr.f32.mxu0 0.0
        %7259 = vmatmul.mubr.f32.gmra.mrb[0].mxu0 %v7097
        %v7260 = vpop.f32.mrb[0].mxu0
        %v7261 = vadd.f32 0.0, %v7260
        %v7262 = vpop.f32.mrb[0].mxu0
        %7263 = vmatprep.mubr.f32.mxu0 0.0
        %7264 = vmatmul.mubr.f32.gmra.mrb[0].mxu0 %v7100
        %v7265 = vpop.f32.mrb[0].mxu0
        %v7266 = vadd.f32 0.0, %v7265
        %v7267 = vpop.f32.mrb[0].mxu0
        %7268 = vmatprep.mubr.f32.mxu0 0.0
        %7269 = vmatmul.mubr.f32.gmra.mrb[0].mxu0 %v7103
        %v7270 = vpop.f32.mrb[0].mxu0
        %v7271 = vadd.f32 0.0, %v7270
        %v7272 = vpop.f32.mrb[0].mxu0
        %7273 = vmatprep.mubr.f32.mxu0 0.0
        %7274 = vmatmul.mubr.f32.gmra.mrb[0].mxu0 %v7106
        %v7275 = vpop.f32.mrb[0].mxu0
        %v7276 = vadd.f32 0.0, %v7275
        %v7277 = vpop.f32.mrb[0].mxu0
        %7278 = vmatprep.mubr.f32.mxu0 0.0
        %7279 = vmatmul.mubr.f32.gmra.mrb[0].mxu0 %v7109
        %v7280 = vpop.f32.mrb[0].mxu0
        %v7281 = vadd.f32 0.0, %v7280
        %v7282 = vpop.f32.mrb[0].mxu0
        %7283 = vmatprep.mubr.f32.mxu0 0.0
        %7284 = vmatmul.mubr.f32.gmra.mrb[0].mxu0 %v7112
        %v7285 = vpop.f32.mrb[0].mxu0
        %v7286 = vadd.f32 0.0, %v7285
        %v7287 = vpop.f32.mrb[0].mxu0
        %7288 = vmatprep.mubr.f32.mxu0 0.0
        %7289 = vmatmul.mubr.f32.gmra.mrb[0].mxu0 %v7115
        %v7290 = vpop.f32.mrb[0].mxu0
        %v7291 = vadd.f32 0.0, %v7290
        %v7292 = vpop.f32.mrb[0].mxu0
        %7293 = vmatprep.mubr.f32.mxu0 0.0
        %7294 = vmatmul.mubr.f32.gmra.mrb[0].mxu0 %v7118
        %v7295 = vpop.f32.mrb[0].mxu0
        %v7296 = vadd.f32 0.0, %v7295
        %v7297 = vpop.f32.mrb[0].mxu0
        %7298 = vmatprep.mubr.f32.mxu0 0.0
        %7299 = vmatmul.mubr.f32.gmra.mrb[0].mxu0 %v7121
        %v7300 = vpop.f32.mrb[0].mxu0
        %v7301 = vadd.f32 0.0, %v7300
        %v7302 = vpop.f32.mrb[0].mxu0
        %7303 = vmatprep.mubr.f32.mxu0 0.0
        %7304 = vmatmul.mubr.f32.gmra.mrb[0].mxu0 %v7124
        %v7305 = vpop.f32.mrb[0].mxu0
        %v7306 = vadd.f32 0.0, %v7305
        %v7307 = vpop.f32.mrb[0].mxu0
        %7308 = vmatprep.mubr.f32.mxu0 0.0
        %7309 = vmatmul.mubr.f32.gmra.mrb[0].mxu0 %v7127
        %v7310 = vpop.f32.mrb[0].mxu0
        %v7311 = vadd.f32 0.0, %v7310
        %v7312 = vpop.f32.mrb[0].mxu0
        %7313 = vmatprep.mubr.f32.mxu0 0.0
        %7314 = vmatmul.mubr.f32.gmra.mrb[0].mxu0 %v7130
        %v7315 = vpop.f32.mrb[0].mxu0
        %v7316 = vadd.f32 0.0, %v7315
        %v7317 = vpop.f32.mrb[0].mxu0
        %7318 = vmatprep.mubr.f32.mxu0 0.0
        %7319 = vmatmul.mubr.f32.gmra.mrb[0].mxu0 %v7133
        %v7320 = vpop.f32.mrb[0].mxu0
        %v7321 = vadd.f32 0.0, %v7320
        %v7322 = vpop.f32.mrb[0].mxu0
        %7323 = vmatprep.mubr.f32.mxu0 0.0
        %7324 = vmatmul.mubr.f32.gmra.mrb[0].mxu0 %v7136
        %v7325 = vpop.f32.mrb[0].mxu0
        %v7326 = vadd.f32 0.0, %v7325
        %v7327 = vpop.f32.mrb[0].mxu0
        %7328 = vmatprep.mubr.f32.mxu0 0.0
        %7329 = vmatmul.mubr.f32.gmra.mrb[0].mxu0 %v7139
        %v7330 = vpop.f32.mrb[0].mxu0
        %v7331 = vadd.f32 0.0, %v7330
        %v7332 = vpop.f32.mrb[0].mxu0
        %7333 = vmatprep.mubr.f32.mxu0 0.0
        %7334 = vmatmul.mubr.f32.gmra.mrb[0].mxu0 %v7142
        %v7335 = vpop.f32.mrb[0].mxu0
        %v7336 = vadd.f32 0.0, %v7335
        %v7337 = vpop.f32.mrb[0].mxu0
        %7338 = vmatprep.mubr.f32.mxu0 0.0
        %7339 = vmatmul.mubr.f32.gmra.mrb[0].mxu0 %v7145
        %v7340 = vpop.f32.mrb[0].mxu0
        %v7341 = vadd.f32 0.0, %v7340
        %v7342 = vpop.f32.mrb[0].mxu0
        %7343 = vmatprep.mubr.f32.mxu0 0.0
        %7344 = vmatmul.mubr.f32.gmra.mrb[0].mxu0 %v7148
        %v7345 = vpop.f32.mrb[0].mxu0
        %v7346 = vadd.f32 0.0, %v7345
        %v7347 = vpop.f32.mrb[0].mxu0
        %7348 = vmatprep.mubr.f32.mxu0 0.0
        %7349 = vmatmul.mubr.f32.gmra.mrb[0].mxu0 %v7151
        %v7350 = vpop.f32.mrb[0].mxu0
        %v7351 = vadd.f32 0.0, %v7350
        %v7352 = vpop.f32.mrb[0].mxu0
        %7353 = vmatprep.mubr.f32.mxu0 0.0
        %7354 = vmatmul.mubr.f32.gmra.mrb[0].mxu0 %v7154
        %v7355 = vpop.f32.mrb[0].mxu0
        %v7356 = vadd.f32 0.0, %v7355
        %v7357 = vpop.f32.mrb[0].mxu0
        %7358 = vmatprep.mubr.f32.mxu0 0.0
        %7359 = vmatmul.mubr.f32.gmra.mrb[0].mxu0 %v7157
        %v7360 = vpop.f32.mrb[0].mxu0
        %v7361 = vadd.f32 0.0, %v7360
        %v7362 = vpop.f32.mrb[0].mxu0
        %7363 = vmatprep.mubr.f32.mxu0 0.0
        %7364 = vmatmul.mubr.f32.gmra.mrb[0].mxu0 %v7160
        %v7365 = vpop.f32.mrb[0].mxu0
        %v7366 = vadd.f32 0.0, %v7365
        %v7367 = vpop.f32.mrb[0].mxu0
        %7368 = vmatprep.mubr.f32.mxu0 0.0
        %7369 = vmatmul.mubr.f32.gmra.mrb[0].mxu0 %v7163
        %v7370 = vpop.f32.mrb[0].mxu0
        %v7371 = vadd.f32 0.0, %v7370
        %v7372 = vpop.f32.mrb[0].mxu0
        %7373 = vmatprep.mubr.f32.mxu0 0.0
        %7374 = vmatmul.mubr.f32.gmra.mrb[0].mxu0 %v7166
        %v7375 = vpop.f32.mrb[0].mxu0
        %v7376 = vadd.f32 0.0, %v7375
        %v7377 = vpop.f32.mrb[0].mxu0
        %7378 = vmatprep.mubr.f32.mxu0 0.0
        %7379 = vmatmul.mubr.f32.gmra.mrb[0].mxu0 %v7169
        %v7380 = vpop.f32.mrb[0].mxu0
        %v7381 = vadd.f32 0.0, %v7380
        %v7382 = vpop.f32.mrb[0].mxu0
        %7383 = vmatprep.mubr.f32.mxu0 0.0
        %7384 = vmatmul.mubr.f32.gmra.mrb[0].mxu0 %v7172
        %v7385 = vpop.f32.mrb[0].mxu0
        %v7386 = vadd.f32 0.0, %v7385
        %v7387 = vpop.f32.mrb[0].mxu0
        %7388 = vmatprep.mubr.f32.mxu0 0.0
        %7389 = vmatmul.mubr.f32.gmra.mrb[0].mxu0 %v7175
        %v7390 = vpop.f32.mrb[0].mxu0
        %v7391 = vadd.f32 0.0, %v7390
        %v7392 = vpop.f32.mrb[0].mxu0
        %7393 = vmatprep.mubr.f32.mxu0 0.0
        %7394 = vmatmul.mubr.f32.gmra.mrb[0].mxu0 %v7178
        %v7395 = vpop.f32.mrb[0].mxu0
        %v7396 = vadd.f32 0.0, %v7395
        %v7397 = vpop.f32.mrb[0].mxu0
        %7398 = vmatprep.mubr.f32.mxu0 0.0
        %7399 = vmatmul.mubr.f32.gmra.mrb[0].mxu0 %v7181
        %v7400 = vpop.f32.mrb[0].mxu0
        %v7401 = vadd.f32 0.0, %v7400
        %v7402 = vpop.f32.mrb[0].mxu0
        %7403 = vmatprep.mubr.f32.mxu0 0.0
        %7404 = vmatmul.mubr.f32.gmra.mrb[0].mxu0 %v7184
        %v7405 = vpop.f32.mrb[0].mxu0
        %v7406 = vadd.f32 0.0, %v7405
        %v7407 = vpop.f32.mrb[0].mxu0
        %7408 = vmatprep.mubr.f32.mxu0 0.0
        %7409 = vmatmul.mubr.f32.gmra.mrb[0].mxu0 %v7187
        %v7410 = vpop.f32.mrb[0].mxu0
        %v7411 = vadd.f32 0.0, %v7410
        %v7412 = vpop.f32.mrb[0].mxu0
        %7413 = vdwg.mxu0
        %v7414 = vadd.f32 %v7016, %v7256
        %v7415 = vadd.f32 %v7017, %v7261
        %v7416 = vadd.f32 %v7018, %v7266
        %v7417 = vadd.f32 %v7019, %v7271
        %v7418 = vadd.f32 %v7020, %v7276
        %v7419 = vadd.f32 %v7021, %v7281
        %v7420 = vadd.f32 %v7022, %v7286
        %v7421 = vadd.f32 %v7023, %v7291
        %v7422 = vadd.f32 %v7024, %v7296
        %v7423 = vadd.f32 %v7025, %v7301
        %v7424 = vadd.f32 %v7026, %v7306
        %v7425 = vadd.f32 %v7027, %v7311
        %v7426 = vadd.f32 %v7028, %v7316
        %v7427 = vadd.f32 %v7029, %v7321
        %v7428 = vadd.f32 %v7030, %v7326
        %v7429 = vadd.f32 %v7031, %v7331
        %v7430 = vadd.f32 %v7032, %v7336
        %v7431 = vadd.f32 %v7033, %v7341
        %v7432 = vadd.f32 %v7034, %v7346
        %v7433 = vadd.f32 %v7035, %v7351
        %v7434 = vadd.f32 %v7036, %v7356
        %v7435 = vadd.f32 %v7037, %v7361
        %v7436 = vadd.f32 %v7038, %v7366
        %v7437 = vadd.f32 %v7039, %v7371
        %v7438 = vadd.f32 %v7040, %v7376
        %v7439 = vadd.f32 %v7041, %v7381
        %v7440 = vadd.f32 %v7042, %v7386
        %v7441 = vadd.f32 %v7043, %v7391
        %v7442 = vadd.f32 %v7044, %v7396
        %v7443 = vadd.f32 %v7045, %v7401
        %v7444 = vadd.f32 %v7046, %v7406
        %v7445 = vadd.f32 %v7047, %v7411
        %v7446 = vld [vmem:[%s5886 + $0x1] sm:$0xff]
        %v7447 = vld [vmem:[%s5886 + $0x9] sm:$0xff]
        %v7448 = vld [vmem:[%s5886 + $0x19] sm:$0xff]
        %v7449 = vld [vmem:[%s5886 + $0x21] sm:$0xff]
        %v7450 = vld [vmem:[%s5886 + $0x31] sm:$0xff]
        %v7451 = vld [vmem:[%s5886 + $0x39] sm:$0xff]
        %v7452 = vld [vmem:[%s5886 + $0x49] sm:$0xff]
        %v7453 = vld [vmem:[%s5886 + $0x51] sm:$0xff]
        %v7454 = vld [vmem:[%s5886 + $0x61] sm:$0xff]
        %v7455 = vld [vmem:[%s5886 + $0x69] sm:$0xff]
        %v7456 = vld [vmem:[%s5886 + $0x79] sm:$0xff]
        %v7457 = vld [vmem:[%s5886 + $0x81] sm:$0xff]
        %v7458 = vld [vmem:[%s5886 + $0x91] sm:$0xff]
        %v7459 = vld [vmem:[%s5886 + $0x99] sm:$0xff]
        %v7460 = vld [vmem:[%s5886 + $0xa9] sm:$0xff]
        %v7461 = vld [vmem:[%s5886 + $0xb1] sm:$0xff]
        %v7462 = vld [vmem:[%s5886 + $0xc1] sm:$0xff]
        %v7463 = vld [vmem:[%s5886 + $0xc9] sm:$0xff]
        %v7464 = vld [vmem:[%s5886 + $0xd9] sm:$0xff]
        %v7465 = vld [vmem:[%s5886 + $0xe1] sm:$0xff]
        %v7466 = vld [vmem:[%s5886 + $0xf1] sm:$0xff]
        %v7467 = vld [vmem:[%s5886 + $0xf9] sm:$0xff]
        %v7468 = vld [vmem:[%s5886 + $0x109] sm:$0xff]
        %v7469 = vld [vmem:[%s5886 + $0x111] sm:$0xff]
        %v7470 = vld [vmem:[%s5886 + $0x121] sm:$0xff]
        %v7471 = vld [vmem:[%s5886 + $0x129] sm:$0xff]
        %v7472 = vld [vmem:[%s5886 + $0x139] sm:$0xff]
        %v7473 = vld [vmem:[%s5886 + $0x141] sm:$0xff]
        %v7474 = vld [vmem:[%s5886 + $0x151] sm:$0xff]
        %v7475 = vld [vmem:[%s5886 + $0x159] sm:$0xff]
        %v7476 = vld [vmem:[%s5886 + $0x169] sm:$0xff]
        %v7477 = vld [vmem:[%s5886 + $0x171] sm:$0xff]
        %s7478 = scalar_lea.vmem %s8, 384
        %v7479 = vld [vmem:[%s7478] sm:$0xff]
        %v7480 = vld [vmem:[%s7478 + $0x8] sm:$0xff]
        %v7481 = vld [vmem:[%s7478 + $0x10] sm:$0xff]
        %v7482 = vld [vmem:[%s7478 + $0x18] sm:$0xff]
        %v7483 = vld [vmem:[%s7478 + $0x20] sm:$0xff]
        %v7484 = vld [vmem:[%s7478 + $0x28] sm:$0xff]
        %v7485 = vld [vmem:[%s7478 + $0x30] sm:$0xff]
        %v7486 = vld [vmem:[%s7478 + $0x38] sm:$0xff]
        %v7487 = vld [vmem:[%s7478 + $0x40] sm:$0xff]
        %v7488 = vld [vmem:[%s7478 + $0x48] sm:$0xff]
        %v7489 = vld [vmem:[%s7478 + $0x50] sm:$0xff]
        %v7490 = vld [vmem:[%s7478 + $0x58] sm:$0xff]
        %v7492 = vsel %vm521, %v7446, 0
        %v7495 = vsel %vm521, %v7447, 0
        %v7498 = vsel %vm521, %v7448, 0
        %v7501 = vsel %vm521, %v7449, 0
        %v7504 = vsel %vm521, %v7450, 0
        %v7507 = vsel %vm521, %v7451, 0
        %v7510 = vsel %vm521, %v7452, 0
        %v7513 = vsel %vm521, %v7453, 0
        %v7516 = vsel %vm521, %v7454, 0
        %v7519 = vsel %vm521, %v7455, 0
        %v7522 = vsel %vm521, %v7456, 0
        %v7525 = vsel %vm521, %v7457, 0
        %v7528 = vsel %vm521, %v7458, 0
        %v7531 = vsel %vm521, %v7459, 0
        %v7534 = vsel %vm521, %v7460, 0
        %v7537 = vsel %vm521, %v7461, 0
        %v7540 = vsel %vm521, %v7462, 0
        %v7543 = vsel %vm521, %v7463, 0
        %v7546 = vsel %vm521, %v7464, 0
        %v7549 = vsel %vm521, %v7465, 0
        %v7552 = vsel %vm521, %v7466, 0
        %v7555 = vsel %vm521, %v7467, 0
        %v7558 = vsel %vm521, %v7468, 0
        %v7561 = vsel %vm521, %v7469, 0
        %v7564 = vsel %vm521, %v7470, 0
        %v7567 = vsel %vm521, %v7471, 0
        %v7570 = vsel %vm521, %v7472, 0
        %v7573 = vsel %vm521, %v7473, 0
        %v7576 = vsel %vm521, %v7474, 0
        %v7579 = vsel %vm521, %v7475, 0
        %v7582 = vsel %vm521, %v7476, 0
        %v7585 = vsel %vm521, %v7477, 0
        %7587 = vmatprep.subr.mxu0 0.0
        %7588 = vmatpush1.msra.mxu0 %v7479
        %7589 = vmatprep.subr.mxu0 0.0
        %7590 = vmatpush1.msra.mxu0 %v7480
        %7591 = vmatprep.subr.mxu0 0.0
        %7592 = vmatpush1.msra.mxu0 %v7481
        %7593 = vmatprep.subr.mxu0 0.0
        %7594 = vmatpush1.msra.mxu0 %v7482
        %7595 = vmatprep.subr.mxu0 0.0
        %7596 = vmatpush1.msra.mxu0 %v7483
        %7597 = vmatprep.subr.mxu0 0.0
        %7598 = vmatpush1.msra.mxu0 %v7484
        %7599 = vmatprep.subr.mxu0 0.0
        %7600 = vmatpush1.msra.mxu0 %v7485
        %7601 = vmatprep.subr.mxu0 0.0
        %7602 = vmatpush1.msra.mxu0 %v7486
        %7603 = vmatprep.subr.mxu0 0.0
        %7604 = vmatpush1.msra.mxu0 %v7487
        %7605 = vmatprep.subr.mxu0 0.0
        %7606 = vmatpush1.msra.mxu0 %v7488
        %7607 = vmatprep.subr.mxu0 0.0
        %7608 = vmatpush1.msra.mxu0 %v7489
        %7609 = vmatprep.subr.mxu0 0.0
        %7610 = vmatpush1.msra.mxu0 %v7490
        %7611 = vmatprep.subr.mxu0 0.0
        %7612 = vmatpush1.msra.mxu0 0.0
        %7613 = vmatprep.subr.mxu0 0.0
        %7614 = vmatpush1.msra.mxu0 0.0
        %7615 = vmatprep.subr.mxu0 0.0
        %7616 = vmatpush1.msra.mxu0 0.0
        %7617 = vmatprep.subr.mxu0 0.0
        %7618 = vmatpush1.msra.mxu0 0.0
        %7619 = vmatprep.subr.mxu0 0.0
        %7620 = vmatpush1.msra.mxu0 0.0
        %7621 = vmatprep.subr.mxu0 0.0
        %7622 = vmatpush1.msra.mxu0 0.0
        %7623 = vmatprep.subr.mxu0 0.0
        %7624 = vmatpush1.msra.mxu0 0.0
        %7625 = vmatprep.subr.mxu0 0.0
        %7626 = vmatpush1.msra.mxu0 0.0
        %7627 = vmatprep.subr.mxu0 0.0
        %7628 = vmatpush1.msra.mxu0 0.0
        %7629 = vmatprep.subr.mxu0 0.0
        %7630 = vmatpush1.msra.mxu0 0.0
        %7631 = vmatprep.subr.mxu0 0.0
        %7632 = vmatpush1.msra.mxu0 0.0
        %7633 = vmatprep.subr.mxu0 0.0
        %7634 = vmatpush1.msra.mxu0 0.0
        %7635 = vmatprep.subr.mxu0 0.0
        %7636 = vmatpush1.msra.mxu0 0.0
        %7637 = vmatprep.subr.mxu0 0.0
        %7638 = vmatpush1.msra.mxu0 0.0
        %7639 = vmatprep.subr.mxu0 0.0
        %7640 = vmatpush1.msra.mxu0 0.0
        %7641 = vmatprep.subr.mxu0 0.0
        %7642 = vmatpush1.msra.mxu0 0.0
        %7643 = vmatprep.subr.mxu0 0.0
        %7644 = vmatpush1.msra.mxu0 0.0
        %7645 = vmatprep.subr.mxu0 0.0
        %7646 = vmatpush1.msra.mxu0 0.0
        %7647 = vmatprep.subr.mxu0 0.0
        %7648 = vmatpush1.msra.mxu0 0.0
        %7649 = vmatprep.subr.mxu0 0.0
        %7650 = vmatpush1.msra.mxu0 0.0
        %7651 = vmatprep.mubr.f32.mxu0 0.0
        %7652 = vmatmul.mubr.f32.gmra.mrb[0].mxu0 %v7492
        %v7653 = vpop.f32.mrb[0].mxu0
        %v7654 = vadd.f32 0.0, %v7653
        %v7655 = vpop.f32.mrb[0].mxu0
        %7656 = vmatprep.mubr.f32.mxu0 0.0
        %7657 = vmatmul.mubr.f32.gmra.mrb[0].mxu0 %v7495
        %v7658 = vpop.f32.mrb[0].mxu0
        %v7659 = vadd.f32 0.0, %v7658
        %v7660 = vpop.f32.mrb[0].mxu0
        %7661 = vmatprep.mubr.f32.mxu0 0.0
        %7662 = vmatmul.mubr.f32.gmra.mrb[0].mxu0 %v7498
        %v7663 = vpop.f32.mrb[0].mxu0
        %v7664 = vadd.f32 0.0, %v7663
        %v7665 = vpop.f32.mrb[0].mxu0
        %7666 = vmatprep.mubr.f32.mxu0 0.0
        %7667 = vmatmul.mubr.f32.gmra.mrb[0].mxu0 %v7501
        %v7668 = vpop.f32.mrb[0].mxu0
        %v7669 = vadd.f32 0.0, %v7668
        %v7670 = vpop.f32.mrb[0].mxu0
        %7671 = vmatprep.mubr.f32.mxu0 0.0
        %7672 = vmatmul.mubr.f32.gmra.mrb[0].mxu0 %v7504
        %v7673 = vpop.f32.mrb[0].mxu0
        %v7674 = vadd.f32 0.0, %v7673
        %v7675 = vpop.f32.mrb[0].mxu0
        %7676 = vmatprep.mubr.f32.mxu0 0.0
        %7677 = vmatmul.mubr.f32.gmra.mrb[0].mxu0 %v7507
        %v7678 = vpop.f32.mrb[0].mxu0
        %v7679 = vadd.f32 0.0, %v7678
        %v7680 = vpop.f32.mrb[0].mxu0
        %7681 = vmatprep.mubr.f32.mxu0 0.0
        %7682 = vmatmul.mubr.f32.gmra.mrb[0].mxu0 %v7510
        %v7683 = vpop.f32.mrb[0].mxu0
        %v7684 = vadd.f32 0.0, %v7683
        %v7685 = vpop.f32.mrb[0].mxu0
        %7686 = vmatprep.mubr.f32.mxu0 0.0
        %7687 = vmatmul.mubr.f32.gmra.mrb[0].mxu0 %v7513
        %v7688 = vpop.f32.mrb[0].mxu0
        %v7689 = vadd.f32 0.0, %v7688
        %v7690 = vpop.f32.mrb[0].mxu0
        %7691 = vmatprep.mubr.f32.mxu0 0.0
        %7692 = vmatmul.mubr.f32.gmra.mrb[0].mxu0 %v7516
        %v7693 = vpop.f32.mrb[0].mxu0
        %v7694 = vadd.f32 0.0, %v7693
        %v7695 = vpop.f32.mrb[0].mxu0
        %7696 = vmatprep.mubr.f32.mxu0 0.0
        %7697 = vmatmul.mubr.f32.gmra.mrb[0].mxu0 %v7519
        %v7698 = vpop.f32.mrb[0].mxu0
        %v7699 = vadd.f32 0.0, %v7698
        %v7700 = vpop.f32.mrb[0].mxu0
        %7701 = vmatprep.mubr.f32.mxu0 0.0
        %7702 = vmatmul.mubr.f32.gmra.mrb[0].mxu0 %v7522
        %v7703 = vpop.f32.mrb[0].mxu0
        %v7704 = vadd.f32 0.0, %v7703
        %v7705 = vpop.f32.mrb[0].mxu0
        %7706 = vmatprep.mubr.f32.mxu0 0.0
        %7707 = vmatmul.mubr.f32.gmra.mrb[0].mxu0 %v7525
        %v7708 = vpop.f32.mrb[0].mxu0
        %v7709 = vadd.f32 0.0, %v7708
        %v7710 = vpop.f32.mrb[0].mxu0
        %7711 = vmatprep.mubr.f32.mxu0 0.0
        %7712 = vmatmul.mubr.f32.gmra.mrb[0].mxu0 %v7528
        %v7713 = vpop.f32.mrb[0].mxu0
        %v7714 = vadd.f32 0.0, %v7713
        %v7715 = vpop.f32.mrb[0].mxu0
        %7716 = vmatprep.mubr.f32.mxu0 0.0
        %7717 = vmatmul.mubr.f32.gmra.mrb[0].mxu0 %v7531
        %v7718 = vpop.f32.mrb[0].mxu0
        %v7719 = vadd.f32 0.0, %v7718
        %v7720 = vpop.f32.mrb[0].mxu0
        %7721 = vmatprep.mubr.f32.mxu0 0.0
        %7722 = vmatmul.mubr.f32.gmra.mrb[0].mxu0 %v7534
        %v7723 = vpop.f32.mrb[0].mxu0
        %v7724 = vadd.f32 0.0, %v7723
        %v7725 = vpop.f32.mrb[0].mxu0
        %7726 = vmatprep.mubr.f32.mxu0 0.0
        %7727 = vmatmul.mubr.f32.gmra.mrb[0].mxu0 %v7537
        %v7728 = vpop.f32.mrb[0].mxu0
        %v7729 = vadd.f32 0.0, %v7728
        %v7730 = vpop.f32.mrb[0].mxu0
        %7731 = vmatprep.mubr.f32.mxu0 0.0
        %7732 = vmatmul.mubr.f32.gmra.mrb[0].mxu0 %v7540
        %v7733 = vpop.f32.mrb[0].mxu0
        %v7734 = vadd.f32 0.0, %v7733
        %v7735 = vpop.f32.mrb[0].mxu0
        %7736 = vmatprep.mubr.f32.mxu0 0.0
        %7737 = vmatmul.mubr.f32.gmra.mrb[0].mxu0 %v7543
        %v7738 = vpop.f32.mrb[0].mxu0
        %v7739 = vadd.f32 0.0, %v7738
        %v7740 = vpop.f32.mrb[0].mxu0
        %7741 = vmatprep.mubr.f32.mxu0 0.0
        %7742 = vmatmul.mubr.f32.gmra.mrb[0].mxu0 %v7546
        %v7743 = vpop.f32.mrb[0].mxu0
        %v7744 = vadd.f32 0.0, %v7743
        %v7745 = vpop.f32.mrb[0].mxu0
        %7746 = vmatprep.mubr.f32.mxu0 0.0
        %7747 = vmatmul.mubr.f32.gmra.mrb[0].mxu0 %v7549
        %v7748 = vpop.f32.mrb[0].mxu0
        %v7749 = vadd.f32 0.0, %v7748
        %v7750 = vpop.f32.mrb[0].mxu0
        %7751 = vmatprep.mubr.f32.mxu0 0.0
        %7752 = vmatmul.mubr.f32.gmra.mrb[0].mxu0 %v7552
        %v7753 = vpop.f32.mrb[0].mxu0
        %v7754 = vadd.f32 0.0, %v7753
        %v7755 = vpop.f32.mrb[0].mxu0
        %7756 = vmatprep.mubr.f32.mxu0 0.0
        %7757 = vmatmul.mubr.f32.gmra.mrb[0].mxu0 %v7555
        %v7758 = vpop.f32.mrb[0].mxu0
        %v7759 = vadd.f32 0.0, %v7758
        %v7760 = vpop.f32.mrb[0].mxu0
        %7761 = vmatprep.mubr.f32.mxu0 0.0
        %7762 = vmatmul.mubr.f32.gmra.mrb[0].mxu0 %v7558
        %v7763 = vpop.f32.mrb[0].mxu0
        %v7764 = vadd.f32 0.0, %v7763
        %v7765 = vpop.f32.mrb[0].mxu0
        %7766 = vmatprep.mubr.f32.mxu0 0.0
        %7767 = vmatmul.mubr.f32.gmra.mrb[0].mxu0 %v7561
        %v7768 = vpop.f32.mrb[0].mxu0
        %v7769 = vadd.f32 0.0, %v7768
        %v7770 = vpop.f32.mrb[0].mxu0
        %7771 = vmatprep.mubr.f32.mxu0 0.0
        %7772 = vmatmul.mubr.f32.gmra.mrb[0].mxu0 %v7564
        %v7773 = vpop.f32.mrb[0].mxu0
        %v7774 = vadd.f32 0.0, %v7773
        %v7775 = vpop.f32.mrb[0].mxu0
        %7776 = vmatprep.mubr.f32.mxu0 0.0
        %7777 = vmatmul.mubr.f32.gmra.mrb[0].mxu0 %v7567
        %v7778 = vpop.f32.mrb[0].mxu0
        %v7779 = vadd.f32 0.0, %v7778
        %v7780 = vpop.f32.mrb[0].mxu0
        %7781 = vmatprep.mubr.f32.mxu0 0.0
        %7782 = vmatmul.mubr.f32.gmra.mrb[0].mxu0 %v7570
        %v7783 = vpop.f32.mrb[0].mxu0
        %v7784 = vadd.f32 0.0, %v7783
        %v7785 = vpop.f32.mrb[0].mxu0
        %7786 = vmatprep.mubr.f32.mxu0 0.0
        %7787 = vmatmul.mubr.f32.gmra.mrb[0].mxu0 %v7573
        %v7788 = vpop.f32.mrb[0].mxu0
        %v7789 = vadd.f32 0.0, %v7788
        %v7790 = vpop.f32.mrb[0].mxu0
        %7791 = vmatprep.mubr.f32.mxu0 0.0
        %7792 = vmatmul.mubr.f32.gmra.mrb[0].mxu0 %v7576
        %v7793 = vpop.f32.mrb[0].mxu0
        %v7794 = vadd.f32 0.0, %v7793
        %v7795 = vpop.f32.mrb[0].mxu0
        %7796 = vmatprep.mubr.f32.mxu0 0.0
        %7797 = vmatmul.mubr.f32.gmra.mrb[0].mxu0 %v7579
        %v7798 = vpop.f32.mrb[0].mxu0
        %v7799 = vadd.f32 0.0, %v7798
        %v7800 = vpop.f32.mrb[0].mxu0
        %7801 = vmatprep.mubr.f32.mxu0 0.0
        %7802 = vmatmul.mubr.f32.gmra.mrb[0].mxu0 %v7582
        %v7803 = vpop.f32.mrb[0].mxu0
        %v7804 = vadd.f32 0.0, %v7803
        %v7805 = vpop.f32.mrb[0].mxu0
        %7806 = vmatprep.mubr.f32.mxu0 0.0
        %7807 = vmatmul.mubr.f32.gmra.mrb[0].mxu0 %v7585
        %v7808 = vpop.f32.mrb[0].mxu0
        %v7809 = vadd.f32 0.0, %v7808
        %v7810 = vpop.f32.mrb[0].mxu0
        %7811 = vdwg.mxu0
        %v7812 = vadd.f32 %v7414, %v7654
        %v7813 = vadd.f32 %v7415, %v7659
        %v7814 = vadd.f32 %v7416, %v7664
        %v7815 = vadd.f32 %v7417, %v7669
        %v7816 = vadd.f32 %v7418, %v7674
        %v7817 = vadd.f32 %v7419, %v7679
        %v7818 = vadd.f32 %v7420, %v7684
        %v7819 = vadd.f32 %v7421, %v7689
        %v7820 = vadd.f32 %v7422, %v7694
        %v7821 = vadd.f32 %v7423, %v7699
        %v7822 = vadd.f32 %v7424, %v7704
        %v7823 = vadd.f32 %v7425, %v7709
        %v7824 = vadd.f32 %v7426, %v7714
        %v7825 = vadd.f32 %v7427, %v7719
        %v7826 = vadd.f32 %v7428, %v7724
        %v7827 = vadd.f32 %v7429, %v7729
        %v7828 = vadd.f32 %v7430, %v7734
        %v7829 = vadd.f32 %v7431, %v7739
        %v7830 = vadd.f32 %v7432, %v7744
        %v7831 = vadd.f32 %v7433, %v7749
        %v7832 = vadd.f32 %v7434, %v7754
        %v7833 = vadd.f32 %v7435, %v7759
        %v7834 = vadd.f32 %v7436, %v7764
        %v7835 = vadd.f32 %v7437, %v7769
        %v7836 = vadd.f32 %v7438, %v7774
        %v7837 = vadd.f32 %v7439, %v7779
        %v7838 = vadd.f32 %v7440, %v7784
        %v7839 = vadd.f32 %v7441, %v7789
        %v7840 = vadd.f32 %v7442, %v7794
        %v7841 = vadd.f32 %v7443, %v7799
        %v7842 = vadd.f32 %v7444, %v7804
        %v7843 = vadd.f32 %v7445, %v7809
        %v7844 = vld [vmem:[%s5886 + $0x2] sm:$0xff]
        %v7845 = vld [vmem:[%s5886 + $0xa] sm:$0xff]
        %v7846 = vld [vmem:[%s5886 + $0x1a] sm:$0xff]
        %v7847 = vld [vmem:[%s5886 + $0x22] sm:$0xff]
        %v7848 = vld [vmem:[%s5886 + $0x32] sm:$0xff]
        %v7849 = vld [vmem:[%s5886 + $0x3a] sm:$0xff]
        %v7850 = vld [vmem:[%s5886 + $0x4a] sm:$0xff]
        %v7851 = vld [vmem:[%s5886 + $0x52] sm:$0xff]
        %v7852 = vld [vmem:[%s5886 + $0x62] sm:$0xff]
        %v7853 = vld [vmem:[%s5886 + $0x6a] sm:$0xff]
        %v7854 = vld [vmem:[%s5886 + $0x7a] sm:$0xff]
        %v7855 = vld [vmem:[%s5886 + $0x82] sm:$0xff]
        %v7856 = vld [vmem:[%s5886 + $0x92] sm:$0xff]
        %v7857 = vld [vmem:[%s5886 + $0x9a] sm:$0xff]
        %v7858 = vld [vmem:[%s5886 + $0xaa] sm:$0xff]
        %v7859 = vld [vmem:[%s5886 + $0xb2] sm:$0xff]
        %v7860 = vld [vmem:[%s5886 + $0xc2] sm:$0xff]
        %v7861 = vld [vmem:[%s5886 + $0xca] sm:$0xff]
        %v7862 = vld [vmem:[%s5886 + $0xda] sm:$0xff]
        %v7863 = vld [vmem:[%s5886 + $0xe2] sm:$0xff]
        %v7864 = vld [vmem:[%s5886 + $0xf2] sm:$0xff]
        %v7865 = vld [vmem:[%s5886 + $0xfa] sm:$0xff]
        %v7866 = vld [vmem:[%s5886 + $0x10a] sm:$0xff]
        %v7867 = vld [vmem:[%s5886 + $0x112] sm:$0xff]
        %v7868 = vld [vmem:[%s5886 + $0x122] sm:$0xff]
        %v7869 = vld [vmem:[%s5886 + $0x12a] sm:$0xff]
        %v7870 = vld [vmem:[%s5886 + $0x13a] sm:$0xff]
        %v7871 = vld [vmem:[%s5886 + $0x142] sm:$0xff]
        %v7872 = vld [vmem:[%s5886 + $0x152] sm:$0xff]
        %v7873 = vld [vmem:[%s5886 + $0x15a] sm:$0xff]
        %v7874 = vld [vmem:[%s5886 + $0x16a] sm:$0xff]
        %v7875 = vld [vmem:[%s5886 + $0x172] sm:$0xff]
        %s7876 = scalar_lea.vmem %s8, 480
        %v7877 = vld [vmem:[%s7876] sm:$0xff]
        %v7878 = vld [vmem:[%s7876 + $0x8] sm:$0xff]
        %v7879 = vld [vmem:[%s7876 + $0x10] sm:$0xff]
        %v7880 = vld [vmem:[%s7876 + $0x18] sm:$0xff]
        %v7881 = vld [vmem:[%s7876 + $0x20] sm:$0xff]
        %v7882 = vld [vmem:[%s7876 + $0x28] sm:$0xff]
        %v7883 = vld [vmem:[%s7876 + $0x30] sm:$0xff]
        %v7884 = vld [vmem:[%s7876 + $0x38] sm:$0xff]
        %v7885 = vld [vmem:[%s7876 + $0x40] sm:$0xff]
        %v7886 = vld [vmem:[%s7876 + $0x48] sm:$0xff]
        %v7887 = vld [vmem:[%s7876 + $0x50] sm:$0xff]
        %v7888 = vld [vmem:[%s7876 + $0x58] sm:$0xff]
        %v7890 = vsel %vm521, %v7844, 0
        %v7893 = vsel %vm521, %v7845, 0
        %v7896 = vsel %vm521, %v7846, 0
        %v7899 = vsel %vm521, %v7847, 0
        %v7902 = vsel %vm521, %v7848, 0
        %v7905 = vsel %vm521, %v7849, 0
        %v7908 = vsel %vm521, %v7850, 0
        %v7911 = vsel %vm521, %v7851, 0
        %v7914 = vsel %vm521, %v7852, 0
        %v7917 = vsel %vm521, %v7853, 0
        %v7920 = vsel %vm521, %v7854, 0
        %v7923 = vsel %vm521, %v7855, 0
        %v7926 = vsel %vm521, %v7856, 0
        %v7929 = vsel %vm521, %v7857, 0
        %v7932 = vsel %vm521, %v7858, 0
        %v7935 = vsel %vm521, %v7859, 0
        %v7938 = vsel %vm521, %v7860, 0
        %v7941 = vsel %vm521, %v7861, 0
        %v7944 = vsel %vm521, %v7862, 0
        %v7947 = vsel %vm521, %v7863, 0
        %v7950 = vsel %vm521, %v7864, 0
        %v7953 = vsel %vm521, %v7865, 0
        %v7956 = vsel %vm521, %v7866, 0
        %v7959 = vsel %vm521, %v7867, 0
        %v7962 = vsel %vm521, %v7868, 0
        %v7965 = vsel %vm521, %v7869, 0
        %v7968 = vsel %vm521, %v7870, 0
        %v7971 = vsel %vm521, %v7871, 0
        %v7974 = vsel %vm521, %v7872, 0
        %v7977 = vsel %vm521, %v7873, 0
        %v7980 = vsel %vm521, %v7874, 0
        %v7983 = vsel %vm521, %v7875, 0
        %7985 = vmatprep.subr.mxu0 0.0
        %7986 = vmatpush1.msra.mxu0 %v7877
        %7987 = vmatprep.subr.mxu0 0.0
        %7988 = vmatpush1.msra.mxu0 %v7878
        %7989 = vmatprep.subr.mxu0 0.0
        %7990 = vmatpush1.msra.mxu0 %v7879
        %7991 = vmatprep.subr.mxu0 0.0
        %7992 = vmatpush1.msra.mxu0 %v7880
        %7993 = vmatprep.subr.mxu0 0.0
        %7994 = vmatpush1.msra.mxu0 %v7881
        %7995 = vmatprep.subr.mxu0 0.0
        %7996 = vmatpush1.msra.mxu0 %v7882
        %7997 = vmatprep.subr.mxu0 0.0
        %7998 = vmatpush1.msra.mxu0 %v7883
        %7999 = vmatprep.subr.mxu0 0.0
        %8000 = vmatpush1.msra.mxu0 %v7884
        %8001 = vmatprep.subr.mxu0 0.0
        %8002 = vmatpush1.msra.mxu0 %v7885
        %8003 = vmatprep.subr.mxu0 0.0
        %8004 = vmatpush1.msra.mxu0 %v7886
        %8005 = vmatprep.subr.mxu0 0.0
        %8006 = vmatpush1.msra.mxu0 %v7887
        %8007 = vmatprep.subr.mxu0 0.0
        %8008 = vmatpush1.msra.mxu0 %v7888
        %8009 = vmatprep.subr.mxu0 0.0
        %8010 = vmatpush1.msra.mxu0 0.0
        %8011 = vmatprep.subr.mxu0 0.0
        %8012 = vmatpush1.msra.mxu0 0.0
        %8013 = vmatprep.subr.mxu0 0.0
        %8014 = vmatpush1.msra.mxu0 0.0
        %8015 = vmatprep.subr.mxu0 0.0
        %8016 = vmatpush1.msra.mxu0 0.0
        %8017 = vmatprep.subr.mxu0 0.0
        %8018 = vmatpush1.msra.mxu0 0.0
        %8019 = vmatprep.subr.mxu0 0.0
        %8020 = vmatpush1.msra.mxu0 0.0
        %8021 = vmatprep.subr.mxu0 0.0
        %8022 = vmatpush1.msra.mxu0 0.0
        %8023 = vmatprep.subr.mxu0 0.0
        %8024 = vmatpush1.msra.mxu0 0.0
        %8025 = vmatprep.subr.mxu0 0.0
        %8026 = vmatpush1.msra.mxu0 0.0
        %8027 = vmatprep.subr.mxu0 0.0
        %8028 = vmatpush1.msra.mxu0 0.0
        %8029 = vmatprep.subr.mxu0 0.0
        %8030 = vmatpush1.msra.mxu0 0.0
        %8031 = vmatprep.subr.mxu0 0.0
        %8032 = vmatpush1.msra.mxu0 0.0
        %8033 = vmatprep.subr.mxu0 0.0
        %8034 = vmatpush1.msra.mxu0 0.0
        %8035 = vmatprep.subr.mxu0 0.0
        %8036 = vmatpush1.msra.mxu0 0.0
        %8037 = vmatprep.subr.mxu0 0.0
        %8038 = vmatpush1.msra.mxu0 0.0
        %8039 = vmatprep.subr.mxu0 0.0
        %8040 = vmatpush1.msra.mxu0 0.0
        %8041 = vmatprep.subr.mxu0 0.0
        %8042 = vmatpush1.msra.mxu0 0.0
        %8043 = vmatprep.subr.mxu0 0.0
        %8044 = vmatpush1.msra.mxu0 0.0
        %8045 = vmatprep.subr.mxu0 0.0
        %8046 = vmatpush1.msra.mxu0 0.0
        %8047 = vmatprep.subr.mxu0 0.0
        %8048 = vmatpush1.msra.mxu0 0.0
        %8049 = vmatprep.mubr.f32.mxu0 0.0
        %8050 = vmatmul.mubr.f32.gmra.mrb[0].mxu0 %v7890
        %v8051 = vpop.f32.mrb[0].mxu0
        %v8052 = vadd.f32 0.0, %v8051
        %v8053 = vpop.f32.mrb[0].mxu0
        %8054 = vmatprep.mubr.f32.mxu0 0.0
        %8055 = vmatmul.mubr.f32.gmra.mrb[0].mxu0 %v7893
        %v8056 = vpop.f32.mrb[0].mxu0
        %v8057 = vadd.f32 0.0, %v8056
        %v8058 = vpop.f32.mrb[0].mxu0
        %8059 = vmatprep.mubr.f32.mxu0 0.0
        %8060 = vmatmul.mubr.f32.gmra.mrb[0].mxu0 %v7896
        %v8061 = vpop.f32.mrb[0].mxu0
        %v8062 = vadd.f32 0.0, %v8061
        %v8063 = vpop.f32.mrb[0].mxu0
        %8064 = vmatprep.mubr.f32.mxu0 0.0
        %8065 = vmatmul.mubr.f32.gmra.mrb[0].mxu0 %v7899
        %v8066 = vpop.f32.mrb[0].mxu0
        %v8067 = vadd.f32 0.0, %v8066
        %v8068 = vpop.f32.mrb[0].mxu0
        %8069 = vmatprep.mubr.f32.mxu0 0.0
        %8070 = vmatmul.mubr.f32.gmra.mrb[0].mxu0 %v7902
        %v8071 = vpop.f32.mrb[0].mxu0
        %v8072 = vadd.f32 0.0, %v8071
        %v8073 = vpop.f32.mrb[0].mxu0
        %8074 = vmatprep.mubr.f32.mxu0 0.0
        %8075 = vmatmul.mubr.f32.gmra.mrb[0].mxu0 %v7905
        %v8076 = vpop.f32.mrb[0].mxu0
        %v8077 = vadd.f32 0.0, %v8076
        %v8078 = vpop.f32.mrb[0].mxu0
        %8079 = vmatprep.mubr.f32.mxu0 0.0
        %8080 = vmatmul.mubr.f32.gmra.mrb[0].mxu0 %v7908
        %v8081 = vpop.f32.mrb[0].mxu0
        %v8082 = vadd.f32 0.0, %v8081
        %v8083 = vpop.f32.mrb[0].mxu0
        %8084 = vmatprep.mubr.f32.mxu0 0.0
        %8085 = vmatmul.mubr.f32.gmra.mrb[0].mxu0 %v7911
        %v8086 = vpop.f32.mrb[0].mxu0
        %v8087 = vadd.f32 0.0, %v8086
        %v8088 = vpop.f32.mrb[0].mxu0
        %8089 = vmatprep.mubr.f32.mxu0 0.0
        %8090 = vmatmul.mubr.f32.gmra.mrb[0].mxu0 %v7914
        %v8091 = vpop.f32.mrb[0].mxu0
        %v8092 = vadd.f32 0.0, %v8091
        %v8093 = vpop.f32.mrb[0].mxu0
        %8094 = vmatprep.mubr.f32.mxu0 0.0
        %8095 = vmatmul.mubr.f32.gmra.mrb[0].mxu0 %v7917
        %v8096 = vpop.f32.mrb[0].mxu0
        %v8097 = vadd.f32 0.0, %v8096
        %v8098 = vpop.f32.mrb[0].mxu0
        %8099 = vmatprep.mubr.f32.mxu0 0.0
        %8100 = vmatmul.mubr.f32.gmra.mrb[0].mxu0 %v7920
        %v8101 = vpop.f32.mrb[0].mxu0
        %v8102 = vadd.f32 0.0, %v8101
        %v8103 = vpop.f32.mrb[0].mxu0
        %8104 = vmatprep.mubr.f32.mxu0 0.0
        %8105 = vmatmul.mubr.f32.gmra.mrb[0].mxu0 %v7923
        %v8106 = vpop.f32.mrb[0].mxu0
        %v8107 = vadd.f32 0.0, %v8106
        %v8108 = vpop.f32.mrb[0].mxu0
        %8109 = vmatprep.mubr.f32.mxu0 0.0
        %8110 = vmatmul.mubr.f32.gmra.mrb[0].mxu0 %v7926
        %v8111 = vpop.f32.mrb[0].mxu0
        %v8112 = vadd.f32 0.0, %v8111
        %v8113 = vpop.f32.mrb[0].mxu0
        %8114 = vmatprep.mubr.f32.mxu0 0.0
        %8115 = vmatmul.mubr.f32.gmra.mrb[0].mxu0 %v7929
        %v8116 = vpop.f32.mrb[0].mxu0
        %v8117 = vadd.f32 0.0, %v8116
        %v8118 = vpop.f32.mrb[0].mxu0
        %8119 = vmatprep.mubr.f32.mxu0 0.0
        %8120 = vmatmul.mubr.f32.gmra.mrb[0].mxu0 %v7932
        %v8121 = vpop.f32.mrb[0].mxu0
        %v8122 = vadd.f32 0.0, %v8121
        %v8123 = vpop.f32.mrb[0].mxu0
        %8124 = vmatprep.mubr.f32.mxu0 0.0
        %8125 = vmatmul.mubr.f32.gmra.mrb[0].mxu0 %v7935
        %v8126 = vpop.f32.mrb[0].mxu0
        %v8127 = vadd.f32 0.0, %v8126
        %v8128 = vpop.f32.mrb[0].mxu0
        %8129 = vmatprep.mubr.f32.mxu0 0.0
        %8130 = vmatmul.mubr.f32.gmra.mrb[0].mxu0 %v7938
        %v8131 = vpop.f32.mrb[0].mxu0
        %v8132 = vadd.f32 0.0, %v8131
        %v8133 = vpop.f32.mrb[0].mxu0
        %8134 = vmatprep.mubr.f32.mxu0 0.0
        %8135 = vmatmul.mubr.f32.gmra.mrb[0].mxu0 %v7941
        %v8136 = vpop.f32.mrb[0].mxu0
        %v8137 = vadd.f32 0.0, %v8136
        %v8138 = vpop.f32.mrb[0].mxu0
        %8139 = vmatprep.mubr.f32.mxu0 0.0
        %8140 = vmatmul.mubr.f32.gmra.mrb[0].mxu0 %v7944
        %v8141 = vpop.f32.mrb[0].mxu0
        %v8142 = vadd.f32 0.0, %v8141
        %v8143 = vpop.f32.mrb[0].mxu0
        %8144 = vmatprep.mubr.f32.mxu0 0.0
        %8145 = vmatmul.mubr.f32.gmra.mrb[0].mxu0 %v7947
        %v8146 = vpop.f32.mrb[0].mxu0
        %v8147 = vadd.f32 0.0, %v8146
        %v8148 = vpop.f32.mrb[0].mxu0
        %8149 = vmatprep.mubr.f32.mxu0 0.0
        %8150 = vmatmul.mubr.f32.gmra.mrb[0].mxu0 %v7950
        %v8151 = vpop.f32.mrb[0].mxu0
        %v8152 = vadd.f32 0.0, %v8151
        %v8153 = vpop.f32.mrb[0].mxu0
        %8154 = vmatprep.mubr.f32.mxu0 0.0
        %8155 = vmatmul.mubr.f32.gmra.mrb[0].mxu0 %v7953
        %v8156 = vpop.f32.mrb[0].mxu0
        %v8157 = vadd.f32 0.0, %v8156
        %v8158 = vpop.f32.mrb[0].mxu0
        %8159 = vmatprep.mubr.f32.mxu0 0.0
        %8160 = vmatmul.mubr.f32.gmra.mrb[0].mxu0 %v7956
        %v8161 = vpop.f32.mrb[0].mxu0
        %v8162 = vadd.f32 0.0, %v8161
        %v8163 = vpop.f32.mrb[0].mxu0
        %8164 = vmatprep.mubr.f32.mxu0 0.0
        %8165 = vmatmul.mubr.f32.gmra.mrb[0].mxu0 %v7959
        %v8166 = vpop.f32.mrb[0].mxu0
        %v8167 = vadd.f32 0.0, %v8166
        %v8168 = vpop.f32.mrb[0].mxu0
        %8169 = vmatprep.mubr.f32.mxu0 0.0
        %8170 = vmatmul.mubr.f32.gmra.mrb[0].mxu0 %v7962
        %v8171 = vpop.f32.mrb[0].mxu0
        %v8172 = vadd.f32 0.0, %v8171
        %v8173 = vpop.f32.mrb[0].mxu0
        %8174 = vmatprep.mubr.f32.mxu0 0.0
        %8175 = vmatmul.mubr.f32.gmra.mrb[0].mxu0 %v7965
        %v8176 = vpop.f32.mrb[0].mxu0
        %v8177 = vadd.f32 0.0, %v8176
        %v8178 = vpop.f32.mrb[0].mxu0
        %8179 = vmatprep.mubr.f32.mxu0 0.0
        %8180 = vmatmul.mubr.f32.gmra.mrb[0].mxu0 %v7968
        %v8181 = vpop.f32.mrb[0].mxu0
        %v8182 = vadd.f32 0.0, %v8181
        %v8183 = vpop.f32.mrb[0].mxu0
        %8184 = vmatprep.mubr.f32.mxu0 0.0
        %8185 = vmatmul.mubr.f32.gmra.mrb[0].mxu0 %v7971
        %v8186 = vpop.f32.mrb[0].mxu0
        %v8187 = vadd.f32 0.0, %v8186
        %v8188 = vpop.f32.mrb[0].mxu0
        %8189 = vmatprep.mubr.f32.mxu0 0.0
        %8190 = vmatmul.mubr.f32.gmra.mrb[0].mxu0 %v7974
        %v8191 = vpop.f32.mrb[0].mxu0
        %v8192 = vadd.f32 0.0, %v8191
        %v8193 = vpop.f32.mrb[0].mxu0
        %8194 = vmatprep.mubr.f32.mxu0 0.0
        %8195 = vmatmul.mubr.f32.gmra.mrb[0].mxu0 %v7977
        %v8196 = vpop.f32.mrb[0].mxu0
        %v8197 = vadd.f32 0.0, %v8196
        %v8198 = vpop.f32.mrb[0].mxu0
        %8199 = vmatprep.mubr.f32.mxu0 0.0
        %8200 = vmatmul.mubr.f32.gmra.mrb[0].mxu0 %v7980
        %v8201 = vpop.f32.mrb[0].mxu0
        %v8202 = vadd.f32 0.0, %v8201
        %v8203 = vpop.f32.mrb[0].mxu0
        %8204 = vmatprep.mubr.f32.mxu0 0.0
        %8205 = vmatmul.mubr.f32.gmra.mrb[0].mxu0 %v7983
        %v8206 = vpop.f32.mrb[0].mxu0
        %v8207 = vadd.f32 0.0, %v8206
        %v8208 = vpop.f32.mrb[0].mxu0
        %8209 = vdwg.mxu0
        %v8210 = vadd.f32 %v7812, %v8052
        %v8211 = vadd.f32 %v7813, %v8057
        %v8212 = vadd.f32 %v7814, %v8062
        %v8213 = vadd.f32 %v7815, %v8067
        %v8214 = vadd.f32 %v7816, %v8072
        %v8215 = vadd.f32 %v7817, %v8077
        %v8216 = vadd.f32 %v7818, %v8082
        %v8217 = vadd.f32 %v7819, %v8087
        %v8218 = vadd.f32 %v7820, %v8092
        %v8219 = vadd.f32 %v7821, %v8097
        %v8220 = vadd.f32 %v7822, %v8102
        %v8221 = vadd.f32 %v7823, %v8107
        %v8222 = vadd.f32 %v7824, %v8112
        %v8223 = vadd.f32 %v7825, %v8117
        %v8224 = vadd.f32 %v7826, %v8122
        %v8225 = vadd.f32 %v7827, %v8127
        %v8226 = vadd.f32 %v7828, %v8132
        %v8227 = vadd.f32 %v7829, %v8137
        %v8228 = vadd.f32 %v7830, %v8142
        %v8229 = vadd.f32 %v7831, %v8147
        %v8230 = vadd.f32 %v7832, %v8152
        %v8231 = vadd.f32 %v7833, %v8157
        %v8232 = vadd.f32 %v7834, %v8162
        %v8233 = vadd.f32 %v7835, %v8167
        %v8234 = vadd.f32 %v7836, %v8172
        %v8235 = vadd.f32 %v7837, %v8177
        %v8236 = vadd.f32 %v7838, %v8182
        %v8237 = vadd.f32 %v7839, %v8187
        %v8238 = vadd.f32 %v7840, %v8192
        %v8239 = vadd.f32 %v7841, %v8197
        %v8240 = vadd.f32 %v7842, %v8202
        %v8241 = vadd.f32 %v7843, %v8207
        %s8242 = scalar_lea.vmem [#allocation3], 48
        %v8243 = vld [vmem:[%s8242] sm:$0xff]
        %v8244 = vld [vmem:[%s8242 + $0x8] sm:$0xff]
        %v8245 = vld [vmem:[%s8242 + $0x18] sm:$0xff]
        %v8246 = vld [vmem:[%s8242 + $0x20] sm:$0xff]
        %v8247 = vld [vmem:[%s8242 + $0x30] sm:$0xff]
        %v8248 = vld [vmem:[%s8242 + $0x38] sm:$0xff]
        %v8249 = vld [vmem:[%s8242 + $0x48] sm:$0xff]
        %v8250 = vld [vmem:[%s8242 + $0x50] sm:$0xff]
        %v8251 = vld [vmem:[%s8242 + $0x60] sm:$0xff]
        %v8252 = vld [vmem:[%s8242 + $0x68] sm:$0xff]
        %v8253 = vld [vmem:[%s8242 + $0x78] sm:$0xff]
        %v8254 = vld [vmem:[%s8242 + $0x80] sm:$0xff]
        %v8255 = vld [vmem:[%s8242 + $0x90] sm:$0xff]
        %v8256 = vld [vmem:[%s8242 + $0x98] sm:$0xff]
        %v8257 = vld [vmem:[%s8242 + $0xa8] sm:$0xff]
        %v8258 = vld [vmem:[%s8242 + $0xb0] sm:$0xff]
        %v8259 = vld [vmem:[%s8242 + $0xc0] sm:$0xff]
        %v8260 = vld [vmem:[%s8242 + $0xc8] sm:$0xff]
        %v8261 = vld [vmem:[%s8242 + $0xd8] sm:$0xff]
        %v8262 = vld [vmem:[%s8242 + $0xe0] sm:$0xff]
        %v8263 = vld [vmem:[%s8242 + $0xf0] sm:$0xff]
        %v8264 = vld [vmem:[%s8242 + $0xf8] sm:$0xff]
        %v8265 = vld [vmem:[%s8242 + $0x108] sm:$0xff]
        %v8266 = vld [vmem:[%s8242 + $0x110] sm:$0xff]
        %v8267 = vld [vmem:[%s8242 + $0x120] sm:$0xff]
        %v8268 = vld [vmem:[%s8242 + $0x128] sm:$0xff]
        %v8269 = vld [vmem:[%s8242 + $0x138] sm:$0xff]
        %v8270 = vld [vmem:[%s8242 + $0x140] sm:$0xff]
        %v8271 = vld [vmem:[%s8242 + $0x150] sm:$0xff]
        %v8272 = vld [vmem:[%s8242 + $0x158] sm:$0xff]
        %v8273 = vld [vmem:[%s8242 + $0x168] sm:$0xff]
        %v8274 = vld [vmem:[%s8242 + $0x170] sm:$0xff]
        %s8275 = scalar_lea.vmem %s8, 576
        %v8276 = vld [vmem:[%s8275] sm:$0xff]
        %v8277 = vld [vmem:[%s8275 + $0x8] sm:$0xff]
        %v8278 = vld [vmem:[%s8275 + $0x10] sm:$0xff]
        %v8279 = vld [vmem:[%s8275 + $0x18] sm:$0xff]
        %v8280 = vld [vmem:[%s8275 + $0x20] sm:$0xff]
        %v8281 = vld [vmem:[%s8275 + $0x28] sm:$0xff]
        %v8282 = vld [vmem:[%s8275 + $0x30] sm:$0xff]
        %v8283 = vld [vmem:[%s8275 + $0x38] sm:$0xff]
        %v8284 = vld [vmem:[%s8275 + $0x40] sm:$0xff]
        %v8285 = vld [vmem:[%s8275 + $0x48] sm:$0xff]
        %v8286 = vld [vmem:[%s8275 + $0x50] sm:$0xff]
        %v8287 = vld [vmem:[%s8275 + $0x58] sm:$0xff]
        %v8289 = vsel %vm521, %v8243, 0
        %v8292 = vsel %vm521, %v8244, 0
        %v8295 = vsel %vm521, %v8245, 0
        %v8298 = vsel %vm521, %v8246, 0
        %v8301 = vsel %vm521, %v8247, 0
        %v8304 = vsel %vm521, %v8248, 0
        %v8307 = vsel %vm521, %v8249, 0
        %v8310 = vsel %vm521, %v8250, 0
        %v8313 = vsel %vm521, %v8251, 0
        %v8316 = vsel %vm521, %v8252, 0
        %v8319 = vsel %vm521, %v8253, 0
        %v8322 = vsel %vm521, %v8254, 0
        %v8325 = vsel %vm521, %v8255, 0
        %v8328 = vsel %vm521, %v8256, 0
        %v8331 = vsel %vm521, %v8257, 0
        %v8334 = vsel %vm521, %v8258, 0
        %v8337 = vsel %vm521, %v8259, 0
        %v8340 = vsel %vm521, %v8260, 0
        %v8343 = vsel %vm521, %v8261, 0
        %v8346 = vsel %vm521, %v8262, 0
        %v8349 = vsel %vm521, %v8263, 0
        %v8352 = vsel %vm521, %v8264, 0
        %v8355 = vsel %vm521, %v8265, 0
        %v8358 = vsel %vm521, %v8266, 0
        %v8361 = vsel %vm521, %v8267, 0
        %v8364 = vsel %vm521, %v8268, 0
        %v8367 = vsel %vm521, %v8269, 0
        %v8370 = vsel %vm521, %v8270, 0
        %v8373 = vsel %vm521, %v8271, 0
        %v8376 = vsel %vm521, %v8272, 0
        %v8379 = vsel %vm521, %v8273, 0
        %v8382 = vsel %vm521, %v8274, 0
        %8384 = vmatprep.subr.mxu0 0.0
        %8385 = vmatpush1.msra.mxu0 %v8276
        %8386 = vmatprep.subr.mxu0 0.0
        %8387 = vmatpush1.msra.mxu0 %v8277
        %8388 = vmatprep.subr.mxu0 0.0
        %8389 = vmatpush1.msra.mxu0 %v8278
        %8390 = vmatprep.subr.mxu0 0.0
        %8391 = vmatpush1.msra.mxu0 %v8279
        %8392 = vmatprep.subr.mxu0 0.0
        %8393 = vmatpush1.msra.mxu0 %v8280
        %8394 = vmatprep.subr.mxu0 0.0
        %8395 = vmatpush1.msra.mxu0 %v8281
        %8396 = vmatprep.subr.mxu0 0.0
        %8397 = vmatpush1.msra.mxu0 %v8282
        %8398 = vmatprep.subr.mxu0 0.0
        %8399 = vmatpush1.msra.mxu0 %v8283
        %8400 = vmatprep.subr.mxu0 0.0
        %8401 = vmatpush1.msra.mxu0 %v8284
        %8402 = vmatprep.subr.mxu0 0.0
        %8403 = vmatpush1.msra.mxu0 %v8285
        %8404 = vmatprep.subr.mxu0 0.0
        %8405 = vmatpush1.msra.mxu0 %v8286
        %8406 = vmatprep.subr.mxu0 0.0
        %8407 = vmatpush1.msra.mxu0 %v8287
        %8408 = vmatprep.subr.mxu0 0.0
        %8409 = vmatpush1.msra.mxu0 0.0
        %8410 = vmatprep.subr.mxu0 0.0
        %8411 = vmatpush1.msra.mxu0 0.0
        %8412 = vmatprep.subr.mxu0 0.0
        %8413 = vmatpush1.msra.mxu0 0.0
        %8414 = vmatprep.subr.mxu0 0.0
        %8415 = vmatpush1.msra.mxu0 0.0
        %8416 = vmatprep.subr.mxu0 0.0
        %8417 = vmatpush1.msra.mxu0 0.0
        %8418 = vmatprep.subr.mxu0 0.0
        %8419 = vmatpush1.msra.mxu0 0.0
        %8420 = vmatprep.subr.mxu0 0.0
        %8421 = vmatpush1.msra.mxu0 0.0
        %8422 = vmatprep.subr.mxu0 0.0
        %8423 = vmatpush1.msra.mxu0 0.0
        %8424 = vmatprep.subr.mxu0 0.0
        %8425 = vmatpush1.msra.mxu0 0.0
        %8426 = vmatprep.subr.mxu0 0.0
        %8427 = vmatpush1.msra.mxu0 0.0
        %8428 = vmatprep.subr.mxu0 0.0
        %8429 = vmatpush1.msra.mxu0 0.0
        %8430 = vmatprep.subr.mxu0 0.0
        %8431 = vmatpush1.msra.mxu0 0.0
        %8432 = vmatprep.subr.mxu0 0.0
        %8433 = vmatpush1.msra.mxu0 0.0
        %8434 = vmatprep.subr.mxu0 0.0
        %8435 = vmatpush1.msra.mxu0 0.0
        %8436 = vmatprep.subr.mxu0 0.0
        %8437 = vmatpush1.msra.mxu0 0.0
        %8438 = vmatprep.subr.mxu0 0.0
        %8439 = vmatpush1.msra.mxu0 0.0
        %8440 = vmatprep.subr.mxu0 0.0
        %8441 = vmatpush1.msra.mxu0 0.0
        %8442 = vmatprep.subr.mxu0 0.0
        %8443 = vmatpush1.msra.mxu0 0.0
        %8444 = vmatprep.subr.mxu0 0.0
        %8445 = vmatpush1.msra.mxu0 0.0
        %8446 = vmatprep.subr.mxu0 0.0
        %8447 = vmatpush1.msra.mxu0 0.0
        %8448 = vmatprep.mubr.f32.mxu0 0.0
        %8449 = vmatmul.mubr.f32.gmra.mrb[0].mxu0 %v8289
        %v8450 = vpop.f32.mrb[0].mxu0
        %v8451 = vadd.f32 0.0, %v8450
        %v8452 = vpop.f32.mrb[0].mxu0
        %8453 = vmatprep.mubr.f32.mxu0 0.0
        %8454 = vmatmul.mubr.f32.gmra.mrb[0].mxu0 %v8292
        %v8455 = vpop.f32.mrb[0].mxu0
        %v8456 = vadd.f32 0.0, %v8455
        %v8457 = vpop.f32.mrb[0].mxu0
        %8458 = vmatprep.mubr.f32.mxu0 0.0
        %8459 = vmatmul.mubr.f32.gmra.mrb[0].mxu0 %v8295
        %v8460 = vpop.f32.mrb[0].mxu0
        %v8461 = vadd.f32 0.0, %v8460
        %v8462 = vpop.f32.mrb[0].mxu0
        %8463 = vmatprep.mubr.f32.mxu0 0.0
        %8464 = vmatmul.mubr.f32.gmra.mrb[0].mxu0 %v8298
        %v8465 = vpop.f32.mrb[0].mxu0
        %v8466 = vadd.f32 0.0, %v8465
        %v8467 = vpop.f32.mrb[0].mxu0
        %8468 = vmatprep.mubr.f32.mxu0 0.0
        %8469 = vmatmul.mubr.f32.gmra.mrb[0].mxu0 %v8301
        %v8470 = vpop.f32.mrb[0].mxu0
        %v8471 = vadd.f32 0.0, %v8470
        %v8472 = vpop.f32.mrb[0].mxu0
        %8473 = vmatprep.mubr.f32.mxu0 0.0
        %8474 = vmatmul.mubr.f32.gmra.mrb[0].mxu0 %v8304
        %v8475 = vpop.f32.mrb[0].mxu0
        %v8476 = vadd.f32 0.0, %v8475
        %v8477 = vpop.f32.mrb[0].mxu0
        %8478 = vmatprep.mubr.f32.mxu0 0.0
        %8479 = vmatmul.mubr.f32.gmra.mrb[0].mxu0 %v8307
        %v8480 = vpop.f32.mrb[0].mxu0
        %v8481 = vadd.f32 0.0, %v8480
        %v8482 = vpop.f32.mrb[0].mxu0
        %8483 = vmatprep.mubr.f32.mxu0 0.0
        %8484 = vmatmul.mubr.f32.gmra.mrb[0].mxu0 %v8310
        %v8485 = vpop.f32.mrb[0].mxu0
        %v8486 = vadd.f32 0.0, %v8485
        %v8487 = vpop.f32.mrb[0].mxu0
        %8488 = vmatprep.mubr.f32.mxu0 0.0
        %8489 = vmatmul.mubr.f32.gmra.mrb[0].mxu0 %v8313
        %v8490 = vpop.f32.mrb[0].mxu0
        %v8491 = vadd.f32 0.0, %v8490
        %v8492 = vpop.f32.mrb[0].mxu0
        %8493 = vmatprep.mubr.f32.mxu0 0.0
        %8494 = vmatmul.mubr.f32.gmra.mrb[0].mxu0 %v8316
        %v8495 = vpop.f32.mrb[0].mxu0
        %v8496 = vadd.f32 0.0, %v8495
        %v8497 = vpop.f32.mrb[0].mxu0
        %8498 = vmatprep.mubr.f32.mxu0 0.0
        %8499 = vmatmul.mubr.f32.gmra.mrb[0].mxu0 %v8319
        %v8500 = vpop.f32.mrb[0].mxu0
        %v8501 = vadd.f32 0.0, %v8500
        %v8502 = vpop.f32.mrb[0].mxu0
        %8503 = vmatprep.mubr.f32.mxu0 0.0
        %8504 = vmatmul.mubr.f32.gmra.mrb[0].mxu0 %v8322
        %v8505 = vpop.f32.mrb[0].mxu0
        %v8506 = vadd.f32 0.0, %v8505
        %v8507 = vpop.f32.mrb[0].mxu0
        %8508 = vmatprep.mubr.f32.mxu0 0.0
        %8509 = vmatmul.mubr.f32.gmra.mrb[0].mxu0 %v8325
        %v8510 = vpop.f32.mrb[0].mxu0
        %v8511 = vadd.f32 0.0, %v8510
        %v8512 = vpop.f32.mrb[0].mxu0
        %8513 = vmatprep.mubr.f32.mxu0 0.0
        %8514 = vmatmul.mubr.f32.gmra.mrb[0].mxu0 %v8328
        %v8515 = vpop.f32.mrb[0].mxu0
        %v8516 = vadd.f32 0.0, %v8515
        %v8517 = vpop.f32.mrb[0].mxu0
        %8518 = vmatprep.mubr.f32.mxu0 0.0
        %8519 = vmatmul.mubr.f32.gmra.mrb[0].mxu0 %v8331
        %v8520 = vpop.f32.mrb[0].mxu0
        %v8521 = vadd.f32 0.0, %v8520
        %v8522 = vpop.f32.mrb[0].mxu0
        %8523 = vmatprep.mubr.f32.mxu0 0.0
        %8524 = vmatmul.mubr.f32.gmra.mrb[0].mxu0 %v8334
        %v8525 = vpop.f32.mrb[0].mxu0
        %v8526 = vadd.f32 0.0, %v8525
        %v8527 = vpop.f32.mrb[0].mxu0
        %8528 = vmatprep.mubr.f32.mxu0 0.0
        %8529 = vmatmul.mubr.f32.gmra.mrb[0].mxu0 %v8337
        %v8530 = vpop.f32.mrb[0].mxu0
        %v8531 = vadd.f32 0.0, %v8530
        %v8532 = vpop.f32.mrb[0].mxu0
        %8533 = vmatprep.mubr.f32.mxu0 0.0
        %8534 = vmatmul.mubr.f32.gmra.mrb[0].mxu0 %v8340
        %v8535 = vpop.f32.mrb[0].mxu0
        %v8536 = vadd.f32 0.0, %v8535
        %v8537 = vpop.f32.mrb[0].mxu0
        %8538 = vmatprep.mubr.f32.mxu0 0.0
        %8539 = vmatmul.mubr.f32.gmra.mrb[0].mxu0 %v8343
        %v8540 = vpop.f32.mrb[0].mxu0
        %v8541 = vadd.f32 0.0, %v8540
        %v8542 = vpop.f32.mrb[0].mxu0
        %8543 = vmatprep.mubr.f32.mxu0 0.0
        %8544 = vmatmul.mubr.f32.gmra.mrb[0].mxu0 %v8346
        %v8545 = vpop.f32.mrb[0].mxu0
        %v8546 = vadd.f32 0.0, %v8545
        %v8547 = vpop.f32.mrb[0].mxu0
        %8548 = vmatprep.mubr.f32.mxu0 0.0
        %8549 = vmatmul.mubr.f32.gmra.mrb[0].mxu0 %v8349
        %v8550 = vpop.f32.mrb[0].mxu0
        %v8551 = vadd.f32 0.0, %v8550
        %v8552 = vpop.f32.mrb[0].mxu0
        %8553 = vmatprep.mubr.f32.mxu0 0.0
        %8554 = vmatmul.mubr.f32.gmra.mrb[0].mxu0 %v8352
        %v8555 = vpop.f32.mrb[0].mxu0
        %v8556 = vadd.f32 0.0, %v8555
        %v8557 = vpop.f32.mrb[0].mxu0
        %8558 = vmatprep.mubr.f32.mxu0 0.0
        %8559 = vmatmul.mubr.f32.gmra.mrb[0].mxu0 %v8355
        %v8560 = vpop.f32.mrb[0].mxu0
        %v8561 = vadd.f32 0.0, %v8560
        %v8562 = vpop.f32.mrb[0].mxu0
        %8563 = vmatprep.mubr.f32.mxu0 0.0
        %8564 = vmatmul.mubr.f32.gmra.mrb[0].mxu0 %v8358
        %v8565 = vpop.f32.mrb[0].mxu0
        %v8566 = vadd.f32 0.0, %v8565
        %v8567 = vpop.f32.mrb[0].mxu0
        %8568 = vmatprep.mubr.f32.mxu0 0.0
        %8569 = vmatmul.mubr.f32.gmra.mrb[0].mxu0 %v8361
        %v8570 = vpop.f32.mrb[0].mxu0
        %v8571 = vadd.f32 0.0, %v8570
        %v8572 = vpop.f32.mrb[0].mxu0
        %8573 = vmatprep.mubr.f32.mxu0 0.0
        %8574 = vmatmul.mubr.f32.gmra.mrb[0].mxu0 %v8364
        %v8575 = vpop.f32.mrb[0].mxu0
        %v8576 = vadd.f32 0.0, %v8575
        %v8577 = vpop.f32.mrb[0].mxu0
        %8578 = vmatprep.mubr.f32.mxu0 0.0
        %8579 = vmatmul.mubr.f32.gmra.mrb[0].mxu0 %v8367
        %v8580 = vpop.f32.mrb[0].mxu0
        %v8581 = vadd.f32 0.0, %v8580
        %v8582 = vpop.f32.mrb[0].mxu0
        %8583 = vmatprep.mubr.f32.mxu0 0.0
        %8584 = vmatmul.mubr.f32.gmra.mrb[0].mxu0 %v8370
        %v8585 = vpop.f32.mrb[0].mxu0
        %v8586 = vadd.f32 0.0, %v8585
        %v8587 = vpop.f32.mrb[0].mxu0
        %8588 = vmatprep.mubr.f32.mxu0 0.0
        %8589 = vmatmul.mubr.f32.gmra.mrb[0].mxu0 %v8373
        %v8590 = vpop.f32.mrb[0].mxu0
        %v8591 = vadd.f32 0.0, %v8590
        %v8592 = vpop.f32.mrb[0].mxu0
        %8593 = vmatprep.mubr.f32.mxu0 0.0
        %8594 = vmatmul.mubr.f32.gmra.mrb[0].mxu0 %v8376
        %v8595 = vpop.f32.mrb[0].mxu0
        %v8596 = vadd.f32 0.0, %v8595
        %v8597 = vpop.f32.mrb[0].mxu0
        %8598 = vmatprep.mubr.f32.mxu0 0.0
        %8599 = vmatmul.mubr.f32.gmra.mrb[0].mxu0 %v8379
        %v8600 = vpop.f32.mrb[0].mxu0
        %v8601 = vadd.f32 0.0, %v8600
        %v8602 = vpop.f32.mrb[0].mxu0
        %8603 = vmatprep.mubr.f32.mxu0 0.0
        %8604 = vmatmul.mubr.f32.gmra.mrb[0].mxu0 %v8382
        %v8605 = vpop.f32.mrb[0].mxu0
        %v8606 = vadd.f32 0.0, %v8605
        %v8607 = vpop.f32.mrb[0].mxu0
        %8608 = vdwg.mxu0
        %v8609 = vadd.f32 %v8210, %v8451
        %v8610 = vadd.f32 %v8211, %v8456
        %v8611 = vadd.f32 %v8212, %v8461
        %v8612 = vadd.f32 %v8213, %v8466
        %v8613 = vadd.f32 %v8214, %v8471
        %v8614 = vadd.f32 %v8215, %v8476
        %v8615 = vadd.f32 %v8216, %v8481
        %v8616 = vadd.f32 %v8217, %v8486
        %v8617 = vadd.f32 %v8218, %v8491
        %v8618 = vadd.f32 %v8219, %v8496
        %v8619 = vadd.f32 %v8220, %v8501
        %v8620 = vadd.f32 %v8221, %v8506
        %v8621 = vadd.f32 %v8222, %v8511
        %v8622 = vadd.f32 %v8223, %v8516
        %v8623 = vadd.f32 %v8224, %v8521
        %v8624 = vadd.f32 %v8225, %v8526
        %v8625 = vadd.f32 %v8226, %v8531
        %v8626 = vadd.f32 %v8227, %v8536
        %v8627 = vadd.f32 %v8228, %v8541
        %v8628 = vadd.f32 %v8229, %v8546
        %v8629 = vadd.f32 %v8230, %v8551
        %v8630 = vadd.f32 %v8231, %v8556
        %v8631 = vadd.f32 %v8232, %v8561
        %v8632 = vadd.f32 %v8233, %v8566
        %v8633 = vadd.f32 %v8234, %v8571
        %v8634 = vadd.f32 %v8235, %v8576
        %v8635 = vadd.f32 %v8236, %v8581
        %v8636 = vadd.f32 %v8237, %v8586
        %v8637 = vadd.f32 %v8238, %v8591
        %v8638 = vadd.f32 %v8239, %v8596
        %v8639 = vadd.f32 %v8240, %v8601
        %v8640 = vadd.f32 %v8241, %v8606
        %v8641 = vld [vmem:[%s8242 + $0x1] sm:$0xff]
        %v8642 = vld [vmem:[%s8242 + $0x9] sm:$0xff]
        %v8643 = vld [vmem:[%s8242 + $0x19] sm:$0xff]
        %v8644 = vld [vmem:[%s8242 + $0x21] sm:$0xff]
        %v8645 = vld [vmem:[%s8242 + $0x31] sm:$0xff]
        %v8646 = vld [vmem:[%s8242 + $0x39] sm:$0xff]
        %v8647 = vld [vmem:[%s8242 + $0x49] sm:$0xff]
        %v8648 = vld [vmem:[%s8242 + $0x51] sm:$0xff]
        %v8649 = vld [vmem:[%s8242 + $0x61] sm:$0xff]
        %v8650 = vld [vmem:[%s8242 + $0x69] sm:$0xff]
        %v8651 = vld [vmem:[%s8242 + $0x79] sm:$0xff]
        %v8652 = vld [vmem:[%s8242 + $0x81] sm:$0xff]
        %v8653 = vld [vmem:[%s8242 + $0x91] sm:$0xff]
        %v8654 = vld [vmem:[%s8242 + $0x99] sm:$0xff]
        %v8655 = vld [vmem:[%s8242 + $0xa9] sm:$0xff]
        %v8656 = vld [vmem:[%s8242 + $0xb1] sm:$0xff]
        %v8657 = vld [vmem:[%s8242 + $0xc1] sm:$0xff]
        %v8658 = vld [vmem:[%s8242 + $0xc9] sm:$0xff]
        %v8659 = vld [vmem:[%s8242 + $0xd9] sm:$0xff]
        %v8660 = vld [vmem:[%s8242 + $0xe1] sm:$0xff]
        %v8661 = vld [vmem:[%s8242 + $0xf1] sm:$0xff]
        %v8662 = vld [vmem:[%s8242 + $0xf9] sm:$0xff]
        %v8663 = vld [vmem:[%s8242 + $0x109] sm:$0xff]
        %v8664 = vld [vmem:[%s8242 + $0x111] sm:$0xff]
        %v8665 = vld [vmem:[%s8242 + $0x121] sm:$0xff]
        %v8666 = vld [vmem:[%s8242 + $0x129] sm:$0xff]
        %v8667 = vld [vmem:[%s8242 + $0x139] sm:$0xff]
        %v8668 = vld [vmem:[%s8242 + $0x141] sm:$0xff]
        %v8669 = vld [vmem:[%s8242 + $0x151] sm:$0xff]
        %v8670 = vld [vmem:[%s8242 + $0x159] sm:$0xff]
        %v8671 = vld [vmem:[%s8242 + $0x169] sm:$0xff]
        %v8672 = vld [vmem:[%s8242 + $0x171] sm:$0xff]
        %s8673 = scalar_lea.vmem %s8, 672
        %v8674 = vld [vmem:[%s8673] sm:$0xff]
        %v8675 = vld [vmem:[%s8673 + $0x8] sm:$0xff]
        %v8676 = vld [vmem:[%s8673 + $0x10] sm:$0xff]
        %v8677 = vld [vmem:[%s8673 + $0x18] sm:$0xff]
        %v8678 = vld [vmem:[%s8673 + $0x20] sm:$0xff]
        %v8679 = vld [vmem:[%s8673 + $0x28] sm:$0xff]
        %v8680 = vld [vmem:[%s8673 + $0x30] sm:$0xff]
        %v8681 = vld [vmem:[%s8673 + $0x38] sm:$0xff]
        %v8682 = vld [vmem:[%s8673 + $0x40] sm:$0xff]
        %v8683 = vld [vmem:[%s8673 + $0x48] sm:$0xff]
        %v8684 = vld [vmem:[%s8673 + $0x50] sm:$0xff]
        %v8685 = vld [vmem:[%s8673 + $0x58] sm:$0xff]
        %v8687 = vsel %vm521, %v8641, 0
        %v8690 = vsel %vm521, %v8642, 0
        %v8693 = vsel %vm521, %v8643, 0
        %v8696 = vsel %vm521, %v8644, 0
        %v8699 = vsel %vm521, %v8645, 0
        %v8702 = vsel %vm521, %v8646, 0
        %v8705 = vsel %vm521, %v8647, 0
        %v8708 = vsel %vm521, %v8648, 0
        %v8711 = vsel %vm521, %v8649, 0
        %v8714 = vsel %vm521, %v8650, 0
        %v8717 = vsel %vm521, %v8651, 0
        %v8720 = vsel %vm521, %v8652, 0
        %v8723 = vsel %vm521, %v8653, 0
        %v8726 = vsel %vm521, %v8654, 0
        %v8729 = vsel %vm521, %v8655, 0
        %v8732 = vsel %vm521, %v8656, 0
        %v8735 = vsel %vm521, %v8657, 0
        %v8738 = vsel %vm521, %v8658, 0
        %v8741 = vsel %vm521, %v8659, 0
        %v8744 = vsel %vm521, %v8660, 0
        %v8747 = vsel %vm521, %v8661, 0
        %v8750 = vsel %vm521, %v8662, 0
        %v8753 = vsel %vm521, %v8663, 0
        %v8756 = vsel %vm521, %v8664, 0
        %v8759 = vsel %vm521, %v8665, 0
        %v8762 = vsel %vm521, %v8666, 0
        %v8765 = vsel %vm521, %v8667, 0
        %v8768 = vsel %vm521, %v8668, 0
        %v8771 = vsel %vm521, %v8669, 0
        %v8774 = vsel %vm521, %v8670, 0
        %v8777 = vsel %vm521, %v8671, 0
        %v8780 = vsel %vm521, %v8672, 0
        %8782 = vmatprep.subr.mxu0 0.0
        %8783 = vmatpush1.msra.mxu0 %v8674
        %8784 = vmatprep.subr.mxu0 0.0
        %8785 = vmatpush1.msra.mxu0 %v8675
        %8786 = vmatprep.subr.mxu0 0.0
        %8787 = vmatpush1.msra.mxu0 %v8676
        %8788 = vmatprep.subr.mxu0 0.0
        %8789 = vmatpush1.msra.mxu0 %v8677
        %8790 = vmatprep.subr.mxu0 0.0
        %8791 = vmatpush1.msra.mxu0 %v8678
        %8792 = vmatprep.subr.mxu0 0.0
        %8793 = vmatpush1.msra.mxu0 %v8679
        %8794 = vmatprep.subr.mxu0 0.0
        %8795 = vmatpush1.msra.mxu0 %v8680
        %8796 = vmatprep.subr.mxu0 0.0
        %8797 = vmatpush1.msra.mxu0 %v8681
        %8798 = vmatprep.subr.mxu0 0.0
        %8799 = vmatpush1.msra.mxu0 %v8682
        %8800 = vmatprep.subr.mxu0 0.0
        %8801 = vmatpush1.msra.mxu0 %v8683
        %8802 = vmatprep.subr.mxu0 0.0
        %8803 = vmatpush1.msra.mxu0 %v8684
        %8804 = vmatprep.subr.mxu0 0.0
        %8805 = vmatpush1.msra.mxu0 %v8685
        %8806 = vmatprep.subr.mxu0 0.0
        %8807 = vmatpush1.msra.mxu0 0.0
        %8808 = vmatprep.subr.mxu0 0.0
        %8809 = vmatpush1.msra.mxu0 0.0
        %8810 = vmatprep.subr.mxu0 0.0
        %8811 = vmatpush1.msra.mxu0 0.0
        %8812 = vmatprep.subr.mxu0 0.0
        %8813 = vmatpush1.msra.mxu0 0.0
        %8814 = vmatprep.subr.mxu0 0.0
        %8815 = vmatpush1.msra.mxu0 0.0
        %8816 = vmatprep.subr.mxu0 0.0
        %8817 = vmatpush1.msra.mxu0 0.0
        %8818 = vmatprep.subr.mxu0 0.0
        %8819 = vmatpush1.msra.mxu0 0.0
        %8820 = vmatprep.subr.mxu0 0.0
        %8821 = vmatpush1.msra.mxu0 0.0
        %8822 = vmatprep.subr.mxu0 0.0
        %8823 = vmatpush1.msra.mxu0 0.0
        %8824 = vmatprep.subr.mxu0 0.0
        %8825 = vmatpush1.msra.mxu0 0.0
        %8826 = vmatprep.subr.mxu0 0.0
        %8827 = vmatpush1.msra.mxu0 0.0
        %8828 = vmatprep.subr.mxu0 0.0
        %8829 = vmatpush1.msra.mxu0 0.0
        %8830 = vmatprep.subr.mxu0 0.0
        %8831 = vmatpush1.msra.mxu0 0.0
        %8832 = vmatprep.subr.mxu0 0.0
        %8833 = vmatpush1.msra.mxu0 0.0
        %8834 = vmatprep.subr.mxu0 0.0
        %8835 = vmatpush1.msra.mxu0 0.0
        %8836 = vmatprep.subr.mxu0 0.0
        %8837 = vmatpush1.msra.mxu0 0.0
        %8838 = vmatprep.subr.mxu0 0.0
        %8839 = vmatpush1.msra.mxu0 0.0
        %8840 = vmatprep.subr.mxu0 0.0
        %8841 = vmatpush1.msra.mxu0 0.0
        %8842 = vmatprep.subr.mxu0 0.0
        %8843 = vmatpush1.msra.mxu0 0.0
        %8844 = vmatprep.subr.mxu0 0.0
        %8845 = vmatpush1.msra.mxu0 0.0
        %8846 = vmatprep.mubr.f32.mxu0 0.0
        %8847 = vmatmul.mubr.f32.gmra.mrb[0].mxu0 %v8687
        %v8848 = vpop.f32.mrb[0].mxu0
        %v8849 = vadd.f32 0.0, %v8848
        %v8850 = vpop.f32.mrb[0].mxu0
        %8851 = vmatprep.mubr.f32.mxu0 0.0
        %8852 = vmatmul.mubr.f32.gmra.mrb[0].mxu0 %v8690
        %v8853 = vpop.f32.mrb[0].mxu0
        %v8854 = vadd.f32 0.0, %v8853
        %v8855 = vpop.f32.mrb[0].mxu0
        %8856 = vmatprep.mubr.f32.mxu0 0.0
        %8857 = vmatmul.mubr.f32.gmra.mrb[0].mxu0 %v8693
        %v8858 = vpop.f32.mrb[0].mxu0
        %v8859 = vadd.f32 0.0, %v8858
        %v8860 = vpop.f32.mrb[0].mxu0
        %8861 = vmatprep.mubr.f32.mxu0 0.0
        %8862 = vmatmul.mubr.f32.gmra.mrb[0].mxu0 %v8696
        %v8863 = vpop.f32.mrb[0].mxu0
        %v8864 = vadd.f32 0.0, %v8863
        %v8865 = vpop.f32.mrb[0].mxu0
        %8866 = vmatprep.mubr.f32.mxu0 0.0
        %8867 = vmatmul.mubr.f32.gmra.mrb[0].mxu0 %v8699
        %v8868 = vpop.f32.mrb[0].mxu0
        %v8869 = vadd.f32 0.0, %v8868
        %v8870 = vpop.f32.mrb[0].mxu0
        %8871 = vmatprep.mubr.f32.mxu0 0.0
        %8872 = vmatmul.mubr.f32.gmra.mrb[0].mxu0 %v8702
        %v8873 = vpop.f32.mrb[0].mxu0
        %v8874 = vadd.f32 0.0, %v8873
        %v8875 = vpop.f32.mrb[0].mxu0
        %8876 = vmatprep.mubr.f32.mxu0 0.0
        %8877 = vmatmul.mubr.f32.gmra.mrb[0].mxu0 %v8705
        %v8878 = vpop.f32.mrb[0].mxu0
        %v8879 = vadd.f32 0.0, %v8878
        %v8880 = vpop.f32.mrb[0].mxu0
        %8881 = vmatprep.mubr.f32.mxu0 0.0
        %8882 = vmatmul.mubr.f32.gmra.mrb[0].mxu0 %v8708
        %v8883 = vpop.f32.mrb[0].mxu0
        %v8884 = vadd.f32 0.0, %v8883
        %v8885 = vpop.f32.mrb[0].mxu0
        %8886 = vmatprep.mubr.f32.mxu0 0.0
        %8887 = vmatmul.mubr.f32.gmra.mrb[0].mxu0 %v8711
        %v8888 = vpop.f32.mrb[0].mxu0
        %v8889 = vadd.f32 0.0, %v8888
        %v8890 = vpop.f32.mrb[0].mxu0
        %8891 = vmatprep.mubr.f32.mxu0 0.0
        %8892 = vmatmul.mubr.f32.gmra.mrb[0].mxu0 %v8714
        %v8893 = vpop.f32.mrb[0].mxu0
        %v8894 = vadd.f32 0.0, %v8893
        %v8895 = vpop.f32.mrb[0].mxu0
        %8896 = vmatprep.mubr.f32.mxu0 0.0
        %8897 = vmatmul.mubr.f32.gmra.mrb[0].mxu0 %v8717
        %v8898 = vpop.f32.mrb[0].mxu0
        %v8899 = vadd.f32 0.0, %v8898
        %v8900 = vpop.f32.mrb[0].mxu0
        %8901 = vmatprep.mubr.f32.mxu0 0.0
        %8902 = vmatmul.mubr.f32.gmra.mrb[0].mxu0 %v8720
        %v8903 = vpop.f32.mrb[0].mxu0
        %v8904 = vadd.f32 0.0, %v8903
        %v8905 = vpop.f32.mrb[0].mxu0
        %8906 = vmatprep.mubr.f32.mxu0 0.0
        %8907 = vmatmul.mubr.f32.gmra.mrb[0].mxu0 %v8723
        %v8908 = vpop.f32.mrb[0].mxu0
        %v8909 = vadd.f32 0.0, %v8908
        %v8910 = vpop.f32.mrb[0].mxu0
        %8911 = vmatprep.mubr.f32.mxu0 0.0
        %8912 = vmatmul.mubr.f32.gmra.mrb[0].mxu0 %v8726
        %v8913 = vpop.f32.mrb[0].mxu0
        %v8914 = vadd.f32 0.0, %v8913
        %v8915 = vpop.f32.mrb[0].mxu0
        %8916 = vmatprep.mubr.f32.mxu0 0.0
        %8917 = vmatmul.mubr.f32.gmra.mrb[0].mxu0 %v8729
        %v8918 = vpop.f32.mrb[0].mxu0
        %v8919 = vadd.f32 0.0, %v8918
        %v8920 = vpop.f32.mrb[0].mxu0
        %8921 = vmatprep.mubr.f32.mxu0 0.0
        %8922 = vmatmul.mubr.f32.gmra.mrb[0].mxu0 %v8732
        %v8923 = vpop.f32.mrb[0].mxu0
        %v8924 = vadd.f32 0.0, %v8923
        %v8925 = vpop.f32.mrb[0].mxu0
        %8926 = vmatprep.mubr.f32.mxu0 0.0
        %8927 = vmatmul.mubr.f32.gmra.mrb[0].mxu0 %v8735
        %v8928 = vpop.f32.mrb[0].mxu0
        %v8929 = vadd.f32 0.0, %v8928
        %v8930 = vpop.f32.mrb[0].mxu0
        %8931 = vmatprep.mubr.f32.mxu0 0.0
        %8932 = vmatmul.mubr.f32.gmra.mrb[0].mxu0 %v8738
        %v8933 = vpop.f32.mrb[0].mxu0
        %v8934 = vadd.f32 0.0, %v8933
        %v8935 = vpop.f32.mrb[0].mxu0
        %8936 = vmatprep.mubr.f32.mxu0 0.0
        %8937 = vmatmul.mubr.f32.gmra.mrb[0].mxu0 %v8741
        %v8938 = vpop.f32.mrb[0].mxu0
        %v8939 = vadd.f32 0.0, %v8938
        %v8940 = vpop.f32.mrb[0].mxu0
        %8941 = vmatprep.mubr.f32.mxu0 0.0
        %8942 = vmatmul.mubr.f32.gmra.mrb[0].mxu0 %v8744
        %v8943 = vpop.f32.mrb[0].mxu0
        %v8944 = vadd.f32 0.0, %v8943
        %v8945 = vpop.f32.mrb[0].mxu0
        %8946 = vmatprep.mubr.f32.mxu0 0.0
        %8947 = vmatmul.mubr.f32.gmra.mrb[0].mxu0 %v8747
        %v8948 = vpop.f32.mrb[0].mxu0
        %v8949 = vadd.f32 0.0, %v8948
        %v8950 = vpop.f32.mrb[0].mxu0
        %8951 = vmatprep.mubr.f32.mxu0 0.0
        %8952 = vmatmul.mubr.f32.gmra.mrb[0].mxu0 %v8750
        %v8953 = vpop.f32.mrb[0].mxu0
        %v8954 = vadd.f32 0.0, %v8953
        %v8955 = vpop.f32.mrb[0].mxu0
        %8956 = vmatprep.mubr.f32.mxu0 0.0
        %8957 = vmatmul.mubr.f32.gmra.mrb[0].mxu0 %v8753
        %v8958 = vpop.f32.mrb[0].mxu0
        %v8959 = vadd.f32 0.0, %v8958
        %v8960 = vpop.f32.mrb[0].mxu0
        %8961 = vmatprep.mubr.f32.mxu0 0.0
        %8962 = vmatmul.mubr.f32.gmra.mrb[0].mxu0 %v8756
        %v8963 = vpop.f32.mrb[0].mxu0
        %v8964 = vadd.f32 0.0, %v8963
        %v8965 = vpop.f32.mrb[0].mxu0
        %8966 = vmatprep.mubr.f32.mxu0 0.0
        %8967 = vmatmul.mubr.f32.gmra.mrb[0].mxu0 %v8759
        %v8968 = vpop.f32.mrb[0].mxu0
        %v8969 = vadd.f32 0.0, %v8968
        %v8970 = vpop.f32.mrb[0].mxu0
        %8971 = vmatprep.mubr.f32.mxu0 0.0
        %8972 = vmatmul.mubr.f32.gmra.mrb[0].mxu0 %v8762
        %v8973 = vpop.f32.mrb[0].mxu0
        %v8974 = vadd.f32 0.0, %v8973
        %v8975 = vpop.f32.mrb[0].mxu0
        %8976 = vmatprep.mubr.f32.mxu0 0.0
        %8977 = vmatmul.mubr.f32.gmra.mrb[0].mxu0 %v8765
        %v8978 = vpop.f32.mrb[0].mxu0
        %v8979 = vadd.f32 0.0, %v8978
        %v8980 = vpop.f32.mrb[0].mxu0
        %8981 = vmatprep.mubr.f32.mxu0 0.0
        %8982 = vmatmul.mubr.f32.gmra.mrb[0].mxu0 %v8768
        %v8983 = vpop.f32.mrb[0].mxu0
        %v8984 = vadd.f32 0.0, %v8983
        %v8985 = vpop.f32.mrb[0].mxu0
        %8986 = vmatprep.mubr.f32.mxu0 0.0
        %8987 = vmatmul.mubr.f32.gmra.mrb[0].mxu0 %v8771
        %v8988 = vpop.f32.mrb[0].mxu0
        %v8989 = vadd.f32 0.0, %v8988
        %v8990 = vpop.f32.mrb[0].mxu0
        %8991 = vmatprep.mubr.f32.mxu0 0.0
        %8992 = vmatmul.mubr.f32.gmra.mrb[0].mxu0 %v8774
        %v8993 = vpop.f32.mrb[0].mxu0
        %v8994 = vadd.f32 0.0, %v8993
        %v8995 = vpop.f32.mrb[0].mxu0
        %8996 = vmatprep.mubr.f32.mxu0 0.0
        %8997 = vmatmul.mubr.f32.gmra.mrb[0].mxu0 %v8777
        %v8998 = vpop.f32.mrb[0].mxu0
        %v8999 = vadd.f32 0.0, %v8998
        %v9000 = vpop.f32.mrb[0].mxu0
        %9001 = vmatprep.mubr.f32.mxu0 0.0
        %9002 = vmatmul.mubr.f32.gmra.mrb[0].mxu0 %v8780
        %v9003 = vpop.f32.mrb[0].mxu0
        %v9004 = vadd.f32 0.0, %v9003
        %v9005 = vpop.f32.mrb[0].mxu0
        %9006 = vdwg.mxu0
        %v9007 = vadd.f32 %v8609, %v8849
        %v9008 = vadd.f32 %v8610, %v8854
        %v9009 = vadd.f32 %v8611, %v8859
        %v9010 = vadd.f32 %v8612, %v8864
        %v9011 = vadd.f32 %v8613, %v8869
        %v9012 = vadd.f32 %v8614, %v8874
        %v9013 = vadd.f32 %v8615, %v8879
        %v9014 = vadd.f32 %v8616, %v8884
        %v9015 = vadd.f32 %v8617, %v8889
        %v9016 = vadd.f32 %v8618, %v8894
        %v9017 = vadd.f32 %v8619, %v8899
        %v9018 = vadd.f32 %v8620, %v8904
        %v9019 = vadd.f32 %v8621, %v8909
        %v9020 = vadd.f32 %v8622, %v8914
        %v9021 = vadd.f32 %v8623, %v8919
        %v9022 = vadd.f32 %v8624, %v8924
        %v9023 = vadd.f32 %v8625, %v8929
        %v9024 = vadd.f32 %v8626, %v8934
        %v9025 = vadd.f32 %v8627, %v8939
        %v9026 = vadd.f32 %v8628, %v8944
        %v9027 = vadd.f32 %v8629, %v8949
        %v9028 = vadd.f32 %v8630, %v8954
        %v9029 = vadd.f32 %v8631, %v8959
        %v9030 = vadd.f32 %v8632, %v8964
        %v9031 = vadd.f32 %v8633, %v8969
        %v9032 = vadd.f32 %v8634, %v8974
        %v9033 = vadd.f32 %v8635, %v8979
        %v9034 = vadd.f32 %v8636, %v8984
        %v9035 = vadd.f32 %v8637, %v8989
        %v9036 = vadd.f32 %v8638, %v8994
        %v9037 = vadd.f32 %v8639, %v8999
        %v9038 = vadd.f32 %v8640, %v9004
        %v9039 = vld [vmem:[%s8242 + $0x2] sm:$0xff]
        %v9040 = vld [vmem:[%s8242 + $0xa] sm:$0xff]
        %v9041 = vld [vmem:[%s8242 + $0x1a] sm:$0xff]
        %v9042 = vld [vmem:[%s8242 + $0x22] sm:$0xff]
        %v9043 = vld [vmem:[%s8242 + $0x32] sm:$0xff]
        %v9044 = vld [vmem:[%s8242 + $0x3a] sm:$0xff]
        %v9045 = vld [vmem:[%s8242 + $0x4a] sm:$0xff]
        %v9046 = vld [vmem:[%s8242 + $0x52] sm:$0xff]
        %v9047 = vld [vmem:[%s8242 + $0x62] sm:$0xff]
        %v9048 = vld [vmem:[%s8242 + $0x6a] sm:$0xff]
        %v9049 = vld [vmem:[%s8242 + $0x7a] sm:$0xff]
        %v9050 = vld [vmem:[%s8242 + $0x82] sm:$0xff]
        %v9051 = vld [vmem:[%s8242 + $0x92] sm:$0xff]
        %v9052 = vld [vmem:[%s8242 + $0x9a] sm:$0xff]
        %v9053 = vld [vmem:[%s8242 + $0xaa] sm:$0xff]
        %v9054 = vld [vmem:[%s8242 + $0xb2] sm:$0xff]
        %v9055 = vld [vmem:[%s8242 + $0xc2] sm:$0xff]
        %v9056 = vld [vmem:[%s8242 + $0xca] sm:$0xff]
        %v9057 = vld [vmem:[%s8242 + $0xda] sm:$0xff]
        %v9058 = vld [vmem:[%s8242 + $0xe2] sm:$0xff]
        %v9059 = vld [vmem:[%s8242 + $0xf2] sm:$0xff]
        %v9060 = vld [vmem:[%s8242 + $0xfa] sm:$0xff]
        %v9061 = vld [vmem:[%s8242 + $0x10a] sm:$0xff]
        %v9062 = vld [vmem:[%s8242 + $0x112] sm:$0xff]
        %v9063 = vld [vmem:[%s8242 + $0x122] sm:$0xff]
        %v9064 = vld [vmem:[%s8242 + $0x12a] sm:$0xff]
        %v9065 = vld [vmem:[%s8242 + $0x13a] sm:$0xff]
        %v9066 = vld [vmem:[%s8242 + $0x142] sm:$0xff]
        %v9067 = vld [vmem:[%s8242 + $0x152] sm:$0xff]
        %v9068 = vld [vmem:[%s8242 + $0x15a] sm:$0xff]
        %v9069 = vld [vmem:[%s8242 + $0x16a] sm:$0xff]
        %v9070 = vld [vmem:[%s8242 + $0x172] sm:$0xff]
        %s9071 = scalar_lea.vmem %s8, 768
        %v9072 = vld [vmem:[%s9071] sm:$0xff]
        %v9073 = vld [vmem:[%s9071 + $0x8] sm:$0xff]
        %v9074 = vld [vmem:[%s9071 + $0x10] sm:$0xff]
        %v9075 = vld [vmem:[%s9071 + $0x18] sm:$0xff]
        %v9076 = vld [vmem:[%s9071 + $0x20] sm:$0xff]
        %v9077 = vld [vmem:[%s9071 + $0x28] sm:$0xff]
        %v9078 = vld [vmem:[%s9071 + $0x30] sm:$0xff]
        %v9079 = vld [vmem:[%s9071 + $0x38] sm:$0xff]
        %v9080 = vld [vmem:[%s9071 + $0x40] sm:$0xff]
        %v9081 = vld [vmem:[%s9071 + $0x48] sm:$0xff]
        %v9082 = vld [vmem:[%s9071 + $0x50] sm:$0xff]
        %v9083 = vld [vmem:[%s9071 + $0x58] sm:$0xff]
        %v9085 = vsel %vm521, %v9039, 0
        %v9088 = vsel %vm521, %v9040, 0
        %v9091 = vsel %vm521, %v9041, 0
        %v9094 = vsel %vm521, %v9042, 0
        %v9097 = vsel %vm521, %v9043, 0
        %v9100 = vsel %vm521, %v9044, 0
        %v9103 = vsel %vm521, %v9045, 0
        %v9106 = vsel %vm521, %v9046, 0
        %v9109 = vsel %vm521, %v9047, 0
        %v9112 = vsel %vm521, %v9048, 0
        %v9115 = vsel %vm521, %v9049, 0
        %v9118 = vsel %vm521, %v9050, 0
        %v9121 = vsel %vm521, %v9051, 0
        %v9124 = vsel %vm521, %v9052, 0
        %v9127 = vsel %vm521, %v9053, 0
        %v9130 = vsel %vm521, %v9054, 0
        %v9133 = vsel %vm521, %v9055, 0
        %v9136 = vsel %vm521, %v9056, 0
        %v9139 = vsel %vm521, %v9057, 0
        %v9142 = vsel %vm521, %v9058, 0
        %v9145 = vsel %vm521, %v9059, 0
        %v9148 = vsel %vm521, %v9060, 0
        %v9151 = vsel %vm521, %v9061, 0
        %v9154 = vsel %vm521, %v9062, 0
        %v9157 = vsel %vm521, %v9063, 0
        %v9160 = vsel %vm521, %v9064, 0
        %v9163 = vsel %vm521, %v9065, 0
        %v9166 = vsel %vm521, %v9066, 0
        %v9169 = vsel %vm521, %v9067, 0
        %v9172 = vsel %vm521, %v9068, 0
        %v9175 = vsel %vm521, %v9069, 0
        %v9178 = vsel %vm521, %v9070, 0
        %9180 = vmatprep.subr.mxu0 0.0
        %9181 = vmatpush1.msra.mxu0 %v9072
        %9182 = vmatprep.subr.mxu0 0.0
        %9183 = vmatpush1.msra.mxu0 %v9073
        %9184 = vmatprep.subr.mxu0 0.0
        %9185 = vmatpush1.msra.mxu0 %v9074
        %9186 = vmatprep.subr.mxu0 0.0
        %9187 = vmatpush1.msra.mxu0 %v9075
        %9188 = vmatprep.subr.mxu0 0.0
        %9189 = vmatpush1.msra.mxu0 %v9076
        %9190 = vmatprep.subr.mxu0 0.0
        %9191 = vmatpush1.msra.mxu0 %v9077
        %9192 = vmatprep.subr.mxu0 0.0
        %9193 = vmatpush1.msra.mxu0 %v9078
        %9194 = vmatprep.subr.mxu0 0.0
        %9195 = vmatpush1.msra.mxu0 %v9079
        %9196 = vmatprep.subr.mxu0 0.0
        %9197 = vmatpush1.msra.mxu0 %v9080
        %9198 = vmatprep.subr.mxu0 0.0
        %9199 = vmatpush1.msra.mxu0 %v9081
        %9200 = vmatprep.subr.mxu0 0.0
        %9201 = vmatpush1.msra.mxu0 %v9082
        %9202 = vmatprep.subr.mxu0 0.0
        %9203 = vmatpush1.msra.mxu0 %v9083
        %9204 = vmatprep.subr.mxu0 0.0
        %9205 = vmatpush1.msra.mxu0 0.0
        %9206 = vmatprep.subr.mxu0 0.0
        %9207 = vmatpush1.msra.mxu0 0.0
        %9208 = vmatprep.subr.mxu0 0.0
        %9209 = vmatpush1.msra.mxu0 0.0
        %9210 = vmatprep.subr.mxu0 0.0
        %9211 = vmatpush1.msra.mxu0 0.0
        %9212 = vmatprep.subr.mxu0 0.0
        %9213 = vmatpush1.msra.mxu0 0.0
        %9214 = vmatprep.subr.mxu0 0.0
        %9215 = vmatpush1.msra.mxu0 0.0
        %9216 = vmatprep.subr.mxu0 0.0
        %9217 = vmatpush1.msra.mxu0 0.0
        %9218 = vmatprep.subr.mxu0 0.0
        %9219 = vmatpush1.msra.mxu0 0.0
        %9220 = vmatprep.subr.mxu0 0.0
        %9221 = vmatpush1.msra.mxu0 0.0
        %9222 = vmatprep.subr.mxu0 0.0
        %9223 = vmatpush1.msra.mxu0 0.0
        %9224 = vmatprep.subr.mxu0 0.0
        %9225 = vmatpush1.msra.mxu0 0.0
        %9226 = vmatprep.subr.mxu0 0.0
        %9227 = vmatpush1.msra.mxu0 0.0
        %9228 = vmatprep.subr.mxu0 0.0
        %9229 = vmatpush1.msra.mxu0 0.0
        %9230 = vmatprep.subr.mxu0 0.0
        %9231 = vmatpush1.msra.mxu0 0.0
        %9232 = vmatprep.subr.mxu0 0.0
        %9233 = vmatpush1.msra.mxu0 0.0
        %9234 = vmatprep.subr.mxu0 0.0
        %9235 = vmatpush1.msra.mxu0 0.0
        %9236 = vmatprep.subr.mxu0 0.0
        %9237 = vmatpush1.msra.mxu0 0.0
        %9238 = vmatprep.subr.mxu0 0.0
        %9239 = vmatpush1.msra.mxu0 0.0
        %9240 = vmatprep.subr.mxu0 0.0
        %9241 = vmatpush1.msra.mxu0 0.0
        %9242 = vmatprep.subr.mxu0 0.0
        %9243 = vmatpush1.msra.mxu0 0.0
        %9244 = vmatprep.mubr.f32.mxu0 0.0
        %9245 = vmatmul.mubr.f32.gmra.mrb[0].mxu0 %v9085
        %v9246 = vpop.f32.mrb[0].mxu0
        %v9247 = vadd.f32 0.0, %v9246
        %v9248 = vpop.f32.mrb[0].mxu0
        %9249 = vmatprep.mubr.f32.mxu0 0.0
        %9250 = vmatmul.mubr.f32.gmra.mrb[0].mxu0 %v9088
        %v9251 = vpop.f32.mrb[0].mxu0
        %v9252 = vadd.f32 0.0, %v9251
        %v9253 = vpop.f32.mrb[0].mxu0
        %9254 = vmatprep.mubr.f32.mxu0 0.0
        %9255 = vmatmul.mubr.f32.gmra.mrb[0].mxu0 %v9091
        %v9256 = vpop.f32.mrb[0].mxu0
        %v9257 = vadd.f32 0.0, %v9256
        %v9258 = vpop.f32.mrb[0].mxu0
        %9259 = vmatprep.mubr.f32.mxu0 0.0
        %9260 = vmatmul.mubr.f32.gmra.mrb[0].mxu0 %v9094
        %v9261 = vpop.f32.mrb[0].mxu0
        %v9262 = vadd.f32 0.0, %v9261
        %v9263 = vpop.f32.mrb[0].mxu0
        %9264 = vmatprep.mubr.f32.mxu0 0.0
        %9265 = vmatmul.mubr.f32.gmra.mrb[0].mxu0 %v9097
        %v9266 = vpop.f32.mrb[0].mxu0
        %v9267 = vadd.f32 0.0, %v9266
        %v9268 = vpop.f32.mrb[0].mxu0
        %9269 = vmatprep.mubr.f32.mxu0 0.0
        %9270 = vmatmul.mubr.f32.gmra.mrb[0].mxu0 %v9100
        %v9271 = vpop.f32.mrb[0].mxu0
        %v9272 = vadd.f32 0.0, %v9271
        %v9273 = vpop.f32.mrb[0].mxu0
        %9274 = vmatprep.mubr.f32.mxu0 0.0
        %9275 = vmatmul.mubr.f32.gmra.mrb[0].mxu0 %v9103
        %v9276 = vpop.f32.mrb[0].mxu0
        %v9277 = vadd.f32 0.0, %v9276
        %v9278 = vpop.f32.mrb[0].mxu0
        %9279 = vmatprep.mubr.f32.mxu0 0.0
        %9280 = vmatmul.mubr.f32.gmra.mrb[0].mxu0 %v9106
        %v9281 = vpop.f32.mrb[0].mxu0
        %v9282 = vadd.f32 0.0, %v9281
        %v9283 = vpop.f32.mrb[0].mxu0
        %9284 = vmatprep.mubr.f32.mxu0 0.0
        %9285 = vmatmul.mubr.f32.gmra.mrb[0].mxu0 %v9109
        %v9286 = vpop.f32.mrb[0].mxu0
        %v9287 = vadd.f32 0.0, %v9286
        %v9288 = vpop.f32.mrb[0].mxu0
        %9289 = vmatprep.mubr.f32.mxu0 0.0
        %9290 = vmatmul.mubr.f32.gmra.mrb[0].mxu0 %v9112
        %v9291 = vpop.f32.mrb[0].mxu0
        %v9292 = vadd.f32 0.0, %v9291
        %v9293 = vpop.f32.mrb[0].mxu0
        %9294 = vmatprep.mubr.f32.mxu0 0.0
        %9295 = vmatmul.mubr.f32.gmra.mrb[0].mxu0 %v9115
        %v9296 = vpop.f32.mrb[0].mxu0
        %v9297 = vadd.f32 0.0, %v9296
        %v9298 = vpop.f32.mrb[0].mxu0
        %9299 = vmatprep.mubr.f32.mxu0 0.0
        %9300 = vmatmul.mubr.f32.gmra.mrb[0].mxu0 %v9118
        %v9301 = vpop.f32.mrb[0].mxu0
        %v9302 = vadd.f32 0.0, %v9301
        %v9303 = vpop.f32.mrb[0].mxu0
        %9304 = vmatprep.mubr.f32.mxu0 0.0
        %9305 = vmatmul.mubr.f32.gmra.mrb[0].mxu0 %v9121
        %v9306 = vpop.f32.mrb[0].mxu0
        %v9307 = vadd.f32 0.0, %v9306
        %v9308 = vpop.f32.mrb[0].mxu0
        %9309 = vmatprep.mubr.f32.mxu0 0.0
        %9310 = vmatmul.mubr.f32.gmra.mrb[0].mxu0 %v9124
        %v9311 = vpop.f32.mrb[0].mxu0
        %v9312 = vadd.f32 0.0, %v9311
        %v9313 = vpop.f32.mrb[0].mxu0
        %9314 = vmatprep.mubr.f32.mxu0 0.0
        %9315 = vmatmul.mubr.f32.gmra.mrb[0].mxu0 %v9127
        %v9316 = vpop.f32.mrb[0].mxu0
        %v9317 = vadd.f32 0.0, %v9316
        %v9318 = vpop.f32.mrb[0].mxu0
        %9319 = vmatprep.mubr.f32.mxu0 0.0
        %9320 = vmatmul.mubr.f32.gmra.mrb[0].mxu0 %v9130
        %v9321 = vpop.f32.mrb[0].mxu0
        %v9322 = vadd.f32 0.0, %v9321
        %v9323 = vpop.f32.mrb[0].mxu0
        %9324 = vmatprep.mubr.f32.mxu0 0.0
        %9325 = vmatmul.mubr.f32.gmra.mrb[0].mxu0 %v9133
        %v9326 = vpop.f32.mrb[0].mxu0
        %v9327 = vadd.f32 0.0, %v9326
        %v9328 = vpop.f32.mrb[0].mxu0
        %9329 = vmatprep.mubr.f32.mxu0 0.0
        %9330 = vmatmul.mubr.f32.gmra.mrb[0].mxu0 %v9136
        %v9331 = vpop.f32.mrb[0].mxu0
        %v9332 = vadd.f32 0.0, %v9331
        %v9333 = vpop.f32.mrb[0].mxu0
        %9334 = vmatprep.mubr.f32.mxu0 0.0
        %9335 = vmatmul.mubr.f32.gmra.mrb[0].mxu0 %v9139
        %v9336 = vpop.f32.mrb[0].mxu0
        %v9337 = vadd.f32 0.0, %v9336
        %v9338 = vpop.f32.mrb[0].mxu0
        %9339 = vmatprep.mubr.f32.mxu0 0.0
        %9340 = vmatmul.mubr.f32.gmra.mrb[0].mxu0 %v9142
        %v9341 = vpop.f32.mrb[0].mxu0
        %v9342 = vadd.f32 0.0, %v9341
        %v9343 = vpop.f32.mrb[0].mxu0
        %9344 = vmatprep.mubr.f32.mxu0 0.0
        %9345 = vmatmul.mubr.f32.gmra.mrb[0].mxu0 %v9145
        %v9346 = vpop.f32.mrb[0].mxu0
        %v9347 = vadd.f32 0.0, %v9346
        %v9348 = vpop.f32.mrb[0].mxu0
        %9349 = vmatprep.mubr.f32.mxu0 0.0
        %9350 = vmatmul.mubr.f32.gmra.mrb[0].mxu0 %v9148
        %v9351 = vpop.f32.mrb[0].mxu0
        %v9352 = vadd.f32 0.0, %v9351
        %v9353 = vpop.f32.mrb[0].mxu0
        %9354 = vmatprep.mubr.f32.mxu0 0.0
        %9355 = vmatmul.mubr.f32.gmra.mrb[0].mxu0 %v9151
        %v9356 = vpop.f32.mrb[0].mxu0
        %v9357 = vadd.f32 0.0, %v9356
        %v9358 = vpop.f32.mrb[0].mxu0
        %9359 = vmatprep.mubr.f32.mxu0 0.0
        %9360 = vmatmul.mubr.f32.gmra.mrb[0].mxu0 %v9154
        %v9361 = vpop.f32.mrb[0].mxu0
        %v9362 = vadd.f32 0.0, %v9361
        %v9363 = vpop.f32.mrb[0].mxu0
        %9364 = vmatprep.mubr.f32.mxu0 0.0
        %9365 = vmatmul.mubr.f32.gmra.mrb[0].mxu0 %v9157
        %v9366 = vpop.f32.mrb[0].mxu0
        %v9367 = vadd.f32 0.0, %v9366
        %v9368 = vpop.f32.mrb[0].mxu0
        %9369 = vmatprep.mubr.f32.mxu0 0.0
        %9370 = vmatmul.mubr.f32.gmra.mrb[0].mxu0 %v9160
        %v9371 = vpop.f32.mrb[0].mxu0
        %v9372 = vadd.f32 0.0, %v9371
        %v9373 = vpop.f32.mrb[0].mxu0
        %9374 = vmatprep.mubr.f32.mxu0 0.0
        %9375 = vmatmul.mubr.f32.gmra.mrb[0].mxu0 %v9163
        %v9376 = vpop.f32.mrb[0].mxu0
        %v9377 = vadd.f32 0.0, %v9376
        %v9378 = vpop.f32.mrb[0].mxu0
        %9379 = vmatprep.mubr.f32.mxu0 0.0
        %9380 = vmatmul.mubr.f32.gmra.mrb[0].mxu0 %v9166
        %v9381 = vpop.f32.mrb[0].mxu0
        %v9382 = vadd.f32 0.0, %v9381
        %v9383 = vpop.f32.mrb[0].mxu0
        %9384 = vmatprep.mubr.f32.mxu0 0.0
        %9385 = vmatmul.mubr.f32.gmra.mrb[0].mxu0 %v9169
        %v9386 = vpop.f32.mrb[0].mxu0
        %v9387 = vadd.f32 0.0, %v9386
        %v9388 = vpop.f32.mrb[0].mxu0
        %9389 = vmatprep.mubr.f32.mxu0 0.0
        %9390 = vmatmul.mubr.f32.gmra.mrb[0].mxu0 %v9172
        %v9391 = vpop.f32.mrb[0].mxu0
        %v9392 = vadd.f32 0.0, %v9391
        %v9393 = vpop.f32.mrb[0].mxu0
        %9394 = vmatprep.mubr.f32.mxu0 0.0
        %9395 = vmatmul.mubr.f32.gmra.mrb[0].mxu0 %v9175
        %v9396 = vpop.f32.mrb[0].mxu0
        %v9397 = vadd.f32 0.0, %v9396
        %v9398 = vpop.f32.mrb[0].mxu0
        %9399 = vmatprep.mubr.f32.mxu0 0.0
        %9400 = vmatmul.mubr.f32.gmra.mrb[0].mxu0 %v9178
        %v9401 = vpop.f32.mrb[0].mxu0
        %v9402 = vadd.f32 0.0, %v9401
        %v9403 = vpop.f32.mrb[0].mxu0
        %9404 = vdwg.mxu0
        %v9405 = vadd.f32 %v9007, %v9247
        %v9406 = vadd.f32 %v9008, %v9252
        %v9407 = vadd.f32 %v9009, %v9257
        %v9408 = vadd.f32 %v9010, %v9262
        %v9409 = vadd.f32 %v9011, %v9267
        %v9410 = vadd.f32 %v9012, %v9272
        %v9411 = vadd.f32 %v9013, %v9277
        %v9412 = vadd.f32 %v9014, %v9282
        %v9413 = vadd.f32 %v9015, %v9287
        %v9414 = vadd.f32 %v9016, %v9292
        %v9415 = vadd.f32 %v9017, %v9297
        %v9416 = vadd.f32 %v9018, %v9302
        %v9417 = vadd.f32 %v9019, %v9307
        %v9418 = vadd.f32 %v9020, %v9312
        %v9419 = vadd.f32 %v9021, %v9317
        %v9420 = vadd.f32 %v9022, %v9322
        %v9421 = vadd.f32 %v9023, %v9327
        %v9422 = vadd.f32 %v9024, %v9332
        %v9423 = vadd.f32 %v9025, %v9337
        %v9424 = vadd.f32 %v9026, %v9342
        %v9425 = vadd.f32 %v9027, %v9347
        %v9426 = vadd.f32 %v9028, %v9352
        %v9427 = vadd.f32 %v9029, %v9357
        %v9428 = vadd.f32 %v9030, %v9362
        %v9429 = vadd.f32 %v9031, %v9367
        %v9430 = vadd.f32 %v9032, %v9372
        %v9431 = vadd.f32 %v9033, %v9377
        %v9432 = vadd.f32 %v9034, %v9382
        %v9433 = vadd.f32 %v9035, %v9387
        %v9434 = vadd.f32 %v9036, %v9392
        %v9435 = vadd.f32 %v9037, %v9397
        %v9436 = vadd.f32 %v9038, %v9402
        %v9437 = vld [vmem:[%s9] sm:$0x1]
        %v9439 = vlaneseq
        %v9440 = vshrl.u32 %v9439, 7
        %v9441 = vsub.s32 0, %v9440
        %v9442 = vrot.slane %v9437, %v9441
        %v9444 = vmul.f32 %v9405, %v9442
        %v9445 = vmul.f32 %v9406, %v9442
        %v9446 = vmul.f32 %v9407, %v9442
        %v9447 = vmul.f32 %v9408, %v9442
        %v9448 = vmul.f32 %v9409, %v9442
        %v9449 = vmul.f32 %v9410, %v9442
        %v9450 = vmul.f32 %v9411, %v9442
        %v9451 = vmul.f32 %v9412, %v9442
        %v9452 = vmul.f32 %v9413, %v9442
        %v9453 = vmul.f32 %v9414, %v9442
        %v9454 = vmul.f32 %v9415, %v9442
        %v9455 = vmul.f32 %v9416, %v9442
        %v9456 = vmul.f32 %v9417, %v9442
        %v9457 = vmul.f32 %v9418, %v9442
        %v9458 = vmul.f32 %v9419, %v9442
        %v9459 = vmul.f32 %v9420, %v9442
        %v9460 = vmul.f32 %v9421, %v9442
        %v9461 = vmul.f32 %v9422, %v9442
        %v9462 = vmul.f32 %v9423, %v9442
        %v9463 = vmul.f32 %v9424, %v9442
        %v9464 = vmul.f32 %v9425, %v9442
        %v9465 = vmul.f32 %v9426, %v9442
        %v9466 = vmul.f32 %v9427, %v9442
        %v9467 = vmul.f32 %v9428, %v9442
        %v9468 = vmul.f32 %v9429, %v9442
        %v9469 = vmul.f32 %v9430, %v9442
        %v9470 = vmul.f32 %v9431, %v9442
        %v9471 = vmul.f32 %v9432, %v9442
        %v9472 = vmul.f32 %v9433, %v9442
        %v9473 = vmul.f32 %v9434, %v9442
        %v9474 = vmul.f32 %v9435, %v9442
        %v9475 = vmul.f32 %v9436, %v9442
        %v9476 = vld [vmem:[%s10] sm:$0x1]
        %v9478 = vlaneseq
        %v9479 = vshrl.u32 %v9478, 7
        %v9480 = vsub.s32 0, %v9479
        %v9481 = vrot.slane %v9476, %v9480
        %v9483 = vadd.f32 %v9444, %v9481
        %v9484 = vadd.f32 %v9445, %v9481
        %v9485 = vadd.f32 %v9446, %v9481
        %v9486 = vadd.f32 %v9447, %v9481
        %v9487 = vadd.f32 %v9448, %v9481
        %v9488 = vadd.f32 %v9449, %v9481
        %v9489 = vadd.f32 %v9450, %v9481
        %v9490 = vadd.f32 %v9451, %v9481
        %v9491 = vadd.f32 %v9452, %v9481
        %v9492 = vadd.f32 %v9453, %v9481
        %v9493 = vadd.f32 %v9454, %v9481
        %v9494 = vadd.f32 %v9455, %v9481
        %v9495 = vadd.f32 %v9456, %v9481
        %v9496 = vadd.f32 %v9457, %v9481
        %v9497 = vadd.f32 %v9458, %v9481
        %v9498 = vadd.f32 %v9459, %v9481
        %v9499 = vadd.f32 %v9460, %v9481
        %v9500 = vadd.f32 %v9461, %v9481
        %v9501 = vadd.f32 %v9462, %v9481
        %v9502 = vadd.f32 %v9463, %v9481
        %v9503 = vadd.f32 %v9464, %v9481
        %v9504 = vadd.f32 %v9465, %v9481
        %v9505 = vadd.f32 %v9466, %v9481
        %v9506 = vadd.f32 %v9467, %v9481
        %v9507 = vadd.f32 %v9468, %v9481
        %v9508 = vadd.f32 %v9469, %v9481
        %v9509 = vadd.f32 %v9470, %v9481
        %v9510 = vadd.f32 %v9471, %v9481
        %v9511 = vadd.f32 %v9472, %v9481
        %v9512 = vadd.f32 %v9473, %v9481
        %v9513 = vadd.f32 %v9474, %v9481
        %v9514 = vadd.f32 %v9475, %v9481
        %v9515 = vmax.f32 %v9483, 0.0
        %v9516 = vmax.f32 %v9484, 0.0
        %v9517 = vmax.f32 %v9485, 0.0
        %v9518 = vmax.f32 %v9486, 0.0
        %v9519 = vmax.f32 %v9487, 0.0
        %v9520 = vmax.f32 %v9488, 0.0
        %v9521 = vmax.f32 %v9489, 0.0
        %v9522 = vmax.f32 %v9490, 0.0
        %v9523 = vmax.f32 %v9491, 0.0
        %v9524 = vmax.f32 %v9492, 0.0
        %v9525 = vmax.f32 %v9493, 0.0
        %v9526 = vmax.f32 %v9494, 0.0
        %v9527 = vmax.f32 %v9495, 0.0
        %v9528 = vmax.f32 %v9496, 0.0
        %v9529 = vmax.f32 %v9497, 0.0
        %v9530 = vmax.f32 %v9498, 0.0
        %v9531 = vmax.f32 %v9499, 0.0
        %v9532 = vmax.f32 %v9500, 0.0
        %v9533 = vmax.f32 %v9501, 0.0
        %v9534 = vmax.f32 %v9502, 0.0
        %v9535 = vmax.f32 %v9503, 0.0
        %v9536 = vmax.f32 %v9504, 0.0
        %v9537 = vmax.f32 %v9505, 0.0
        %v9538 = vmax.f32 %v9506, 0.0
        %v9539 = vmax.f32 %v9507, 0.0
        %v9540 = vmax.f32 %v9508, 0.0
        %v9541 = vmax.f32 %v9509, 0.0
        %v9542 = vmax.f32 %v9510, 0.0
        %v9543 = vmax.f32 %v9511, 0.0
        %v9544 = vmax.f32 %v9512, 0.0
        %v9545 = vmax.f32 %v9513, 0.0
        %v9546 = vmax.f32 %v9514, 0.0
        %9547 = vst.msk [vmem:[%s493] sm:$0xff] %vm2159, %v9515
        %9548 = vst.msk [vmem:[%s493 + $0x8] sm:$0xff] %vm2159, %v9516
        %9549 = vst.msk [vmem:[%s493 + $0x10] sm:$0xff] %vm2159, %v9517
        %9550 = vst.msk [vmem:[%s493 + $0x18] sm:$0xff] %vm2159, %v9518
        %9551 = vst.msk [vmem:[%s493 + $0x20] sm:$0xff] %vm2159, %v9519
        %9552 = vst.msk [vmem:[%s493 + $0x28] sm:$0xff] %vm2159, %v9520
        %9553 = vst.msk [vmem:[%s493 + $0x30] sm:$0xff] %vm2159, %v9521
        %9554 = vst.msk [vmem:[%s493 + $0x38] sm:$0xff] %vm2159, %v9522
        %9555 = vst.msk [vmem:[%s493 + $0x40] sm:$0xff] %vm2159, %v9523
        %9556 = vst.msk [vmem:[%s493 + $0x48] sm:$0xff] %vm2159, %v9524
        %9557 = vst.msk [vmem:[%s493 + $0x50] sm:$0xff] %vm2159, %v9525
        %9558 = vst.msk [vmem:[%s493 + $0x58] sm:$0xff] %vm2159, %v9526
        %9559 = vst.msk [vmem:[%s493 + $0x60] sm:$0xff] %vm2159, %v9527
        %9560 = vst.msk [vmem:[%s493 + $0x68] sm:$0xff] %vm2159, %v9528
        %9561 = vst.msk [vmem:[%s493 + $0x70] sm:$0xff] %vm2159, %v9529
        %9562 = vst.msk [vmem:[%s493 + $0x78] sm:$0xff] %vm2159, %v9530
        %9563 = vst.msk [vmem:[%s493 + $0x80] sm:$0xff] %vm2159, %v9531
        %9564 = vst.msk [vmem:[%s493 + $0x88] sm:$0xff] %vm2159, %v9532
        %9565 = vst.msk [vmem:[%s493 + $0x90] sm:$0xff] %vm2159, %v9533
        %9566 = vst.msk [vmem:[%s493 + $0x98] sm:$0xff] %vm2159, %v9534
        %9567 = vst.msk [vmem:[%s493 + $0xa0] sm:$0xff] %vm2159, %v9535
        %9568 = vst.msk [vmem:[%s493 + $0xa8] sm:$0xff] %vm2159, %v9536
        %9569 = vst.msk [vmem:[%s493 + $0xb0] sm:$0xff] %vm2159, %v9537
        %9570 = vst.msk [vmem:[%s493 + $0xb8] sm:$0xff] %vm2159, %v9538
        %9571 = vst.msk [vmem:[%s493 + $0xc0] sm:$0xff] %vm2159, %v9539
        %9572 = vst.msk [vmem:[%s493 + $0xc8] sm:$0xff] %vm2159, %v9540
        %9573 = vst.msk [vmem:[%s493 + $0xd0] sm:$0xff] %vm2159, %v9541
        %9574 = vst.msk [vmem:[%s493 + $0xd8] sm:$0xff] %vm2159, %v9542
        %9575 = vst.msk [vmem:[%s493 + $0xe0] sm:$0xff] %vm2159, %v9543
        %9576 = vst.msk [vmem:[%s493 + $0xe8] sm:$0xff] %vm2159, %v9544
        %9577 = vst.msk [vmem:[%s493 + $0xf0] sm:$0xff] %vm2159, %v9545
        %9578 = vst.msk [vmem:[%s493 + $0xf8] sm:$0xff] %vm2159, %v9546
        %v9579 = vld [vmem:[%s11] sm:$0x1]
        %v9581 = vlaneseq
        %v9582 = vshrl.u32 %v9581, 7
        %v9583 = vsub.s32 0, %v9582
        %v9584 = vrot.slane %v9579, %v9583
        %v9586 = vmul.f32 %v9515, %v9584
        %v9587 = vmul.f32 %v9516, %v9584
        %v9588 = vmul.f32 %v9517, %v9584
        %v9589 = vmul.f32 %v9518, %v9584
        %v9590 = vmul.f32 %v9519, %v9584
        %v9591 = vmul.f32 %v9520, %v9584
        %v9592 = vmul.f32 %v9521, %v9584
        %v9593 = vmul.f32 %v9522, %v9584
        %v9594 = vmul.f32 %v9523, %v9584
        %v9595 = vmul.f32 %v9524, %v9584
        %v9596 = vmul.f32 %v9525, %v9584
        %v9597 = vmul.f32 %v9526, %v9584
        %v9598 = vmul.f32 %v9527, %v9584
        %v9599 = vmul.f32 %v9528, %v9584
        %v9600 = vmul.f32 %v9529, %v9584
        %v9601 = vmul.f32 %v9530, %v9584
        %v9602 = vmul.f32 %v9531, %v9584
        %v9603 = vmul.f32 %v9532, %v9584
        %v9604 = vmul.f32 %v9533, %v9584
        %v9605 = vmul.f32 %v9534, %v9584
        %v9606 = vmul.f32 %v9535, %v9584
        %v9607 = vmul.f32 %v9536, %v9584
        %v9608 = vmul.f32 %v9537, %v9584
        %v9609 = vmul.f32 %v9538, %v9584
        %v9610 = vmul.f32 %v9539, %v9584
        %v9611 = vmul.f32 %v9540, %v9584
        %v9612 = vmul.f32 %v9541, %v9584
        %v9613 = vmul.f32 %v9542, %v9584
        %v9614 = vmul.f32 %v9543, %v9584
        %v9615 = vmul.f32 %v9544, %v9584
        %v9616 = vmul.f32 %v9545, %v9584
        %v9617 = vmul.f32 %v9546, %v9584
        %v9618 = vsel %vm2159, %v9586, 0.0
        %9619 = vadd.xlane.f32.xlu0 %v9618
        %v9620 = vpop.xlane.xlu0 %9619
        %v9621 = vsel %vm2159, %v9587, 0.0
        %9622 = vadd.xlane.f32.xlu0 %v9621
        %v9623 = vpop.xlane.xlu0 %9622
        %v9624 = vsel %vm2159, %v9588, 0.0
        %9625 = vadd.xlane.f32.xlu0 %v9624
        %v9626 = vpop.xlane.xlu0 %9625
        %v9627 = vsel %vm2159, %v9589, 0.0
        %9628 = vadd.xlane.f32.xlu0 %v9627
        %v9629 = vpop.xlane.xlu0 %9628
        %v9630 = vsel %vm2159, %v9590, 0.0
        %9631 = vadd.xlane.f32.xlu0 %v9630
        %v9632 = vpop.xlane.xlu0 %9631
        %v9633 = vsel %vm2159, %v9591, 0.0
        %9634 = vadd.xlane.f32.xlu0 %v9633
        %v9635 = vpop.xlane.xlu0 %9634
        %v9636 = vsel %vm2159, %v9592, 0.0
        %9637 = vadd.xlane.f32.xlu0 %v9636
        %v9638 = vpop.xlane.xlu0 %9637
        %v9639 = vsel %vm2159, %v9593, 0.0
        %9640 = vadd.xlane.f32.xlu0 %v9639
        %v9641 = vpop.xlane.xlu0 %9640
        %v9642 = vsel %vm2159, %v9594, 0.0
        %9643 = vadd.xlane.f32.xlu0 %v9642
        %v9644 = vpop.xlane.xlu0 %9643
        %v9645 = vsel %vm2159, %v9595, 0.0
        %9646 = vadd.xlane.f32.xlu0 %v9645
        %v9647 = vpop.xlane.xlu0 %9646
        %v9648 = vsel %vm2159, %v9596, 0.0
        %9649 = vadd.xlane.f32.xlu0 %v9648
        %v9650 = vpop.xlane.xlu0 %9649
        %v9651 = vsel %vm2159, %v9597, 0.0
        %9652 = vadd.xlane.f32.xlu0 %v9651
        %v9653 = vpop.xlane.xlu0 %9652
        %v9654 = vsel %vm2159, %v9598, 0.0
        %9655 = vadd.xlane.f32.xlu0 %v9654
        %v9656 = vpop.xlane.xlu0 %9655
        %v9657 = vsel %vm2159, %v9599, 0.0
        %9658 = vadd.xlane.f32.xlu0 %v9657
        %v9659 = vpop.xlane.xlu0 %9658
        %v9660 = vsel %vm2159, %v9600, 0.0
        %9661 = vadd.xlane.f32.xlu0 %v9660
        %v9662 = vpop.xlane.xlu0 %9661
        %v9663 = vsel %vm2159, %v9601, 0.0
        %9664 = vadd.xlane.f32.xlu0 %v9663
        %v9665 = vpop.xlane.xlu0 %9664
        %v9666 = vsel %vm2159, %v9602, 0.0
        %9667 = vadd.xlane.f32.xlu0 %v9666
        %v9668 = vpop.xlane.xlu0 %9667
        %v9669 = vsel %vm2159, %v9603, 0.0
        %9670 = vadd.xlane.f32.xlu0 %v9669
        %v9671 = vpop.xlane.xlu0 %9670
        %v9672 = vsel %vm2159, %v9604, 0.0
        %9673 = vadd.xlane.f32.xlu0 %v9672
        %v9674 = vpop.xlane.xlu0 %9673
        %v9675 = vsel %vm2159, %v9605, 0.0
        %9676 = vadd.xlane.f32.xlu0 %v9675
        %v9677 = vpop.xlane.xlu0 %9676
        %v9678 = vsel %vm2159, %v9606, 0.0
        %9679 = vadd.xlane.f32.xlu0 %v9678
        %v9680 = vpop.xlane.xlu0 %9679
        %v9681 = vsel %vm2159, %v9607, 0.0
        %9682 = vadd.xlane.f32.xlu0 %v9681
        %v9683 = vpop.xlane.xlu0 %9682
        %v9684 = vsel %vm2159, %v9608, 0.0
        %9685 = vadd.xlane.f32.xlu0 %v9684
        %v9686 = vpop.xlane.xlu0 %9685
        %v9687 = vsel %vm2159, %v9609, 0.0
        %9688 = vadd.xlane.f32.xlu0 %v9687
        %v9689 = vpop.xlane.xlu0 %9688
        %v9690 = vsel %vm2159, %v9610, 0.0
        %9691 = vadd.xlane.f32.xlu0 %v9690
        %v9692 = vpop.xlane.xlu0 %9691
        %v9693 = vsel %vm2159, %v9611, 0.0
        %9694 = vadd.xlane.f32.xlu0 %v9693
        %v9695 = vpop.xlane.xlu0 %9694
        %v9696 = vsel %vm2159, %v9612, 0.0
        %9697 = vadd.xlane.f32.xlu0 %v9696
        %v9698 = vpop.xlane.xlu0 %9697
        %v9699 = vsel %vm2159, %v9613, 0.0
        %9700 = vadd.xlane.f32.xlu0 %v9699
        %v9701 = vpop.xlane.xlu0 %9700
        %v9702 = vsel %vm2159, %v9614, 0.0
        %9703 = vadd.xlane.f32.xlu0 %v9702
        %v9704 = vpop.xlane.xlu0 %9703
        %v9705 = vsel %vm2159, %v9615, 0.0
        %9706 = vadd.xlane.f32.xlu0 %v9705
        %v9707 = vpop.xlane.xlu0 %9706
        %v9708 = vsel %vm2159, %v9616, 0.0
        %9709 = vadd.xlane.f32.xlu0 %v9708
        %v9710 = vpop.xlane.xlu0 %9709
        %v9711 = vsel %vm2159, %v9617, 0.0
        %9712 = vadd.xlane.f32.xlu0 %v9711
        %v9713 = vpop.xlane.xlu0 %9712
        %v9714 = vld [vmem:[#allocation4] sm:$0x1]
        %v9716 = vlaneseq
        %v9717 = vshrl.u32 %v9716, 7
        %v9718 = vsub.s32 0, %v9717
        %v9719 = vrot.slane %v9714, %v9718
        %v9721 = vadd.f32 %v9620, %v9719
        %v9722 = vadd.f32 %v9623, %v9719
        %v9723 = vadd.f32 %v9626, %v9719
        %v9724 = vadd.f32 %v9629, %v9719
        %v9725 = vadd.f32 %v9632, %v9719
        %v9726 = vadd.f32 %v9635, %v9719
        %v9727 = vadd.f32 %v9638, %v9719
        %v9728 = vadd.f32 %v9641, %v9719
        %v9729 = vadd.f32 %v9644, %v9719
        %v9730 = vadd.f32 %v9647, %v9719
        %v9731 = vadd.f32 %v9650, %v9719
        %v9732 = vadd.f32 %v9653, %v9719
        %v9733 = vadd.f32 %v9656, %v9719
        %v9734 = vadd.f32 %v9659, %v9719
        %v9735 = vadd.f32 %v9662, %v9719
        %v9736 = vadd.f32 %v9665, %v9719
        %v9737 = vadd.f32 %v9668, %v9719
        %v9738 = vadd.f32 %v9671, %v9719
        %v9739 = vadd.f32 %v9674, %v9719
        %v9740 = vadd.f32 %v9677, %v9719
        %v9741 = vadd.f32 %v9680, %v9719
        %v9742 = vadd.f32 %v9683, %v9719
        %v9743 = vadd.f32 %v9686, %v9719
        %v9744 = vadd.f32 %v9689, %v9719
        %v9745 = vadd.f32 %v9692, %v9719
        %v9746 = vadd.f32 %v9695, %v9719
        %v9747 = vadd.f32 %v9698, %v9719
        %v9748 = vadd.f32 %v9701, %v9719
        %v9749 = vadd.f32 %v9704, %v9719
        %v9750 = vadd.f32 %v9707, %v9719
        %v9751 = vadd.f32 %v9710, %v9719
        %v9752 = vadd.f32 %v9713, %v9719
        %v9753 = vsub.f32 0.0, %v9721
        %v9754 = vsub.f32 0.0, %v9722
        %v9755 = vsub.f32 0.0, %v9723
        %v9756 = vsub.f32 0.0, %v9724
        %v9757 = vsub.f32 0.0, %v9725
        %v9758 = vsub.f32 0.0, %v9726
        %v9759 = vsub.f32 0.0, %v9727
        %v9760 = vsub.f32 0.0, %v9728
        %v9761 = vsub.f32 0.0, %v9729
        %v9762 = vsub.f32 0.0, %v9730
        %v9763 = vsub.f32 0.0, %v9731
        %v9764 = vsub.f32 0.0, %v9732
        %v9765 = vsub.f32 0.0, %v9733
        %v9766 = vsub.f32 0.0, %v9734
        %v9767 = vsub.f32 0.0, %v9735
        %v9768 = vsub.f32 0.0, %v9736
        %v9769 = vsub.f32 0.0, %v9737
        %v9770 = vsub.f32 0.0, %v9738
        %v9771 = vsub.f32 0.0, %v9739
        %v9772 = vsub.f32 0.0, %v9740
        %v9773 = vsub.f32 0.0, %v9741
        %v9774 = vsub.f32 0.0, %v9742
        %v9775 = vsub.f32 0.0, %v9743
        %v9776 = vsub.f32 0.0, %v9744
        %v9777 = vsub.f32 0.0, %v9745
        %v9778 = vsub.f32 0.0, %v9746
        %v9779 = vsub.f32 0.0, %v9747
        %v9780 = vsub.f32 0.0, %v9748
        %v9781 = vsub.f32 0.0, %v9749
        %v9782 = vsub.f32 0.0, %v9750
        %v9783 = vsub.f32 0.0, %v9751
        %v9784 = vsub.f32 0.0, %v9752
        %v9785 = vmul.f32 %v9753, 1.442695
        %v9786 = vpow.pop %v9785
        %v9787 = vmul.f32 %v9754, 1.442695
        %v9788 = vpow.pop %v9787
        %v9789 = vmul.f32 %v9755, 1.442695
        %v9790 = vpow.pop %v9789
        %v9791 = vmul.f32 %v9756, 1.442695
        %v9792 = vpow.pop %v9791
        %v9793 = vmul.f32 %v9757, 1.442695
        %v9794 = vpow.pop %v9793
        %v9795 = vmul.f32 %v9758, 1.442695
        %v9796 = vpow.pop %v9795
        %v9797 = vmul.f32 %v9759, 1.442695
        %v9798 = vpow.pop %v9797
        %v9799 = vmul.f32 %v9760, 1.442695
        %v9800 = vpow.pop %v9799
        %v9801 = vmul.f32 %v9761, 1.442695
        %v9802 = vpow.pop %v9801
        %v9803 = vmul.f32 %v9762, 1.442695
        %v9804 = vpow.pop %v9803
        %v9805 = vmul.f32 %v9763, 1.442695
        %v9806 = vpow.pop %v9805
        %v9807 = vmul.f32 %v9764, 1.442695
        %v9808 = vpow.pop %v9807
        %v9809 = vmul.f32 %v9765, 1.442695
        %v9810 = vpow.pop %v9809
        %v9811 = vmul.f32 %v9766, 1.442695
        %v9812 = vpow.pop %v9811
        %v9813 = vmul.f32 %v9767, 1.442695
        %v9814 = vpow.pop %v9813
        %v9815 = vmul.f32 %v9768, 1.442695
        %v9816 = vpow.pop %v9815
        %v9817 = vmul.f32 %v9769, 1.442695
        %v9818 = vpow.pop %v9817
        %v9819 = vmul.f32 %v9770, 1.442695
        %v9820 = vpow.pop %v9819
        %v9821 = vmul.f32 %v9771, 1.442695
        %v9822 = vpow.pop %v9821
        %v9823 = vmul.f32 %v9772, 1.442695
        %v9824 = vpow.pop %v9823
        %v9825 = vmul.f32 %v9773, 1.442695
        %v9826 = vpow.pop %v9825
        %v9827 = vmul.f32 %v9774, 1.442695
        %v9828 = vpow.pop %v9827
        %v9829 = vmul.f32 %v9775, 1.442695
        %v9830 = vpow.pop %v9829
        %v9831 = vmul.f32 %v9776, 1.442695
        %v9832 = vpow.pop %v9831
        %v9833 = vmul.f32 %v9777, 1.442695
        %v9834 = vpow.pop %v9833
        %v9835 = vmul.f32 %v9778, 1.442695
        %v9836 = vpow.pop %v9835
        %v9837 = vmul.f32 %v9779, 1.442695
        %v9838 = vpow.pop %v9837
        %v9839 = vmul.f32 %v9780, 1.442695
        %v9840 = vpow.pop %v9839
        %v9841 = vmul.f32 %v9781, 1.442695
        %v9842 = vpow.pop %v9841
        %v9843 = vmul.f32 %v9782, 1.442695
        %v9844 = vpow.pop %v9843
        %v9845 = vmul.f32 %v9783, 1.442695
        %v9846 = vpow.pop %v9845
        %v9847 = vmul.f32 %v9784, 1.442695
        %v9848 = vpow.pop %v9847
        %v9849 = vadd.f32 %v9786, 1.0
        %v9850 = vadd.f32 %v9788, 1.0
        %v9851 = vadd.f32 %v9790, 1.0
        %v9852 = vadd.f32 %v9792, 1.0
        %v9853 = vadd.f32 %v9794, 1.0
        %v9854 = vadd.f32 %v9796, 1.0
        %v9855 = vadd.f32 %v9798, 1.0
        %v9856 = vadd.f32 %v9800, 1.0
        %v9857 = vadd.f32 %v9802, 1.0
        %v9858 = vadd.f32 %v9804, 1.0
        %v9859 = vadd.f32 %v9806, 1.0
        %v9860 = vadd.f32 %v9808, 1.0
        %v9861 = vadd.f32 %v9810, 1.0
        %v9862 = vadd.f32 %v9812, 1.0
        %v9863 = vadd.f32 %v9814, 1.0
        %v9864 = vadd.f32 %v9816, 1.0
        %v9865 = vadd.f32 %v9818, 1.0
        %v9866 = vadd.f32 %v9820, 1.0
        %v9867 = vadd.f32 %v9822, 1.0
        %v9868 = vadd.f32 %v9824, 1.0
        %v9869 = vadd.f32 %v9826, 1.0
        %v9870 = vadd.f32 %v9828, 1.0
        %v9871 = vadd.f32 %v9830, 1.0
        %v9872 = vadd.f32 %v9832, 1.0
        %v9873 = vadd.f32 %v9834, 1.0
        %v9874 = vadd.f32 %v9836, 1.0
        %v9875 = vadd.f32 %v9838, 1.0
        %v9876 = vadd.f32 %v9840, 1.0
        %v9877 = vadd.f32 %v9842, 1.0
        %v9878 = vadd.f32 %v9844, 1.0
        %v9879 = vadd.f32 %v9846, 1.0
        %v9880 = vadd.f32 %v9848, 1.0
        %v9881 = vrcp.pop %v9849
        %v9882 = vmul.f32 1.0, %v9881
        %v9883 = vrcp.pop %v9850
        %v9884 = vmul.f32 1.0, %v9883
        %v9885 = vrcp.pop %v9851
        %v9886 = vmul.f32 1.0, %v9885
        %v9887 = vrcp.pop %v9852
        %v9888 = vmul.f32 1.0, %v9887
        %v9889 = vrcp.pop %v9853
        %v9890 = vmul.f32 1.0, %v9889
        %v9891 = vrcp.pop %v9854
        %v9892 = vmul.f32 1.0, %v9891
        %v9893 = vrcp.pop %v9855
        %v9894 = vmul.f32 1.0, %v9893
        %v9895 = vrcp.pop %v9856
        %v9896 = vmul.f32 1.0, %v9895
        %v9897 = vrcp.pop %v9857
        %v9898 = vmul.f32 1.0, %v9897
        %v9899 = vrcp.pop %v9858
        %v9900 = vmul.f32 1.0, %v9899
        %v9901 = vrcp.pop %v9859
        %v9902 = vmul.f32 1.0, %v9901
        %v9903 = vrcp.pop %v9860
        %v9904 = vmul.f32 1.0, %v9903
        %v9905 = vrcp.pop %v9861
        %v9906 = vmul.f32 1.0, %v9905
        %v9907 = vrcp.pop %v9862
        %v9908 = vmul.f32 1.0, %v9907
        %v9909 = vrcp.pop %v9863
        %v9910 = vmul.f32 1.0, %v9909
        %v9911 = vrcp.pop %v9864
        %v9912 = vmul.f32 1.0, %v9911
        %v9913 = vrcp.pop %v9865
        %v9914 = vmul.f32 1.0, %v9913
        %v9915 = vrcp.pop %v9866
        %v9916 = vmul.f32 1.0, %v9915
        %v9917 = vrcp.pop %v9867
        %v9918 = vmul.f32 1.0, %v9917
        %v9919 = vrcp.pop %v9868
        %v9920 = vmul.f32 1.0, %v9919
        %v9921 = vrcp.pop %v9869
        %v9922 = vmul.f32 1.0, %v9921
        %v9923 = vrcp.pop %v9870
        %v9924 = vmul.f32 1.0, %v9923
        %v9925 = vrcp.pop %v9871
        %v9926 = vmul.f32 1.0, %v9925
        %v9927 = vrcp.pop %v9872
        %v9928 = vmul.f32 1.0, %v9927
        %v9929 = vrcp.pop %v9873
        %v9930 = vmul.f32 1.0, %v9929
        %v9931 = vrcp.pop %v9874
        %v9932 = vmul.f32 1.0, %v9931
        %v9933 = vrcp.pop %v9875
        %v9934 = vmul.f32 1.0, %v9933
        %v9935 = vrcp.pop %v9876
        %v9936 = vmul.f32 1.0, %v9935
        %v9937 = vrcp.pop %v9877
        %v9938 = vmul.f32 1.0, %v9937
        %v9939 = vrcp.pop %v9878
        %v9940 = vmul.f32 1.0, %v9939
        %v9941 = vrcp.pop %v9879
        %v9942 = vmul.f32 1.0, %v9941
        %v9943 = vrcp.pop %v9880
        %v9944 = vmul.f32 1.0, %v9943
        %vm9945 = vcmask 7168
        %9946 = vst.msk [vmem:[%s520] sm:$0xff] %vm9945, %v9882
        %9947 = vst.msk [vmem:[%s520 + $0x8] sm:$0xff] %vm9945, %v9884
        %9948 = vst.msk [vmem:[%s520 + $0x10] sm:$0xff] %vm9945, %v9886
        %9949 = vst.msk [vmem:[%s520 + $0x18] sm:$0xff] %vm9945, %v9888
        %9950 = vst.msk [vmem:[%s520 + $0x20] sm:$0xff] %vm9945, %v9890
        %9951 = vst.msk [vmem:[%s520 + $0x28] sm:$0xff] %vm9945, %v9892
        %9952 = vst.msk [vmem:[%s520 + $0x30] sm:$0xff] %vm9945, %v9894
        %9953 = vst.msk [vmem:[%s520 + $0x38] sm:$0xff] %vm9945, %v9896
        %9954 = vst.msk [vmem:[%s520 + $0x40] sm:$0xff] %vm9945, %v9898
        %9955 = vst.msk [vmem:[%s520 + $0x48] sm:$0xff] %vm9945, %v9900
        %9956 = vst.msk [vmem:[%s520 + $0x50] sm:$0xff] %vm9945, %v9902
        %9957 = vst.msk [vmem:[%s520 + $0x58] sm:$0xff] %vm9945, %v9904
        %9958 = vst.msk [vmem:[%s520 + $0x60] sm:$0xff] %vm9945, %v9906
        %9959 = vst.msk [vmem:[%s520 + $0x68] sm:$0xff] %vm9945, %v9908
        %9960 = vst.msk [vmem:[%s520 + $0x70] sm:$0xff] %vm9945, %v9910
        %9961 = vst.msk [vmem:[%s520 + $0x78] sm:$0xff] %vm9945, %v9912
        %9962 = vst.msk [vmem:[%s520 + $0x80] sm:$0xff] %vm9945, %v9914
        %9963 = vst.msk [vmem:[%s520 + $0x88] sm:$0xff] %vm9945, %v9916
        %9964 = vst.msk [vmem:[%s520 + $0x90] sm:$0xff] %vm9945, %v9918
        %9965 = vst.msk [vmem:[%s520 + $0x98] sm:$0xff] %vm9945, %v9920
        %9966 = vst.msk [vmem:[%s520 + $0xa0] sm:$0xff] %vm9945, %v9922
        %9967 = vst.msk [vmem:[%s520 + $0xa8] sm:$0xff] %vm9945, %v9924
        %9968 = vst.msk [vmem:[%s520 + $0xb0] sm:$0xff] %vm9945, %v9926
        %9969 = vst.msk [vmem:[%s520 + $0xb8] sm:$0xff] %vm9945, %v9928
        %9970 = vst.msk [vmem:[%s520 + $0xc0] sm:$0xff] %vm9945, %v9930
        %9971 = vst.msk [vmem:[%s520 + $0xc8] sm:$0xff] %vm9945, %v9932
        %9972 = vst.msk [vmem:[%s520 + $0xd0] sm:$0xff] %vm9945, %v9934
        %9973 = vst.msk [vmem:[%s520 + $0xd8] sm:$0xff] %vm9945, %v9936
        %9974 = vst.msk [vmem:[%s520 + $0xe0] sm:$0xff] %vm9945, %v9938
        %9975 = vst.msk [vmem:[%s520 + $0xe8] sm:$0xff] %vm9945, %v9940
        %9976 = vst.msk [vmem:[%s520 + $0xf0] sm:$0xff] %vm9945, %v9942
        %9977 = vst.msk [vmem:[%s520 + $0xf8] sm:$0xff] %vm9945, %v9944
        %s9978 = sand.u32 %s327, 1
        %s9979 = scalar_lea.sflag [#allocation6], %s9978
        %s9980 = sand.u32 %s327, 1
        %s9981 = smul.addr %s9980, 256
        %s9982 = scalar_lea.vmem [#allocation5], %s9981
        %p9983 = scmp.lt.s32.totalorder %s31, 1
        %s9984 = scalar_select %p9983, %s31, 1
        %s9985 = smul.addr %s9984, 32
        %s9986 = smul.addr %s9985, 8
        %s9987 = scalar_lea.vmem %s14, %s9986
        // Predicated region
        $region73: #{decoder_block_forward.1} parent=71 // pred_check
          %p9988 = pneg %p337
        $region74: #{decoder_block_forward.1} parent=71 // pred_check_branch
          %9990 = sbr.rel (%p9988) target = $region76
        $region75: #{decoder_block_forward.1} parent=71 // pred_region
          %s9992 = ssub.s32 4096, 4096
          %9993 = vsyncadd %s9979, %s9992
          %s9994 = smul.addr %s31, 32
          %s9995 = smul.addr %s9994, 128
          %s9996 = scalar_lea.hbm %s13, %s9995
          %s9997 = sshll.u32 %s9982, 4
          %s9998 = int_to_ptr.vmem [resolvable:$true] %s9997
          %10003 = dma.vmem_to_hbm [thread:$0]  %s9998, 4096, %s9996, %s9979, 128, 128, 8
        $region76: #{decoder_block_forward.1} parent=71 // pred_fallthru
          _
        // Predicated region
        $region77: #{decoder_block_forward.1} parent=71 // pred_check
          %p10004 = pneg %p363
        $region78: #{decoder_block_forward.1} parent=71 // pred_check_branch
          %10006 = sbr.rel (%p10004) target = $region80
        $region79: #{decoder_block_forward.1} parent=71 // pred_region
          _
        $region80: #{decoder_block_forward.1} parent=71 // pred_fallthru
          _
      $region72: #{decoder_block_forward.1} parent=5 // pred_fallthru
        _
      %p10007 = scmp.le.s32.totalorder 2, %s26
      // Predicated region
      $region81: #{decoder_block_forward.1} parent=5 // pred_check
        %p10008 = pneg %p10007
      $region82: #{decoder_block_forward.1} parent=5 // pred_check_branch
        %10010 = sbr.rel (%p10008) target = $region84
      $region83: #{decoder_block_forward.1} parent=5 // pred_region
        %s10011 = ssub.s32 %s26, 2
        // Predicated region
        $region85: #{decoder_block_forward.1} parent=83 // pred_check
          %p10012 = pneg %p343
        $region86: #{decoder_block_forward.1} parent=83 // pred_check_branch
          %10014 = sbr.rel (%p10012) target = $region88
        $region87: #{decoder_block_forward.1} parent=83 // pred_region
          %s10015 = sand.u32 %s328, 1
          %s10016 = scalar_lea.sflag [#allocation6], %s10015
          %s10017 = sand.u32 %s328, 1
          %s10018 = smul.addr %s10017, 256
          %s10019 = scalar_lea.vmem [#allocation5], %s10018
          %10020 = dma.done %s10016, 4096
        $region88: #{decoder_block_forward.1} parent=83 // pred_fallthru
          _
        // Predicated region
        $region89: #{decoder_block_forward.1} parent=83 // pred_check
          %p10021 = pneg %p369
        $region90: #{decoder_block_forward.1} parent=83 // pred_check_branch
          %10023 = sbr.rel (%p10021) target = $region92
        $region91: #{decoder_block_forward.1} parent=83 // pred_region
          %p10024 = scmp.lt.s32.totalorder %s32, 1
          %s10025 = scalar_select %p10024, %s32, 1
          %s10026 = smul.addr %s10025, 32
          %s10027 = smul.addr %s10026, 8
          %s10028 = scalar_lea.vmem %s14, %s10027
        $region92: #{decoder_block_forward.1} parent=83 // pred_fallthru
          _
      $region84: #{decoder_block_forward.1} parent=5 // pred_fallthru
        _
    $region6: #{decoder_block_forward.1} parent=1 // loop_footer
      %s30 = sadd.s32 1, %s26
    $region7: #{decoder_block_forward.1} parent=1 // loop_footer_branch
      %25 = sbr.rel target = $region3
    $region8: #{decoder_block_forward.1} parent=1 // loop_exit
      _
    %10029 = vsyncpa [#allocation6], 1
    %s10030 = scalar_lea.sflag [#allocation6], 1
    %10031 = vsyncpa %s10030, 1

</llo_original>
